<compile_context>
chip_gen: v7x
topology: tpu7x:2x2x1
jax: 0.10.0
libtpu: 0.0.40
codegen_flags: <defaults>
</compile_context>

<pallas_src>
import functools

import numpy as np
import jax
import jax.numpy as jnp
from jax import lax
from jax.experimental import pallas as pl
from jax.experimental.pallas import tpu as pltpu


def _elu(x):
    # ELU(alpha=1): x if x > 0 else exp(x) - 1   (clamp arg of exp for safety)
    return jnp.where(x > 0, x, jnp.exp(jnp.minimum(x, 0.0)) - 1.0)


# ----------------------------------------------------------------------------
# Kernel 1: time-tiled, doc-batched 2-layer LSTM.
#   grid = (num_chunks,)  ("arbitrary": sequential recurrence)
#   x_tm is packed time-major: row (t*d_pad + d) = sentence t of doc d.
#   Weights use a 128-lane-per-gate layout: columns [k*HP : k*HP+H] of gate k
#   are real, the rest zero; h/c carries are (d_pad, HP).
#   Emits final cell states of both layers into lane-aligned halves of a
#   (d_pad, 2*HP) output, matching
#     self.rnn_text_representation(sentence_vector.unsqueeze(0))[1][1].reshape(-1)
# ----------------------------------------------------------------------------
def lstm_chunk_kernel(lens_ref, x_ref, wih0_ref, whh0_ref, b0_ref,
                      wih1_ref, whh1_ref, b1_ref, out_ref,
                      gx0_ref, h0_ref, c0_ref, h1_ref, c1_ref,
                      *, hidden_p, d_pad, t_tile):
    HP = hidden_p
    c = pl.program_id(0)
    n_chunks = pl.num_programs(0)

    # Hoisted per-chunk layer-0 input projection: one (t_tile*d_pad, H)x(H,4HP)
    # MXU matmul instead of a tiny matmul per timestep.
    gx0_ref[...] = (jnp.dot(x_ref[...], wih0_ref[...],
                            preferred_element_type=jnp.float32) + b0_ref[...])

    @pl.when(c == 0)
    def _():
        z = jnp.zeros((d_pad, HP), jnp.float32)
        h0_ref[...] = z
        c0_ref[...] = z
        h1_ref[...] = z
        c1_ref[...] = z

    lens = lens_ref[...]                 # (d_pad, 1) int32 per-doc lengths
    whh0 = whh0_ref[...]
    wih1 = wih1_ref[...]
    whh1 = whh1_ref[...]
    b1 = b1_ref[...]

    def sigmoid(x):
        # EUP-only sigmoid (no VPU divide on the serial critical path).
        return 0.5 * jnp.tanh(0.5 * x) + 0.5

    def gates(g, c_prev):
        # 128-lane-aligned gate blocks: whole-vreg slices, no lane shuffles.
        i = sigmoid(g[:, 0 * HP:1 * HP])
        f = sigmoid(g[:, 1 * HP:2 * HP])
        gg = jnp.tanh(g[:, 2 * HP:3 * HP])
        o = sigmoid(g[:, 3 * HP:4 * HP])
        c_new = f * c_prev + i * gg
        return o * jnp.tanh(c_new), c_new

    base = c * t_tile

    def step(j, carry):
        h0, c0_, h1, c1_ = carry
        t = base + j
        # --- layer-1 for timestep t-1 (reads h0(t-1) = incoming carry) ------
        # Independent of layer-0 below: both chains only consume h0(t-1), so
        # the scheduler can overlap the two matmul+EUP chains (layer skew).
        g1 = (jnp.dot(h0, wih1, preferred_element_type=jnp.float32)
              + jnp.dot(h1, whh1, preferred_element_type=jnp.float32) + b1)
        h1n, c1n = gates(g1, c1_)
        valid1 = jnp.logical_and(t >= 1, (t - 1) < lens)   # (d_pad, 1)
        # --- layer-0 for timestep t -----------------------------------------
        row = pl.multiple_of(j * d_pad, d_pad)
        g0 = gx0_ref[pl.ds(row, d_pad), :] + jnp.dot(
            h0, whh0, preferred_element_type=jnp.float32)
        h0n, c0n = gates(g0, c0_)
        valid0 = t < lens                                   # (d_pad, 1)
        return (jnp.where(valid0, h0n, h0), jnp.where(valid0, c0n, c0_),
                jnp.where(valid1, h1n, h1), jnp.where(valid1, c1n, c1_))

    carry0 = (h0_ref[...], c0_ref[...], h1_ref[...], c1_ref[...])
    h0, c0, h1, c1 = lax.fori_loop(0, t_tile, step, carry0,
                                   unroll=bool(t_tile <= 16))

    # Persist carries for the next time chunk.
    h0_ref[...] = h0
    c0_ref[...] = c0
    h1_ref[...] = h1
    c1_ref[...] = c1

    # Lane-aligned halves, full-width stores (no concat).
    out_ref[:, 0:HP] = c0
    out_ref[:, HP:2 * HP] = c1

    @pl.when(c == n_chunks - 1)
    def _():
        # Flush the skewed layer-1 for the final timestep (only docs whose
        # length equals the padded total still need it; others are masked).
        t_last = n_chunks * t_tile - 1
        g1 = (jnp.dot(h0, wih1, preferred_element_type=jnp.float32)
              + jnp.dot(h1, whh1, preferred_element_type=jnp.float32) + b1)
        _, c1f = gates(g1, c1)
        out_ref[:, HP:2 * HP] = jnp.where(t_last < lens, c1f, c1)


def lstm_doc_cell_states(x_tm, lens2d, wih0_p, whh0_p, b0_p, wih1_p, whh1_p,
                         b1_p, *, hidden, hidden_p, d_pad, t_tile, num_chunks):
    H, HP = hidden, hidden_p
    kernel = functools.partial(lstm_chunk_kernel, hidden_p=HP, d_pad=d_pad,
                               t_tile=t_tile)

    # Explicit scoped-VMEM budget (defaults: 16 MiB v5e / 32 MiB v6e,v7x).
    f32 = 4
    x_blk = t_tile * d_pad * H * f32
    gx0_b = t_tile * d_pad * 4 * HP * f32
    wts_b = (H * 4 * HP + 3 * HP * 4 * HP + 2 * 4 * HP + d_pad) * f32
    carry_b = 4 * d_pad * HP * f32
    out_b = d_pad * 2 * HP * f32
    total = 2 * (x_blk + wts_b + out_b) + gx0_b + carry_b   # 2x: double-buffer
    vmem_limit = min(64 << 20, max(int(1.5 * total), 16 << 20))

    return pl.pallas_call(
        kernel,
        out_shape=jax.ShapeDtypeStruct((d_pad, 2 * HP), jnp.float32),
        grid_spec=pltpu.PrefetchScalarGridSpec(
            num_scalar_prefetch=0,
            grid=(num_chunks,),
            in_specs=[
                pl.BlockSpec((d_pad, 1), lambda c: (0, 0)),          # lens
                pl.BlockSpec((t_tile * d_pad, H), lambda c: (c, 0)),  # x chunk
                pl.BlockSpec((H, 4 * HP), lambda c: (0, 0)),          # W_ih0
                pl.BlockSpec((HP, 4 * HP), lambda c: (0, 0)),         # W_hh0
                pl.BlockSpec((1, 4 * HP), lambda c: (0, 0)),          # b0
                pl.BlockSpec((HP, 4 * HP), lambda c: (0, 0)),         # W_ih1
                pl.BlockSpec((HP, 4 * HP), lambda c: (0, 0)),         # W_hh1
                pl.BlockSpec((1, 4 * HP), lambda c: (0, 0)),          # b1
            ],
            out_specs=pl.BlockSpec((d_pad, 2 * HP), lambda c: (0, 0)),
            scratch_shapes=[
                pltpu.VMEM((t_tile * d_pad, 4 * HP), jnp.float32),    # gx0
                pltpu.VMEM((d_pad, HP), jnp.float32),                 # h0
                pltpu.VMEM((d_pad, HP), jnp.float32),                 # c0
                pltpu.VMEM((d_pad, HP), jnp.float32),                 # h1
                pltpu.VMEM((d_pad, HP), jnp.float32),                 # c1
            ]),
        compiler_params=pltpu.CompilerParams(
            dimension_semantics=("arbitrary",),
            vmem_limit_bytes=vmem_limit),
        # TODO(synk): optional bf16 cast of MXU operands (x/W/h) for v6e/v7x;
        # kept f32 here so the 1e-4 check against the reference holds.
    )(lens2d, x_tm, wih0_p, whh0_p, b0_p, wih1_p, whh1_p, b1_p)


# ----------------------------------------------------------------------------
# Kernel 2: classifier head, row-tiled.
#   Linear(3H, 64) -> ELU -> Linear(64, 2) -> ELU   (dropout = identity, eval)
# The (N, 3H) concat is fused away by splitting W1 into sent / text halves;
# the per-row doc cell state is gathered INSIDE the kernel from the tiny
# whole-resident doc_c table via a one_hot(doc_id) @ doc_c MXU matmul, so no
# (N, 2H) text array ever touches HBM.  Hidden/output widths are zero-padded
# to 128 lanes for lane-dense stores.
# ----------------------------------------------------------------------------
def classifier_kernel(s_ref, ids_ref, docc_ref, w1s_ref, w1t_ref, b1_ref,
                      w2_ref, b2_ref, o_ref):
    tm = s_ref.shape[0]
    d_pad = docc_ref.shape[0]
    onehot = (ids_ref[...] ==
              lax.broadcasted_iota(jnp.int32, (tm, d_pad), 1)
              ).astype(jnp.float32)
    text = jnp.dot(onehot, docc_ref[...],
                   preferred_element_type=jnp.float32)      # (tm, 2*HP)
    h = (jnp.dot(s_ref[...], w1s_ref[...], preferred_element_type=jnp.float32)
         + jnp.dot(text, w1t_ref[...], preferred_element_type=jnp.float32)
         + b1_ref[...])
    h = _elu(h)
    y = jnp.dot(h, w2_ref[...], preferred_element_type=jnp.float32) + b2_ref[...]
    # TODO(synk): training-mode Dropout(p=0.2) would need pltpu.prng_*; the
    # eval-mode identity is implemented here.
    o_ref[...] = _elu(y)


def classifier(sent_pad, doc_ids2d, doc_c, w1s, w1t, b1p, w2p, b2p, *, tm):
    n_pad, h = sent_pad.shape
    d_pad, h2p = doc_c.shape
    hid_p = w1s.shape[1]
    out_p = w2p.shape[1]
    return pl.pallas_call(
        classifier_kernel,
        out_shape=jax.ShapeDtypeStruct((n_pad, out_p), jnp.float32),
        grid=(n_pad // tm,),
        in_specs=[
            pl.BlockSpec((tm, h), lambda i: (i, 0)),          # sent features
            pl.BlockSpec((tm, 1), lambda i: (i, 0)),          # per-row doc id
            pl.BlockSpec((d_pad, h2p), lambda i: (0, 0)),     # doc cell table
            pl.BlockSpec((h, hid_p), lambda i: (0, 0)),       # W1 (sent half)
            pl.BlockSpec((h2p, hid_p), lambda i: (0, 0)),     # W1 (text half)
            pl.BlockSpec((1, hid_p), lambda i: (0, 0)),       # b1 (padded)
            pl.BlockSpec((hid_p, out_p), lambda i: (0, 0)),   # W2 (padded)
            pl.BlockSpec((1, out_p), lambda i: (0, 0)),       # b2 (padded)
        ],
        out_specs=pl.BlockSpec((tm, out_p), lambda i: (i, 0)),
        compiler_params=pltpu.CompilerParams(
            dimension_semantics=("parallel",)),
    )(sent_pad, doc_ids2d, doc_c, w1s, w1t, b1p, w2p, b2p)


# ----------------------------------------------------------------------------
# Pure-JAX reference (mirrors the PyTorch forward) for validation.
# ----------------------------------------------------------------------------
def reference_forward(sent_features, doc_lens_list, lstm_params, cls_params):
    wih0, whh0, b0, wih1, whh1, b1 = lstm_params
    w1, bc1, w2, bc2 = cls_params
    H = sent_features.shape[1]

    def cell(x, h, c, wih, whh, b):
        g = x @ wih + h @ whh + b
        i = jax.nn.sigmoid(g[:, 0:H])
        f = jax.nn.sigmoid(g[:, H:2 * H])
        gg = jnp.tanh(g[:, 2 * H:3 * H])
        o = jax.nn.sigmoid(g[:, 3 * H:4 * H])
        c = f * c + i * gg
        h = o * jnp.tanh(c)
        return h, c

    text_rows = []
    start = 0
    for L in doc_lens_list:
        xd = sent_features[start:start + L]
        h0 = c0 = h1 = c1 = jnp.zeros((1, H), jnp.float32)
        for t in range(L):
            x = xd[t:t + 1]
            h0, c0 = cell(x, h0, c0, wih0, whh0, b0)
            h1, c1 = cell(h0, h1, c1, wih1, whh1, b1)
        cvec = jnp.concatenate([c0, c1], axis=1)            # (1, 2H)
        text_rows.append(jnp.tile(cvec, (L, 1)))
        start += L
    text_feature = jnp.concatenate(text_rows, axis=0)
    feat = jnp.concatenate([sent_features, text_feature], axis=1)
    h = jax.nn.elu(feat @ w1 + bc1)
    return jax.nn.elu(h @ w2 + bc2)


# ----------------------------------------------------------------------------
# Weight packing helpers (host / XLA side, one-time).
# ----------------------------------------------------------------------------
def _pad_gate_cols(w, H, HP):
    """(rows, 4H) -> (rows, 4*HP): gate k real weights at cols [k*HP:k*HP+H]."""
    out = jnp.zeros((w.shape[0], 4 * HP), jnp.float32)
    for k in range(4):
        out = out.at[:, k * HP:k * HP + H].set(w[:, k * H:(k + 1) * H])
    return out


def _pad_rows(w, rows_p):
    return jnp.zeros((rows_p, w.shape[1]), w.dtype).at[:w.shape[0]].set(w)


# ----------------------------------------------------------------------------
# Full forward (Pallas path).
# ----------------------------------------------------------------------------
def rnn_text_representation_forward(sent_features, doc_lens_list, lstm_params,
                                    cls_params, *, row_tile=512, time_tile=64):
    doc_lens_list = [int(v) for v in doc_lens_list]
    D = len(doc_lens_list)
    N, H = sent_features.shape
    max_len = max(doc_lens_list)

    HP = -(-H // 128) * 128                                  # lane-padded hidden
    d_pad = -(-D // 8) * 8                                   # sublane-aligned
    t_tile = min(time_tile, max(8, -(-max_len // 8) * 8))    # time chunk size
    max_len_pad = -(-max_len // t_tile) * t_tile
    num_chunks = max_len_pad // t_tile

    wih0, whh0, b0, wih1, whh1, b1 = lstm_params
    w1, bc1, w2, bc2 = cls_params

    # --- static packing glue (doc layout is host-known) -----------------
    offsets = np.concatenate([[0], np.cumsum(doc_lens_list)[:-1]]).astype(np.int64)
    lens = np.zeros((d_pad, 1), np.int32)
    lens[:D, 0] = doc_lens_list

    # Time-major packed gather index: row (t*d_pad + d) -> sentence off[d]+t.
    # Invalid (t, d) slots point at sentence 0 (finite garbage, masked in-kernel).
    idx = np.zeros((max_len_pad, d_pad), np.int32)
    for d, L in enumerate(doc_lens_list):
        idx[:L, d] = offsets[d] + np.arange(L)
    x_tm = jnp.take(sent_features, jnp.asarray(idx.reshape(-1)), axis=0)

    # 128-lane-per-gate weight layout.
    wih0_p = _pad_gate_cols(wih0, H, HP)                     # (H,  4*HP)
    whh0_p = _pad_rows(_pad_gate_cols(whh0, H, HP), HP)      # (HP, 4*HP)
    b0_p = _pad_gate_cols(b0, H, HP)                         # (1,  4*HP)
    wih1_p = _pad_rows(_pad_gate_cols(wih1, H, HP), HP)      # (HP, 4*HP)
    whh1_p = _pad_rows(_pad_gate_cols(whh1, H, HP), HP)      # (HP, 4*HP)
    b1_p = _pad_gate_cols(b1, H, HP)                         # (1,  4*HP)

    doc_c = lstm_doc_cell_states(x_tm, jnp.asarray(lens), wih0_p, whh0_p, b0_p,
                                 wih1_p, whh1_p, b1_p, hidden=H, hidden_p=HP,
                                 d_pad=d_pad, t_tile=t_tile,
                                 num_chunks=num_chunks)      # (d_pad, 2*HP)

    # --- classifier ------------------------------------------------------
    # Row tile: large (memory-bound head) but shrunk for small N.
    # TODO(synk): on v7x, prefer tm such that n_pad//tm >= 2 and even so the
    # "parallel" axis splits across both TensorCores.
    tm = row_tile
    n_min = max(8, -(-N // 8) * 8)
    if n_min <= tm:
        tm = n_min
    n_pad = -(-N // tm) * tm

    doc_ids = np.zeros((n_pad, 1), np.int32)                 # pad rows -> doc 0
    doc_ids[:N, 0] = np.repeat(np.arange(D), doc_lens_list)
    sent_pad = jnp.pad(sent_features, ((0, n_pad - N), (0, 0)))

    hid = w1.shape[1]                                        # 64
    out_dim = w2.shape[1]                                    # 2
    hid_p = -(-hid // 128) * 128                             # lane-dense hidden
    out_p = -(-out_dim // 128) * 128                         # lane-dense output

    # W1 split: rows 0..H multiply sent; the text half is laid out to match
    # the lane-padded doc_c columns (c0 in [:, :H], c1 in [:, HP:HP+H]).
    w1s = jnp.zeros((H, hid_p), jnp.float32).at[:, :hid].set(w1[:H])
    w1t = jnp.zeros((2 * HP, hid_p), jnp.float32)
    w1t = w1t.at[0:H, :hid].set(w1[H:2 * H])
    w1t = w1t.at[HP:HP + H, :hid].set(w1[2 * H:3 * H])
    b1p = jnp.zeros((1, hid_p), jnp.float32).at[:, :hid].set(bc1)
    w2p = jnp.zeros((hid_p, out_p), jnp.float32).at[:hid, :out_dim].set(w2)
    b2p = jnp.zeros((1, out_p), jnp.float32).at[:, :out_dim].set(bc2)

    out_pad = classifier(sent_pad, jnp.asarray(doc_ids), doc_c,
                         w1s, w1t, b1p, w2p, b2p, tm=tm)
    return out_pad[:N, :out_dim]                             # (N, 2)


if __name__ == "__main__":
    key = jax.random.PRNGKey(0)
    H = 32                                 # hps.hidden_size
    doc_lens_list = [3, 5, 8]              # sentences per doc (dtype==1 nodes)
    N = sum(doc_lens_list)

    ks = jax.random.split(key, 12)
    scale = 1.0 / np.sqrt(H)

    # "HSG output": sentence features (stand-in for the GNN encoder).
    # TODO(synk): the HSumGraph GNN encoder + dgl unbatch/filter_nodes have no
    # Pallas equivalent; sentence features / per-doc counts are inputs here.
    sent_features = jax.random.normal(ks[0], (N, H), jnp.float32)

    # 2-layer LSTM parameters (PyTorch layout transposed to (in, 4H),
    # PyTorch gate order [i, f, g, o]; the two biases fused into one).
    wih0 = jax.random.uniform(ks[1], (H, 4 * H), jnp.float32, -scale, scale)
    whh0 = jax.random.uniform(ks[2], (H, 4 * H), jnp.float32, -scale, scale)
    b0 = (jax.random.uniform(ks[3], (1, 4 * H), jnp.float32, -scale, scale)
          + jax.random.uniform(ks[4], (1, 4 * H), jnp.float32, -scale, scale))
    wih1 = jax.random.uniform(ks[5], (H, 4 * H), jnp.float32, -scale, scale)
    whh1 = jax.random.uniform(ks[6], (H, 4 * H), jnp.float32, -scale, scale)
    b1 = (jax.random.uniform(ks[7], (1, 4 * H), jnp.float32, -scale, scale)
          + jax.random.uniform(ks[8], (1, 4 * H), jnp.float32, -scale, scale))
    lstm_params = (wih0, whh0, b0, wih1, whh1, b1)

    # Classifier parameters (transposed to (in, out)).
    w1 = jax.random.normal(ks[9], (3 * H, 64), jnp.float32) * 0.1
    bc1 = jnp.zeros((1, 64), jnp.float32)
    w2 = jax.random.normal(ks[10], (64, 2), jnp.float32) * 0.1
    bc2 = jnp.zeros((1, 2), jnp.float32)
    cls_params = (w1, bc1, w2, bc2)

    out = rnn_text_representation_forward(sent_features, doc_lens_list,
                                          lstm_params, cls_params)
    out = jax.block_until_ready(out)

    ref = reference_forward(sent_features, doc_lens_list, lstm_params, cls_params)
    ref = jax.block_until_ready(ref)

    assert out.shape == (N, 2), out.shape
    np.testing.assert_allclose(np.asarray(out), np.asarray(ref),
                               rtol=1e-4, atol=1e-4)
    print("KERNEL_OK")
</pallas_src>

<mosaic_0001>
module attributes {stable_mosaic.version = 11 : i64} {
  func.func @lstm_chunk_kernel(%arg0: i32, %arg1: memref<8x1xi32, #tpu.memory_space<vmem>>, %arg2: memref<64x32xf32, #tpu.memory_space<vmem>>, %arg3: memref<32x512xf32, #tpu.memory_space<vmem>>, %arg4: memref<128x512xf32, #tpu.memory_space<vmem>>, %arg5: memref<1x512xf32, #tpu.memory_space<vmem>>, %arg6: memref<128x512xf32, #tpu.memory_space<vmem>>, %arg7: memref<128x512xf32, #tpu.memory_space<vmem>>, %arg8: memref<1x512xf32, #tpu.memory_space<vmem>>, %arg9: memref<8x256xf32, #tpu.memory_space<vmem>>, %arg10: memref<64x512xf32, #tpu.memory_space<vmem>>, %arg11: memref<8x128xf32, #tpu.memory_space<vmem>>, %arg12: memref<8x128xf32, #tpu.memory_space<vmem>>, %arg13: memref<8x128xf32, #tpu.memory_space<vmem>>, %arg14: memref<8x128xf32, #tpu.memory_space<vmem>>) attributes {dimension_semantics = [#tpu.dimension_semantics<arbitrary>], iteration_bounds = array<i64: 1>, scalar_prefetch = 0 : i64, scratch_operands = 5 : i64, tpu.core_type = #tpu.core_type<tc>, window_params = [{pipeline_mode = #tpu.pipeline_mode<synchronous>, transform_indices = @transform_0, window_bounds = array<i64: 8, 1>}, {transform_indices = @transform_1, window_bounds = array<i64: 64, 32>}, {pipeline_mode = #tpu.pipeline_mode<synchronous>, transform_indices = @transform_2, window_bounds = array<i64: 32, 512>}, {pipeline_mode = #tpu.pipeline_mode<synchronous>, transform_indices = @transform_3, window_bounds = array<i64: 128, 512>}, {pipeline_mode = #tpu.pipeline_mode<synchronous>, transform_indices = @transform_4, window_bounds = array<i64: 1, 512>}, {pipeline_mode = #tpu.pipeline_mode<synchronous>, transform_indices = @transform_5, window_bounds = array<i64: 128, 512>}, {pipeline_mode = #tpu.pipeline_mode<synchronous>, transform_indices = @transform_6, window_bounds = array<i64: 128, 512>}, {pipeline_mode = #tpu.pipeline_mode<synchronous>, transform_indices = @transform_7, window_bounds = array<i64: 1, 512>}, {pipeline_mode = #tpu.pipeline_mode<synchronous>, transform_indices = @transform_8, window_bounds = array<i64: 8, 256>}]} {
    %c0 = arith.constant 0 : index
    %c0_0 = arith.constant 0 : index
    %0 = vector.load %arg2[%c0, %c0_0] : memref<64x32xf32, #tpu.memory_space<vmem>>, vector<64x32xf32>
    %c0_1 = arith.constant 0 : index
    %c0_2 = arith.constant 0 : index
    %1 = vector.load %arg3[%c0_1, %c0_2] : memref<32x512xf32, #tpu.memory_space<vmem>>, vector<32x512xf32>
    %cst = arith.constant dense<0.000000e+00> : vector<64x512xf32>
    %2 = tpu.matmul %0, %1, %cst {dimension_numbers = #tpu.dot_dimension_numbers<[1], [0], [0], [1], [0, 0, 1, 1], [], []>} : vector<64x32xf32>, vector<32x512xf32>, vector<64x512xf32> -> vector<64x512xf32>
    %c0_3 = arith.constant 0 : index
    %c0_4 = arith.constant 0 : index
    %3 = vector.load %arg5[%c0_3, %c0_4] : memref<1x512xf32, #tpu.memory_space<vmem>>, vector<1x512xf32>
    %4 = vector.broadcast %3 : vector<1x512xf32> to vector<64x512xf32>
    %5 = arith.addf %2, %4 : vector<64x512xf32>
    %c0_5 = arith.constant 0 : index
    %c0_6 = arith.constant 0 : index
    %6 = vector.load %arg10[%c0_5, %c0_6] : memref<64x512xf32, #tpu.memory_space<vmem>>, vector<64x512xf32>
    tpu.vector_store %arg10[%c0_5, %c0_6], %5 {strides = array<i32>} : memref<64x512xf32, #tpu.memory_space<vmem>>, vector<64x512xf32>,
    %c0_i32 = arith.constant 0 : i32
    %7 = arith.cmpi eq, %arg0, %c0_i32 : i32
    %8 = arith.extui %7 : i1 to i32
    %c0_i32_7 = arith.constant 0 : i32
    %9 = arith.cmpi ne, %8, %c0_i32_7 : i32
    scf.if %9 {
      %cst_241 = arith.constant 0.000000e+00 : f32
      %781 = vector.broadcast %cst_241 : f32 to vector<8x128xf32>
      %c0_242 = arith.constant 0 : index
      %c0_243 = arith.constant 0 : index
      %782 = vector.load %arg11[%c0_242, %c0_243] : memref<8x128xf32, #tpu.memory_space<vmem>>, vector<8x128xf32>
      tpu.vector_store %arg11[%c0_242, %c0_243], %781 {strides = array<i32>} : memref<8x128xf32, #tpu.memory_space<vmem>>, vector<8x128xf32>,
      %c0_244 = arith.constant 0 : index
      %c0_245 = arith.constant 0 : index
      %783 = vector.load %arg12[%c0_244, %c0_245] : memref<8x128xf32, #tpu.memory_space<vmem>>, vector<8x128xf32>
      tpu.vector_store %arg12[%c0_244, %c0_245], %781 {strides = array<i32>} : memref<8x128xf32, #tpu.memory_space<vmem>>, vector<8x128xf32>,
      %c0_246 = arith.constant 0 : index
      %c0_247 = arith.constant 0 : index
      %784 = vector.load %arg13[%c0_246, %c0_247] : memref<8x128xf32, #tpu.memory_space<vmem>>, vector<8x128xf32>
      tpu.vector_store %arg13[%c0_246, %c0_247], %781 {strides = array<i32>} : memref<8x128xf32, #tpu.memory_space<vmem>>, vector<8x128xf32>,
      %c0_248 = arith.constant 0 : index
      %c0_249 = arith.constant 0 : index
      %785 = vector.load %arg14[%c0_248, %c0_249] : memref<8x128xf32, #tpu.memory_space<vmem>>, vector<8x128xf32>
      tpu.vector_store %arg14[%c0_248, %c0_249], %781 {strides = array<i32>} : memref<8x128xf32, #tpu.memory_space<vmem>>, vector<8x128xf32>,
    } else {
    }
    %c0_8 = arith.constant 0 : index
    %c0_9 = arith.constant 0 : index
    %10 = vector.load %arg1[%c0_8, %c0_9] : memref<8x1xi32, #tpu.memory_space<vmem>>, vector<8x1xi32>
    %c0_10 = arith.constant 0 : index
    %c0_11 = arith.constant 0 : index
    %11 = vector.load %arg4[%c0_10, %c0_11] : memref<128x512xf32, #tpu.memory_space<vmem>>, vector<128x512xf32>
    %c0_12 = arith.constant 0 : index
    %c0_13 = arith.constant 0 : index
    %12 = vector.load %arg6[%c0_12, %c0_13] : memref<128x512xf32, #tpu.memory_space<vmem>>, vector<128x512xf32>
    %c0_14 = arith.constant 0 : index
    %c0_15 = arith.constant 0 : index
    %13 = vector.load %arg7[%c0_14, %c0_15] : memref<128x512xf32, #tpu.memory_space<vmem>>, vector<128x512xf32>
    %c0_16 = arith.constant 0 : index
    %c0_17 = arith.constant 0 : index
    %14 = vector.load %arg8[%c0_16, %c0_17] : memref<1x512xf32, #tpu.memory_space<vmem>>, vector<1x512xf32>
    %c8_i32 = arith.constant 8 : i32
    %15 = arith.muli %arg0, %c8_i32 : i32
    %c0_18 = arith.constant 0 : index
    %c0_19 = arith.constant 0 : index
    %16 = vector.load %arg11[%c0_18, %c0_19] : memref<8x128xf32, #tpu.memory_space<vmem>>, vector<8x128xf32>
    %c0_20 = arith.constant 0 : index
    %c0_21 = arith.constant 0 : index
    %17 = vector.load %arg12[%c0_20, %c0_21] : memref<8x128xf32, #tpu.memory_space<vmem>>, vector<8x128xf32>
    %c0_22 = arith.constant 0 : index
    %c0_23 = arith.constant 0 : index
    %18 = vector.load %arg13[%c0_22, %c0_23] : memref<8x128xf32, #tpu.memory_space<vmem>>, vector<8x128xf32>
    %c0_24 = arith.constant 0 : index
    %c0_25 = arith.constant 0 : index
    %19 = vector.load %arg14[%c0_24, %c0_25] : memref<8x128xf32, #tpu.memory_space<vmem>>, vector<8x128xf32>
    %c0_i32_26 = arith.constant 0 : i32
    %20 = arith.addi %15, %c0_i32_26 : i32
    %cst_27 = arith.constant dense<0.000000e+00> : vector<8x512xf32>
    %21 = tpu.matmul %16, %12, %cst_27 {dimension_numbers = #tpu.dot_dimension_numbers<[1], [0], [0], [1], [0, 0, 1, 1], [], []>} : vector<8x128xf32>, vector<128x512xf32>, vector<8x512xf32> -> vector<8x512xf32>
    %cst_28 = arith.constant dense<0.000000e+00> : vector<8x512xf32>
    %22 = tpu.matmul %18, %13, %cst_28 {dimension_numbers = #tpu.dot_dimension_numbers<[1], [0], [0], [1], [0, 0, 1, 1], [], []>} : vector<8x128xf32>, vector<128x512xf32>, vector<8x512xf32> -> vector<8x512xf32>
    %23 = arith.addf %21, %22 : vector<8x512xf32>
    %24 = vector.broadcast %14 : vector<1x512xf32> to vector<8x512xf32>
    %25 = arith.addf %23, %24 : vector<8x512xf32>
    %26 = vector.extract_strided_slice %25 {offsets = [0, 0], sizes = [8, 128], strides = [1, 1]} : vector<8x512xf32> to vector<8x128xf32>
    %cst_29 = arith.constant 5.000000e-01 : f32
    %27 = vector.broadcast %cst_29 : f32 to vector<8x128xf32>
    %28 = arith.mulf %27, %26 : vector<8x128xf32>
    %29 = math.tanh %28 : vector<8x128xf32>
    %cst_30 = arith.constant 5.000000e-01 : f32
    %30 = vector.broadcast %cst_30 : f32 to vector<8x128xf32>
    %31 = arith.mulf %30, %29 : vector<8x128xf32>
    %cst_31 = arith.constant 5.000000e-01 : f32
    %32 = vector.broadcast %cst_31 : f32 to vector<8x128xf32>
    %33 = arith.addf %31, %32 : vector<8x128xf32>
    %34 = vector.extract_strided_slice %25 {offsets = [0, 128], sizes = [8, 128], strides = [1, 1]} : vector<8x512xf32> to vector<8x128xf32>
    %cst_32 = arith.constant 5.000000e-01 : f32
    %35 = vector.broadcast %cst_32 : f32 to vector<8x128xf32>
    %36 = arith.mulf %35, %34 : vector<8x128xf32>
    %37 = math.tanh %36 : vector<8x128xf32>
    %cst_33 = arith.constant 5.000000e-01 : f32
    %38 = vector.broadcast %cst_33 : f32 to vector<8x128xf32>
    %39 = arith.mulf %38, %37 : vector<8x128xf32>
    %cst_34 = arith.constant 5.000000e-01 : f32
    %40 = vector.broadcast %cst_34 : f32 to vector<8x128xf32>
    %41 = arith.addf %39, %40 : vector<8x128xf32>
    %42 = vector.extract_strided_slice %25 {offsets = [0, 256], sizes = [8, 128], strides = [1, 1]} : vector<8x512xf32> to vector<8x128xf32>
    %43 = math.tanh %42 : vector<8x128xf32>
    %44 = vector.extract_strided_slice %25 {offsets = [0, 384], sizes = [8, 128], strides = [1, 1]} : vector<8x512xf32> to vector<8x128xf32>
    %cst_35 = arith.constant 5.000000e-01 : f32
    %45 = vector.broadcast %cst_35 : f32 to vector<8x128xf32>
    %46 = arith.mulf %45, %44 : vector<8x128xf32>
    %47 = math.tanh %46 : vector<8x128xf32>
    %cst_36 = arith.constant 5.000000e-01 : f32
    %48 = vector.broadcast %cst_36 : f32 to vector<8x128xf32>
    %49 = arith.mulf %48, %47 : vector<8x128xf32>
    %cst_37 = arith.constant 5.000000e-01 : f32
    %50 = vector.broadcast %cst_37 : f32 to vector<8x128xf32>
    %51 = arith.addf %49, %50 : vector<8x128xf32>
    %52 = arith.mulf %41, %19 : vector<8x128xf32>
    %53 = arith.mulf %33, %43 : vector<8x128xf32>
    %54 = arith.addf %52, %53 : vector<8x128xf32>
    %55 = math.tanh %54 : vector<8x128xf32>
    %56 = arith.mulf %51, %55 : vector<8x128xf32>
    %c1_i32 = arith.constant 1 : i32
    %57 = arith.cmpi sge, %20, %c1_i32 : i32
    %c1_i32_38 = arith.constant 1 : i32
    %58 = arith.subi %20, %c1_i32_38 : i32
    %59 = vector.broadcast %58 : i32 to vector<8x1xi32>
    %60 = arith.cmpi slt, %59, %10 : vector<8x1xi32>
    %61 = vector.broadcast %57 : i1 to vector<8x1xi1>
    %62 = arith.andi %61, %60 : vector<8x1xi1>
    %c8_i32_39 = arith.constant 8 : i32
    %63 = arith.muli %c0_i32_26, %c8_i32_39 : i32
    %64 = tpu.assume_multiple %63, 8 : i32
    %65 = arith.index_cast %64 : i32 to index
    %c0_40 = arith.constant 0 : index
    %66 = vector.load %arg10[%65, %c0_40] : memref<64x512xf32, #tpu.memory_space<vmem>>, vector<8x512xf32>
    %cst_41 = arith.constant dense<0.000000e+00> : vector<8x512xf32>
    %67 = tpu.matmul %16, %11, %cst_41 {dimension_numbers = #tpu.dot_dimension_numbers<[1], [0], [0], [1], [0, 0, 1, 1], [], []>} : vector<8x128xf32>, vector<128x512xf32>, vector<8x512xf32> -> vector<8x512xf32>
    %68 = arith.addf %66, %67 : vector<8x512xf32>
    %69 = vector.extract_strided_slice %68 {offsets = [0, 0], sizes = [8, 128], strides = [1, 1]} : vector<8x512xf32> to vector<8x128xf32>
    %cst_42 = arith.constant 5.000000e-01 : f32
    %70 = vector.broadcast %cst_42 : f32 to vector<8x128xf32>
    %71 = arith.mulf %70, %69 : vector<8x128xf32>
    %72 = math.tanh %71 : vector<8x128xf32>
    %cst_43 = arith.constant 5.000000e-01 : f32
    %73 = vector.broadcast %cst_43 : f32 to vector<8x128xf32>
    %74 = arith.mulf %73, %72 : vector<8x128xf32>
    %cst_44 = arith.constant 5.000000e-01 : f32
    %75 = vector.broadcast %cst_44 : f32 to vector<8x128xf32>
    %76 = arith.addf %74, %75 : vector<8x128xf32>
    %77 = vector.extract_strided_slice %68 {offsets = [0, 128], sizes = [8, 128], strides = [1, 1]} : vector<8x512xf32> to vector<8x128xf32>
    %cst_45 = arith.constant 5.000000e-01 : f32
    %78 = vector.broadcast %cst_45 : f32 to vector<8x128xf32>
    %79 = arith.mulf %78, %77 : vector<8x128xf32>
    %80 = math.tanh %79 : vector<8x128xf32>
    %cst_46 = arith.constant 5.000000e-01 : f32
    %81 = vector.broadcast %cst_46 : f32 to vector<8x128xf32>
    %82 = arith.mulf %81, %80 : vector<8x128xf32>
    %cst_47 = arith.constant 5.000000e-01 : f32
    %83 = vector.broadcast %cst_47 : f32 to vector<8x128xf32>
    %84 = arith.addf %82, %83 : vector<8x128xf32>
    %85 = vector.extract_strided_slice %68 {offsets = [0, 256], sizes = [8, 128], strides = [1, 1]} : vector<8x512xf32> to vector<8x128xf32>
    %86 = math.tanh %85 : vector<8x128xf32>
    %87 = vector.extract_strided_slice %68 {offsets = [0, 384], sizes = [8, 128], strides = [1, 1]} : vector<8x512xf32> to vector<8x128xf32>
    %cst_48 = arith.constant 5.000000e-01 : f32
    %88 = vector.broadcast %cst_48 : f32 to vector<8x128xf32>
    %89 = arith.mulf %88, %87 : vector<8x128xf32>
    %90 = math.tanh %89 : vector<8x128xf32>
    %cst_49 = arith.constant 5.000000e-01 : f32
    %91 = vector.broadcast %cst_49 : f32 to vector<8x128xf32>
    %92 = arith.mulf %91, %90 : vector<8x128xf32>
    %cst_50 = arith.constant 5.000000e-01 : f32
    %93 = vector.broadcast %cst_50 : f32 to vector<8x128xf32>
    %94 = arith.addf %92, %93 : vector<8x128xf32>
    %95 = arith.mulf %84, %17 : vector<8x128xf32>
    %96 = arith.mulf %76, %86 : vector<8x128xf32>
    %97 = arith.addf %95, %96 : vector<8x128xf32>
    %98 = math.tanh %97 : vector<8x128xf32>
    %99 = arith.mulf %94, %98 : vector<8x128xf32>
    %100 = vector.broadcast %20 : i32 to vector<8x1xi32>
    %101 = arith.cmpi slt, %100, %10 : vector<8x1xi32>
    %102 = vector.shape_cast %101 : vector<8x1xi1> to vector<8x1xi1>
    %103 = vector.broadcast %102 : vector<8x1xi1> to vector<8x128xi1>
    %104 = arith.select %103, %99, %16 : vector<8x128xi1>, vector<8x128xf32>
    %105 = vector.shape_cast %101 : vector<8x1xi1> to vector<8x1xi1>
    %106 = vector.broadcast %105 : vector<8x1xi1> to vector<8x128xi1>
    %107 = arith.select %106, %97, %17 : vector<8x128xi1>, vector<8x128xf32>
    %108 = vector.shape_cast %62 : vector<8x1xi1> to vector<8x1xi1>
    %109 = vector.broadcast %108 : vector<8x1xi1> to vector<8x128xi1>
    %110 = arith.select %109, %56, %18 : vector<8x128xi1>, vector<8x128xf32>
    %111 = vector.shape_cast %62 : vector<8x1xi1> to vector<8x1xi1>
    %112 = vector.broadcast %111 : vector<8x1xi1> to vector<8x128xi1>
    %113 = arith.select %112, %54, %19 : vector<8x128xi1>, vector<8x128xf32>
    %c1_i32_51 = arith.constant 1 : i32
    %114 = arith.addi %15, %c1_i32_51 : i32
    %cst_52 = arith.constant dense<0.000000e+00> : vector<8x512xf32>
    %115 = tpu.matmul %104, %12, %cst_52 {dimension_numbers = #tpu.dot_dimension_numbers<[1], [0], [0], [1], [0, 0, 1, 1], [], []>} : vector<8x128xf32>, vector<128x512xf32>, vector<8x512xf32> -> vector<8x512xf32>
    %cst_53 = arith.constant dense<0.000000e+00> : vector<8x512xf32>
    %116 = tpu.matmul %110, %13, %cst_53 {dimension_numbers = #tpu.dot_dimension_numbers<[1], [0], [0], [1], [0, 0, 1, 1], [], []>} : vector<8x128xf32>, vector<128x512xf32>, vector<8x512xf32> -> vector<8x512xf32>
    %117 = arith.addf %115, %116 : vector<8x512xf32>
    %118 = vector.broadcast %14 : vector<1x512xf32> to vector<8x512xf32>
    %119 = arith.addf %117, %118 : vector<8x512xf32>
    %120 = vector.extract_strided_slice %119 {offsets = [0, 0], sizes = [8, 128], strides = [1, 1]} : vector<8x512xf32> to vector<8x128xf32>
    %cst_54 = arith.constant 5.000000e-01 : f32
    %121 = vector.broadcast %cst_54 : f32 to vector<8x128xf32>
    %122 = arith.mulf %121, %120 : vector<8x128xf32>
    %123 = math.tanh %122 : vector<8x128xf32>
    %cst_55 = arith.constant 5.000000e-01 : f32
    %124 = vector.broadcast %cst_55 : f32 to vector<8x128xf32>
    %125 = arith.mulf %124, %123 : vector<8x128xf32>
    %cst_56 = arith.constant 5.000000e-01 : f32
    %126 = vector.broadcast %cst_56 : f32 to vector<8x128xf32>
    %127 = arith.addf %125, %126 : vector<8x128xf32>
    %128 = vector.extract_strided_slice %119 {offsets = [0, 128], sizes = [8, 128], strides = [1, 1]} : vector<8x512xf32> to vector<8x128xf32>
    %cst_57 = arith.constant 5.000000e-01 : f32
    %129 = vector.broadcast %cst_57 : f32 to vector<8x128xf32>
    %130 = arith.mulf %129, %128 : vector<8x128xf32>
    %131 = math.tanh %130 : vector<8x128xf32>
    %cst_58 = arith.constant 5.000000e-01 : f32
    %132 = vector.broadcast %cst_58 : f32 to vector<8x128xf32>
    %133 = arith.mulf %132, %131 : vector<8x128xf32>
    %cst_59 = arith.constant 5.000000e-01 : f32
    %134 = vector.broadcast %cst_59 : f32 to vector<8x128xf32>
    %135 = arith.addf %133, %134 : vector<8x128xf32>
    %136 = vector.extract_strided_slice %119 {offsets = [0, 256], sizes = [8, 128], strides = [1, 1]} : vector<8x512xf32> to vector<8x128xf32>
    %137 = math.tanh %136 : vector<8x128xf32>
    %138 = vector.extract_strided_slice %119 {offsets = [0, 384], sizes = [8, 128], strides = [1, 1]} : vector<8x512xf32> to vector<8x128xf32>
    %cst_60 = arith.constant 5.000000e-01 : f32
    %139 = vector.broadcast %cst_60 : f32 to vector<8x128xf32>
    %140 = arith.mulf %139, %138 : vector<8x128xf32>
    %141 = math.tanh %140 : vector<8x128xf32>
    %cst_61 = arith.constant 5.000000e-01 : f32
    %142 = vector.broadcast %cst_61 : f32 to vector<8x128xf32>
    %143 = arith.mulf %142, %141 : vector<8x128xf32>
    %cst_62 = arith.constant 5.000000e-01 : f32
    %144 = vector.broadcast %cst_62 : f32 to vector<8x128xf32>
    %145 = arith.addf %143, %144 : vector<8x128xf32>
    %146 = arith.mulf %135, %113 : vector<8x128xf32>
    %147 = arith.mulf %127, %137 : vector<8x128xf32>
    %148 = arith.addf %146, %147 : vector<8x128xf32>
    %149 = math.tanh %148 : vector<8x128xf32>
    %150 = arith.mulf %145, %149 : vector<8x128xf32>
    %c1_i32_63 = arith.constant 1 : i32
    %151 = arith.cmpi sge, %114, %c1_i32_63 : i32
    %c1_i32_64 = arith.constant 1 : i32
    %152 = arith.subi %114, %c1_i32_64 : i32
    %153 = vector.broadcast %152 : i32 to vector<8x1xi32>
    %154 = arith.cmpi slt, %153, %10 : vector<8x1xi32>
    %155 = vector.broadcast %151 : i1 to vector<8x1xi1>
    %156 = arith.andi %155, %154 : vector<8x1xi1>
    %c8_i32_65 = arith.constant 8 : i32
    %157 = arith.muli %c1_i32_51, %c8_i32_65 : i32
    %158 = tpu.assume_multiple %157, 8 : i32
    %159 = arith.index_cast %158 : i32 to index
    %c0_66 = arith.constant 0 : index
    %160 = vector.load %arg10[%159, %c0_66] : memref<64x512xf32, #tpu.memory_space<vmem>>, vector<8x512xf32>
    %cst_67 = arith.constant dense<0.000000e+00> : vector<8x512xf32>
    %161 = tpu.matmul %104, %11, %cst_67 {dimension_numbers = #tpu.dot_dimension_numbers<[1], [0], [0], [1], [0, 0, 1, 1], [], []>} : vector<8x128xf32>, vector<128x512xf32>, vector<8x512xf32> -> vector<8x512xf32>
    %162 = arith.addf %160, %161 : vector<8x512xf32>
    %163 = vector.extract_strided_slice %162 {offsets = [0, 0], sizes = [8, 128], strides = [1, 1]} : vector<8x512xf32> to vector<8x128xf32>
    %cst_68 = arith.constant 5.000000e-01 : f32
    %164 = vector.broadcast %cst_68 : f32 to vector<8x128xf32>
    %165 = arith.mulf %164, %163 : vector<8x128xf32>
    %166 = math.tanh %165 : vector<8x128xf32>
    %cst_69 = arith.constant 5.000000e-01 : f32
    %167 = vector.broadcast %cst_69 : f32 to vector<8x128xf32>
    %168 = arith.mulf %167, %166 : vector<8x128xf32>
    %cst_70 = arith.constant 5.000000e-01 : f32
    %169 = vector.broadcast %cst_70 : f32 to vector<8x128xf32>
    %170 = arith.addf %168, %169 : vector<8x128xf32>
    %171 = vector.extract_strided_slice %162 {offsets = [0, 128], sizes = [8, 128], strides = [1, 1]} : vector<8x512xf32> to vector<8x128xf32>
    %cst_71 = arith.constant 5.000000e-01 : f32
    %172 = vector.broadcast %cst_71 : f32 to vector<8x128xf32>
    %173 = arith.mulf %172, %171 : vector<8x128xf32>
    %174 = math.tanh %173 : vector<8x128xf32>
    %cst_72 = arith.constant 5.000000e-01 : f32
    %175 = vector.broadcast %cst_72 : f32 to vector<8x128xf32>
    %176 = arith.mulf %175, %174 : vector<8x128xf32>
    %cst_73 = arith.constant 5.000000e-01 : f32
    %177 = vector.broadcast %cst_73 : f32 to vector<8x128xf32>
    %178 = arith.addf %176, %177 : vector<8x128xf32>
    %179 = vector.extract_strided_slice %162 {offsets = [0, 256], sizes = [8, 128], strides = [1, 1]} : vector<8x512xf32> to vector<8x128xf32>
    %180 = math.tanh %179 : vector<8x128xf32>
    %181 = vector.extract_strided_slice %162 {offsets = [0, 384], sizes = [8, 128], strides = [1, 1]} : vector<8x512xf32> to vector<8x128xf32>
    %cst_74 = arith.constant 5.000000e-01 : f32
    %182 = vector.broadcast %cst_74 : f32 to vector<8x128xf32>
    %183 = arith.mulf %182, %181 : vector<8x128xf32>
    %184 = math.tanh %183 : vector<8x128xf32>
    %cst_75 = arith.constant 5.000000e-01 : f32
    %185 = vector.broadcast %cst_75 : f32 to vector<8x128xf32>
    %186 = arith.mulf %185, %184 : vector<8x128xf32>
    %cst_76 = arith.constant 5.000000e-01 : f32
    %187 = vector.broadcast %cst_76 : f32 to vector<8x128xf32>
    %188 = arith.addf %186, %187 : vector<8x128xf32>
    %189 = arith.mulf %178, %107 : vector<8x128xf32>
    %190 = arith.mulf %170, %180 : vector<8x128xf32>
    %191 = arith.addf %189, %190 : vector<8x128xf32>
    %192 = math.tanh %191 : vector<8x128xf32>
    %193 = arith.mulf %188, %192 : vector<8x128xf32>
    %194 = vector.broadcast %114 : i32 to vector<8x1xi32>
    %195 = arith.cmpi slt, %194, %10 : vector<8x1xi32>
    %196 = vector.shape_cast %195 : vector<8x1xi1> to vector<8x1xi1>
    %197 = vector.broadcast %196 : vector<8x1xi1> to vector<8x128xi1>
    %198 = arith.select %197, %193, %104 : vector<8x128xi1>, vector<8x128xf32>
    %199 = vector.shape_cast %195 : vector<8x1xi1> to vector<8x1xi1>
    %200 = vector.broadcast %199 : vector<8x1xi1> to vector<8x128xi1>
    %201 = arith.select %200, %191, %107 : vector<8x128xi1>, vector<8x128xf32>
    %202 = vector.shape_cast %156 : vector<8x1xi1> to vector<8x1xi1>
    %203 = vector.broadcast %202 : vector<8x1xi1> to vector<8x128xi1>
    %204 = arith.select %203, %150, %110 : vector<8x128xi1>, vector<8x128xf32>
    %205 = vector.shape_cast %156 : vector<8x1xi1> to vector<8x1xi1>
    %206 = vector.broadcast %205 : vector<8x1xi1> to vector<8x128xi1>
    %207 = arith.select %206, %148, %113 : vector<8x128xi1>, vector<8x128xf32>
    %c2_i32 = arith.constant 2 : i32
    %208 = arith.addi %15, %c2_i32 : i32
    %cst_77 = arith.constant dense<0.000000e+00> : vector<8x512xf32>
    %209 = tpu.matmul %198, %12, %cst_77 {dimension_numbers = #tpu.dot_dimension_numbers<[1], [0], [0], [1], [0, 0, 1, 1], [], []>} : vector<8x128xf32>, vector<128x512xf32>, vector<8x512xf32> -> vector<8x512xf32>
    %cst_78 = arith.constant dense<0.000000e+00> : vector<8x512xf32>
    %210 = tpu.matmul %204, %13, %cst_78 {dimension_numbers = #tpu.dot_dimension_numbers<[1], [0], [0], [1], [0, 0, 1, 1], [], []>} : vector<8x128xf32>, vector<128x512xf32>, vector<8x512xf32> -> vector<8x512xf32>
    %211 = arith.addf %209, %210 : vector<8x512xf32>
    %212 = vector.broadcast %14 : vector<1x512xf32> to vector<8x512xf32>
    %213 = arith.addf %211, %212 : vector<8x512xf32>
    %214 = vector.extract_strided_slice %213 {offsets = [0, 0], sizes = [8, 128], strides = [1, 1]} : vector<8x512xf32> to vector<8x128xf32>
    %cst_79 = arith.constant 5.000000e-01 : f32
    %215 = vector.broadcast %cst_79 : f32 to vector<8x128xf32>
    %216 = arith.mulf %215, %214 : vector<8x128xf32>
    %217 = math.tanh %216 : vector<8x128xf32>
    %cst_80 = arith.constant 5.000000e-01 : f32
    %218 = vector.broadcast %cst_80 : f32 to vector<8x128xf32>
    %219 = arith.mulf %218, %217 : vector<8x128xf32>
    %cst_81 = arith.constant 5.000000e-01 : f32
    %220 = vector.broadcast %cst_81 : f32 to vector<8x128xf32>
    %221 = arith.addf %219, %220 : vector<8x128xf32>
    %222 = vector.extract_strided_slice %213 {offsets = [0, 128], sizes = [8, 128], strides = [1, 1]} : vector<8x512xf32> to vector<8x128xf32>
    %cst_82 = arith.constant 5.000000e-01 : f32
    %223 = vector.broadcast %cst_82 : f32 to vector<8x128xf32>
    %224 = arith.mulf %223, %222 : vector<8x128xf32>
    %225 = math.tanh %224 : vector<8x128xf32>
    %cst_83 = arith.constant 5.000000e-01 : f32
    %226 = vector.broadcast %cst_83 : f32 to vector<8x128xf32>
    %227 = arith.mulf %226, %225 : vector<8x128xf32>
    %cst_84 = arith.constant 5.000000e-01 : f32
    %228 = vector.broadcast %cst_84 : f32 to vector<8x128xf32>
    %229 = arith.addf %227, %228 : vector<8x128xf32>
    %230 = vector.extract_strided_slice %213 {offsets = [0, 256], sizes = [8, 128], strides = [1, 1]} : vector<8x512xf32> to vector<8x128xf32>
    %231 = math.tanh %230 : vector<8x128xf32>
    %232 = vector.extract_strided_slice %213 {offsets = [0, 384], sizes = [8, 128], strides = [1, 1]} : vector<8x512xf32> to vector<8x128xf32>
    %cst_85 = arith.constant 5.000000e-01 : f32
    %233 = vector.broadcast %cst_85 : f32 to vector<8x128xf32>
    %234 = arith.mulf %233, %232 : vector<8x128xf32>
    %235 = math.tanh %234 : vector<8x128xf32>
    %cst_86 = arith.constant 5.000000e-01 : f32
    %236 = vector.broadcast %cst_86 : f32 to vector<8x128xf32>
    %237 = arith.mulf %236, %235 : vector<8x128xf32>
    %cst_87 = arith.constant 5.000000e-01 : f32
    %238 = vector.broadcast %cst_87 : f32 to vector<8x128xf32>
    %239 = arith.addf %237, %238 : vector<8x128xf32>
    %240 = arith.mulf %229, %207 : vector<8x128xf32>
    %241 = arith.mulf %221, %231 : vector<8x128xf32>
    %242 = arith.addf %240, %241 : vector<8x128xf32>
    %243 = math.tanh %242 : vector<8x128xf32>
    %244 = arith.mulf %239, %243 : vector<8x128xf32>
    %c1_i32_88 = arith.constant 1 : i32
    %245 = arith.cmpi sge, %208, %c1_i32_88 : i32
    %c1_i32_89 = arith.constant 1 : i32
    %246 = arith.subi %208, %c1_i32_89 : i32
    %247 = vector.broadcast %246 : i32 to vector<8x1xi32>
    %248 = arith.cmpi slt, %247, %10 : vector<8x1xi32>
    %249 = vector.broadcast %245 : i1 to vector<8x1xi1>
    %250 = arith.andi %249, %248 : vector<8x1xi1>
    %c8_i32_90 = arith.constant 8 : i32
    %251 = arith.muli %c2_i32, %c8_i32_90 : i32
    %252 = tpu.assume_multiple %251, 8 : i32
    %253 = arith.index_cast %252 : i32 to index
    %c0_91 = arith.constant 0 : index
    %254 = vector.load %arg10[%253, %c0_91] : memref<64x512xf32, #tpu.memory_space<vmem>>, vector<8x512xf32>
    %cst_92 = arith.constant dense<0.000000e+00> : vector<8x512xf32>
    %255 = tpu.matmul %198, %11, %cst_92 {dimension_numbers = #tpu.dot_dimension_numbers<[1], [0], [0], [1], [0, 0, 1, 1], [], []>} : vector<8x128xf32>, vector<128x512xf32>, vector<8x512xf32> -> vector<8x512xf32>
    %256 = arith.addf %254, %255 : vector<8x512xf32>
    %257 = vector.extract_strided_slice %256 {offsets = [0, 0], sizes = [8, 128], strides = [1, 1]} : vector<8x512xf32> to vector<8x128xf32>
    %cst_93 = arith.constant 5.000000e-01 : f32
    %258 = vector.broadcast %cst_93 : f32 to vector<8x128xf32>
    %259 = arith.mulf %258, %257 : vector<8x128xf32>
    %260 = math.tanh %259 : vector<8x128xf32>
    %cst_94 = arith.constant 5.000000e-01 : f32
    %261 = vector.broadcast %cst_94 : f32 to vector<8x128xf32>
    %262 = arith.mulf %261, %260 : vector<8x128xf32>
    %cst_95 = arith.constant 5.000000e-01 : f32
    %263 = vector.broadcast %cst_95 : f32 to vector<8x128xf32>
    %264 = arith.addf %262, %263 : vector<8x128xf32>
    %265 = vector.extract_strided_slice %256 {offsets = [0, 128], sizes = [8, 128], strides = [1, 1]} : vector<8x512xf32> to vector<8x128xf32>
    %cst_96 = arith.constant 5.000000e-01 : f32
    %266 = vector.broadcast %cst_96 : f32 to vector<8x128xf32>
    %267 = arith.mulf %266, %265 : vector<8x128xf32>
    %268 = math.tanh %267 : vector<8x128xf32>
    %cst_97 = arith.constant 5.000000e-01 : f32
    %269 = vector.broadcast %cst_97 : f32 to vector<8x128xf32>
    %270 = arith.mulf %269, %268 : vector<8x128xf32>
    %cst_98 = arith.constant 5.000000e-01 : f32
    %271 = vector.broadcast %cst_98 : f32 to vector<8x128xf32>
    %272 = arith.addf %270, %271 : vector<8x128xf32>
    %273 = vector.extract_strided_slice %256 {offsets = [0, 256], sizes = [8, 128], strides = [1, 1]} : vector<8x512xf32> to vector<8x128xf32>
    %274 = math.tanh %273 : vector<8x128xf32>
    %275 = vector.extract_strided_slice %256 {offsets = [0, 384], sizes = [8, 128], strides = [1, 1]} : vector<8x512xf32> to vector<8x128xf32>
    %cst_99 = arith.constant 5.000000e-01 : f32
    %276 = vector.broadcast %cst_99 : f32 to vector<8x128xf32>
    %277 = arith.mulf %276, %275 : vector<8x128xf32>
    %278 = math.tanh %277 : vector<8x128xf32>
    %cst_100 = arith.constant 5.000000e-01 : f32
    %279 = vector.broadcast %cst_100 : f32 to vector<8x128xf32>
    %280 = arith.mulf %279, %278 : vector<8x128xf32>
    %cst_101 = arith.constant 5.000000e-01 : f32
    %281 = vector.broadcast %cst_101 : f32 to vector<8x128xf32>
    %282 = arith.addf %280, %281 : vector<8x128xf32>
    %283 = arith.mulf %272, %201 : vector<8x128xf32>
    %284 = arith.mulf %264, %274 : vector<8x128xf32>
    %285 = arith.addf %283, %284 : vector<8x128xf32>
    %286 = math.tanh %285 : vector<8x128xf32>
    %287 = arith.mulf %282, %286 : vector<8x128xf32>
    %288 = vector.broadcast %208 : i32 to vector<8x1xi32>
    %289 = arith.cmpi slt, %288, %10 : vector<8x1xi32>
    %290 = vector.shape_cast %289 : vector<8x1xi1> to vector<8x1xi1>
    %291 = vector.broadcast %290 : vector<8x1xi1> to vector<8x128xi1>
    %292 = arith.select %291, %287, %198 : vector<8x128xi1>, vector<8x128xf32>
    %293 = vector.shape_cast %289 : vector<8x1xi1> to vector<8x1xi1>
    %294 = vector.broadcast %293 : vector<8x1xi1> to vector<8x128xi1>
    %295 = arith.select %294, %285, %201 : vector<8x128xi1>, vector<8x128xf32>
    %296 = vector.shape_cast %250 : vector<8x1xi1> to vector<8x1xi1>
    %297 = vector.broadcast %296 : vector<8x1xi1> to vector<8x128xi1>
    %298 = arith.select %297, %244, %204 : vector<8x128xi1>, vector<8x128xf32>
    %299 = vector.shape_cast %250 : vector<8x1xi1> to vector<8x1xi1>
    %300 = vector.broadcast %299 : vector<8x1xi1> to vector<8x128xi1>
    %301 = arith.select %300, %242, %207 : vector<8x128xi1>, vector<8x128xf32>
    %c3_i32 = arith.constant 3 : i32
    %302 = arith.addi %15, %c3_i32 : i32
    %cst_102 = arith.constant dense<0.000000e+00> : vector<8x512xf32>
    %303 = tpu.matmul %292, %12, %cst_102 {dimension_numbers = #tpu.dot_dimension_numbers<[1], [0], [0], [1], [0, 0, 1, 1], [], []>} : vector<8x128xf32>, vector<128x512xf32>, vector<8x512xf32> -> vector<8x512xf32>
    %cst_103 = arith.constant dense<0.000000e+00> : vector<8x512xf32>
    %304 = tpu.matmul %298, %13, %cst_103 {dimension_numbers = #tpu.dot_dimension_numbers<[1], [0], [0], [1], [0, 0, 1, 1], [], []>} : vector<8x128xf32>, vector<128x512xf32>, vector<8x512xf32> -> vector<8x512xf32>
    %305 = arith.addf %303, %304 : vector<8x512xf32>
    %306 = vector.broadcast %14 : vector<1x512xf32> to vector<8x512xf32>
    %307 = arith.addf %305, %306 : vector<8x512xf32>
    %308 = vector.extract_strided_slice %307 {offsets = [0, 0], sizes = [8, 128], strides = [1, 1]} : vector<8x512xf32> to vector<8x128xf32>
    %cst_104 = arith.constant 5.000000e-01 : f32
    %309 = vector.broadcast %cst_104 : f32 to vector<8x128xf32>
    %310 = arith.mulf %309, %308 : vector<8x128xf32>
    %311 = math.tanh %310 : vector<8x128xf32>
    %cst_105 = arith.constant 5.000000e-01 : f32
    %312 = vector.broadcast %cst_105 : f32 to vector<8x128xf32>
    %313 = arith.mulf %312, %311 : vector<8x128xf32>
    %cst_106 = arith.constant 5.000000e-01 : f32
    %314 = vector.broadcast %cst_106 : f32 to vector<8x128xf32>
    %315 = arith.addf %313, %314 : vector<8x128xf32>
    %316 = vector.extract_strided_slice %307 {offsets = [0, 128], sizes = [8, 128], strides = [1, 1]} : vector<8x512xf32> to vector<8x128xf32>
    %cst_107 = arith.constant 5.000000e-01 : f32
    %317 = vector.broadcast %cst_107 : f32 to vector<8x128xf32>
    %318 = arith.mulf %317, %316 : vector<8x128xf32>
    %319 = math.tanh %318 : vector<8x128xf32>
    %cst_108 = arith.constant 5.000000e-01 : f32
    %320 = vector.broadcast %cst_108 : f32 to vector<8x128xf32>
    %321 = arith.mulf %320, %319 : vector<8x128xf32>
    %cst_109 = arith.constant 5.000000e-01 : f32
    %322 = vector.broadcast %cst_109 : f32 to vector<8x128xf32>
    %323 = arith.addf %321, %322 : vector<8x128xf32>
    %324 = vector.extract_strided_slice %307 {offsets = [0, 256], sizes = [8, 128], strides = [1, 1]} : vector<8x512xf32> to vector<8x128xf32>
    %325 = math.tanh %324 : vector<8x128xf32>
    %326 = vector.extract_strided_slice %307 {offsets = [0, 384], sizes = [8, 128], strides = [1, 1]} : vector<8x512xf32> to vector<8x128xf32>
    %cst_110 = arith.constant 5.000000e-01 : f32
    %327 = vector.broadcast %cst_110 : f32 to vector<8x128xf32>
    %328 = arith.mulf %327, %326 : vector<8x128xf32>
    %329 = math.tanh %328 : vector<8x128xf32>
    %cst_111 = arith.constant 5.000000e-01 : f32
    %330 = vector.broadcast %cst_111 : f32 to vector<8x128xf32>
    %331 = arith.mulf %330, %329 : vector<8x128xf32>
    %cst_112 = arith.constant 5.000000e-01 : f32
    %332 = vector.broadcast %cst_112 : f32 to vector<8x128xf32>
    %333 = arith.addf %331, %332 : vector<8x128xf32>
    %334 = arith.mulf %323, %301 : vector<8x128xf32>
    %335 = arith.mulf %315, %325 : vector<8x128xf32>
    %336 = arith.addf %334, %335 : vector<8x128xf32>
    %337 = math.tanh %336 : vector<8x128xf32>
    %338 = arith.mulf %333, %337 : vector<8x128xf32>
    %c1_i32_113 = arith.constant 1 : i32
    %339 = arith.cmpi sge, %302, %c1_i32_113 : i32
    %c1_i32_114 = arith.constant 1 : i32
    %340 = arith.subi %302, %c1_i32_114 : i32
    %341 = vector.broadcast %340 : i32 to vector<8x1xi32>
    %342 = arith.cmpi slt, %341, %10 : vector<8x1xi32>
    %343 = vector.broadcast %339 : i1 to vector<8x1xi1>
    %344 = arith.andi %343, %342 : vector<8x1xi1>
    %c8_i32_115 = arith.constant 8 : i32
    %345 = arith.muli %c3_i32, %c8_i32_115 : i32
    %346 = tpu.assume_multiple %345, 8 : i32
    %347 = arith.index_cast %346 : i32 to index
    %c0_116 = arith.constant 0 : index
    %348 = vector.load %arg10[%347, %c0_116] : memref<64x512xf32, #tpu.memory_space<vmem>>, vector<8x512xf32>
    %cst_117 = arith.constant dense<0.000000e+00> : vector<8x512xf32>
    %349 = tpu.matmul %292, %11, %cst_117 {dimension_numbers = #tpu.dot_dimension_numbers<[1], [0], [0], [1], [0, 0, 1, 1], [], []>} : vector<8x128xf32>, vector<128x512xf32>, vector<8x512xf32> -> vector<8x512xf32>
    %350 = arith.addf %348, %349 : vector<8x512xf32>
    %351 = vector.extract_strided_slice %350 {offsets = [0, 0], sizes = [8, 128], strides = [1, 1]} : vector<8x512xf32> to vector<8x128xf32>
    %cst_118 = arith.constant 5.000000e-01 : f32
    %352 = vector.broadcast %cst_118 : f32 to vector<8x128xf32>
    %353 = arith.mulf %352, %351 : vector<8x128xf32>
    %354 = math.tanh %353 : vector<8x128xf32>
    %cst_119 = arith.constant 5.000000e-01 : f32
    %355 = vector.broadcast %cst_119 : f32 to vector<8x128xf32>
    %356 = arith.mulf %355, %354 : vector<8x128xf32>
    %cst_120 = arith.constant 5.000000e-01 : f32
    %357 = vector.broadcast %cst_120 : f32 to vector<8x128xf32>
    %358 = arith.addf %356, %357 : vector<8x128xf32>
    %359 = vector.extract_strided_slice %350 {offsets = [0, 128], sizes = [8, 128], strides = [1, 1]} : vector<8x512xf32> to vector<8x128xf32>
    %cst_121 = arith.constant 5.000000e-01 : f32
    %360 = vector.broadcast %cst_121 : f32 to vector<8x128xf32>
    %361 = arith.mulf %360, %359 : vector<8x128xf32>
    %362 = math.tanh %361 : vector<8x128xf32>
    %cst_122 = arith.constant 5.000000e-01 : f32
    %363 = vector.broadcast %cst_122 : f32 to vector<8x128xf32>
    %364 = arith.mulf %363, %362 : vector<8x128xf32>
    %cst_123 = arith.constant 5.000000e-01 : f32
    %365 = vector.broadcast %cst_123 : f32 to vector<8x128xf32>
    %366 = arith.addf %364, %365 : vector<8x128xf32>
    %367 = vector.extract_strided_slice %350 {offsets = [0, 256], sizes = [8, 128], strides = [1, 1]} : vector<8x512xf32> to vector<8x128xf32>
    %368 = math.tanh %367 : vector<8x128xf32>
    %369 = vector.extract_strided_slice %350 {offsets = [0, 384], sizes = [8, 128], strides = [1, 1]} : vector<8x512xf32> to vector<8x128xf32>
    %cst_124 = arith.constant 5.000000e-01 : f32
    %370 = vector.broadcast %cst_124 : f32 to vector<8x128xf32>
    %371 = arith.mulf %370, %369 : vector<8x128xf32>
    %372 = math.tanh %371 : vector<8x128xf32>
    %cst_125 = arith.constant 5.000000e-01 : f32
    %373 = vector.broadcast %cst_125 : f32 to vector<8x128xf32>
    %374 = arith.mulf %373, %372 : vector<8x128xf32>
    %cst_126 = arith.constant 5.000000e-01 : f32
    %375 = vector.broadcast %cst_126 : f32 to vector<8x128xf32>
    %376 = arith.addf %374, %375 : vector<8x128xf32>
    %377 = arith.mulf %366, %295 : vector<8x128xf32>
    %378 = arith.mulf %358, %368 : vector<8x128xf32>
    %379 = arith.addf %377, %378 : vector<8x128xf32>
    %380 = math.tanh %379 : vector<8x128xf32>
    %381 = arith.mulf %376, %380 : vector<8x128xf32>
    %382 = vector.broadcast %302 : i32 to vector<8x1xi32>
    %383 = arith.cmpi slt, %382, %10 : vector<8x1xi32>
    %384 = vector.shape_cast %383 : vector<8x1xi1> to vector<8x1xi1>
    %385 = vector.broadcast %384 : vector<8x1xi1> to vector<8x128xi1>
    %386 = arith.select %385, %381, %292 : vector<8x128xi1>, vector<8x128xf32>
    %387 = vector.shape_cast %383 : vector<8x1xi1> to vector<8x1xi1>
    %388 = vector.broadcast %387 : vector<8x1xi1> to vector<8x128xi1>
    %389 = arith.select %388, %379, %295 : vector<8x128xi1>, vector<8x128xf32>
    %390 = vector.shape_cast %344 : vector<8x1xi1> to vector<8x1xi1>
    %391 = vector.broadcast %390 : vector<8x1xi1> to vector<8x128xi1>
    %392 = arith.select %391, %338, %298 : vector<8x128xi1>, vector<8x128xf32>
    %393 = vector.shape_cast %344 : vector<8x1xi1> to vector<8x1xi1>
    %394 = vector.broadcast %393 : vector<8x1xi1> to vector<8x128xi1>
    %395 = arith.select %394, %336, %301 : vector<8x128xi1>, vector<8x128xf32>
    %c4_i32 = arith.constant 4 : i32
    %396 = arith.addi %15, %c4_i32 : i32
    %cst_127 = arith.constant dense<0.000000e+00> : vector<8x512xf32>
    %397 = tpu.matmul %386, %12, %cst_127 {dimension_numbers = #tpu.dot_dimension_numbers<[1], [0], [0], [1], [0, 0, 1, 1], [], []>} : vector<8x128xf32>, vector<128x512xf32>, vector<8x512xf32> -> vector<8x512xf32>
    %cst_128 = arith.constant dense<0.000000e+00> : vector<8x512xf32>
    %398 = tpu.matmul %392, %13, %cst_128 {dimension_numbers = #tpu.dot_dimension_numbers<[1], [0], [0], [1], [0, 0, 1, 1], [], []>} : vector<8x128xf32>, vector<128x512xf32>, vector<8x512xf32> -> vector<8x512xf32>
    %399 = arith.addf %397, %398 : vector<8x512xf32>
    %400 = vector.broadcast %14 : vector<1x512xf32> to vector<8x512xf32>
    %401 = arith.addf %399, %400 : vector<8x512xf32>
    %402 = vector.extract_strided_slice %401 {offsets = [0, 0], sizes = [8, 128], strides = [1, 1]} : vector<8x512xf32> to vector<8x128xf32>
    %cst_129 = arith.constant 5.000000e-01 : f32
    %403 = vector.broadcast %cst_129 : f32 to vector<8x128xf32>
    %404 = arith.mulf %403, %402 : vector<8x128xf32>
    %405 = math.tanh %404 : vector<8x128xf32>
    %cst_130 = arith.constant 5.000000e-01 : f32
    %406 = vector.broadcast %cst_130 : f32 to vector<8x128xf32>
    %407 = arith.mulf %406, %405 : vector<8x128xf32>
    %cst_131 = arith.constant 5.000000e-01 : f32
    %408 = vector.broadcast %cst_131 : f32 to vector<8x128xf32>
    %409 = arith.addf %407, %408 : vector<8x128xf32>
    %410 = vector.extract_strided_slice %401 {offsets = [0, 128], sizes = [8, 128], strides = [1, 1]} : vector<8x512xf32> to vector<8x128xf32>
    %cst_132 = arith.constant 5.000000e-01 : f32
    %411 = vector.broadcast %cst_132 : f32 to vector<8x128xf32>
    %412 = arith.mulf %411, %410 : vector<8x128xf32>
    %413 = math.tanh %412 : vector<8x128xf32>
    %cst_133 = arith.constant 5.000000e-01 : f32
    %414 = vector.broadcast %cst_133 : f32 to vector<8x128xf32>
    %415 = arith.mulf %414, %413 : vector<8x128xf32>
    %cst_134 = arith.constant 5.000000e-01 : f32
    %416 = vector.broadcast %cst_134 : f32 to vector<8x128xf32>
    %417 = arith.addf %415, %416 : vector<8x128xf32>
    %418 = vector.extract_strided_slice %401 {offsets = [0, 256], sizes = [8, 128], strides = [1, 1]} : vector<8x512xf32> to vector<8x128xf32>
    %419 = math.tanh %418 : vector<8x128xf32>
    %420 = vector.extract_strided_slice %401 {offsets = [0, 384], sizes = [8, 128], strides = [1, 1]} : vector<8x512xf32> to vector<8x128xf32>
    %cst_135 = arith.constant 5.000000e-01 : f32
    %421 = vector.broadcast %cst_135 : f32 to vector<8x128xf32>
    %422 = arith.mulf %421, %420 : vector<8x128xf32>
    %423 = math.tanh %422 : vector<8x128xf32>
    %cst_136 = arith.constant 5.000000e-01 : f32
    %424 = vector.broadcast %cst_136 : f32 to vector<8x128xf32>
    %425 = arith.mulf %424, %423 : vector<8x128xf32>
    %cst_137 = arith.constant 5.000000e-01 : f32
    %426 = vector.broadcast %cst_137 : f32 to vector<8x128xf32>
    %427 = arith.addf %425, %426 : vector<8x128xf32>
    %428 = arith.mulf %417, %395 : vector<8x128xf32>
    %429 = arith.mulf %409, %419 : vector<8x128xf32>
    %430 = arith.addf %428, %429 : vector<8x128xf32>
    %431 = math.tanh %430 : vector<8x128xf32>
    %432 = arith.mulf %427, %431 : vector<8x128xf32>
    %c1_i32_138 = arith.constant 1 : i32
    %433 = arith.cmpi sge, %396, %c1_i32_138 : i32
    %c1_i32_139 = arith.constant 1 : i32
    %434 = arith.subi %396, %c1_i32_139 : i32
    %435 = vector.broadcast %434 : i32 to vector<8x1xi32>
    %436 = arith.cmpi slt, %435, %10 : vector<8x1xi32>
    %437 = vector.broadcast %433 : i1 to vector<8x1xi1>
    %438 = arith.andi %437, %436 : vector<8x1xi1>
    %c8_i32_140 = arith.constant 8 : i32
    %439 = arith.muli %c4_i32, %c8_i32_140 : i32
    %440 = tpu.assume_multiple %439, 8 : i32
    %441 = arith.index_cast %440 : i32 to index
    %c0_141 = arith.constant 0 : index
    %442 = vector.load %arg10[%441, %c0_141] : memref<64x512xf32, #tpu.memory_space<vmem>>, vector<8x512xf32>
    %cst_142 = arith.constant dense<0.000000e+00> : vector<8x512xf32>
    %443 = tpu.matmul %386, %11, %cst_142 {dimension_numbers = #tpu.dot_dimension_numbers<[1], [0], [0], [1], [0, 0, 1, 1], [], []>} : vector<8x128xf32>, vector<128x512xf32>, vector<8x512xf32> -> vector<8x512xf32>
    %444 = arith.addf %442, %443 : vector<8x512xf32>
    %445 = vector.extract_strided_slice %444 {offsets = [0, 0], sizes = [8, 128], strides = [1, 1]} : vector<8x512xf32> to vector<8x128xf32>
    %cst_143 = arith.constant 5.000000e-01 : f32
    %446 = vector.broadcast %cst_143 : f32 to vector<8x128xf32>
    %447 = arith.mulf %446, %445 : vector<8x128xf32>
    %448 = math.tanh %447 : vector<8x128xf32>
    %cst_144 = arith.constant 5.000000e-01 : f32
    %449 = vector.broadcast %cst_144 : f32 to vector<8x128xf32>
    %450 = arith.mulf %449, %448 : vector<8x128xf32>
    %cst_145 = arith.constant 5.000000e-01 : f32
    %451 = vector.broadcast %cst_145 : f32 to vector<8x128xf32>
    %452 = arith.addf %450, %451 : vector<8x128xf32>
    %453 = vector.extract_strided_slice %444 {offsets = [0, 128], sizes = [8, 128], strides = [1, 1]} : vector<8x512xf32> to vector<8x128xf32>
    %cst_146 = arith.constant 5.000000e-01 : f32
    %454 = vector.broadcast %cst_146 : f32 to vector<8x128xf32>
    %455 = arith.mulf %454, %453 : vector<8x128xf32>
    %456 = math.tanh %455 : vector<8x128xf32>
    %cst_147 = arith.constant 5.000000e-01 : f32
    %457 = vector.broadcast %cst_147 : f32 to vector<8x128xf32>
    %458 = arith.mulf %457, %456 : vector<8x128xf32>
    %cst_148 = arith.constant 5.000000e-01 : f32
    %459 = vector.broadcast %cst_148 : f32 to vector<8x128xf32>
    %460 = arith.addf %458, %459 : vector<8x128xf32>
    %461 = vector.extract_strided_slice %444 {offsets = [0, 256], sizes = [8, 128], strides = [1, 1]} : vector<8x512xf32> to vector<8x128xf32>
    %462 = math.tanh %461 : vector<8x128xf32>
    %463 = vector.extract_strided_slice %444 {offsets = [0, 384], sizes = [8, 128], strides = [1, 1]} : vector<8x512xf32> to vector<8x128xf32>
    %cst_149 = arith.constant 5.000000e-01 : f32
    %464 = vector.broadcast %cst_149 : f32 to vector<8x128xf32>
    %465 = arith.mulf %464, %463 : vector<8x128xf32>
    %466 = math.tanh %465 : vector<8x128xf32>
    %cst_150 = arith.constant 5.000000e-01 : f32
    %467 = vector.broadcast %cst_150 : f32 to vector<8x128xf32>
    %468 = arith.mulf %467, %466 : vector<8x128xf32>
    %cst_151 = arith.constant 5.000000e-01 : f32
    %469 = vector.broadcast %cst_151 : f32 to vector<8x128xf32>
    %470 = arith.addf %468, %469 : vector<8x128xf32>
    %471 = arith.mulf %460, %389 : vector<8x128xf32>
    %472 = arith.mulf %452, %462 : vector<8x128xf32>
    %473 = arith.addf %471, %472 : vector<8x128xf32>
    %474 = math.tanh %473 : vector<8x128xf32>
    %475 = arith.mulf %470, %474 : vector<8x128xf32>
    %476 = vector.broadcast %396 : i32 to vector<8x1xi32>
    %477 = arith.cmpi slt, %476, %10 : vector<8x1xi32>
    %478 = vector.shape_cast %477 : vector<8x1xi1> to vector<8x1xi1>
    %479 = vector.broadcast %478 : vector<8x1xi1> to vector<8x128xi1>
    %480 = arith.select %479, %475, %386 : vector<8x128xi1>, vector<8x128xf32>
    %481 = vector.shape_cast %477 : vector<8x1xi1> to vector<8x1xi1>
    %482 = vector.broadcast %481 : vector<8x1xi1> to vector<8x128xi1>
    %483 = arith.select %482, %473, %389 : vector<8x128xi1>, vector<8x128xf32>
    %484 = vector.shape_cast %438 : vector<8x1xi1> to vector<8x1xi1>
    %485 = vector.broadcast %484 : vector<8x1xi1> to vector<8x128xi1>
    %486 = arith.select %485, %432, %392 : vector<8x128xi1>, vector<8x128xf32>
    %487 = vector.shape_cast %438 : vector<8x1xi1> to vector<8x1xi1>
    %488 = vector.broadcast %487 : vector<8x1xi1> to vector<8x128xi1>
    %489 = arith.select %488, %430, %395 : vector<8x128xi1>, vector<8x128xf32>
    %c5_i32 = arith.constant 5 : i32
    %490 = arith.addi %15, %c5_i32 : i32
    %cst_152 = arith.constant dense<0.000000e+00> : vector<8x512xf32>
    %491 = tpu.matmul %480, %12, %cst_152 {dimension_numbers = #tpu.dot_dimension_numbers<[1], [0], [0], [1], [0, 0, 1, 1], [], []>} : vector<8x128xf32>, vector<128x512xf32>, vector<8x512xf32> -> vector<8x512xf32>
    %cst_153 = arith.constant dense<0.000000e+00> : vector<8x512xf32>
    %492 = tpu.matmul %486, %13, %cst_153 {dimension_numbers = #tpu.dot_dimension_numbers<[1], [0], [0], [1], [0, 0, 1, 1], [], []>} : vector<8x128xf32>, vector<128x512xf32>, vector<8x512xf32> -> vector<8x512xf32>
    %493 = arith.addf %491, %492 : vector<8x512xf32>
    %494 = vector.broadcast %14 : vector<1x512xf32> to vector<8x512xf32>
    %495 = arith.addf %493, %494 : vector<8x512xf32>
    %496 = vector.extract_strided_slice %495 {offsets = [0, 0], sizes = [8, 128], strides = [1, 1]} : vector<8x512xf32> to vector<8x128xf32>
    %cst_154 = arith.constant 5.000000e-01 : f32
    %497 = vector.broadcast %cst_154 : f32 to vector<8x128xf32>
    %498 = arith.mulf %497, %496 : vector<8x128xf32>
    %499 = math.tanh %498 : vector<8x128xf32>
    %cst_155 = arith.constant 5.000000e-01 : f32
    %500 = vector.broadcast %cst_155 : f32 to vector<8x128xf32>
    %501 = arith.mulf %500, %499 : vector<8x128xf32>
    %cst_156 = arith.constant 5.000000e-01 : f32
    %502 = vector.broadcast %cst_156 : f32 to vector<8x128xf32>
    %503 = arith.addf %501, %502 : vector<8x128xf32>
    %504 = vector.extract_strided_slice %495 {offsets = [0, 128], sizes = [8, 128], strides = [1, 1]} : vector<8x512xf32> to vector<8x128xf32>
    %cst_157 = arith.constant 5.000000e-01 : f32
    %505 = vector.broadcast %cst_157 : f32 to vector<8x128xf32>
    %506 = arith.mulf %505, %504 : vector<8x128xf32>
    %507 = math.tanh %506 : vector<8x128xf32>
    %cst_158 = arith.constant 5.000000e-01 : f32
    %508 = vector.broadcast %cst_158 : f32 to vector<8x128xf32>
    %509 = arith.mulf %508, %507 : vector<8x128xf32>
    %cst_159 = arith.constant 5.000000e-01 : f32
    %510 = vector.broadcast %cst_159 : f32 to vector<8x128xf32>
    %511 = arith.addf %509, %510 : vector<8x128xf32>
    %512 = vector.extract_strided_slice %495 {offsets = [0, 256], sizes = [8, 128], strides = [1, 1]} : vector<8x512xf32> to vector<8x128xf32>
    %513 = math.tanh %512 : vector<8x128xf32>
    %514 = vector.extract_strided_slice %495 {offsets = [0, 384], sizes = [8, 128], strides = [1, 1]} : vector<8x512xf32> to vector<8x128xf32>
    %cst_160 = arith.constant 5.000000e-01 : f32
    %515 = vector.broadcast %cst_160 : f32 to vector<8x128xf32>
    %516 = arith.mulf %515, %514 : vector<8x128xf32>
    %517 = math.tanh %516 : vector<8x128xf32>
    %cst_161 = arith.constant 5.000000e-01 : f32
    %518 = vector.broadcast %cst_161 : f32 to vector<8x128xf32>
    %519 = arith.mulf %518, %517 : vector<8x128xf32>
    %cst_162 = arith.constant 5.000000e-01 : f32
    %520 = vector.broadcast %cst_162 : f32 to vector<8x128xf32>
    %521 = arith.addf %519, %520 : vector<8x128xf32>
    %522 = arith.mulf %511, %489 : vector<8x128xf32>
    %523 = arith.mulf %503, %513 : vector<8x128xf32>
    %524 = arith.addf %522, %523 : vector<8x128xf32>
    %525 = math.tanh %524 : vector<8x128xf32>
    %526 = arith.mulf %521, %525 : vector<8x128xf32>
    %c1_i32_163 = arith.constant 1 : i32
    %527 = arith.cmpi sge, %490, %c1_i32_163 : i32
    %c1_i32_164 = arith.constant 1 : i32
    %528 = arith.subi %490, %c1_i32_164 : i32
    %529 = vector.broadcast %528 : i32 to vector<8x1xi32>
    %530 = arith.cmpi slt, %529, %10 : vector<8x1xi32>
    %531 = vector.broadcast %527 : i1 to vector<8x1xi1>
    %532 = arith.andi %531, %530 : vector<8x1xi1>
    %c8_i32_165 = arith.constant 8 : i32
    %533 = arith.muli %c5_i32, %c8_i32_165 : i32
    %534 = tpu.assume_multiple %533, 8 : i32
    %535 = arith.index_cast %534 : i32 to index
    %c0_166 = arith.constant 0 : index
    %536 = vector.load %arg10[%535, %c0_166] : memref<64x512xf32, #tpu.memory_space<vmem>>, vector<8x512xf32>
    %cst_167 = arith.constant dense<0.000000e+00> : vector<8x512xf32>
    %537 = tpu.matmul %480, %11, %cst_167 {dimension_numbers = #tpu.dot_dimension_numbers<[1], [0], [0], [1], [0, 0, 1, 1], [], []>} : vector<8x128xf32>, vector<128x512xf32>, vector<8x512xf32> -> vector<8x512xf32>
    %538 = arith.addf %536, %537 : vector<8x512xf32>
    %539 = vector.extract_strided_slice %538 {offsets = [0, 0], sizes = [8, 128], strides = [1, 1]} : vector<8x512xf32> to vector<8x128xf32>
    %cst_168 = arith.constant 5.000000e-01 : f32
    %540 = vector.broadcast %cst_168 : f32 to vector<8x128xf32>
    %541 = arith.mulf %540, %539 : vector<8x128xf32>
    %542 = math.tanh %541 : vector<8x128xf32>
    %cst_169 = arith.constant 5.000000e-01 : f32
    %543 = vector.broadcast %cst_169 : f32 to vector<8x128xf32>
    %544 = arith.mulf %543, %542 : vector<8x128xf32>
    %cst_170 = arith.constant 5.000000e-01 : f32
    %545 = vector.broadcast %cst_170 : f32 to vector<8x128xf32>
    %546 = arith.addf %544, %545 : vector<8x128xf32>
    %547 = vector.extract_strided_slice %538 {offsets = [0, 128], sizes = [8, 128], strides = [1, 1]} : vector<8x512xf32> to vector<8x128xf32>
    %cst_171 = arith.constant 5.000000e-01 : f32
    %548 = vector.broadcast %cst_171 : f32 to vector<8x128xf32>
    %549 = arith.mulf %548, %547 : vector<8x128xf32>
    %550 = math.tanh %549 : vector<8x128xf32>
    %cst_172 = arith.constant 5.000000e-01 : f32
    %551 = vector.broadcast %cst_172 : f32 to vector<8x128xf32>
    %552 = arith.mulf %551, %550 : vector<8x128xf32>
    %cst_173 = arith.constant 5.000000e-01 : f32
    %553 = vector.broadcast %cst_173 : f32 to vector<8x128xf32>
    %554 = arith.addf %552, %553 : vector<8x128xf32>
    %555 = vector.extract_strided_slice %538 {offsets = [0, 256], sizes = [8, 128], strides = [1, 1]} : vector<8x512xf32> to vector<8x128xf32>
    %556 = math.tanh %555 : vector<8x128xf32>
    %557 = vector.extract_strided_slice %538 {offsets = [0, 384], sizes = [8, 128], strides = [1, 1]} : vector<8x512xf32> to vector<8x128xf32>
    %cst_174 = arith.constant 5.000000e-01 : f32
    %558 = vector.broadcast %cst_174 : f32 to vector<8x128xf32>
    %559 = arith.mulf %558, %557 : vector<8x128xf32>
    %560 = math.tanh %559 : vector<8x128xf32>
    %cst_175 = arith.constant 5.000000e-01 : f32
    %561 = vector.broadcast %cst_175 : f32 to vector<8x128xf32>
    %562 = arith.mulf %561, %560 : vector<8x128xf32>
    %cst_176 = arith.constant 5.000000e-01 : f32
    %563 = vector.broadcast %cst_176 : f32 to vector<8x128xf32>
    %564 = arith.addf %562, %563 : vector<8x128xf32>
    %565 = arith.mulf %554, %483 : vector<8x128xf32>
    %566 = arith.mulf %546, %556 : vector<8x128xf32>
    %567 = arith.addf %565, %566 : vector<8x128xf32>
    %568 = math.tanh %567 : vector<8x128xf32>
    %569 = arith.mulf %564, %568 : vector<8x128xf32>
    %570 = vector.broadcast %490 : i32 to vector<8x1xi32>
    %571 = arith.cmpi slt, %570, %10 : vector<8x1xi32>
    %572 = vector.shape_cast %571 : vector<8x1xi1> to vector<8x1xi1>
    %573 = vector.broadcast %572 : vector<8x1xi1> to vector<8x128xi1>
    %574 = arith.select %573, %569, %480 : vector<8x128xi1>, vector<8x128xf32>
    %575 = vector.shape_cast %571 : vector<8x1xi1> to vector<8x1xi1>
    %576 = vector.broadcast %575 : vector<8x1xi1> to vector<8x128xi1>
    %577 = arith.select %576, %567, %483 : vector<8x128xi1>, vector<8x128xf32>
    %578 = vector.shape_cast %532 : vector<8x1xi1> to vector<8x1xi1>
    %579 = vector.broadcast %578 : vector<8x1xi1> to vector<8x128xi1>
    %580 = arith.select %579, %526, %486 : vector<8x128xi1>, vector<8x128xf32>
    %581 = vector.shape_cast %532 : vector<8x1xi1> to vector<8x1xi1>
    %582 = vector.broadcast %581 : vector<8x1xi1> to vector<8x128xi1>
    %583 = arith.select %582, %524, %489 : vector<8x128xi1>, vector<8x128xf32>
    %c6_i32 = arith.constant 6 : i32
    %584 = arith.addi %15, %c6_i32 : i32
    %cst_177 = arith.constant dense<0.000000e+00> : vector<8x512xf32>
    %585 = tpu.matmul %574, %12, %cst_177 {dimension_numbers = #tpu.dot_dimension_numbers<[1], [0], [0], [1], [0, 0, 1, 1], [], []>} : vector<8x128xf32>, vector<128x512xf32>, vector<8x512xf32> -> vector<8x512xf32>
    %cst_178 = arith.constant dense<0.000000e+00> : vector<8x512xf32>
    %586 = tpu.matmul %580, %13, %cst_178 {dimension_numbers = #tpu.dot_dimension_numbers<[1], [0], [0], [1], [0, 0, 1, 1], [], []>} : vector<8x128xf32>, vector<128x512xf32>, vector<8x512xf32> -> vector<8x512xf32>
    %587 = arith.addf %585, %586 : vector<8x512xf32>
    %588 = vector.broadcast %14 : vector<1x512xf32> to vector<8x512xf32>
    %589 = arith.addf %587, %588 : vector<8x512xf32>
    %590 = vector.extract_strided_slice %589 {offsets = [0, 0], sizes = [8, 128], strides = [1, 1]} : vector<8x512xf32> to vector<8x128xf32>
    %cst_179 = arith.constant 5.000000e-01 : f32
    %591 = vector.broadcast %cst_179 : f32 to vector<8x128xf32>
    %592 = arith.mulf %591, %590 : vector<8x128xf32>
    %593 = math.tanh %592 : vector<8x128xf32>
    %cst_180 = arith.constant 5.000000e-01 : f32
    %594 = vector.broadcast %cst_180 : f32 to vector<8x128xf32>
    %595 = arith.mulf %594, %593 : vector<8x128xf32>
    %cst_181 = arith.constant 5.000000e-01 : f32
    %596 = vector.broadcast %cst_181 : f32 to vector<8x128xf32>
    %597 = arith.addf %595, %596 : vector<8x128xf32>
    %598 = vector.extract_strided_slice %589 {offsets = [0, 128], sizes = [8, 128], strides = [1, 1]} : vector<8x512xf32> to vector<8x128xf32>
    %cst_182 = arith.constant 5.000000e-01 : f32
    %599 = vector.broadcast %cst_182 : f32 to vector<8x128xf32>
    %600 = arith.mulf %599, %598 : vector<8x128xf32>
    %601 = math.tanh %600 : vector<8x128xf32>
    %cst_183 = arith.constant 5.000000e-01 : f32
    %602 = vector.broadcast %cst_183 : f32 to vector<8x128xf32>
    %603 = arith.mulf %602, %601 : vector<8x128xf32>
    %cst_184 = arith.constant 5.000000e-01 : f32
    %604 = vector.broadcast %cst_184 : f32 to vector<8x128xf32>
    %605 = arith.addf %603, %604 : vector<8x128xf32>
    %606 = vector.extract_strided_slice %589 {offsets = [0, 256], sizes = [8, 128], strides = [1, 1]} : vector<8x512xf32> to vector<8x128xf32>
    %607 = math.tanh %606 : vector<8x128xf32>
    %608 = vector.extract_strided_slice %589 {offsets = [0, 384], sizes = [8, 128], strides = [1, 1]} : vector<8x512xf32> to vector<8x128xf32>
    %cst_185 = arith.constant 5.000000e-01 : f32
    %609 = vector.broadcast %cst_185 : f32 to vector<8x128xf32>
    %610 = arith.mulf %609, %608 : vector<8x128xf32>
    %611 = math.tanh %610 : vector<8x128xf32>
    %cst_186 = arith.constant 5.000000e-01 : f32
    %612 = vector.broadcast %cst_186 : f32 to vector<8x128xf32>
    %613 = arith.mulf %612, %611 : vector<8x128xf32>
    %cst_187 = arith.constant 5.000000e-01 : f32
    %614 = vector.broadcast %cst_187 : f32 to vector<8x128xf32>
    %615 = arith.addf %613, %614 : vector<8x128xf32>
    %616 = arith.mulf %605, %583 : vector<8x128xf32>
    %617 = arith.mulf %597, %607 : vector<8x128xf32>
    %618 = arith.addf %616, %617 : vector<8x128xf32>
    %619 = math.tanh %618 : vector<8x128xf32>
    %620 = arith.mulf %615, %619 : vector<8x128xf32>
    %c1_i32_188 = arith.constant 1 : i32
    %621 = arith.cmpi sge, %584, %c1_i32_188 : i32
    %c1_i32_189 = arith.constant 1 : i32
    %622 = arith.subi %584, %c1_i32_189 : i32
    %623 = vector.broadcast %622 : i32 to vector<8x1xi32>
    %624 = arith.cmpi slt, %623, %10 : vector<8x1xi32>
    %625 = vector.broadcast %621 : i1 to vector<8x1xi1>
    %626 = arith.andi %625, %624 : vector<8x1xi1>
    %c8_i32_190 = arith.constant 8 : i32
    %627 = arith.muli %c6_i32, %c8_i32_190 : i32
    %628 = tpu.assume_multiple %627, 8 : i32
    %629 = arith.index_cast %628 : i32 to index
    %c0_191 = arith.constant 0 : index
    %630 = vector.load %arg10[%629, %c0_191] : memref<64x512xf32, #tpu.memory_space<vmem>>, vector<8x512xf32>
    %cst_192 = arith.constant dense<0.000000e+00> : vector<8x512xf32>
    %631 = tpu.matmul %574, %11, %cst_192 {dimension_numbers = #tpu.dot_dimension_numbers<[1], [0], [0], [1], [0, 0, 1, 1], [], []>} : vector<8x128xf32>, vector<128x512xf32>, vector<8x512xf32> -> vector<8x512xf32>
    %632 = arith.addf %630, %631 : vector<8x512xf32>
    %633 = vector.extract_strided_slice %632 {offsets = [0, 0], sizes = [8, 128], strides = [1, 1]} : vector<8x512xf32> to vector<8x128xf32>
    %cst_193 = arith.constant 5.000000e-01 : f32
    %634 = vector.broadcast %cst_193 : f32 to vector<8x128xf32>
    %635 = arith.mulf %634, %633 : vector<8x128xf32>
    %636 = math.tanh %635 : vector<8x128xf32>
    %cst_194 = arith.constant 5.000000e-01 : f32
    %637 = vector.broadcast %cst_194 : f32 to vector<8x128xf32>
    %638 = arith.mulf %637, %636 : vector<8x128xf32>
    %cst_195 = arith.constant 5.000000e-01 : f32
    %639 = vector.broadcast %cst_195 : f32 to vector<8x128xf32>
    %640 = arith.addf %638, %639 : vector<8x128xf32>
    %641 = vector.extract_strided_slice %632 {offsets = [0, 128], sizes = [8, 128], strides = [1, 1]} : vector<8x512xf32> to vector<8x128xf32>
    %cst_196 = arith.constant 5.000000e-01 : f32
    %642 = vector.broadcast %cst_196 : f32 to vector<8x128xf32>
    %643 = arith.mulf %642, %641 : vector<8x128xf32>
    %644 = math.tanh %643 : vector<8x128xf32>
    %cst_197 = arith.constant 5.000000e-01 : f32
    %645 = vector.broadcast %cst_197 : f32 to vector<8x128xf32>
    %646 = arith.mulf %645, %644 : vector<8x128xf32>
    %cst_198 = arith.constant 5.000000e-01 : f32
    %647 = vector.broadcast %cst_198 : f32 to vector<8x128xf32>
    %648 = arith.addf %646, %647 : vector<8x128xf32>
    %649 = vector.extract_strided_slice %632 {offsets = [0, 256], sizes = [8, 128], strides = [1, 1]} : vector<8x512xf32> to vector<8x128xf32>
    %650 = math.tanh %649 : vector<8x128xf32>
    %651 = vector.extract_strided_slice %632 {offsets = [0, 384], sizes = [8, 128], strides = [1, 1]} : vector<8x512xf32> to vector<8x128xf32>
    %cst_199 = arith.constant 5.000000e-01 : f32
    %652 = vector.broadcast %cst_199 : f32 to vector<8x128xf32>
    %653 = arith.mulf %652, %651 : vector<8x128xf32>
    %654 = math.tanh %653 : vector<8x128xf32>
    %cst_200 = arith.constant 5.000000e-01 : f32
    %655 = vector.broadcast %cst_200 : f32 to vector<8x128xf32>
    %656 = arith.mulf %655, %654 : vector<8x128xf32>
    %cst_201 = arith.constant 5.000000e-01 : f32
    %657 = vector.broadcast %cst_201 : f32 to vector<8x128xf32>
    %658 = arith.addf %656, %657 : vector<8x128xf32>
    %659 = arith.mulf %648, %577 : vector<8x128xf32>
    %660 = arith.mulf %640, %650 : vector<8x128xf32>
    %661 = arith.addf %659, %660 : vector<8x128xf32>
    %662 = math.tanh %661 : vector<8x128xf32>
    %663 = arith.mulf %658, %662 : vector<8x128xf32>
    %664 = vector.broadcast %584 : i32 to vector<8x1xi32>
    %665 = arith.cmpi slt, %664, %10 : vector<8x1xi32>
    %666 = vector.shape_cast %665 : vector<8x1xi1> to vector<8x1xi1>
    %667 = vector.broadcast %666 : vector<8x1xi1> to vector<8x128xi1>
    %668 = arith.select %667, %663, %574 : vector<8x128xi1>, vector<8x128xf32>
    %669 = vector.shape_cast %665 : vector<8x1xi1> to vector<8x1xi1>
    %670 = vector.broadcast %669 : vector<8x1xi1> to vector<8x128xi1>
    %671 = arith.select %670, %661, %577 : vector<8x128xi1>, vector<8x128xf32>
    %672 = vector.shape_cast %626 : vector<8x1xi1> to vector<8x1xi1>
    %673 = vector.broadcast %672 : vector<8x1xi1> to vector<8x128xi1>
    %674 = arith.select %673, %620, %580 : vector<8x128xi1>, vector<8x128xf32>
    %675 = vector.shape_cast %626 : vector<8x1xi1> to vector<8x1xi1>
    %676 = vector.broadcast %675 : vector<8x1xi1> to vector<8x128xi1>
    %677 = arith.select %676, %618, %583 : vector<8x128xi1>, vector<8x128xf32>
    %c7_i32 = arith.constant 7 : i32
    %678 = arith.addi %15, %c7_i32 : i32
    %cst_202 = arith.constant dense<0.000000e+00> : vector<8x512xf32>
    %679 = tpu.matmul %668, %12, %cst_202 {dimension_numbers = #tpu.dot_dimension_numbers<[1], [0], [0], [1], [0, 0, 1, 1], [], []>} : vector<8x128xf32>, vector<128x512xf32>, vector<8x512xf32> -> vector<8x512xf32>
    %cst_203 = arith.constant dense<0.000000e+00> : vector<8x512xf32>
    %680 = tpu.matmul %674, %13, %cst_203 {dimension_numbers = #tpu.dot_dimension_numbers<[1], [0], [0], [1], [0, 0, 1, 1], [], []>} : vector<8x128xf32>, vector<128x512xf32>, vector<8x512xf32> -> vector<8x512xf32>
    %681 = arith.addf %679, %680 : vector<8x512xf32>
    %682 = vector.broadcast %14 : vector<1x512xf32> to vector<8x512xf32>
    %683 = arith.addf %681, %682 : vector<8x512xf32>
    %684 = vector.extract_strided_slice %683 {offsets = [0, 0], sizes = [8, 128], strides = [1, 1]} : vector<8x512xf32> to vector<8x128xf32>
    %cst_204 = arith.constant 5.000000e-01 : f32
    %685 = vector.broadcast %cst_204 : f32 to vector<8x128xf32>
    %686 = arith.mulf %685, %684 : vector<8x128xf32>
    %687 = math.tanh %686 : vector<8x128xf32>
    %cst_205 = arith.constant 5.000000e-01 : f32
    %688 = vector.broadcast %cst_205 : f32 to vector<8x128xf32>
    %689 = arith.mulf %688, %687 : vector<8x128xf32>
    %cst_206 = arith.constant 5.000000e-01 : f32
    %690 = vector.broadcast %cst_206 : f32 to vector<8x128xf32>
    %691 = arith.addf %689, %690 : vector<8x128xf32>
    %692 = vector.extract_strided_slice %683 {offsets = [0, 128], sizes = [8, 128], strides = [1, 1]} : vector<8x512xf32> to vector<8x128xf32>
    %cst_207 = arith.constant 5.000000e-01 : f32
    %693 = vector.broadcast %cst_207 : f32 to vector<8x128xf32>
    %694 = arith.mulf %693, %692 : vector<8x128xf32>
    %695 = math.tanh %694 : vector<8x128xf32>
    %cst_208 = arith.constant 5.000000e-01 : f32
    %696 = vector.broadcast %cst_208 : f32 to vector<8x128xf32>
    %697 = arith.mulf %696, %695 : vector<8x128xf32>
    %cst_209 = arith.constant 5.000000e-01 : f32
    %698 = vector.broadcast %cst_209 : f32 to vector<8x128xf32>
    %699 = arith.addf %697, %698 : vector<8x128xf32>
    %700 = vector.extract_strided_slice %683 {offsets = [0, 256], sizes = [8, 128], strides = [1, 1]} : vector<8x512xf32> to vector<8x128xf32>
    %701 = math.tanh %700 : vector<8x128xf32>
    %702 = vector.extract_strided_slice %683 {offsets = [0, 384], sizes = [8, 128], strides = [1, 1]} : vector<8x512xf32> to vector<8x128xf32>
    %cst_210 = arith.constant 5.000000e-01 : f32
    %703 = vector.broadcast %cst_210 : f32 to vector<8x128xf32>
    %704 = arith.mulf %703, %702 : vector<8x128xf32>
    %705 = math.tanh %704 : vector<8x128xf32>
    %cst_211 = arith.constant 5.000000e-01 : f32
    %706 = vector.broadcast %cst_211 : f32 to vector<8x128xf32>
    %707 = arith.mulf %706, %705 : vector<8x128xf32>
    %cst_212 = arith.constant 5.000000e-01 : f32
    %708 = vector.broadcast %cst_212 : f32 to vector<8x128xf32>
    %709 = arith.addf %707, %708 : vector<8x128xf32>
    %710 = arith.mulf %699, %677 : vector<8x128xf32>
    %711 = arith.mulf %691, %701 : vector<8x128xf32>
    %712 = arith.addf %710, %711 : vector<8x128xf32>
    %713 = math.tanh %712 : vector<8x128xf32>
    %714 = arith.mulf %709, %713 : vector<8x128xf32>
    %c1_i32_213 = arith.constant 1 : i32
    %715 = arith.cmpi sge, %678, %c1_i32_213 : i32
    %c1_i32_214 = arith.constant 1 : i32
    %716 = arith.subi %678, %c1_i32_214 : i32
    %717 = vector.broadcast %716 : i32 to vector<8x1xi32>
    %718 = arith.cmpi slt, %717, %10 : vector<8x1xi32>
    %719 = vector.broadcast %715 : i1 to vector<8x1xi1>
    %720 = arith.andi %719, %718 : vector<8x1xi1>
    %c8_i32_215 = arith.constant 8 : i32
    %721 = arith.muli %c7_i32, %c8_i32_215 : i32
    %722 = tpu.assume_multiple %721, 8 : i32
    %723 = arith.index_cast %722 : i32 to index
    %c0_216 = arith.constant 0 : index
    %724 = vector.load %arg10[%723, %c0_216] : memref<64x512xf32, #tpu.memory_space<vmem>>, vector<8x512xf32>
    %cst_217 = arith.constant dense<0.000000e+00> : vector<8x512xf32>
    %725 = tpu.matmul %668, %11, %cst_217 {dimension_numbers = #tpu.dot_dimension_numbers<[1], [0], [0], [1], [0, 0, 1, 1], [], []>} : vector<8x128xf32>, vector<128x512xf32>, vector<8x512xf32> -> vector<8x512xf32>
    %726 = arith.addf %724, %725 : vector<8x512xf32>
    %727 = vector.extract_strided_slice %726 {offsets = [0, 0], sizes = [8, 128], strides = [1, 1]} : vector<8x512xf32> to vector<8x128xf32>
    %cst_218 = arith.constant 5.000000e-01 : f32
    %728 = vector.broadcast %cst_218 : f32 to vector<8x128xf32>
    %729 = arith.mulf %728, %727 : vector<8x128xf32>
    %730 = math.tanh %729 : vector<8x128xf32>
    %cst_219 = arith.constant 5.000000e-01 : f32
    %731 = vector.broadcast %cst_219 : f32 to vector<8x128xf32>
    %732 = arith.mulf %731, %730 : vector<8x128xf32>
    %cst_220 = arith.constant 5.000000e-01 : f32
    %733 = vector.broadcast %cst_220 : f32 to vector<8x128xf32>
    %734 = arith.addf %732, %733 : vector<8x128xf32>
    %735 = vector.extract_strided_slice %726 {offsets = [0, 128], sizes = [8, 128], strides = [1, 1]} : vector<8x512xf32> to vector<8x128xf32>
    %cst_221 = arith.constant 5.000000e-01 : f32
    %736 = vector.broadcast %cst_221 : f32 to vector<8x128xf32>
    %737 = arith.mulf %736, %735 : vector<8x128xf32>
    %738 = math.tanh %737 : vector<8x128xf32>
    %cst_222 = arith.constant 5.000000e-01 : f32
    %739 = vector.broadcast %cst_222 : f32 to vector<8x128xf32>
    %740 = arith.mulf %739, %738 : vector<8x128xf32>
    %cst_223 = arith.constant 5.000000e-01 : f32
    %741 = vector.broadcast %cst_223 : f32 to vector<8x128xf32>
    %742 = arith.addf %740, %741 : vector<8x128xf32>
    %743 = vector.extract_strided_slice %726 {offsets = [0, 256], sizes = [8, 128], strides = [1, 1]} : vector<8x512xf32> to vector<8x128xf32>
    %744 = math.tanh %743 : vector<8x128xf32>
    %745 = vector.extract_strided_slice %726 {offsets = [0, 384], sizes = [8, 128], strides = [1, 1]} : vector<8x512xf32> to vector<8x128xf32>
    %cst_224 = arith.constant 5.000000e-01 : f32
    %746 = vector.broadcast %cst_224 : f32 to vector<8x128xf32>
    %747 = arith.mulf %746, %745 : vector<8x128xf32>
    %748 = math.tanh %747 : vector<8x128xf32>
    %cst_225 = arith.constant 5.000000e-01 : f32
    %749 = vector.broadcast %cst_225 : f32 to vector<8x128xf32>
    %750 = arith.mulf %749, %748 : vector<8x128xf32>
    %cst_226 = arith.constant 5.000000e-01 : f32
    %751 = vector.broadcast %cst_226 : f32 to vector<8x128xf32>
    %752 = arith.addf %750, %751 : vector<8x128xf32>
    %753 = arith.mulf %742, %671 : vector<8x128xf32>
    %754 = arith.mulf %734, %744 : vector<8x128xf32>
    %755 = arith.addf %753, %754 : vector<8x128xf32>
    %756 = math.tanh %755 : vector<8x128xf32>
    %757 = arith.mulf %752, %756 : vector<8x128xf32>
    %758 = vector.broadcast %678 : i32 to vector<8x1xi32>
    %759 = arith.cmpi slt, %758, %10 : vector<8x1xi32>
    %760 = vector.shape_cast %759 : vector<8x1xi1> to vector<8x1xi1>
    %761 = vector.broadcast %760 : vector<8x1xi1> to vector<8x128xi1>
    %762 = arith.select %761, %757, %668 : vector<8x128xi1>, vector<8x128xf32>
    %763 = vector.shape_cast %759 : vector<8x1xi1> to vector<8x1xi1>
    %764 = vector.broadcast %763 : vector<8x1xi1> to vector<8x128xi1>
    %765 = arith.select %764, %755, %671 : vector<8x128xi1>, vector<8x128xf32>
    %766 = vector.shape_cast %720 : vector<8x1xi1> to vector<8x1xi1>
    %767 = vector.broadcast %766 : vector<8x1xi1> to vector<8x128xi1>
    %768 = arith.select %767, %714, %674 : vector<8x128xi1>, vector<8x128xf32>
    %769 = vector.shape_cast %720 : vector<8x1xi1> to vector<8x1xi1>
    %770 = vector.broadcast %769 : vector<8x1xi1> to vector<8x128xi1>
    %771 = arith.select %770, %712, %677 : vector<8x128xi1>, vector<8x128xf32>
    %c8_i32_227 = arith.constant 8 : i32
    %c0_228 = arith.constant 0 : index
    %c0_229 = arith.constant 0 : index
    %772 = vector.load %arg11[%c0_228, %c0_229] : memref<8x128xf32, #tpu.memory_space<vmem>>, vector<8x128xf32>
    tpu.vector_store %arg11[%c0_228, %c0_229], %762 {strides = array<i32>} : memref<8x128xf32, #tpu.memory_space<vmem>>, vector<8x128xf32>,
    %c0_230 = arith.constant 0 : index
    %c0_231 = arith.constant 0 : index
    %773 = vector.load %arg12[%c0_230, %c0_231] : memref<8x128xf32, #tpu.memory_space<vmem>>, vector<8x128xf32>
    tpu.vector_store %arg12[%c0_230, %c0_231], %765 {strides = array<i32>} : memref<8x128xf32, #tpu.memory_space<vmem>>, vector<8x128xf32>,
    %c0_232 = arith.constant 0 : index
    %c0_233 = arith.constant 0 : index
    %774 = vector.load %arg13[%c0_232, %c0_233] : memref<8x128xf32, #tpu.memory_space<vmem>>, vector<8x128xf32>
    tpu.vector_store %arg13[%c0_232, %c0_233], %768 {strides = array<i32>} : memref<8x128xf32, #tpu.memory_space<vmem>>, vector<8x128xf32>,
    %c0_234 = arith.constant 0 : index
    %c0_235 = arith.constant 0 : index
    %775 = vector.load %arg14[%c0_234, %c0_235] : memref<8x128xf32, #tpu.memory_space<vmem>>, vector<8x128xf32>
    tpu.vector_store %arg14[%c0_234, %c0_235], %771 {strides = array<i32>} : memref<8x128xf32, #tpu.memory_space<vmem>>, vector<8x128xf32>,
    %c0_236 = arith.constant 0 : index
    %c0_237 = arith.constant 0 : index
    %776 = vector.load %arg9[%c0_236, %c0_237] : memref<8x256xf32, #tpu.memory_space<vmem>>, vector<8x128xf32>
    tpu.vector_store %arg9[%c0_236, %c0_237], %765 {strides = array<i32>} : memref<8x256xf32, #tpu.memory_space<vmem>>, vector<8x128xf32>,
    %c0_238 = arith.constant 0 : index
    %c128 = arith.constant 128 : index
    %777 = vector.load %arg9[%c0_238, %c128] : memref<8x256xf32, #tpu.memory_space<vmem>>, vector<8x128xf32>
    tpu.vector_store %arg9[%c0_238, %c128], %771 {strides = array<i32>} : memref<8x256xf32, #tpu.memory_space<vmem>>, vector<8x128xf32>,
    %c0_i32_239 = arith.constant 0 : i32
    %778 = arith.cmpi eq, %arg0, %c0_i32_239 : i32
    %779 = arith.extui %778 : i1 to i32
    %c0_i32_240 = arith.constant 0 : i32
    %780 = arith.cmpi ne, %779, %c0_i32_240 : i32
    scf.if %780 {
      %cst_241 = arith.constant dense<0.000000e+00> : vector<8x512xf32>
      %781 = tpu.matmul %762, %12, %cst_241 {dimension_numbers = #tpu.dot_dimension_numbers<[1], [0], [0], [1], [0, 0, 1, 1], [], []>} : vector<8x128xf32>, vector<128x512xf32>, vector<8x512xf32> -> vector<8x512xf32>
      %cst_242 = arith.constant dense<0.000000e+00> : vector<8x512xf32>
      %782 = tpu.matmul %768, %13, %cst_242 {dimension_numbers = #tpu.dot_dimension_numbers<[1], [0], [0], [1], [0, 0, 1, 1], [], []>} : vector<8x128xf32>, vector<128x512xf32>, vector<8x512xf32> -> vector<8x512xf32>
      %783 = arith.addf %781, %782 : vector<8x512xf32>
      %784 = vector.broadcast %14 : vector<1x512xf32> to vector<8x512xf32>
      %785 = arith.addf %783, %784 : vector<8x512xf32>
      %786 = vector.extract_strided_slice %785 {offsets = [0, 0], sizes = [8, 128], strides = [1, 1]} : vector<8x512xf32> to vector<8x128xf32>
      %cst_243 = arith.constant 5.000000e-01 : f32
      %787 = vector.broadcast %cst_243 : f32 to vector<8x128xf32>
      %788 = arith.mulf %787, %786 : vector<8x128xf32>
      %789 = math.tanh %788 : vector<8x128xf32>
      %cst_244 = arith.constant 5.000000e-01 : f32
      %790 = vector.broadcast %cst_244 : f32 to vector<8x128xf32>
      %791 = arith.mulf %790, %789 : vector<8x128xf32>
      %cst_245 = arith.constant 5.000000e-01 : f32
      %792 = vector.broadcast %cst_245 : f32 to vector<8x128xf32>
      %793 = arith.addf %791, %792 : vector<8x128xf32>
      %794 = vector.extract_strided_slice %785 {offsets = [0, 128], sizes = [8, 128], strides = [1, 1]} : vector<8x512xf32> to vector<8x128xf32>
      %cst_246 = arith.constant 5.000000e-01 : f32
      %795 = vector.broadcast %cst_246 : f32 to vector<8x128xf32>
      %796 = arith.mulf %795, %794 : vector<8x128xf32>
      %797 = math.tanh %796 : vector<8x128xf32>
      %cst_247 = arith.constant 5.000000e-01 : f32
      %798 = vector.broadcast %cst_247 : f32 to vector<8x128xf32>
      %799 = arith.mulf %798, %797 : vector<8x128xf32>
      %cst_248 = arith.constant 5.000000e-01 : f32
      %800 = vector.broadcast %cst_248 : f32 to vector<8x128xf32>
      %801 = arith.addf %799, %800 : vector<8x128xf32>
      %802 = vector.extract_strided_slice %785 {offsets = [0, 256], sizes = [8, 128], strides = [1, 1]} : vector<8x512xf32> to vector<8x128xf32>
      %803 = math.tanh %802 : vector<8x128xf32>
      %804 = arith.mulf %801, %771 : vector<8x128xf32>
      %805 = arith.mulf %793, %803 : vector<8x128xf32>
      %806 = arith.addf %804, %805 : vector<8x128xf32>
      %c7_i32_249 = arith.constant 7 : i32
      %807 = vector.broadcast %c7_i32_249 : i32 to vector<8x1xi32>
      %808 = arith.cmpi sgt, %10, %807 : vector<8x1xi32>
      %809 = vector.shape_cast %808 : vector<8x1xi1> to vector<8x1xi1>
      %810 = vector.broadcast %809 : vector<8x1xi1> to vector<8x128xi1>
      %811 = arith.select %810, %806, %771 : vector<8x128xi1>, vector<8x128xf32>
      %c0_250 = arith.constant 0 : index
      %c128_251 = arith.constant 128 : index
      %812 = vector.load %arg9[%c0_250, %c128_251] : memref<8x256xf32, #tpu.memory_space<vmem>>, vector<8x128xf32>
      tpu.vector_store %arg9[%c0_250, %c128_251], %811 {strides = array<i32>} : memref<8x256xf32, #tpu.memory_space<vmem>>, vector<8x128xf32>,
    } else {
    }
    return
  }
  func.func @transform_0(%arg0: i32) -> (i32, i32) {
    %c0_i32 = arith.constant 0 : i32
    %c0_i32_0 = arith.constant 0 : i32
    %c0_i32_1 = arith.constant 0 : i32
    return %c0_i32, %c0_i32_0 : i32, i32
  }
  func.func @transform_1(%arg0: i32) -> (i32, i32) {
    %c0_i32 = arith.constant 0 : i32
    %c0_i32_0 = arith.constant 0 : i32
    return %arg0, %c0_i32 : i32, i32
  }
  func.func @transform_2(%arg0: i32) -> (i32, i32) {
    %c0_i32 = arith.constant 0 : i32
    %c0_i32_0 = arith.constant 0 : i32
    %c0_i32_1 = arith.constant 0 : i32
    return %c0_i32, %c0_i32_0 : i32, i32
  }
  func.func @transform_3(%arg0: i32) -> (i32, i32) {
    %c0_i32 = arith.constant 0 : i32
    %c0_i32_0 = arith.constant 0 : i32
    %c0_i32_1 = arith.constant 0 : i32
    return %c0_i32, %c0_i32_0 : i32, i32
  }
  func.func @transform_4(%arg0: i32) -> (i32, i32) {
    %c0_i32 = arith.constant 0 : i32
    %c0_i32_0 = arith.constant 0 : i32
    %c0_i32_1 = arith.constant 0 : i32
    return %c0_i32, %c0_i32_0 : i32, i32
  }
  func.func @transform_5(%arg0: i32) -> (i32, i32) {
    %c0_i32 = arith.constant 0 : i32
    %c0_i32_0 = arith.constant 0 : i32
    %c0_i32_1 = arith.constant 0 : i32
    return %c0_i32, %c0_i32_0 : i32, i32
  }
  func.func @transform_6(%arg0: i32) -> (i32, i32) {
    %c0_i32 = arith.constant 0 : i32
    %c0_i32_0 = arith.constant 0 : i32
    %c0_i32_1 = arith.constant 0 : i32
    return %c0_i32, %c0_i32_0 : i32, i32
  }
  func.func @transform_7(%arg0: i32) -> (i32, i32) {
    %c0_i32 = arith.constant 0 : i32
    %c0_i32_0 = arith.constant 0 : i32
    %c0_i32_1 = arith.constant 0 : i32
    return %c0_i32, %c0_i32_0 : i32, i32
  }
  func.func @transform_8(%arg0: i32) -> (i32, i32) {
    %c0_i32 = arith.constant 0 : i32
    %c0_i32_0 = arith.constant 0 : i32
    %c0_i32_1 = arith.constant 0 : i32
    return %c0_i32, %c0_i32_0 : i32, i32
  }
}

</mosaic_0001>

<llo_original>
// kernel: tpu_custom_call.1
$region0: #{tpu_custom_call.1}
  #allocation0 [shape = 'u32[]', space=smem, size = 0x4, offset = 0x4, fixed_abs, tag = 'smem constant byte address 0x4 - core index']
  #allocation1 [shape = 'u32[144,128]{1,0:T(1,128)}', space=vmem, size = 0x12000, scoped, tag = 'internal scratch']
  #allocation2 [shape = 'f32[64,512]{1,0:T(8,128)}', space=vmem, size = 0x20000, scoped, tag = 'scratch operand']
  #allocation3 [shape = 'f32[8,128]{1,0:T(8,128)}', space=vmem, size = 0x1000, scoped, tag = 'scratch operand']
  #allocation4 [shape = 'f32[8,128]{1,0:T(8,128)}', space=vmem, size = 0x1000, scoped, tag = 'scratch operand']
  #allocation5 [shape = 'f32[8,128]{1,0:T(8,128)}', space=vmem, size = 0x1000, scoped, tag = 'scratch operand']
  #allocation6 [shape = 'f32[8,128]{1,0:T(8,128)}', space=vmem, size = 0x1000, scoped, tag = 'scratch operand']
  %s0 = inlined_call_operand.vmem [shape: s32[8,1], index: 0, kind: input, shape index: {}]
  %s1 = inlined_call_operand.vmem [shape: f32[64,32], index: 1, kind: input, shape index: {}]
  %s2 = inlined_call_operand.hbm [shape: f32[32,512], index: 2, kind: input, shape index: {}]
  %s3 = inlined_call_operand.hbm [shape: f32[128,512], index: 3, kind: input, shape index: {}]
  %s4 = inlined_call_operand.vmem [shape: f32[1,512], index: 4, kind: input, shape index: {}]
  %s5 = inlined_call_operand.hbm [shape: f32[128,512], index: 5, kind: input, shape index: {}]
  %s6 = inlined_call_operand.hbm [shape: f32[128,512], index: 6, kind: input, shape index: {}]
  %s7 = inlined_call_operand.vmem [shape: f32[1,512], index: 7, kind: input, shape index: {}]
  %s8 = inlined_call_operand.hbm [shape: f32[8,256], index: 8, kind: output, shape index: {}]
  %s9 = sld [smem:[#allocation0]]
  $region66: #{tpu_custom_call.1} parent=0
    _
  %s11 = ssub.s32 1, %s9
  %s12 = scalar_select 0, %s11, %s9
  $region1: #{tpu_custom_call.1} parent=0
    #allocation7 [shape = 'u8[65536]{0}', space=vmem, size = 0x10000, scoped, tag = 'input window, operand 2, single buffered']
    #allocation8 [shape = 's32[1]{0}', space=sflag, size = 0x4, scoped, tag = 'scoped memory for tpu_custom_call.1']
    #allocation9 [shape = 's32[1]{0}', space=sflag, size = 0x4, scoped, tag = 'scoped memory for tpu_custom_call.1']
    #allocation10 [shape = 'u8[262144]{0}', space=vmem, size = 0x40000, scoped, tag = 'input window, operand 3, single buffered']
    #allocation11 [shape = 's32[1]{0}', space=sflag, size = 0x4, scoped, tag = 'scoped memory for tpu_custom_call.1']
    #allocation12 [shape = 'u8[262144]{0}', space=vmem, size = 0x40000, scoped, tag = 'input window, operand 5, single buffered']
    #allocation13 [shape = 'u8[262144]{0}', space=vmem, size = 0x40000, scoped, tag = 'input window, operand 6, single buffered']
    #allocation14 [shape = 's32[1]{0}', space=sflag, size = 0x4, scoped, tag = 'scoped memory for tpu_custom_call.1']
    #allocation15 [shape = 'u8[8192]{0}', space=vmem, size = 0x2000, scoped, tag = 'output window, operand 0, single buffered']
    %13 = vsyncpa [#allocation8], 0
    %14 = vsyncpa [#allocation11], 0
    %15 = vsyncpa [#allocation14], 0
    %16 = vsyncpa [#allocation9], 0
    // Predicated region
    $region2: #{tpu_custom_call.1} parent=1 // pred_check
      _
    $region3: #{tpu_custom_call.1} parent=1 // pred_check_branch
      %18 = sbr.rel (0) target = $region5
    $region4: #{tpu_custom_call.1} parent=1 // pred_region
      _
    $region5: #{tpu_custom_call.1} parent=1 // pred_fallthru
      _
    // Predicated region
    $region6: #{tpu_custom_call.1} parent=1 // pred_check
      _
    $region7: #{tpu_custom_call.1} parent=1 // pred_check_branch
      %20 = sbr.rel (0) target = $region9
    $region8: #{tpu_custom_call.1} parent=1 // pred_region
      _
    $region9: #{tpu_custom_call.1} parent=1 // pred_fallthru
      _
    // Predicated region
    $region10: #{tpu_custom_call.1} parent=1 // pred_check
      _
    $region11: #{tpu_custom_call.1} parent=1 // pred_check_branch
      %22 = sbr.rel (0) target = $region13
    $region12: #{tpu_custom_call.1} parent=1 // pred_region
      %s24 = ssub.s32 2048, 2048
      %25 = vsyncadd [#allocation8], %s24
      %s26 = sshll.u32 [#allocation7], 4
      %s27 = int_to_ptr.vmem [resolvable:$true] %s26
      %32 = dma.hbm_to_vmem [thread:$0]  %s2, 2048, %s27, [#allocation8], 512, 512, 32
    $region13: #{tpu_custom_call.1} parent=1 // pred_fallthru
      _
    // Predicated region
    $region14: #{tpu_custom_call.1} parent=1 // pred_check
      _
    $region15: #{tpu_custom_call.1} parent=1 // pred_check_branch
      %34 = sbr.rel (0) target = $region17
    $region16: #{tpu_custom_call.1} parent=1 // pred_region
      %s36 = ssub.s32 8192, 8192
      %37 = vsyncadd [#allocation11], %s36
      %s38 = sshll.u32 [#allocation10], 4
      %s39 = int_to_ptr.vmem [resolvable:$true] %s38
      %44 = dma.hbm_to_vmem [thread:$0]  %s3, 8192, %s39, [#allocation11], 512, 512, 32
    $region17: #{tpu_custom_call.1} parent=1 // pred_fallthru
      _
    // Predicated region
    $region18: #{tpu_custom_call.1} parent=1 // pred_check
      _
    $region19: #{tpu_custom_call.1} parent=1 // pred_check_branch
      %46 = sbr.rel (0) target = $region21
    $region20: #{tpu_custom_call.1} parent=1 // pred_region
      _
    $region21: #{tpu_custom_call.1} parent=1 // pred_fallthru
      _
    // Predicated region
    $region22: #{tpu_custom_call.1} parent=1 // pred_check
      _
    $region23: #{tpu_custom_call.1} parent=1 // pred_check_branch
      %48 = sbr.rel (0) target = $region25
    $region24: #{tpu_custom_call.1} parent=1 // pred_region
      %s50 = ssub.s32 8192, 8192
      %51 = vsyncadd [#allocation11], %s50
      %s52 = sshll.u32 [#allocation12], 4
      %s53 = int_to_ptr.vmem [resolvable:$true] %s52
      %58 = dma.hbm_to_vmem [thread:$0]  %s5, 8192, %s53, [#allocation11], 512, 512, 32
    $region25: #{tpu_custom_call.1} parent=1 // pred_fallthru
      _
    // Predicated region
    $region26: #{tpu_custom_call.1} parent=1 // pred_check
      _
    $region27: #{tpu_custom_call.1} parent=1 // pred_check_branch
      %60 = sbr.rel (0) target = $region29
    $region28: #{tpu_custom_call.1} parent=1 // pred_region
      %s62 = ssub.s32 8192, 8192
      %63 = vsyncadd [#allocation14], %s62
      %s64 = sshll.u32 [#allocation13], 4
      %s65 = int_to_ptr.vmem [resolvable:$true] %s64
      %70 = dma.hbm_to_vmem [thread:$0]  %s6, 8192, %s65, [#allocation14], 512, 512, 32
    $region29: #{tpu_custom_call.1} parent=1 // pred_fallthru
      _
    // Predicated region
    $region30: #{tpu_custom_call.1} parent=1 // pred_check
      _
    $region31: #{tpu_custom_call.1} parent=1 // pred_check_branch
      %72 = sbr.rel (0) target = $region33
    $region32: #{tpu_custom_call.1} parent=1 // pred_region
      _
    $region33: #{tpu_custom_call.1} parent=1 // pred_fallthru
      _
    // Predicated region
    $region34: #{tpu_custom_call.1} parent=1 // pred_check
      _
    $region35: #{tpu_custom_call.1} parent=1 // pred_check_branch
      %74 = sbr.rel (0) target = $region37
    $region36: #{tpu_custom_call.1} parent=1 // pred_region
      %75 = dma.done [#allocation8], 2048
    $region37: #{tpu_custom_call.1} parent=1 // pred_fallthru
      _
    // Predicated region
    $region38: #{tpu_custom_call.1} parent=1 // pred_check
      _
    $region39: #{tpu_custom_call.1} parent=1 // pred_check_branch
      %77 = sbr.rel (0) target = $region41
    $region40: #{tpu_custom_call.1} parent=1 // pred_region
      %78 = dma.done [#allocation11], 8192
    $region41: #{tpu_custom_call.1} parent=1 // pred_fallthru
      _
    // Predicated region
    $region42: #{tpu_custom_call.1} parent=1 // pred_check
      _
    $region43: #{tpu_custom_call.1} parent=1 // pred_check_branch
      %80 = sbr.rel (0) target = $region45
    $region44: #{tpu_custom_call.1} parent=1 // pred_region
      %81 = dma.done [#allocation11], 8192
    $region45: #{tpu_custom_call.1} parent=1 // pred_fallthru
      _
    // Predicated region
    $region46: #{tpu_custom_call.1} parent=1 // pred_check
      _
    $region47: #{tpu_custom_call.1} parent=1 // pred_check_branch
      %83 = sbr.rel (0) target = $region49
    $region48: #{tpu_custom_call.1} parent=1 // pred_region
      %84 = dma.done [#allocation14], 8192
    $region49: #{tpu_custom_call.1} parent=1 // pred_fallthru
      _
    %v85 = vld [vmem:[%s1] sm:$0xff]
    %v86 = vld [vmem:[%s1 + $0x8] sm:$0xff]
    %v87 = vld [vmem:[%s1 + $0x10] sm:$0xff]
    %v88 = vld [vmem:[%s1 + $0x18] sm:$0xff]
    %v89 = vld [vmem:[%s1 + $0x20] sm:$0xff]
    %v90 = vld [vmem:[%s1 + $0x28] sm:$0xff]
    %v91 = vld [vmem:[%s1 + $0x30] sm:$0xff]
    %v92 = vld [vmem:[%s1 + $0x38] sm:$0xff]
    %v93 = vld [vmem:[#allocation7] sm:$0xff]
    %v94 = vld [vmem:[#allocation7 + $0x8] sm:$0xff]
    %v95 = vld [vmem:[#allocation7 + $0x10] sm:$0xff]
    %v96 = vld [vmem:[#allocation7 + $0x18] sm:$0xff]
    %v97 = vld [vmem:[#allocation7 + $0x20] sm:$0xff]
    %v98 = vld [vmem:[#allocation7 + $0x28] sm:$0xff]
    %v99 = vld [vmem:[#allocation7 + $0x30] sm:$0xff]
    %v100 = vld [vmem:[#allocation7 + $0x38] sm:$0xff]
    %v101 = vld [vmem:[#allocation7 + $0x40] sm:$0xff]
    %v102 = vld [vmem:[#allocation7 + $0x48] sm:$0xff]
    %v103 = vld [vmem:[#allocation7 + $0x50] sm:$0xff]
    %v104 = vld [vmem:[#allocation7 + $0x58] sm:$0xff]
    %v105 = vld [vmem:[#allocation7 + $0x60] sm:$0xff]
    %v106 = vld [vmem:[#allocation7 + $0x68] sm:$0xff]
    %v107 = vld [vmem:[#allocation7 + $0x70] sm:$0xff]
    %v108 = vld [vmem:[#allocation7 + $0x78] sm:$0xff]
    %v109 = vld [vmem:[%s4] sm:$0xf]
    %v111 = vlaneseq
    %v112 = vshrl.u32 %v111, 7
    %v113 = vsub.s32 0, %v112
    %v114 = vrot.slane %v109, %v113
    %v115 = vlaneseq
    %v116 = vshrl.u32 %v115, 7
    %v117 = vsub.s32 1, %v116
    %v118 = vrot.slane %v109, %v117
    %v119 = vlaneseq
    %v120 = vshrl.u32 %v119, 7
    %v121 = vsub.s32 2, %v120
    %v122 = vrot.slane %v109, %v121
    %v123 = vlaneseq
    %v124 = vshrl.u32 %v123, 7
    %v125 = vsub.s32 3, %v124
    %v126 = vrot.slane %v109, %v125
    %vm131 = vcmask 261120
    %v133 = vsel %vm131, %v85, 0
    %v136 = vsel %vm131, %v86, 0
    %v139 = vsel %vm131, %v87, 0
    %v142 = vsel %vm131, %v88, 0
    %v145 = vsel %vm131, %v89, 0
    %v148 = vsel %vm131, %v90, 0
    %v151 = vsel %vm131, %v91, 0
    %v154 = vsel %vm131, %v92, 0
    %156 = vmatprep.subr.mxu0 %v94
    %157 = vmatpush1.msra.mxu0 %v93
    %158 = vmatprep.subr.mxu0 %v98
    %159 = vmatpush1.msra.mxu0 %v97
    %160 = vmatprep.subr.mxu0 %v102
    %161 = vmatpush1.msra.mxu0 %v101
    %162 = vmatprep.subr.mxu0 %v106
    %163 = vmatpush1.msra.mxu0 %v105
    %164 = vmatprep.subr.mxu0 0.0
    %165 = vmatpush1.msra.mxu0 0.0
    %166 = vmatprep.subr.mxu0 0.0
    %167 = vmatpush1.msra.mxu0 0.0
    %168 = vmatprep.subr.mxu0 0.0
    %169 = vmatpush1.msra.mxu0 0.0
    %170 = vmatprep.subr.mxu0 0.0
    %171 = vmatpush1.msra.mxu0 0.0
    %172 = vmatprep.subr.mxu0 0.0
    %173 = vmatpush1.msra.mxu0 0.0
    %174 = vmatprep.subr.mxu0 0.0
    %175 = vmatpush1.msra.mxu0 0.0
    %176 = vmatprep.subr.mxu0 0.0
    %177 = vmatpush1.msra.mxu0 0.0
    %178 = vmatprep.subr.mxu0 0.0
    %179 = vmatpush1.msra.mxu0 0.0
    %180 = vmatprep.subr.mxu0 0.0
    %181 = vmatpush1.msra.mxu0 0.0
    %182 = vmatprep.subr.mxu0 0.0
    %183 = vmatpush1.msra.mxu0 0.0
    %184 = vmatprep.subr.mxu0 0.0
    %185 = vmatpush1.msra.mxu0 0.0
    %186 = vmatprep.subr.mxu0 0.0
    %187 = vmatpush1.msra.mxu0 0.0
    %188 = vmatprep.subr.mxu0 0.0
    %189 = vmatpush1.msra.mxu0 0.0
    %190 = vmatprep.subr.mxu0 0.0
    %191 = vmatpush1.msra.mxu0 0.0
    %192 = vmatprep.subr.mxu0 0.0
    %193 = vmatpush1.msra.mxu0 0.0
    %194 = vmatprep.subr.mxu0 0.0
    %195 = vmatpush1.msra.mxu0 0.0
    %196 = vmatprep.subr.mxu0 0.0
    %197 = vmatpush1.msra.mxu0 0.0
    %198 = vmatprep.subr.mxu0 0.0
    %199 = vmatpush1.msra.mxu0 0.0
    %200 = vmatprep.subr.mxu0 0.0
    %201 = vmatpush1.msra.mxu0 0.0
    %202 = vmatprep.subr.mxu0 0.0
    %203 = vmatpush1.msra.mxu0 0.0
    %204 = vmatprep.subr.mxu0 0.0
    %205 = vmatpush1.msra.mxu0 0.0
    %206 = vmatprep.subr.mxu0 0.0
    %207 = vmatpush1.msra.mxu0 0.0
    %208 = vmatprep.subr.mxu0 0.0
    %209 = vmatpush1.msra.mxu0 0.0
    %210 = vmatprep.subr.mxu0 0.0
    %211 = vmatpush1.msra.mxu0 0.0
    %212 = vmatprep.subr.mxu0 0.0
    %213 = vmatpush1.msra.mxu0 0.0
    %214 = vmatprep.subr.mxu0 0.0
    %215 = vmatpush1.msra.mxu0 0.0
    %216 = vmatprep.subr.mxu0 0.0
    %217 = vmatpush1.msra.mxu0 0.0
    %218 = vmatprep.subr.mxu0 0.0
    %219 = vmatpush1.msra.mxu0 0.0
    %220 = vmatprep.mubr.f32.mxu0 0.0
    %221 = vmatmul.mubr.f32.gmra.mrb[0].mxu0 %v133
    %v222 = vpop.f32.mrb[0].mxu0
    %v223 = vadd.f32 %v114, %v222
    %v224 = vpop.f32.mrb[0].mxu0
    %v225 = vadd.f32 %v118, %v224
    %226 = vmatprep.mubr.f32.mxu0 0.0
    %227 = vmatmul.mubr.f32.gmra.mrb[0].mxu0 %v136
    %v228 = vpop.f32.mrb[0].mxu0
    %v229 = vadd.f32 %v114, %v228
    %v230 = vpop.f32.mrb[0].mxu0
    %v231 = vadd.f32 %v118, %v230
    %232 = vmatprep.mubr.f32.mxu0 0.0
    %233 = vmatmul.mubr.f32.gmra.mrb[0].mxu0 %v139
    %v234 = vpop.f32.mrb[0].mxu0
    %v235 = vadd.f32 %v114, %v234
    %v236 = vpop.f32.mrb[0].mxu0
    %v237 = vadd.f32 %v118, %v236
    %238 = vmatprep.mubr.f32.mxu0 0.0
    %239 = vmatmul.mubr.f32.gmra.mrb[0].mxu0 %v142
    %v240 = vpop.f32.mrb[0].mxu0
    %v241 = vadd.f32 %v114, %v240
    %v242 = vpop.f32.mrb[0].mxu0
    %v243 = vadd.f32 %v118, %v242
    %244 = vmatprep.mubr.f32.mxu0 0.0
    %245 = vmatmul.mubr.f32.gmra.mrb[0].mxu0 %v145
    %v246 = vpop.f32.mrb[0].mxu0
    %v247 = vadd.f32 %v114, %v246
    %v248 = vpop.f32.mrb[0].mxu0
    %v249 = vadd.f32 %v118, %v248
    %250 = vmatprep.mubr.f32.mxu0 0.0
    %251 = vmatmul.mubr.f32.gmra.mrb[0].mxu0 %v148
    %v252 = vpop.f32.mrb[0].mxu0
    %v253 = vadd.f32 %v114, %v252
    %v254 = vpop.f32.mrb[0].mxu0
    %v255 = vadd.f32 %v118, %v254
    %256 = vmatprep.mubr.f32.mxu0 0.0
    %257 = vmatmul.mubr.f32.gmra.mrb[0].mxu0 %v151
    %v258 = vpop.f32.mrb[0].mxu0
    %v259 = vadd.f32 %v114, %v258
    %v260 = vpop.f32.mrb[0].mxu0
    %v261 = vadd.f32 %v118, %v260
    %262 = vmatprep.mubr.f32.mxu0 0.0
    %263 = vmatmul.mubr.f32.gmra.mrb[0].mxu0 %v154
    %v264 = vpop.f32.mrb[0].mxu0
    %v265 = vadd.f32 %v114, %v264
    %v266 = vpop.f32.mrb[0].mxu0
    %v267 = vadd.f32 %v118, %v266
    %268 = vdwg.mxu0
    %269 = vmatprep.subr.mxu0 %v96
    %270 = vmatpush1.msra.mxu0 %v95
    %271 = vmatprep.subr.mxu0 %v100
    %272 = vmatpush1.msra.mxu0 %v99
    %273 = vmatprep.subr.mxu0 %v104
    %274 = vmatpush1.msra.mxu0 %v103
    %275 = vmatprep.subr.mxu0 %v108
    %276 = vmatpush1.msra.mxu0 %v107
    %277 = vmatprep.subr.mxu0 0.0
    %278 = vmatpush1.msra.mxu0 0.0
    %279 = vmatprep.subr.mxu0 0.0
    %280 = vmatpush1.msra.mxu0 0.0
    %281 = vmatprep.subr.mxu0 0.0
    %282 = vmatpush1.msra.mxu0 0.0
    %283 = vmatprep.subr.mxu0 0.0
    %284 = vmatpush1.msra.mxu0 0.0
    %285 = vmatprep.subr.mxu0 0.0
    %286 = vmatpush1.msra.mxu0 0.0
    %287 = vmatprep.subr.mxu0 0.0
    %288 = vmatpush1.msra.mxu0 0.0
    %289 = vmatprep.subr.mxu0 0.0
    %290 = vmatpush1.msra.mxu0 0.0
    %291 = vmatprep.subr.mxu0 0.0
    %292 = vmatpush1.msra.mxu0 0.0
    %293 = vmatprep.subr.mxu0 0.0
    %294 = vmatpush1.msra.mxu0 0.0
    %295 = vmatprep.subr.mxu0 0.0
    %296 = vmatpush1.msra.mxu0 0.0
    %297 = vmatprep.subr.mxu0 0.0
    %298 = vmatpush1.msra.mxu0 0.0
    %299 = vmatprep.subr.mxu0 0.0
    %300 = vmatpush1.msra.mxu0 0.0
    %301 = vmatprep.subr.mxu0 0.0
    %302 = vmatpush1.msra.mxu0 0.0
    %303 = vmatprep.subr.mxu0 0.0
    %304 = vmatpush1.msra.mxu0 0.0
    %305 = vmatprep.subr.mxu0 0.0
    %306 = vmatpush1.msra.mxu0 0.0
    %307 = vmatprep.subr.mxu0 0.0
    %308 = vmatpush1.msra.mxu0 0.0
    %309 = vmatprep.subr.mxu0 0.0
    %310 = vmatpush1.msra.mxu0 0.0
    %311 = vmatprep.subr.mxu0 0.0
    %312 = vmatpush1.msra.mxu0 0.0
    %313 = vmatprep.subr.mxu0 0.0
    %314 = vmatpush1.msra.mxu0 0.0
    %315 = vmatprep.subr.mxu0 0.0
    %316 = vmatpush1.msra.mxu0 0.0
    %317 = vmatprep.subr.mxu0 0.0
    %318 = vmatpush1.msra.mxu0 0.0
    %319 = vmatprep.subr.mxu0 0.0
    %320 = vmatpush1.msra.mxu0 0.0
    %321 = vmatprep.subr.mxu0 0.0
    %322 = vmatpush1.msra.mxu0 0.0
    %323 = vmatprep.subr.mxu0 0.0
    %324 = vmatpush1.msra.mxu0 0.0
    %325 = vmatprep.subr.mxu0 0.0
    %326 = vmatpush1.msra.mxu0 0.0
    %327 = vmatprep.subr.mxu0 0.0
    %328 = vmatpush1.msra.mxu0 0.0
    %329 = vmatprep.subr.mxu0 0.0
    %330 = vmatpush1.msra.mxu0 0.0
    %331 = vmatprep.subr.mxu0 0.0
    %332 = vmatpush1.msra.mxu0 0.0
    %333 = vmatprep.mubr.f32.mxu0 0.0
    %334 = vmatmul.mubr.f32.gmra.mrb[0].mxu0 %v133
    %v335 = vpop.f32.mrb[0].mxu0
    %v336 = vadd.f32 %v122, %v335
    %v337 = vpop.f32.mrb[0].mxu0
    %v338 = vadd.f32 %v126, %v337
    %339 = vmatprep.mubr.f32.mxu0 0.0
    %340 = vmatmul.mubr.f32.gmra.mrb[0].mxu0 %v136
    %v341 = vpop.f32.mrb[0].mxu0
    %v342 = vadd.f32 %v122, %v341
    %v343 = vpop.f32.mrb[0].mxu0
    %v344 = vadd.f32 %v126, %v343
    %345 = vmatprep.mubr.f32.mxu0 0.0
    %346 = vmatmul.mubr.f32.gmra.mrb[0].mxu0 %v139
    %v347 = vpop.f32.mrb[0].mxu0
    %v348 = vadd.f32 %v122, %v347
    %v349 = vpop.f32.mrb[0].mxu0
    %v350 = vadd.f32 %v126, %v349
    %351 = vmatprep.mubr.f32.mxu0 0.0
    %352 = vmatmul.mubr.f32.gmra.mrb[0].mxu0 %v142
    %v353 = vpop.f32.mrb[0].mxu0
    %v354 = vadd.f32 %v122, %v353
    %v355 = vpop.f32.mrb[0].mxu0
    %v356 = vadd.f32 %v126, %v355
    %357 = vmatprep.mubr.f32.mxu0 0.0
    %358 = vmatmul.mubr.f32.gmra.mrb[0].mxu0 %v145
    %v359 = vpop.f32.mrb[0].mxu0
    %v360 = vadd.f32 %v122, %v359
    %v361 = vpop.f32.mrb[0].mxu0
    %v362 = vadd.f32 %v126, %v361
    %363 = vmatprep.mubr.f32.mxu0 0.0
    %364 = vmatmul.mubr.f32.gmra.mrb[0].mxu0 %v148
    %v365 = vpop.f32.mrb[0].mxu0
    %v366 = vadd.f32 %v122, %v365
    %v367 = vpop.f32.mrb[0].mxu0
    %v368 = vadd.f32 %v126, %v367
    %369 = vmatprep.mubr.f32.mxu0 0.0
    %370 = vmatmul.mubr.f32.gmra.mrb[0].mxu0 %v151
    %v371 = vpop.f32.mrb[0].mxu0
    %v372 = vadd.f32 %v122, %v371
    %v373 = vpop.f32.mrb[0].mxu0
    %v374 = vadd.f32 %v126, %v373
    %375 = vmatprep.mubr.f32.mxu0 0.0
    %376 = vmatmul.mubr.f32.gmra.mrb[0].mxu0 %v154
    %v377 = vpop.f32.mrb[0].mxu0
    %v378 = vadd.f32 %v122, %v377
    %v379 = vpop.f32.mrb[0].mxu0
    %v380 = vadd.f32 %v126, %v379
    %381 = vdwg.mxu0
    %382 = vst [vmem:[#allocation2] sm:$0xff] %v223
    %383 = vst [vmem:[#allocation2 + $0x8] sm:$0xff] %v225
    %384 = vst [vmem:[#allocation2 + $0x10] sm:$0xff] %v336
    %385 = vst [vmem:[#allocation2 + $0x18] sm:$0xff] %v338
    %386 = vst [vmem:[#allocation2 + $0x20] sm:$0xff] %v229
    %387 = vst [vmem:[#allocation2 + $0x28] sm:$0xff] %v231
    %388 = vst [vmem:[#allocation2 + $0x30] sm:$0xff] %v342
    %389 = vst [vmem:[#allocation2 + $0x38] sm:$0xff] %v344
    %390 = vst [vmem:[#allocation2 + $0x40] sm:$0xff] %v235
    %391 = vst [vmem:[#allocation2 + $0x48] sm:$0xff] %v237
    %392 = vst [vmem:[#allocation2 + $0x50] sm:$0xff] %v348
    %393 = vst [vmem:[#allocation2 + $0x58] sm:$0xff] %v350
    %394 = vst [vmem:[#allocation2 + $0x60] sm:$0xff] %v241
    %395 = vst [vmem:[#allocation2 + $0x68] sm:$0xff] %v243
    %396 = vst [vmem:[#allocation2 + $0x70] sm:$0xff] %v354
    %397 = vst [vmem:[#allocation2 + $0x78] sm:$0xff] %v356
    %398 = vst [vmem:[#allocation2 + $0x80] sm:$0xff] %v247
    %399 = vst [vmem:[#allocation2 + $0x88] sm:$0xff] %v249
    %400 = vst [vmem:[#allocation2 + $0x90] sm:$0xff] %v360
    %401 = vst [vmem:[#allocation2 + $0x98] sm:$0xff] %v362
    %402 = vst [vmem:[#allocation2 + $0xa0] sm:$0xff] %v253
    %403 = vst [vmem:[#allocation2 + $0xa8] sm:$0xff] %v255
    %404 = vst [vmem:[#allocation2 + $0xb0] sm:$0xff] %v366
    %405 = vst [vmem:[#allocation2 + $0xb8] sm:$0xff] %v368
    %406 = vst [vmem:[#allocation2 + $0xc0] sm:$0xff] %v259
    %407 = vst [vmem:[#allocation2 + $0xc8] sm:$0xff] %v261
    %408 = vst [vmem:[#allocation2 + $0xd0] sm:$0xff] %v372
    %409 = vst [vmem:[#allocation2 + $0xd8] sm:$0xff] %v374
    %410 = vst [vmem:[#allocation2 + $0xe0] sm:$0xff] %v265
    %411 = vst [vmem:[#allocation2 + $0xe8] sm:$0xff] %v267
    %412 = vst [vmem:[#allocation2 + $0xf0] sm:$0xff] %v378
    %413 = vst [vmem:[#allocation2 + $0xf8] sm:$0xff] %v380
    %p414 = scmp.eq.s32.totalorder 0, 0
    // Predicated region
    $region50: #{tpu_custom_call.1} parent=1 // pred_check
      %p415 = pneg %p414
    $region51: #{tpu_custom_call.1} parent=1 // pred_check_branch
      %417 = sbr.rel (%p415) target = $region53
    $region52: #{tpu_custom_call.1} parent=1 // pred_region
      %418 = vst [vmem:[#allocation3] sm:$0xff] 0.0
      %419 = vst [vmem:[#allocation4] sm:$0xff] 0.0
      %420 = vst [vmem:[#allocation5] sm:$0xff] 0.0
      %421 = vst [vmem:[#allocation6] sm:$0xff] 0.0
    $region53: #{tpu_custom_call.1} parent=1 // pred_fallthru
      _
    %v422 = vld [vmem:[%s0] sm:$0xff]
    %v423 = vld [vmem:[#allocation10] sm:$0xff]
    %v424 = vld [vmem:[#allocation10 + $0x8] sm:$0xff]
    %v425 = vld [vmem:[#allocation10 + $0x10] sm:$0xff]
    %v426 = vld [vmem:[#allocation10 + $0x18] sm:$0xff]
    %v427 = vld [vmem:[#allocation10 + $0x20] sm:$0xff]
    %v428 = vld [vmem:[#allocation10 + $0x28] sm:$0xff]
    %v429 = vld [vmem:[#allocation10 + $0x30] sm:$0xff]
    %v430 = vld [vmem:[#allocation10 + $0x38] sm:$0xff]
    %v431 = vld [vmem:[#allocation10 + $0x40] sm:$0xff]
    %v432 = vld [vmem:[#allocation10 + $0x48] sm:$0xff]
    %v433 = vld [vmem:[#allocation10 + $0x50] sm:$0xff]
    %v434 = vld [vmem:[#allocation10 + $0x58] sm:$0xff]
    %v435 = vld [vmem:[#allocation10 + $0x60] sm:$0xff]
    %v436 = vld [vmem:[#allocation10 + $0x68] sm:$0xff]
    %v437 = vld [vmem:[#allocation10 + $0x70] sm:$0xff]
    %v438 = vld [vmem:[#allocation10 + $0x78] sm:$0xff]
    %v439 = vld [vmem:[#allocation10 + $0x80] sm:$0xff]
    %v440 = vld [vmem:[#allocation10 + $0x88] sm:$0xff]
    %v441 = vld [vmem:[#allocation10 + $0x90] sm:$0xff]
    %v442 = vld [vmem:[#allocation10 + $0x98] sm:$0xff]
    %v443 = vld [vmem:[#allocation10 + $0xa0] sm:$0xff]
    %v444 = vld [vmem:[#allocation10 + $0xa8] sm:$0xff]
    %v445 = vld [vmem:[#allocation10 + $0xb0] sm:$0xff]
    %v446 = vld [vmem:[#allocation10 + $0xb8] sm:$0xff]
    %v447 = vld [vmem:[#allocation10 + $0xc0] sm:$0xff]
    %v448 = vld [vmem:[#allocation10 + $0xc8] sm:$0xff]
    %v449 = vld [vmem:[#allocation10 + $0xd0] sm:$0xff]
    %v450 = vld [vmem:[#allocation10 + $0xd8] sm:$0xff]
    %v451 = vld [vmem:[#allocation10 + $0xe0] sm:$0xff]
    %v452 = vld [vmem:[#allocation10 + $0xe8] sm:$0xff]
    %v453 = vld [vmem:[#allocation10 + $0xf0] sm:$0xff]
    %v454 = vld [vmem:[#allocation10 + $0xf8] sm:$0xff]
    %v455 = vld [vmem:[#allocation10 + $0x100] sm:$0xff]
    %v456 = vld [vmem:[#allocation10 + $0x108] sm:$0xff]
    %v457 = vld [vmem:[#allocation10 + $0x110] sm:$0xff]
    %v458 = vld [vmem:[#allocation10 + $0x118] sm:$0xff]
    %v459 = vld [vmem:[#allocation10 + $0x120] sm:$0xff]
    %v460 = vld [vmem:[#allocation10 + $0x128] sm:$0xff]
    %v461 = vld [vmem:[#allocation10 + $0x130] sm:$0xff]
    %v462 = vld [vmem:[#allocation10 + $0x138] sm:$0xff]
    %v463 = vld [vmem:[#allocation10 + $0x140] sm:$0xff]
    %v464 = vld [vmem:[#allocation10 + $0x148] sm:$0xff]
    %v465 = vld [vmem:[#allocation10 + $0x150] sm:$0xff]
    %v466 = vld [vmem:[#allocation10 + $0x158] sm:$0xff]
    %v467 = vld [vmem:[#allocation10 + $0x160] sm:$0xff]
    %v468 = vld [vmem:[#allocation10 + $0x168] sm:$0xff]
    %v469 = vld [vmem:[#allocation10 + $0x170] sm:$0xff]
    %v470 = vld [vmem:[#allocation10 + $0x178] sm:$0xff]
    %v471 = vld [vmem:[#allocation10 + $0x180] sm:$0xff]
    %v472 = vld [vmem:[#allocation10 + $0x188] sm:$0xff]
    %v473 = vld [vmem:[#allocation10 + $0x190] sm:$0xff]
    %v474 = vld [vmem:[#allocation10 + $0x198] sm:$0xff]
    %v475 = vld [vmem:[#allocation10 + $0x1a0] sm:$0xff]
    %v476 = vld [vmem:[#allocation10 + $0x1a8] sm:$0xff]
    %v477 = vld [vmem:[#allocation10 + $0x1b0] sm:$0xff]
    %v478 = vld [vmem:[#allocation10 + $0x1b8] sm:$0xff]
    %v479 = vld [vmem:[#allocation10 + $0x1c0] sm:$0xff]
    %v480 = vld [vmem:[#allocation10 + $0x1c8] sm:$0xff]
    %v481 = vld [vmem:[#allocation10 + $0x1d0] sm:$0xff]
    %v482 = vld [vmem:[#allocation10 + $0x1d8] sm:$0xff]
    %v483 = vld [vmem:[#allocation10 + $0x1e0] sm:$0xff]
    %v484 = vld [vmem:[#allocation10 + $0x1e8] sm:$0xff]
    %v485 = vld [vmem:[#allocation10 + $0x1f0] sm:$0xff]
    %v486 = vld [vmem:[#allocation10 + $0x1f8] sm:$0xff]
    %v487 = vld [vmem:[#allocation12] sm:$0xff]
    %v488 = vld [vmem:[#allocation12 + $0x8] sm:$0xff]
    %v489 = vld [vmem:[#allocation12 + $0x10] sm:$0xff]
    %v490 = vld [vmem:[#allocation12 + $0x18] sm:$0xff]
    %v491 = vld [vmem:[#allocation12 + $0x20] sm:$0xff]
    %v492 = vld [vmem:[#allocation12 + $0x28] sm:$0xff]
    %v493 = vld [vmem:[#allocation12 + $0x30] sm:$0xff]
    %v494 = vld [vmem:[#allocation12 + $0x38] sm:$0xff]
    %v495 = vld [vmem:[#allocation12 + $0x40] sm:$0xff]
    %v496 = vld [vmem:[#allocation12 + $0x48] sm:$0xff]
    %v497 = vld [vmem:[#allocation12 + $0x50] sm:$0xff]
    %v498 = vld [vmem:[#allocation12 + $0x58] sm:$0xff]
    %v499 = vld [vmem:[#allocation12 + $0x60] sm:$0xff]
    %v500 = vld [vmem:[#allocation12 + $0x68] sm:$0xff]
    %v501 = vld [vmem:[#allocation12 + $0x70] sm:$0xff]
    %v502 = vld [vmem:[#allocation12 + $0x78] sm:$0xff]
    %v503 = vld [vmem:[#allocation12 + $0x80] sm:$0xff]
    %v504 = vld [vmem:[#allocation12 + $0x88] sm:$0xff]
    %v505 = vld [vmem:[#allocation12 + $0x90] sm:$0xff]
    %v506 = vld [vmem:[#allocation12 + $0x98] sm:$0xff]
    %v507 = vld [vmem:[#allocation12 + $0xa0] sm:$0xff]
    %v508 = vld [vmem:[#allocation12 + $0xa8] sm:$0xff]
    %v509 = vld [vmem:[#allocation12 + $0xb0] sm:$0xff]
    %v510 = vld [vmem:[#allocation12 + $0xb8] sm:$0xff]
    %v511 = vld [vmem:[#allocation12 + $0xc0] sm:$0xff]
    %v512 = vld [vmem:[#allocation12 + $0xc8] sm:$0xff]
    %v513 = vld [vmem:[#allocation12 + $0xd0] sm:$0xff]
    %v514 = vld [vmem:[#allocation12 + $0xd8] sm:$0xff]
    %v515 = vld [vmem:[#allocation12 + $0xe0] sm:$0xff]
    %v516 = vld [vmem:[#allocation12 + $0xe8] sm:$0xff]
    %v517 = vld [vmem:[#allocation12 + $0xf0] sm:$0xff]
    %v518 = vld [vmem:[#allocation12 + $0xf8] sm:$0xff]
    %v519 = vld [vmem:[#allocation12 + $0x100] sm:$0xff]
    %v520 = vld [vmem:[#allocation12 + $0x108] sm:$0xff]
    %v521 = vld [vmem:[#allocation12 + $0x110] sm:$0xff]
    %v522 = vld [vmem:[#allocation12 + $0x118] sm:$0xff]
    %v523 = vld [vmem:[#allocation12 + $0x120] sm:$0xff]
    %v524 = vld [vmem:[#allocation12 + $0x128] sm:$0xff]
    %v525 = vld [vmem:[#allocation12 + $0x130] sm:$0xff]
    %v526 = vld [vmem:[#allocation12 + $0x138] sm:$0xff]
    %v527 = vld [vmem:[#allocation12 + $0x140] sm:$0xff]
    %v528 = vld [vmem:[#allocation12 + $0x148] sm:$0xff]
    %v529 = vld [vmem:[#allocation12 + $0x150] sm:$0xff]
    %v530 = vld [vmem:[#allocation12 + $0x158] sm:$0xff]
    %v531 = vld [vmem:[#allocation12 + $0x160] sm:$0xff]
    %v532 = vld [vmem:[#allocation12 + $0x168] sm:$0xff]
    %v533 = vld [vmem:[#allocation12 + $0x170] sm:$0xff]
    %v534 = vld [vmem:[#allocation12 + $0x178] sm:$0xff]
    %v535 = vld [vmem:[#allocation12 + $0x180] sm:$0xff]
    %v536 = vld [vmem:[#allocation12 + $0x188] sm:$0xff]
    %v537 = vld [vmem:[#allocation12 + $0x190] sm:$0xff]
    %v538 = vld [vmem:[#allocation12 + $0x198] sm:$0xff]
    %v539 = vld [vmem:[#allocation12 + $0x1a0] sm:$0xff]
    %v540 = vld [vmem:[#allocation12 + $0x1a8] sm:$0xff]
    %v541 = vld [vmem:[#allocation12 + $0x1b0] sm:$0xff]
    %v542 = vld [vmem:[#allocation12 + $0x1b8] sm:$0xff]
    %v543 = vld [vmem:[#allocation12 + $0x1c0] sm:$0xff]
    %v544 = vld [vmem:[#allocation12 + $0x1c8] sm:$0xff]
    %v545 = vld [vmem:[#allocation12 + $0x1d0] sm:$0xff]
    %v546 = vld [vmem:[#allocation12 + $0x1d8] sm:$0xff]
    %v547 = vld [vmem:[#allocation12 + $0x1e0] sm:$0xff]
    %v548 = vld [vmem:[#allocation12 + $0x1e8] sm:$0xff]
    %v549 = vld [vmem:[#allocation12 + $0x1f0] sm:$0xff]
    %v550 = vld [vmem:[#allocation12 + $0x1f8] sm:$0xff]
    %v551 = vld [vmem:[#allocation13] sm:$0xff]
    %v552 = vld [vmem:[#allocation13 + $0x8] sm:$0xff]
    %v553 = vld [vmem:[#allocation13 + $0x10] sm:$0xff]
    %v554 = vld [vmem:[#allocation13 + $0x18] sm:$0xff]
    %v555 = vld [vmem:[#allocation13 + $0x20] sm:$0xff]
    %v556 = vld [vmem:[#allocation13 + $0x28] sm:$0xff]
    %v557 = vld [vmem:[#allocation13 + $0x30] sm:$0xff]
    %v558 = vld [vmem:[#allocation13 + $0x38] sm:$0xff]
    %v559 = vld [vmem:[#allocation13 + $0x40] sm:$0xff]
    %v560 = vld [vmem:[#allocation13 + $0x48] sm:$0xff]
    %v561 = vld [vmem:[#allocation13 + $0x50] sm:$0xff]
    %v562 = vld [vmem:[#allocation13 + $0x58] sm:$0xff]
    %v563 = vld [vmem:[#allocation13 + $0x60] sm:$0xff]
    %v564 = vld [vmem:[#allocation13 + $0x68] sm:$0xff]
    %v565 = vld [vmem:[#allocation13 + $0x70] sm:$0xff]
    %v566 = vld [vmem:[#allocation13 + $0x78] sm:$0xff]
    %v567 = vld [vmem:[#allocation13 + $0x80] sm:$0xff]
    %v568 = vld [vmem:[#allocation13 + $0x88] sm:$0xff]
    %v569 = vld [vmem:[#allocation13 + $0x90] sm:$0xff]
    %v570 = vld [vmem:[#allocation13 + $0x98] sm:$0xff]
    %v571 = vld [vmem:[#allocation13 + $0xa0] sm:$0xff]
    %v572 = vld [vmem:[#allocation13 + $0xa8] sm:$0xff]
    %v573 = vld [vmem:[#allocation13 + $0xb0] sm:$0xff]
    %v574 = vld [vmem:[#allocation13 + $0xb8] sm:$0xff]
    %v575 = vld [vmem:[#allocation13 + $0xc0] sm:$0xff]
    %v576 = vld [vmem:[#allocation13 + $0xc8] sm:$0xff]
    %v577 = vld [vmem:[#allocation13 + $0xd0] sm:$0xff]
    %v578 = vld [vmem:[#allocation13 + $0xd8] sm:$0xff]
    %v579 = vld [vmem:[#allocation13 + $0xe0] sm:$0xff]
    %v580 = vld [vmem:[#allocation13 + $0xe8] sm:$0xff]
    %v581 = vld [vmem:[#allocation13 + $0xf0] sm:$0xff]
    %v582 = vld [vmem:[#allocation13 + $0xf8] sm:$0xff]
    %v583 = vld [vmem:[#allocation13 + $0x100] sm:$0xff]
    %v584 = vld [vmem:[#allocation13 + $0x108] sm:$0xff]
    %v585 = vld [vmem:[#allocation13 + $0x110] sm:$0xff]
    %v586 = vld [vmem:[#allocation13 + $0x118] sm:$0xff]
    %v587 = vld [vmem:[#allocation13 + $0x120] sm:$0xff]
    %v588 = vld [vmem:[#allocation13 + $0x128] sm:$0xff]
    %v589 = vld [vmem:[#allocation13 + $0x130] sm:$0xff]
    %v590 = vld [vmem:[#allocation13 + $0x138] sm:$0xff]
    %v591 = vld [vmem:[#allocation13 + $0x140] sm:$0xff]
    %v592 = vld [vmem:[#allocation13 + $0x148] sm:$0xff]
    %v593 = vld [vmem:[#allocation13 + $0x150] sm:$0xff]
    %v594 = vld [vmem:[#allocation13 + $0x158] sm:$0xff]
    %v595 = vld [vmem:[#allocation13 + $0x160] sm:$0xff]
    %v596 = vld [vmem:[#allocation13 + $0x168] sm:$0xff]
    %v597 = vld [vmem:[#allocation13 + $0x170] sm:$0xff]
    %v598 = vld [vmem:[#allocation13 + $0x178] sm:$0xff]
    %v599 = vld [vmem:[#allocation13 + $0x180] sm:$0xff]
    %v600 = vld [vmem:[#allocation13 + $0x188] sm:$0xff]
    %v601 = vld [vmem:[#allocation13 + $0x190] sm:$0xff]
    %v602 = vld [vmem:[#allocation13 + $0x198] sm:$0xff]
    %v603 = vld [vmem:[#allocation13 + $0x1a0] sm:$0xff]
    %v604 = vld [vmem:[#allocation13 + $0x1a8] sm:$0xff]
    %v605 = vld [vmem:[#allocation13 + $0x1b0] sm:$0xff]
    %v606 = vld [vmem:[#allocation13 + $0x1b8] sm:$0xff]
    %v607 = vld [vmem:[#allocation13 + $0x1c0] sm:$0xff]
    %v608 = vld [vmem:[#allocation13 + $0x1c8] sm:$0xff]
    %v609 = vld [vmem:[#allocation13 + $0x1d0] sm:$0xff]
    %v610 = vld [vmem:[#allocation13 + $0x1d8] sm:$0xff]
    %v611 = vld [vmem:[#allocation13 + $0x1e0] sm:$0xff]
    %v612 = vld [vmem:[#allocation13 + $0x1e8] sm:$0xff]
    %v613 = vld [vmem:[#allocation13 + $0x1f0] sm:$0xff]
    %v614 = vld [vmem:[#allocation13 + $0x1f8] sm:$0xff]
    %v615 = vld [vmem:[%s7] sm:$0xf]
    %s616 = smul.u32 0, 8
    %v617 = vld [vmem:[#allocation3] sm:$0xff]
    %v618 = vld [vmem:[#allocation4] sm:$0xff]
    %v619 = vld [vmem:[#allocation5] sm:$0xff]
    %v620 = vld [vmem:[#allocation6] sm:$0xff]
    %621 = vmatprep.subr.mxu0 %v552
    %622 = vmatpush1.msra.mxu0 %v551
    %623 = vmatprep.subr.mxu0 %v556
    %624 = vmatpush1.msra.mxu0 %v555
    %625 = vmatprep.subr.mxu0 %v560
    %626 = vmatpush1.msra.mxu0 %v559
    %627 = vmatprep.subr.mxu0 %v564
    %628 = vmatpush1.msra.mxu0 %v563
    %629 = vmatprep.subr.mxu0 %v568
    %630 = vmatpush1.msra.mxu0 %v567
    %631 = vmatprep.subr.mxu0 %v572
    %632 = vmatpush1.msra.mxu0 %v571
    %633 = vmatprep.subr.mxu0 %v576
    %634 = vmatpush1.msra.mxu0 %v575
    %635 = vmatprep.subr.mxu0 %v580
    %636 = vmatpush1.msra.mxu0 %v579
    %637 = vmatprep.subr.mxu0 %v584
    %638 = vmatpush1.msra.mxu0 %v583
    %639 = vmatprep.subr.mxu0 %v588
    %640 = vmatpush1.msra.mxu0 %v587
    %641 = vmatprep.subr.mxu0 %v592
    %642 = vmatpush1.msra.mxu0 %v591
    %643 = vmatprep.subr.mxu0 %v596
    %644 = vmatpush1.msra.mxu0 %v595
    %645 = vmatprep.subr.mxu0 %v600
    %646 = vmatpush1.msra.mxu0 %v599
    %647 = vmatprep.subr.mxu0 %v604
    %648 = vmatpush1.msra.mxu0 %v603
    %649 = vmatprep.subr.mxu0 %v608
    %650 = vmatpush1.msra.mxu0 %v607
    %651 = vmatprep.subr.mxu0 %v612
    %652 = vmatpush1.msra.mxu0 %v611
    %653 = vmatprep.subr.mxu0 0.0
    %654 = vmatpush1.msra.mxu0 0.0
    %655 = vmatprep.subr.mxu0 0.0
    %656 = vmatpush1.msra.mxu0 0.0
    %657 = vmatprep.subr.mxu0 0.0
    %658 = vmatpush1.msra.mxu0 0.0
    %659 = vmatprep.subr.mxu0 0.0
    %660 = vmatpush1.msra.mxu0 0.0
    %661 = vmatprep.subr.mxu0 0.0
    %662 = vmatpush1.msra.mxu0 0.0
    %663 = vmatprep.subr.mxu0 0.0
    %664 = vmatpush1.msra.mxu0 0.0
    %665 = vmatprep.subr.mxu0 0.0
    %666 = vmatpush1.msra.mxu0 0.0
    %667 = vmatprep.subr.mxu0 0.0
    %668 = vmatpush1.msra.mxu0 0.0
    %669 = vmatprep.subr.mxu0 0.0
    %670 = vmatpush1.msra.mxu0 0.0
    %671 = vmatprep.subr.mxu0 0.0
    %672 = vmatpush1.msra.mxu0 0.0
    %673 = vmatprep.subr.mxu0 0.0
    %674 = vmatpush1.msra.mxu0 0.0
    %675 = vmatprep.subr.mxu0 0.0
    %676 = vmatpush1.msra.mxu0 0.0
    %677 = vmatprep.subr.mxu0 0.0
    %678 = vmatpush1.msra.mxu0 0.0
    %679 = vmatprep.subr.mxu0 0.0
    %680 = vmatpush1.msra.mxu0 0.0
    %681 = vmatprep.subr.mxu0 0.0
    %682 = vmatpush1.msra.mxu0 0.0
    %683 = vmatprep.subr.mxu0 0.0
    %684 = vmatpush1.msra.mxu0 0.0
    %685 = vmatprep.mubr.f32.mxu0 0.0
    %686 = vmatmul.mubr.f32.gmra.mrb[0].mxu0 %v619
    %v687 = vpop.f32.mrb[0].mxu0
    %v688 = vadd.f32 0.0, %v687
    %v689 = vpop.f32.mrb[0].mxu0
    %v690 = vadd.f32 0.0, %v689
    %691 = vdwg.mxu0
    %692 = vmatprep.subr.mxu0 %v554
    %693 = vmatpush1.msra.mxu0 %v553
    %694 = vmatprep.subr.mxu0 %v558
    %695 = vmatpush1.msra.mxu0 %v557
    %696 = vmatprep.subr.mxu0 %v562
    %697 = vmatpush1.msra.mxu0 %v561
    %698 = vmatprep.subr.mxu0 %v566
    %699 = vmatpush1.msra.mxu0 %v565
    %700 = vmatprep.subr.mxu0 %v570
    %701 = vmatpush1.msra.mxu0 %v569
    %702 = vmatprep.subr.mxu0 %v574
    %703 = vmatpush1.msra.mxu0 %v573
    %704 = vmatprep.subr.mxu0 %v578
    %705 = vmatpush1.msra.mxu0 %v577
    %706 = vmatprep.subr.mxu0 %v582
    %707 = vmatpush1.msra.mxu0 %v581
    %708 = vmatprep.subr.mxu0 %v586
    %709 = vmatpush1.msra.mxu0 %v585
    %710 = vmatprep.subr.mxu0 %v590
    %711 = vmatpush1.msra.mxu0 %v589
    %712 = vmatprep.subr.mxu0 %v594
    %713 = vmatpush1.msra.mxu0 %v593
    %714 = vmatprep.subr.mxu0 %v598
    %715 = vmatpush1.msra.mxu0 %v597
    %716 = vmatprep.subr.mxu0 %v602
    %717 = vmatpush1.msra.mxu0 %v601
    %718 = vmatprep.subr.mxu0 %v606
    %719 = vmatpush1.msra.mxu0 %v605
    %720 = vmatprep.subr.mxu0 %v610
    %721 = vmatpush1.msra.mxu0 %v609
    %722 = vmatprep.subr.mxu0 %v614
    %723 = vmatpush1.msra.mxu0 %v613
    %724 = vmatprep.subr.mxu0 0.0
    %725 = vmatpush1.msra.mxu0 0.0
    %726 = vmatprep.subr.mxu0 0.0
    %727 = vmatpush1.msra.mxu0 0.0
    %728 = vmatprep.subr.mxu0 0.0
    %729 = vmatpush1.msra.mxu0 0.0
    %730 = vmatprep.subr.mxu0 0.0
    %731 = vmatpush1.msra.mxu0 0.0
    %732 = vmatprep.subr.mxu0 0.0
    %733 = vmatpush1.msra.mxu0 0.0
    %734 = vmatprep.subr.mxu0 0.0
    %735 = vmatpush1.msra.mxu0 0.0
    %736 = vmatprep.subr.mxu0 0.0
    %737 = vmatpush1.msra.mxu0 0.0
    %738 = vmatprep.subr.mxu0 0.0
    %739 = vmatpush1.msra.mxu0 0.0
    %740 = vmatprep.subr.mxu0 0.0
    %741 = vmatpush1.msra.mxu0 0.0
    %742 = vmatprep.subr.mxu0 0.0
    %743 = vmatpush1.msra.mxu0 0.0
    %744 = vmatprep.subr.mxu0 0.0
    %745 = vmatpush1.msra.mxu0 0.0
    %746 = vmatprep.subr.mxu0 0.0
    %747 = vmatpush1.msra.mxu0 0.0
    %748 = vmatprep.subr.mxu0 0.0
    %749 = vmatpush1.msra.mxu0 0.0
    %750 = vmatprep.subr.mxu0 0.0
    %751 = vmatpush1.msra.mxu0 0.0
    %752 = vmatprep.subr.mxu0 0.0
    %753 = vmatpush1.msra.mxu0 0.0
    %754 = vmatprep.subr.mxu0 0.0
    %755 = vmatpush1.msra.mxu0 0.0
    %756 = vmatprep.mubr.f32.mxu0 0.0
    %757 = vmatmul.mubr.f32.gmra.mrb[0].mxu0 %v619
    %v758 = vpop.f32.mrb[0].mxu0
    %v759 = vadd.f32 0.0, %v758
    %v760 = vpop.f32.mrb[0].mxu0
    %v761 = vadd.f32 0.0, %v760
    %762 = vdwg.mxu0
    %763 = vmatprep.subr.mxu0 %v488
    %764 = vmatpush1.msra.mxu0 %v487
    %765 = vmatprep.subr.mxu0 %v492
    %766 = vmatpush1.msra.mxu0 %v491
    %767 = vmatprep.subr.mxu0 %v496
    %768 = vmatpush1.msra.mxu0 %v495
    %769 = vmatprep.subr.mxu0 %v500
    %770 = vmatpush1.msra.mxu0 %v499
    %771 = vmatprep.subr.mxu0 %v504
    %772 = vmatpush1.msra.mxu0 %v503
    %773 = vmatprep.subr.mxu0 %v508
    %774 = vmatpush1.msra.mxu0 %v507
    %775 = vmatprep.subr.mxu0 %v512
    %776 = vmatpush1.msra.mxu0 %v511
    %777 = vmatprep.subr.mxu0 %v516
    %778 = vmatpush1.msra.mxu0 %v515
    %779 = vmatprep.subr.mxu0 %v520
    %780 = vmatpush1.msra.mxu0 %v519
    %781 = vmatprep.subr.mxu0 %v524
    %782 = vmatpush1.msra.mxu0 %v523
    %783 = vmatprep.subr.mxu0 %v528
    %784 = vmatpush1.msra.mxu0 %v527
    %785 = vmatprep.subr.mxu0 %v532
    %786 = vmatpush1.msra.mxu0 %v531
    %787 = vmatprep.subr.mxu0 %v536
    %788 = vmatpush1.msra.mxu0 %v535
    %789 = vmatprep.subr.mxu0 %v540
    %790 = vmatpush1.msra.mxu0 %v539
    %791 = vmatprep.subr.mxu0 %v544
    %792 = vmatpush1.msra.mxu0 %v543
    %793 = vmatprep.subr.mxu0 %v548
    %794 = vmatpush1.msra.mxu0 %v547
    %795 = vmatprep.subr.mxu0 0.0
    %796 = vmatpush1.msra.mxu0 0.0
    %797 = vmatprep.subr.mxu0 0.0
    %798 = vmatpush1.msra.mxu0 0.0
    %799 = vmatprep.subr.mxu0 0.0
    %800 = vmatpush1.msra.mxu0 0.0
    %801 = vmatprep.subr.mxu0 0.0
    %802 = vmatpush1.msra.mxu0 0.0
    %803 = vmatprep.subr.mxu0 0.0
    %804 = vmatpush1.msra.mxu0 0.0
    %805 = vmatprep.subr.mxu0 0.0
    %806 = vmatpush1.msra.mxu0 0.0
    %807 = vmatprep.subr.mxu0 0.0
    %808 = vmatpush1.msra.mxu0 0.0
    %809 = vmatprep.subr.mxu0 0.0
    %810 = vmatpush1.msra.mxu0 0.0
    %811 = vmatprep.subr.mxu0 0.0
    %812 = vmatpush1.msra.mxu0 0.0
    %813 = vmatprep.subr.mxu0 0.0
    %814 = vmatpush1.msra.mxu0 0.0
    %815 = vmatprep.subr.mxu0 0.0
    %816 = vmatpush1.msra.mxu0 0.0
    %817 = vmatprep.subr.mxu0 0.0
    %818 = vmatpush1.msra.mxu0 0.0
    %819 = vmatprep.subr.mxu0 0.0
    %820 = vmatpush1.msra.mxu0 0.0
    %821 = vmatprep.subr.mxu0 0.0
    %822 = vmatpush1.msra.mxu0 0.0
    %823 = vmatprep.subr.mxu0 0.0
    %824 = vmatpush1.msra.mxu0 0.0
    %825 = vmatprep.subr.mxu0 0.0
    %826 = vmatpush1.msra.mxu0 0.0
    %827 = vmatprep.mubr.f32.mxu0 0.0
    %828 = vmatmul.mubr.f32.gmra.mrb[0].mxu0 %v617
    %v829 = vpop.f32.mrb[0].mxu0
    %v830 = vadd.f32 %v688, %v829
    %v831 = vpop.f32.mrb[0].mxu0
    %v832 = vadd.f32 %v690, %v831
    %833 = vdwg.mxu0
    %834 = vmatprep.subr.mxu0 %v490
    %835 = vmatpush1.msra.mxu0 %v489
    %836 = vmatprep.subr.mxu0 %v494
    %837 = vmatpush1.msra.mxu0 %v493
    %838 = vmatprep.subr.mxu0 %v498
    %839 = vmatpush1.msra.mxu0 %v497
    %840 = vmatprep.subr.mxu0 %v502
    %841 = vmatpush1.msra.mxu0 %v501
    %842 = vmatprep.subr.mxu0 %v506
    %843 = vmatpush1.msra.mxu0 %v505
    %844 = vmatprep.subr.mxu0 %v510
    %845 = vmatpush1.msra.mxu0 %v509
    %846 = vmatprep.subr.mxu0 %v514
    %847 = vmatpush1.msra.mxu0 %v513
    %848 = vmatprep.subr.mxu0 %v518
    %849 = vmatpush1.msra.mxu0 %v517
    %850 = vmatprep.subr.mxu0 %v522
    %851 = vmatpush1.msra.mxu0 %v521
    %852 = vmatprep.subr.mxu0 %v526
    %853 = vmatpush1.msra.mxu0 %v525
    %854 = vmatprep.subr.mxu0 %v530
    %855 = vmatpush1.msra.mxu0 %v529
    %856 = vmatprep.subr.mxu0 %v534
    %857 = vmatpush1.msra.mxu0 %v533
    %858 = vmatprep.subr.mxu0 %v538
    %859 = vmatpush1.msra.mxu0 %v537
    %860 = vmatprep.subr.mxu0 %v542
    %861 = vmatpush1.msra.mxu0 %v541
    %862 = vmatprep.subr.mxu0 %v546
    %863 = vmatpush1.msra.mxu0 %v545
    %864 = vmatprep.subr.mxu0 %v550
    %865 = vmatpush1.msra.mxu0 %v549
    %866 = vmatprep.subr.mxu0 0.0
    %867 = vmatpush1.msra.mxu0 0.0
    %868 = vmatprep.subr.mxu0 0.0
    %869 = vmatpush1.msra.mxu0 0.0
    %870 = vmatprep.subr.mxu0 0.0
    %871 = vmatpush1.msra.mxu0 0.0
    %872 = vmatprep.subr.mxu0 0.0
    %873 = vmatpush1.msra.mxu0 0.0
    %874 = vmatprep.subr.mxu0 0.0
    %875 = vmatpush1.msra.mxu0 0.0
    %876 = vmatprep.subr.mxu0 0.0
    %877 = vmatpush1.msra.mxu0 0.0
    %878 = vmatprep.subr.mxu0 0.0
    %879 = vmatpush1.msra.mxu0 0.0
    %880 = vmatprep.subr.mxu0 0.0
    %881 = vmatpush1.msra.mxu0 0.0
    %882 = vmatprep.subr.mxu0 0.0
    %883 = vmatpush1.msra.mxu0 0.0
    %884 = vmatprep.subr.mxu0 0.0
    %885 = vmatpush1.msra.mxu0 0.0
    %886 = vmatprep.subr.mxu0 0.0
    %887 = vmatpush1.msra.mxu0 0.0
    %888 = vmatprep.subr.mxu0 0.0
    %889 = vmatpush1.msra.mxu0 0.0
    %890 = vmatprep.subr.mxu0 0.0
    %891 = vmatpush1.msra.mxu0 0.0
    %892 = vmatprep.subr.mxu0 0.0
    %893 = vmatpush1.msra.mxu0 0.0
    %894 = vmatprep.subr.mxu0 0.0
    %895 = vmatpush1.msra.mxu0 0.0
    %896 = vmatprep.subr.mxu0 0.0
    %897 = vmatpush1.msra.mxu0 0.0
    %898 = vmatprep.mubr.f32.mxu0 0.0
    %899 = vmatmul.mubr.f32.gmra.mrb[0].mxu0 %v617
    %v900 = vpop.f32.mrb[0].mxu0
    %v901 = vadd.f32 %v759, %v900
    %v902 = vpop.f32.mrb[0].mxu0
    %v903 = vadd.f32 %v761, %v902
    %904 = vdwg.mxu0
    %v906 = vlaneseq
    %v907 = vshrl.u32 %v906, 7
    %v908 = vsub.s32 0, %v907
    %v909 = vrot.slane %v615, %v908
    %v910 = vlaneseq
    %v911 = vshrl.u32 %v910, 7
    %v912 = vsub.s32 1, %v911
    %v913 = vrot.slane %v615, %v912
    %v914 = vlaneseq
    %v915 = vshrl.u32 %v914, 7
    %v916 = vsub.s32 2, %v915
    %v917 = vrot.slane %v615, %v916
    %v918 = vlaneseq
    %v919 = vshrl.u32 %v918, 7
    %v920 = vsub.s32 3, %v919
    %v921 = vrot.slane %v615, %v920
    %v926 = vadd.f32 %v830, %v909
    %v927 = vadd.f32 %v832, %v913
    %v928 = vadd.f32 %v901, %v917
    %v929 = vadd.f32 %v903, %v921
    %v930 = vmul.f32 %v926, 0.5
    %v931 = vtanh.pop %v930
    %v932 = vmul.f32 %v931, 0.5
    %v933 = vadd.f32 %v932, 0.5
    %v934 = vmul.f32 %v927, 0.5
    %v935 = vtanh.pop %v934
    %v936 = vmul.f32 %v935, 0.5
    %v937 = vadd.f32 %v936, 0.5
    %v938 = vtanh.pop %v928
    %v939 = vmul.f32 %v929, 0.5
    %v940 = vtanh.pop %v939
    %v941 = vmul.f32 %v940, 0.5
    %v942 = vadd.f32 %v941, 0.5
    %v943 = vmul.f32 %v937, %v620
    %v944 = vmul.f32 %v933, %v938
    %v945 = vadd.f32 %v943, %v944
    %v946 = vtanh.pop %v945
    %v947 = vmul.f32 %v942, %v946
    %p948 = scmp.ge.s32.totalorder %s616, 1
    %s949 = sadd.s32 %s616, 4294967295
    %v950 = vstv %s949
    %vm951 = vcmp.lt.s32.totalorder %v950, %v422
    %s952 = scalar_select %p948, 1, 0
    %v953 = vstv %s952
    %vm954 = vcmp.eq.s32.totalorder %v953, 1
    %vm955 = vmand %vm954, %vm951
    %s956 = smul.u32 0, 4
    %s957 = smul.addr %s956, 8
    %s958 = scalar_lea.vmem [#allocation2], %s957
    %v959 = vld [vmem:[%s958] sm:$0xff]
    %v960 = vld [vmem:[%s958 + $0x8] sm:$0xff]
    %v961 = vld [vmem:[%s958 + $0x10] sm:$0xff]
    %v962 = vld [vmem:[%s958 + $0x18] sm:$0xff]
    %963 = vmatprep.subr.mxu0 %v424
    %964 = vmatpush1.msra.mxu0 %v423
    %965 = vmatprep.subr.mxu0 %v428
    %966 = vmatpush1.msra.mxu0 %v427
    %967 = vmatprep.subr.mxu0 %v432
    %968 = vmatpush1.msra.mxu0 %v431
    %969 = vmatprep.subr.mxu0 %v436
    %970 = vmatpush1.msra.mxu0 %v435
    %971 = vmatprep.subr.mxu0 %v440
    %972 = vmatpush1.msra.mxu0 %v439
    %973 = vmatprep.subr.mxu0 %v444
    %974 = vmatpush1.msra.mxu0 %v443
    %975 = vmatprep.subr.mxu0 %v448
    %976 = vmatpush1.msra.mxu0 %v447
    %977 = vmatprep.subr.mxu0 %v452
    %978 = vmatpush1.msra.mxu0 %v451
    %979 = vmatprep.subr.mxu0 %v456
    %980 = vmatpush1.msra.mxu0 %v455
    %981 = vmatprep.subr.mxu0 %v460
    %982 = vmatpush1.msra.mxu0 %v459
    %983 = vmatprep.subr.mxu0 %v464
    %984 = vmatpush1.msra.mxu0 %v463
    %985 = vmatprep.subr.mxu0 %v468
    %986 = vmatpush1.msra.mxu0 %v467
    %987 = vmatprep.subr.mxu0 %v472
    %988 = vmatpush1.msra.mxu0 %v471
    %989 = vmatprep.subr.mxu0 %v476
    %990 = vmatpush1.msra.mxu0 %v475
    %991 = vmatprep.subr.mxu0 %v480
    %992 = vmatpush1.msra.mxu0 %v479
    %993 = vmatprep.subr.mxu0 %v484
    %994 = vmatpush1.msra.mxu0 %v483
    %995 = vmatprep.subr.mxu0 0.0
    %996 = vmatpush1.msra.mxu0 0.0
    %997 = vmatprep.subr.mxu0 0.0
    %998 = vmatpush1.msra.mxu0 0.0
    %999 = vmatprep.subr.mxu0 0.0
    %1000 = vmatpush1.msra.mxu0 0.0
    %1001 = vmatprep.subr.mxu0 0.0
    %1002 = vmatpush1.msra.mxu0 0.0
    %1003 = vmatprep.subr.mxu0 0.0
    %1004 = vmatpush1.msra.mxu0 0.0
    %1005 = vmatprep.subr.mxu0 0.0
    %1006 = vmatpush1.msra.mxu0 0.0
    %1007 = vmatprep.subr.mxu0 0.0
    %1008 = vmatpush1.msra.mxu0 0.0
    %1009 = vmatprep.subr.mxu0 0.0
    %1010 = vmatpush1.msra.mxu0 0.0
    %1011 = vmatprep.subr.mxu0 0.0
    %1012 = vmatpush1.msra.mxu0 0.0
    %1013 = vmatprep.subr.mxu0 0.0
    %1014 = vmatpush1.msra.mxu0 0.0
    %1015 = vmatprep.subr.mxu0 0.0
    %1016 = vmatpush1.msra.mxu0 0.0
    %1017 = vmatprep.subr.mxu0 0.0
    %1018 = vmatpush1.msra.mxu0 0.0
    %1019 = vmatprep.subr.mxu0 0.0
    %1020 = vmatpush1.msra.mxu0 0.0
    %1021 = vmatprep.subr.mxu0 0.0
    %1022 = vmatpush1.msra.mxu0 0.0
    %1023 = vmatprep.subr.mxu0 0.0
    %1024 = vmatpush1.msra.mxu0 0.0
    %1025 = vmatprep.subr.mxu0 0.0
    %1026 = vmatpush1.msra.mxu0 0.0
    %1027 = vmatprep.mubr.f32.mxu0 0.0
    %1028 = vmatmul.mubr.f32.gmra.mrb[0].mxu0 %v617
    %v1029 = vpop.f32.mrb[0].mxu0
    %v1030 = vadd.f32 0.0, %v1029
    %v1031 = vpop.f32.mrb[0].mxu0
    %v1032 = vadd.f32 0.0, %v1031
    %1033 = vdwg.mxu0
    %1034 = vmatprep.subr.mxu0 %v426
    %1035 = vmatpush1.msra.mxu0 %v425
    %1036 = vmatprep.subr.mxu0 %v430
    %1037 = vmatpush1.msra.mxu0 %v429
    %1038 = vmatprep.subr.mxu0 %v434
    %1039 = vmatpush1.msra.mxu0 %v433
    %1040 = vmatprep.subr.mxu0 %v438
    %1041 = vmatpush1.msra.mxu0 %v437
    %1042 = vmatprep.subr.mxu0 %v442
    %1043 = vmatpush1.msra.mxu0 %v441
    %1044 = vmatprep.subr.mxu0 %v446
    %1045 = vmatpush1.msra.mxu0 %v445
    %1046 = vmatprep.subr.mxu0 %v450
    %1047 = vmatpush1.msra.mxu0 %v449
    %1048 = vmatprep.subr.mxu0 %v454
    %1049 = vmatpush1.msra.mxu0 %v453
    %1050 = vmatprep.subr.mxu0 %v458
    %1051 = vmatpush1.msra.mxu0 %v457
    %1052 = vmatprep.subr.mxu0 %v462
    %1053 = vmatpush1.msra.mxu0 %v461
    %1054 = vmatprep.subr.mxu0 %v466
    %1055 = vmatpush1.msra.mxu0 %v465
    %1056 = vmatprep.subr.mxu0 %v470
    %1057 = vmatpush1.msra.mxu0 %v469
    %1058 = vmatprep.subr.mxu0 %v474
    %1059 = vmatpush1.msra.mxu0 %v473
    %1060 = vmatprep.subr.mxu0 %v478
    %1061 = vmatpush1.msra.mxu0 %v477
    %1062 = vmatprep.subr.mxu0 %v482
    %1063 = vmatpush1.msra.mxu0 %v481
    %1064 = vmatprep.subr.mxu0 %v486
    %1065 = vmatpush1.msra.mxu0 %v485
    %1066 = vmatprep.subr.mxu0 0.0
    %1067 = vmatpush1.msra.mxu0 0.0
    %1068 = vmatprep.subr.mxu0 0.0
    %1069 = vmatpush1.msra.mxu0 0.0
    %1070 = vmatprep.subr.mxu0 0.0
    %1071 = vmatpush1.msra.mxu0 0.0
    %1072 = vmatprep.subr.mxu0 0.0
    %1073 = vmatpush1.msra.mxu0 0.0
    %1074 = vmatprep.subr.mxu0 0.0
    %1075 = vmatpush1.msra.mxu0 0.0
    %1076 = vmatprep.subr.mxu0 0.0
    %1077 = vmatpush1.msra.mxu0 0.0
    %1078 = vmatprep.subr.mxu0 0.0
    %1079 = vmatpush1.msra.mxu0 0.0
    %1080 = vmatprep.subr.mxu0 0.0
    %1081 = vmatpush1.msra.mxu0 0.0
    %1082 = vmatprep.subr.mxu0 0.0
    %1083 = vmatpush1.msra.mxu0 0.0
    %1084 = vmatprep.subr.mxu0 0.0
    %1085 = vmatpush1.msra.mxu0 0.0
    %1086 = vmatprep.subr.mxu0 0.0
    %1087 = vmatpush1.msra.mxu0 0.0
    %1088 = vmatprep.subr.mxu0 0.0
    %1089 = vmatpush1.msra.mxu0 0.0
    %1090 = vmatprep.subr.mxu0 0.0
    %1091 = vmatpush1.msra.mxu0 0.0
    %1092 = vmatprep.subr.mxu0 0.0
    %1093 = vmatpush1.msra.mxu0 0.0
    %1094 = vmatprep.subr.mxu0 0.0
    %1095 = vmatpush1.msra.mxu0 0.0
    %1096 = vmatprep.subr.mxu0 0.0
    %1097 = vmatpush1.msra.mxu0 0.0
    %1098 = vmatprep.mubr.f32.mxu0 0.0
    %1099 = vmatmul.mubr.f32.gmra.mrb[0].mxu0 %v617
    %v1100 = vpop.f32.mrb[0].mxu0
    %v1101 = vadd.f32 0.0, %v1100
    %v1102 = vpop.f32.mrb[0].mxu0
    %v1103 = vadd.f32 0.0, %v1102
    %1104 = vdwg.mxu0
    %v1105 = vadd.f32 %v959, %v1030
    %v1106 = vadd.f32 %v960, %v1032
    %v1107 = vadd.f32 %v961, %v1101
    %v1108 = vadd.f32 %v962, %v1103
    %v1109 = vmul.f32 %v1105, 0.5
    %v1110 = vtanh.pop %v1109
    %v1111 = vmul.f32 %v1110, 0.5
    %v1112 = vadd.f32 %v1111, 0.5
    %v1113 = vmul.f32 %v1106, 0.5
    %v1114 = vtanh.pop %v1113
    %v1115 = vmul.f32 %v1114, 0.5
    %v1116 = vadd.f32 %v1115, 0.5
    %v1117 = vtanh.pop %v1107
    %v1118 = vmul.f32 %v1108, 0.5
    %v1119 = vtanh.pop %v1118
    %v1120 = vmul.f32 %v1119, 0.5
    %v1121 = vadd.f32 %v1120, 0.5
    %v1122 = vmul.f32 %v1116, %v618
    %v1123 = vmul.f32 %v1112, %v1117
    %v1124 = vadd.f32 %v1122, %v1123
    %v1125 = vtanh.pop %v1124
    %v1126 = vmul.f32 %v1121, %v1125
    %v1127 = vstv %s616
    %vm1128 = vcmp.lt.s32.totalorder %v1127, %v422
    %v1129 = vsel %vm1128, 1, 0
    %1130 = vset.pattern.permute.xlu0 0
    %1131 = vperm.xlu0 %1130, %v1129
    %v1132 = vpop.permute.xlu0 %1131
    %vm1133 = vcmp.eq.s32.totalorder %v1132, 1
    %v1134 = vsel %vm1133, %v1126, %v617
    %v1135 = vsel %vm1133, %v1124, %v618
    %v1136 = vsel %vm955, 1, 0
    %1137 = vset.pattern.permute.xlu0 0
    %1138 = vperm.xlu0 %1137, %v1136
    %v1139 = vpop.permute.xlu0 %1138
    %vm1140 = vcmp.eq.s32.totalorder %v1139, 1
    %v1141 = vsel %vm1140, %v947, %v619
    %v1142 = vsel %vm1140, %v945, %v620
    %s1143 = sadd.s32 %s616, 1
    %1144 = vmatprep.subr.mxu0 %v552
    %1145 = vmatpush1.msra.mxu0 %v551
    %1146 = vmatprep.subr.mxu0 %v556
    %1147 = vmatpush1.msra.mxu0 %v555
    %1148 = vmatprep.subr.mxu0 %v560
    %1149 = vmatpush1.msra.mxu0 %v559
    %1150 = vmatprep.subr.mxu0 %v564
    %1151 = vmatpush1.msra.mxu0 %v563
    %1152 = vmatprep.subr.mxu0 %v568
    %1153 = vmatpush1.msra.mxu0 %v567
    %1154 = vmatprep.subr.mxu0 %v572
    %1155 = vmatpush1.msra.mxu0 %v571
    %1156 = vmatprep.subr.mxu0 %v576
    %1157 = vmatpush1.msra.mxu0 %v575
    %1158 = vmatprep.subr.mxu0 %v580
    %1159 = vmatpush1.msra.mxu0 %v579
    %1160 = vmatprep.subr.mxu0 %v584
    %1161 = vmatpush1.msra.mxu0 %v583
    %1162 = vmatprep.subr.mxu0 %v588
    %1163 = vmatpush1.msra.mxu0 %v587
    %1164 = vmatprep.subr.mxu0 %v592
    %1165 = vmatpush1.msra.mxu0 %v591
    %1166 = vmatprep.subr.mxu0 %v596
    %1167 = vmatpush1.msra.mxu0 %v595
    %1168 = vmatprep.subr.mxu0 %v600
    %1169 = vmatpush1.msra.mxu0 %v599
    %1170 = vmatprep.subr.mxu0 %v604
    %1171 = vmatpush1.msra.mxu0 %v603
    %1172 = vmatprep.subr.mxu0 %v608
    %1173 = vmatpush1.msra.mxu0 %v607
    %1174 = vmatprep.subr.mxu0 %v612
    %1175 = vmatpush1.msra.mxu0 %v611
    %1176 = vmatprep.subr.mxu0 0.0
    %1177 = vmatpush1.msra.mxu0 0.0
    %1178 = vmatprep.subr.mxu0 0.0
    %1179 = vmatpush1.msra.mxu0 0.0
    %1180 = vmatprep.subr.mxu0 0.0
    %1181 = vmatpush1.msra.mxu0 0.0
    %1182 = vmatprep.subr.mxu0 0.0
    %1183 = vmatpush1.msra.mxu0 0.0
    %1184 = vmatprep.subr.mxu0 0.0
    %1185 = vmatpush1.msra.mxu0 0.0
    %1186 = vmatprep.subr.mxu0 0.0
    %1187 = vmatpush1.msra.mxu0 0.0
    %1188 = vmatprep.subr.mxu0 0.0
    %1189 = vmatpush1.msra.mxu0 0.0
    %1190 = vmatprep.subr.mxu0 0.0
    %1191 = vmatpush1.msra.mxu0 0.0
    %1192 = vmatprep.subr.mxu0 0.0
    %1193 = vmatpush1.msra.mxu0 0.0
    %1194 = vmatprep.subr.mxu0 0.0
    %1195 = vmatpush1.msra.mxu0 0.0
    %1196 = vmatprep.subr.mxu0 0.0
    %1197 = vmatpush1.msra.mxu0 0.0
    %1198 = vmatprep.subr.mxu0 0.0
    %1199 = vmatpush1.msra.mxu0 0.0
    %1200 = vmatprep.subr.mxu0 0.0
    %1201 = vmatpush1.msra.mxu0 0.0
    %1202 = vmatprep.subr.mxu0 0.0
    %1203 = vmatpush1.msra.mxu0 0.0
    %1204 = vmatprep.subr.mxu0 0.0
    %1205 = vmatpush1.msra.mxu0 0.0
    %1206 = vmatprep.subr.mxu0 0.0
    %1207 = vmatpush1.msra.mxu0 0.0
    %1208 = vmatprep.mubr.f32.mxu0 0.0
    %1209 = vmatmul.mubr.f32.gmra.mrb[0].mxu0 %v1141
    %v1210 = vpop.f32.mrb[0].mxu0
    %v1211 = vadd.f32 0.0, %v1210
    %v1212 = vpop.f32.mrb[0].mxu0
    %v1213 = vadd.f32 0.0, %v1212
    %1214 = vdwg.mxu0
    %1215 = vmatprep.subr.mxu0 %v554
    %1216 = vmatpush1.msra.mxu0 %v553
    %1217 = vmatprep.subr.mxu0 %v558
    %1218 = vmatpush1.msra.mxu0 %v557
    %1219 = vmatprep.subr.mxu0 %v562
    %1220 = vmatpush1.msra.mxu0 %v561
    %1221 = vmatprep.subr.mxu0 %v566
    %1222 = vmatpush1.msra.mxu0 %v565
    %1223 = vmatprep.subr.mxu0 %v570
    %1224 = vmatpush1.msra.mxu0 %v569
    %1225 = vmatprep.subr.mxu0 %v574
    %1226 = vmatpush1.msra.mxu0 %v573
    %1227 = vmatprep.subr.mxu0 %v578
    %1228 = vmatpush1.msra.mxu0 %v577
    %1229 = vmatprep.subr.mxu0 %v582
    %1230 = vmatpush1.msra.mxu0 %v581
    %1231 = vmatprep.subr.mxu0 %v586
    %1232 = vmatpush1.msra.mxu0 %v585
    %1233 = vmatprep.subr.mxu0 %v590
    %1234 = vmatpush1.msra.mxu0 %v589
    %1235 = vmatprep.subr.mxu0 %v594
    %1236 = vmatpush1.msra.mxu0 %v593
    %1237 = vmatprep.subr.mxu0 %v598
    %1238 = vmatpush1.msra.mxu0 %v597
    %1239 = vmatprep.subr.mxu0 %v602
    %1240 = vmatpush1.msra.mxu0 %v601
    %1241 = vmatprep.subr.mxu0 %v606
    %1242 = vmatpush1.msra.mxu0 %v605
    %1243 = vmatprep.subr.mxu0 %v610
    %1244 = vmatpush1.msra.mxu0 %v609
    %1245 = vmatprep.subr.mxu0 %v614
    %1246 = vmatpush1.msra.mxu0 %v613
    %1247 = vmatprep.subr.mxu0 0.0
    %1248 = vmatpush1.msra.mxu0 0.0
    %1249 = vmatprep.subr.mxu0 0.0
    %1250 = vmatpush1.msra.mxu0 0.0
    %1251 = vmatprep.subr.mxu0 0.0
    %1252 = vmatpush1.msra.mxu0 0.0
    %1253 = vmatprep.subr.mxu0 0.0
    %1254 = vmatpush1.msra.mxu0 0.0
    %1255 = vmatprep.subr.mxu0 0.0
    %1256 = vmatpush1.msra.mxu0 0.0
    %1257 = vmatprep.subr.mxu0 0.0
    %1258 = vmatpush1.msra.mxu0 0.0
    %1259 = vmatprep.subr.mxu0 0.0
    %1260 = vmatpush1.msra.mxu0 0.0
    %1261 = vmatprep.subr.mxu0 0.0
    %1262 = vmatpush1.msra.mxu0 0.0
    %1263 = vmatprep.subr.mxu0 0.0
    %1264 = vmatpush1.msra.mxu0 0.0
    %1265 = vmatprep.subr.mxu0 0.0
    %1266 = vmatpush1.msra.mxu0 0.0
    %1267 = vmatprep.subr.mxu0 0.0
    %1268 = vmatpush1.msra.mxu0 0.0
    %1269 = vmatprep.subr.mxu0 0.0
    %1270 = vmatpush1.msra.mxu0 0.0
    %1271 = vmatprep.subr.mxu0 0.0
    %1272 = vmatpush1.msra.mxu0 0.0
    %1273 = vmatprep.subr.mxu0 0.0
    %1274 = vmatpush1.msra.mxu0 0.0
    %1275 = vmatprep.subr.mxu0 0.0
    %1276 = vmatpush1.msra.mxu0 0.0
    %1277 = vmatprep.subr.mxu0 0.0
    %1278 = vmatpush1.msra.mxu0 0.0
    %1279 = vmatprep.mubr.f32.mxu0 0.0
    %1280 = vmatmul.mubr.f32.gmra.mrb[0].mxu0 %v1141
    %v1281 = vpop.f32.mrb[0].mxu0
    %v1282 = vadd.f32 0.0, %v1281
    %v1283 = vpop.f32.mrb[0].mxu0
    %v1284 = vadd.f32 0.0, %v1283
    %1285 = vdwg.mxu0
    %1286 = vmatprep.subr.mxu0 %v488
    %1287 = vmatpush1.msra.mxu0 %v487
    %1288 = vmatprep.subr.mxu0 %v492
    %1289 = vmatpush1.msra.mxu0 %v491
    %1290 = vmatprep.subr.mxu0 %v496
    %1291 = vmatpush1.msra.mxu0 %v495
    %1292 = vmatprep.subr.mxu0 %v500
    %1293 = vmatpush1.msra.mxu0 %v499
    %1294 = vmatprep.subr.mxu0 %v504
    %1295 = vmatpush1.msra.mxu0 %v503
    %1296 = vmatprep.subr.mxu0 %v508
    %1297 = vmatpush1.msra.mxu0 %v507
    %1298 = vmatprep.subr.mxu0 %v512
    %1299 = vmatpush1.msra.mxu0 %v511
    %1300 = vmatprep.subr.mxu0 %v516
    %1301 = vmatpush1.msra.mxu0 %v515
    %1302 = vmatprep.subr.mxu0 %v520
    %1303 = vmatpush1.msra.mxu0 %v519
    %1304 = vmatprep.subr.mxu0 %v524
    %1305 = vmatpush1.msra.mxu0 %v523
    %1306 = vmatprep.subr.mxu0 %v528
    %1307 = vmatpush1.msra.mxu0 %v527
    %1308 = vmatprep.subr.mxu0 %v532
    %1309 = vmatpush1.msra.mxu0 %v531
    %1310 = vmatprep.subr.mxu0 %v536
    %1311 = vmatpush1.msra.mxu0 %v535
    %1312 = vmatprep.subr.mxu0 %v540
    %1313 = vmatpush1.msra.mxu0 %v539
    %1314 = vmatprep.subr.mxu0 %v544
    %1315 = vmatpush1.msra.mxu0 %v543
    %1316 = vmatprep.subr.mxu0 %v548
    %1317 = vmatpush1.msra.mxu0 %v547
    %1318 = vmatprep.subr.mxu0 0.0
    %1319 = vmatpush1.msra.mxu0 0.0
    %1320 = vmatprep.subr.mxu0 0.0
    %1321 = vmatpush1.msra.mxu0 0.0
    %1322 = vmatprep.subr.mxu0 0.0
    %1323 = vmatpush1.msra.mxu0 0.0
    %1324 = vmatprep.subr.mxu0 0.0
    %1325 = vmatpush1.msra.mxu0 0.0
    %1326 = vmatprep.subr.mxu0 0.0
    %1327 = vmatpush1.msra.mxu0 0.0
    %1328 = vmatprep.subr.mxu0 0.0
    %1329 = vmatpush1.msra.mxu0 0.0
    %1330 = vmatprep.subr.mxu0 0.0
    %1331 = vmatpush1.msra.mxu0 0.0
    %1332 = vmatprep.subr.mxu0 0.0
    %1333 = vmatpush1.msra.mxu0 0.0
    %1334 = vmatprep.subr.mxu0 0.0
    %1335 = vmatpush1.msra.mxu0 0.0
    %1336 = vmatprep.subr.mxu0 0.0
    %1337 = vmatpush1.msra.mxu0 0.0
    %1338 = vmatprep.subr.mxu0 0.0
    %1339 = vmatpush1.msra.mxu0 0.0
    %1340 = vmatprep.subr.mxu0 0.0
    %1341 = vmatpush1.msra.mxu0 0.0
    %1342 = vmatprep.subr.mxu0 0.0
    %1343 = vmatpush1.msra.mxu0 0.0
    %1344 = vmatprep.subr.mxu0 0.0
    %1345 = vmatpush1.msra.mxu0 0.0
    %1346 = vmatprep.subr.mxu0 0.0
    %1347 = vmatpush1.msra.mxu0 0.0
    %1348 = vmatprep.subr.mxu0 0.0
    %1349 = vmatpush1.msra.mxu0 0.0
    %1350 = vmatprep.mubr.f32.mxu0 0.0
    %1351 = vmatmul.mubr.f32.gmra.mrb[0].mxu0 %v1134
    %v1352 = vpop.f32.mrb[0].mxu0
    %v1353 = vadd.f32 %v1211, %v1352
    %v1354 = vpop.f32.mrb[0].mxu0
    %v1355 = vadd.f32 %v1213, %v1354
    %1356 = vdwg.mxu0
    %1357 = vmatprep.subr.mxu0 %v490
    %1358 = vmatpush1.msra.mxu0 %v489
    %1359 = vmatprep.subr.mxu0 %v494
    %1360 = vmatpush1.msra.mxu0 %v493
    %1361 = vmatprep.subr.mxu0 %v498
    %1362 = vmatpush1.msra.mxu0 %v497
    %1363 = vmatprep.subr.mxu0 %v502
    %1364 = vmatpush1.msra.mxu0 %v501
    %1365 = vmatprep.subr.mxu0 %v506
    %1366 = vmatpush1.msra.mxu0 %v505
    %1367 = vmatprep.subr.mxu0 %v510
    %1368 = vmatpush1.msra.mxu0 %v509
    %1369 = vmatprep.subr.mxu0 %v514
    %1370 = vmatpush1.msra.mxu0 %v513
    %1371 = vmatprep.subr.mxu0 %v518
    %1372 = vmatpush1.msra.mxu0 %v517
    %1373 = vmatprep.subr.mxu0 %v522
    %1374 = vmatpush1.msra.mxu0 %v521
    %1375 = vmatprep.subr.mxu0 %v526
    %1376 = vmatpush1.msra.mxu0 %v525
    %1377 = vmatprep.subr.mxu0 %v530
    %1378 = vmatpush1.msra.mxu0 %v529
    %1379 = vmatprep.subr.mxu0 %v534
    %1380 = vmatpush1.msra.mxu0 %v533
    %1381 = vmatprep.subr.mxu0 %v538
    %1382 = vmatpush1.msra.mxu0 %v537
    %1383 = vmatprep.subr.mxu0 %v542
    %1384 = vmatpush1.msra.mxu0 %v541
    %1385 = vmatprep.subr.mxu0 %v546
    %1386 = vmatpush1.msra.mxu0 %v545
    %1387 = vmatprep.subr.mxu0 %v550
    %1388 = vmatpush1.msra.mxu0 %v549
    %1389 = vmatprep.subr.mxu0 0.0
    %1390 = vmatpush1.msra.mxu0 0.0
    %1391 = vmatprep.subr.mxu0 0.0
    %1392 = vmatpush1.msra.mxu0 0.0
    %1393 = vmatprep.subr.mxu0 0.0
    %1394 = vmatpush1.msra.mxu0 0.0
    %1395 = vmatprep.subr.mxu0 0.0
    %1396 = vmatpush1.msra.mxu0 0.0
    %1397 = vmatprep.subr.mxu0 0.0
    %1398 = vmatpush1.msra.mxu0 0.0
    %1399 = vmatprep.subr.mxu0 0.0
    %1400 = vmatpush1.msra.mxu0 0.0
    %1401 = vmatprep.subr.mxu0 0.0
    %1402 = vmatpush1.msra.mxu0 0.0
    %1403 = vmatprep.subr.mxu0 0.0
    %1404 = vmatpush1.msra.mxu0 0.0
    %1405 = vmatprep.subr.mxu0 0.0
    %1406 = vmatpush1.msra.mxu0 0.0
    %1407 = vmatprep.subr.mxu0 0.0
    %1408 = vmatpush1.msra.mxu0 0.0
    %1409 = vmatprep.subr.mxu0 0.0
    %1410 = vmatpush1.msra.mxu0 0.0
    %1411 = vmatprep.subr.mxu0 0.0
    %1412 = vmatpush1.msra.mxu0 0.0
    %1413 = vmatprep.subr.mxu0 0.0
    %1414 = vmatpush1.msra.mxu0 0.0
    %1415 = vmatprep.subr.mxu0 0.0
    %1416 = vmatpush1.msra.mxu0 0.0
    %1417 = vmatprep.subr.mxu0 0.0
    %1418 = vmatpush1.msra.mxu0 0.0
    %1419 = vmatprep.subr.mxu0 0.0
    %1420 = vmatpush1.msra.mxu0 0.0
    %1421 = vmatprep.mubr.f32.mxu0 0.0
    %1422 = vmatmul.mubr.f32.gmra.mrb[0].mxu0 %v1134
    %v1423 = vpop.f32.mrb[0].mxu0
    %v1424 = vadd.f32 %v1282, %v1423
    %v1425 = vpop.f32.mrb[0].mxu0
    %v1426 = vadd.f32 %v1284, %v1425
    %1427 = vdwg.mxu0
    %v1428 = vadd.f32 %v1353, %v909
    %v1429 = vadd.f32 %v1355, %v913
    %v1430 = vadd.f32 %v1424, %v917
    %v1431 = vadd.f32 %v1426, %v921
    %v1432 = vmul.f32 %v1428, 0.5
    %v1433 = vtanh.pop %v1432
    %v1434 = vmul.f32 %v1433, 0.5
    %v1435 = vadd.f32 %v1434, 0.5
    %v1436 = vmul.f32 %v1429, 0.5
    %v1437 = vtanh.pop %v1436
    %v1438 = vmul.f32 %v1437, 0.5
    %v1439 = vadd.f32 %v1438, 0.5
    %v1440 = vtanh.pop %v1430
    %v1441 = vmul.f32 %v1431, 0.5
    %v1442 = vtanh.pop %v1441
    %v1443 = vmul.f32 %v1442, 0.5
    %v1444 = vadd.f32 %v1443, 0.5
    %v1445 = vmul.f32 %v1439, %v1142
    %v1446 = vmul.f32 %v1435, %v1440
    %v1447 = vadd.f32 %v1445, %v1446
    %v1448 = vtanh.pop %v1447
    %v1449 = vmul.f32 %v1444, %v1448
    %p1450 = scmp.ge.s32.totalorder %s1143, 1
    %s1451 = scalar_select %p1450, 1, 0
    %v1452 = vstv %s1451
    %vm1453 = vcmp.eq.s32.totalorder %v1452, 1
    %vm1454 = vmand %vm1453, %vm1128
    %s1455 = smul.u32 1, 4
    %s1456 = smul.addr %s1455, 8
    %s1457 = scalar_lea.vmem [#allocation2], %s1456
    %v1458 = vld [vmem:[%s1457] sm:$0xff]
    %v1459 = vld [vmem:[%s1457 + $0x8] sm:$0xff]
    %v1460 = vld [vmem:[%s1457 + $0x10] sm:$0xff]
    %v1461 = vld [vmem:[%s1457 + $0x18] sm:$0xff]
    %1462 = vmatprep.subr.mxu0 %v424
    %1463 = vmatpush1.msra.mxu0 %v423
    %1464 = vmatprep.subr.mxu0 %v428
    %1465 = vmatpush1.msra.mxu0 %v427
    %1466 = vmatprep.subr.mxu0 %v432
    %1467 = vmatpush1.msra.mxu0 %v431
    %1468 = vmatprep.subr.mxu0 %v436
    %1469 = vmatpush1.msra.mxu0 %v435
    %1470 = vmatprep.subr.mxu0 %v440
    %1471 = vmatpush1.msra.mxu0 %v439
    %1472 = vmatprep.subr.mxu0 %v444
    %1473 = vmatpush1.msra.mxu0 %v443
    %1474 = vmatprep.subr.mxu0 %v448
    %1475 = vmatpush1.msra.mxu0 %v447
    %1476 = vmatprep.subr.mxu0 %v452
    %1477 = vmatpush1.msra.mxu0 %v451
    %1478 = vmatprep.subr.mxu0 %v456
    %1479 = vmatpush1.msra.mxu0 %v455
    %1480 = vmatprep.subr.mxu0 %v460
    %1481 = vmatpush1.msra.mxu0 %v459
    %1482 = vmatprep.subr.mxu0 %v464
    %1483 = vmatpush1.msra.mxu0 %v463
    %1484 = vmatprep.subr.mxu0 %v468
    %1485 = vmatpush1.msra.mxu0 %v467
    %1486 = vmatprep.subr.mxu0 %v472
    %1487 = vmatpush1.msra.mxu0 %v471
    %1488 = vmatprep.subr.mxu0 %v476
    %1489 = vmatpush1.msra.mxu0 %v475
    %1490 = vmatprep.subr.mxu0 %v480
    %1491 = vmatpush1.msra.mxu0 %v479
    %1492 = vmatprep.subr.mxu0 %v484
    %1493 = vmatpush1.msra.mxu0 %v483
    %1494 = vmatprep.subr.mxu0 0.0
    %1495 = vmatpush1.msra.mxu0 0.0
    %1496 = vmatprep.subr.mxu0 0.0
    %1497 = vmatpush1.msra.mxu0 0.0
    %1498 = vmatprep.subr.mxu0 0.0
    %1499 = vmatpush1.msra.mxu0 0.0
    %1500 = vmatprep.subr.mxu0 0.0
    %1501 = vmatpush1.msra.mxu0 0.0
    %1502 = vmatprep.subr.mxu0 0.0
    %1503 = vmatpush1.msra.mxu0 0.0
    %1504 = vmatprep.subr.mxu0 0.0
    %1505 = vmatpush1.msra.mxu0 0.0
    %1506 = vmatprep.subr.mxu0 0.0
    %1507 = vmatpush1.msra.mxu0 0.0
    %1508 = vmatprep.subr.mxu0 0.0
    %1509 = vmatpush1.msra.mxu0 0.0
    %1510 = vmatprep.subr.mxu0 0.0
    %1511 = vmatpush1.msra.mxu0 0.0
    %1512 = vmatprep.subr.mxu0 0.0
    %1513 = vmatpush1.msra.mxu0 0.0
    %1514 = vmatprep.subr.mxu0 0.0
    %1515 = vmatpush1.msra.mxu0 0.0
    %1516 = vmatprep.subr.mxu0 0.0
    %1517 = vmatpush1.msra.mxu0 0.0
    %1518 = vmatprep.subr.mxu0 0.0
    %1519 = vmatpush1.msra.mxu0 0.0
    %1520 = vmatprep.subr.mxu0 0.0
    %1521 = vmatpush1.msra.mxu0 0.0
    %1522 = vmatprep.subr.mxu0 0.0
    %1523 = vmatpush1.msra.mxu0 0.0
    %1524 = vmatprep.subr.mxu0 0.0
    %1525 = vmatpush1.msra.mxu0 0.0
    %1526 = vmatprep.mubr.f32.mxu0 0.0
    %1527 = vmatmul.mubr.f32.gmra.mrb[0].mxu0 %v1134
    %v1528 = vpop.f32.mrb[0].mxu0
    %v1529 = vadd.f32 0.0, %v1528
    %v1530 = vpop.f32.mrb[0].mxu0
    %v1531 = vadd.f32 0.0, %v1530
    %1532 = vdwg.mxu0
    %1533 = vmatprep.subr.mxu0 %v426
    %1534 = vmatpush1.msra.mxu0 %v425
    %1535 = vmatprep.subr.mxu0 %v430
    %1536 = vmatpush1.msra.mxu0 %v429
    %1537 = vmatprep.subr.mxu0 %v434
    %1538 = vmatpush1.msra.mxu0 %v433
    %1539 = vmatprep.subr.mxu0 %v438
    %1540 = vmatpush1.msra.mxu0 %v437
    %1541 = vmatprep.subr.mxu0 %v442
    %1542 = vmatpush1.msra.mxu0 %v441
    %1543 = vmatprep.subr.mxu0 %v446
    %1544 = vmatpush1.msra.mxu0 %v445
    %1545 = vmatprep.subr.mxu0 %v450
    %1546 = vmatpush1.msra.mxu0 %v449
    %1547 = vmatprep.subr.mxu0 %v454
    %1548 = vmatpush1.msra.mxu0 %v453
    %1549 = vmatprep.subr.mxu0 %v458
    %1550 = vmatpush1.msra.mxu0 %v457
    %1551 = vmatprep.subr.mxu0 %v462
    %1552 = vmatpush1.msra.mxu0 %v461
    %1553 = vmatprep.subr.mxu0 %v466
    %1554 = vmatpush1.msra.mxu0 %v465
    %1555 = vmatprep.subr.mxu0 %v470
    %1556 = vmatpush1.msra.mxu0 %v469
    %1557 = vmatprep.subr.mxu0 %v474
    %1558 = vmatpush1.msra.mxu0 %v473
    %1559 = vmatprep.subr.mxu0 %v478
    %1560 = vmatpush1.msra.mxu0 %v477
    %1561 = vmatprep.subr.mxu0 %v482
    %1562 = vmatpush1.msra.mxu0 %v481
    %1563 = vmatprep.subr.mxu0 %v486
    %1564 = vmatpush1.msra.mxu0 %v485
    %1565 = vmatprep.subr.mxu0 0.0
    %1566 = vmatpush1.msra.mxu0 0.0
    %1567 = vmatprep.subr.mxu0 0.0
    %1568 = vmatpush1.msra.mxu0 0.0
    %1569 = vmatprep.subr.mxu0 0.0
    %1570 = vmatpush1.msra.mxu0 0.0
    %1571 = vmatprep.subr.mxu0 0.0
    %1572 = vmatpush1.msra.mxu0 0.0
    %1573 = vmatprep.subr.mxu0 0.0
    %1574 = vmatpush1.msra.mxu0 0.0
    %1575 = vmatprep.subr.mxu0 0.0
    %1576 = vmatpush1.msra.mxu0 0.0
    %1577 = vmatprep.subr.mxu0 0.0
    %1578 = vmatpush1.msra.mxu0 0.0
    %1579 = vmatprep.subr.mxu0 0.0
    %1580 = vmatpush1.msra.mxu0 0.0
    %1581 = vmatprep.subr.mxu0 0.0
    %1582 = vmatpush1.msra.mxu0 0.0
    %1583 = vmatprep.subr.mxu0 0.0
    %1584 = vmatpush1.msra.mxu0 0.0
    %1585 = vmatprep.subr.mxu0 0.0
    %1586 = vmatpush1.msra.mxu0 0.0
    %1587 = vmatprep.subr.mxu0 0.0
    %1588 = vmatpush1.msra.mxu0 0.0
    %1589 = vmatprep.subr.mxu0 0.0
    %1590 = vmatpush1.msra.mxu0 0.0
    %1591 = vmatprep.subr.mxu0 0.0
    %1592 = vmatpush1.msra.mxu0 0.0
    %1593 = vmatprep.subr.mxu0 0.0
    %1594 = vmatpush1.msra.mxu0 0.0
    %1595 = vmatprep.subr.mxu0 0.0
    %1596 = vmatpush1.msra.mxu0 0.0
    %1597 = vmatprep.mubr.f32.mxu0 0.0
    %1598 = vmatmul.mubr.f32.gmra.mrb[0].mxu0 %v1134
    %v1599 = vpop.f32.mrb[0].mxu0
    %v1600 = vadd.f32 0.0, %v1599
    %v1601 = vpop.f32.mrb[0].mxu0
    %v1602 = vadd.f32 0.0, %v1601
    %1603 = vdwg.mxu0
    %v1604 = vadd.f32 %v1458, %v1529
    %v1605 = vadd.f32 %v1459, %v1531
    %v1606 = vadd.f32 %v1460, %v1600
    %v1607 = vadd.f32 %v1461, %v1602
    %v1608 = vmul.f32 %v1604, 0.5
    %v1609 = vtanh.pop %v1608
    %v1610 = vmul.f32 %v1609, 0.5
    %v1611 = vadd.f32 %v1610, 0.5
    %v1612 = vmul.f32 %v1605, 0.5
    %v1613 = vtanh.pop %v1612
    %v1614 = vmul.f32 %v1613, 0.5
    %v1615 = vadd.f32 %v1614, 0.5
    %v1616 = vtanh.pop %v1606
    %v1617 = vmul.f32 %v1607, 0.5
    %v1618 = vtanh.pop %v1617
    %v1619 = vmul.f32 %v1618, 0.5
    %v1620 = vadd.f32 %v1619, 0.5
    %v1621 = vmul.f32 %v1615, %v1135
    %v1622 = vmul.f32 %v1611, %v1616
    %v1623 = vadd.f32 %v1621, %v1622
    %v1624 = vtanh.pop %v1623
    %v1625 = vmul.f32 %v1620, %v1624
    %v1626 = vstv %s1143
    %vm1627 = vcmp.lt.s32.totalorder %v1626, %v422
    %v1628 = vsel %vm1627, 1, 0
    %1629 = vset.pattern.permute.xlu0 0
    %1630 = vperm.xlu0 %1629, %v1628
    %v1631 = vpop.permute.xlu0 %1630
    %vm1632 = vcmp.eq.s32.totalorder %v1631, 1
    %v1633 = vsel %vm1632, %v1625, %v1134
    %v1634 = vsel %vm1632, %v1623, %v1135
    %v1635 = vsel %vm1454, 1, 0
    %1636 = vset.pattern.permute.xlu0 0
    %1637 = vperm.xlu0 %1636, %v1635
    %v1638 = vpop.permute.xlu0 %1637
    %vm1639 = vcmp.eq.s32.totalorder %v1638, 1
    %v1640 = vsel %vm1639, %v1449, %v1141
    %v1641 = vsel %vm1639, %v1447, %v1142
    %s1642 = sadd.s32 %s616, 2
    %1643 = vmatprep.subr.mxu0 %v552
    %1644 = vmatpush1.msra.mxu0 %v551
    %1645 = vmatprep.subr.mxu0 %v556
    %1646 = vmatpush1.msra.mxu0 %v555
    %1647 = vmatprep.subr.mxu0 %v560
    %1648 = vmatpush1.msra.mxu0 %v559
    %1649 = vmatprep.subr.mxu0 %v564
    %1650 = vmatpush1.msra.mxu0 %v563
    %1651 = vmatprep.subr.mxu0 %v568
    %1652 = vmatpush1.msra.mxu0 %v567
    %1653 = vmatprep.subr.mxu0 %v572
    %1654 = vmatpush1.msra.mxu0 %v571
    %1655 = vmatprep.subr.mxu0 %v576
    %1656 = vmatpush1.msra.mxu0 %v575
    %1657 = vmatprep.subr.mxu0 %v580
    %1658 = vmatpush1.msra.mxu0 %v579
    %1659 = vmatprep.subr.mxu0 %v584
    %1660 = vmatpush1.msra.mxu0 %v583
    %1661 = vmatprep.subr.mxu0 %v588
    %1662 = vmatpush1.msra.mxu0 %v587
    %1663 = vmatprep.subr.mxu0 %v592
    %1664 = vmatpush1.msra.mxu0 %v591
    %1665 = vmatprep.subr.mxu0 %v596
    %1666 = vmatpush1.msra.mxu0 %v595
    %1667 = vmatprep.subr.mxu0 %v600
    %1668 = vmatpush1.msra.mxu0 %v599
    %1669 = vmatprep.subr.mxu0 %v604
    %1670 = vmatpush1.msra.mxu0 %v603
    %1671 = vmatprep.subr.mxu0 %v608
    %1672 = vmatpush1.msra.mxu0 %v607
    %1673 = vmatprep.subr.mxu0 %v612
    %1674 = vmatpush1.msra.mxu0 %v611
    %1675 = vmatprep.subr.mxu0 0.0
    %1676 = vmatpush1.msra.mxu0 0.0
    %1677 = vmatprep.subr.mxu0 0.0
    %1678 = vmatpush1.msra.mxu0 0.0
    %1679 = vmatprep.subr.mxu0 0.0
    %1680 = vmatpush1.msra.mxu0 0.0
    %1681 = vmatprep.subr.mxu0 0.0
    %1682 = vmatpush1.msra.mxu0 0.0
    %1683 = vmatprep.subr.mxu0 0.0
    %1684 = vmatpush1.msra.mxu0 0.0
    %1685 = vmatprep.subr.mxu0 0.0
    %1686 = vmatpush1.msra.mxu0 0.0
    %1687 = vmatprep.subr.mxu0 0.0
    %1688 = vmatpush1.msra.mxu0 0.0
    %1689 = vmatprep.subr.mxu0 0.0
    %1690 = vmatpush1.msra.mxu0 0.0
    %1691 = vmatprep.subr.mxu0 0.0
    %1692 = vmatpush1.msra.mxu0 0.0
    %1693 = vmatprep.subr.mxu0 0.0
    %1694 = vmatpush1.msra.mxu0 0.0
    %1695 = vmatprep.subr.mxu0 0.0
    %1696 = vmatpush1.msra.mxu0 0.0
    %1697 = vmatprep.subr.mxu0 0.0
    %1698 = vmatpush1.msra.mxu0 0.0
    %1699 = vmatprep.subr.mxu0 0.0
    %1700 = vmatpush1.msra.mxu0 0.0
    %1701 = vmatprep.subr.mxu0 0.0
    %1702 = vmatpush1.msra.mxu0 0.0
    %1703 = vmatprep.subr.mxu0 0.0
    %1704 = vmatpush1.msra.mxu0 0.0
    %1705 = vmatprep.subr.mxu0 0.0
    %1706 = vmatpush1.msra.mxu0 0.0
    %1707 = vmatprep.mubr.f32.mxu0 0.0
    %1708 = vmatmul.mubr.f32.gmra.mrb[0].mxu0 %v1640
    %v1709 = vpop.f32.mrb[0].mxu0
    %v1710 = vadd.f32 0.0, %v1709
    %v1711 = vpop.f32.mrb[0].mxu0
    %v1712 = vadd.f32 0.0, %v1711
    %1713 = vdwg.mxu0
    %1714 = vmatprep.subr.mxu0 %v554
    %1715 = vmatpush1.msra.mxu0 %v553
    %1716 = vmatprep.subr.mxu0 %v558
    %1717 = vmatpush1.msra.mxu0 %v557
    %1718 = vmatprep.subr.mxu0 %v562
    %1719 = vmatpush1.msra.mxu0 %v561
    %1720 = vmatprep.subr.mxu0 %v566
    %1721 = vmatpush1.msra.mxu0 %v565
    %1722 = vmatprep.subr.mxu0 %v570
    %1723 = vmatpush1.msra.mxu0 %v569
    %1724 = vmatprep.subr.mxu0 %v574
    %1725 = vmatpush1.msra.mxu0 %v573
    %1726 = vmatprep.subr.mxu0 %v578
    %1727 = vmatpush1.msra.mxu0 %v577
    %1728 = vmatprep.subr.mxu0 %v582
    %1729 = vmatpush1.msra.mxu0 %v581
    %1730 = vmatprep.subr.mxu0 %v586
    %1731 = vmatpush1.msra.mxu0 %v585
    %1732 = vmatprep.subr.mxu0 %v590
    %1733 = vmatpush1.msra.mxu0 %v589
    %1734 = vmatprep.subr.mxu0 %v594
    %1735 = vmatpush1.msra.mxu0 %v593
    %1736 = vmatprep.subr.mxu0 %v598
    %1737 = vmatpush1.msra.mxu0 %v597
    %1738 = vmatprep.subr.mxu0 %v602
    %1739 = vmatpush1.msra.mxu0 %v601
    %1740 = vmatprep.subr.mxu0 %v606
    %1741 = vmatpush1.msra.mxu0 %v605
    %1742 = vmatprep.subr.mxu0 %v610
    %1743 = vmatpush1.msra.mxu0 %v609
    %1744 = vmatprep.subr.mxu0 %v614
    %1745 = vmatpush1.msra.mxu0 %v613
    %1746 = vmatprep.subr.mxu0 0.0
    %1747 = vmatpush1.msra.mxu0 0.0
    %1748 = vmatprep.subr.mxu0 0.0
    %1749 = vmatpush1.msra.mxu0 0.0
    %1750 = vmatprep.subr.mxu0 0.0
    %1751 = vmatpush1.msra.mxu0 0.0
    %1752 = vmatprep.subr.mxu0 0.0
    %1753 = vmatpush1.msra.mxu0 0.0
    %1754 = vmatprep.subr.mxu0 0.0
    %1755 = vmatpush1.msra.mxu0 0.0
    %1756 = vmatprep.subr.mxu0 0.0
    %1757 = vmatpush1.msra.mxu0 0.0
    %1758 = vmatprep.subr.mxu0 0.0
    %1759 = vmatpush1.msra.mxu0 0.0
    %1760 = vmatprep.subr.mxu0 0.0
    %1761 = vmatpush1.msra.mxu0 0.0
    %1762 = vmatprep.subr.mxu0 0.0
    %1763 = vmatpush1.msra.mxu0 0.0
    %1764 = vmatprep.subr.mxu0 0.0
    %1765 = vmatpush1.msra.mxu0 0.0
    %1766 = vmatprep.subr.mxu0 0.0
    %1767 = vmatpush1.msra.mxu0 0.0
    %1768 = vmatprep.subr.mxu0 0.0
    %1769 = vmatpush1.msra.mxu0 0.0
    %1770 = vmatprep.subr.mxu0 0.0
    %1771 = vmatpush1.msra.mxu0 0.0
    %1772 = vmatprep.subr.mxu0 0.0
    %1773 = vmatpush1.msra.mxu0 0.0
    %1774 = vmatprep.subr.mxu0 0.0
    %1775 = vmatpush1.msra.mxu0 0.0
    %1776 = vmatprep.subr.mxu0 0.0
    %1777 = vmatpush1.msra.mxu0 0.0
    %1778 = vmatprep.mubr.f32.mxu0 0.0
    %1779 = vmatmul.mubr.f32.gmra.mrb[0].mxu0 %v1640
    %v1780 = vpop.f32.mrb[0].mxu0
    %v1781 = vadd.f32 0.0, %v1780
    %v1782 = vpop.f32.mrb[0].mxu0
    %v1783 = vadd.f32 0.0, %v1782
    %1784 = vdwg.mxu0
    %1785 = vmatprep.subr.mxu0 %v488
    %1786 = vmatpush1.msra.mxu0 %v487
    %1787 = vmatprep.subr.mxu0 %v492
    %1788 = vmatpush1.msra.mxu0 %v491
    %1789 = vmatprep.subr.mxu0 %v496
    %1790 = vmatpush1.msra.mxu0 %v495
    %1791 = vmatprep.subr.mxu0 %v500
    %1792 = vmatpush1.msra.mxu0 %v499
    %1793 = vmatprep.subr.mxu0 %v504
    %1794 = vmatpush1.msra.mxu0 %v503
    %1795 = vmatprep.subr.mxu0 %v508
    %1796 = vmatpush1.msra.mxu0 %v507
    %1797 = vmatprep.subr.mxu0 %v512
    %1798 = vmatpush1.msra.mxu0 %v511
    %1799 = vmatprep.subr.mxu0 %v516
    %1800 = vmatpush1.msra.mxu0 %v515
    %1801 = vmatprep.subr.mxu0 %v520
    %1802 = vmatpush1.msra.mxu0 %v519
    %1803 = vmatprep.subr.mxu0 %v524
    %1804 = vmatpush1.msra.mxu0 %v523
    %1805 = vmatprep.subr.mxu0 %v528
    %1806 = vmatpush1.msra.mxu0 %v527
    %1807 = vmatprep.subr.mxu0 %v532
    %1808 = vmatpush1.msra.mxu0 %v531
    %1809 = vmatprep.subr.mxu0 %v536
    %1810 = vmatpush1.msra.mxu0 %v535
    %1811 = vmatprep.subr.mxu0 %v540
    %1812 = vmatpush1.msra.mxu0 %v539
    %1813 = vmatprep.subr.mxu0 %v544
    %1814 = vmatpush1.msra.mxu0 %v543
    %1815 = vmatprep.subr.mxu0 %v548
    %1816 = vmatpush1.msra.mxu0 %v547
    %1817 = vmatprep.subr.mxu0 0.0
    %1818 = vmatpush1.msra.mxu0 0.0
    %1819 = vmatprep.subr.mxu0 0.0
    %1820 = vmatpush1.msra.mxu0 0.0
    %1821 = vmatprep.subr.mxu0 0.0
    %1822 = vmatpush1.msra.mxu0 0.0
    %1823 = vmatprep.subr.mxu0 0.0
    %1824 = vmatpush1.msra.mxu0 0.0
    %1825 = vmatprep.subr.mxu0 0.0
    %1826 = vmatpush1.msra.mxu0 0.0
    %1827 = vmatprep.subr.mxu0 0.0
    %1828 = vmatpush1.msra.mxu0 0.0
    %1829 = vmatprep.subr.mxu0 0.0
    %1830 = vmatpush1.msra.mxu0 0.0
    %1831 = vmatprep.subr.mxu0 0.0
    %1832 = vmatpush1.msra.mxu0 0.0
    %1833 = vmatprep.subr.mxu0 0.0
    %1834 = vmatpush1.msra.mxu0 0.0
    %1835 = vmatprep.subr.mxu0 0.0
    %1836 = vmatpush1.msra.mxu0 0.0
    %1837 = vmatprep.subr.mxu0 0.0
    %1838 = vmatpush1.msra.mxu0 0.0
    %1839 = vmatprep.subr.mxu0 0.0
    %1840 = vmatpush1.msra.mxu0 0.0
    %1841 = vmatprep.subr.mxu0 0.0
    %1842 = vmatpush1.msra.mxu0 0.0
    %1843 = vmatprep.subr.mxu0 0.0
    %1844 = vmatpush1.msra.mxu0 0.0
    %1845 = vmatprep.subr.mxu0 0.0
    %1846 = vmatpush1.msra.mxu0 0.0
    %1847 = vmatprep.subr.mxu0 0.0
    %1848 = vmatpush1.msra.mxu0 0.0
    %1849 = vmatprep.mubr.f32.mxu0 0.0
    %1850 = vmatmul.mubr.f32.gmra.mrb[0].mxu0 %v1633
    %v1851 = vpop.f32.mrb[0].mxu0
    %v1852 = vadd.f32 %v1710, %v1851
    %v1853 = vpop.f32.mrb[0].mxu0
    %v1854 = vadd.f32 %v1712, %v1853
    %1855 = vdwg.mxu0
    %1856 = vmatprep.subr.mxu0 %v490
    %1857 = vmatpush1.msra.mxu0 %v489
    %1858 = vmatprep.subr.mxu0 %v494
    %1859 = vmatpush1.msra.mxu0 %v493
    %1860 = vmatprep.subr.mxu0 %v498
    %1861 = vmatpush1.msra.mxu0 %v497
    %1862 = vmatprep.subr.mxu0 %v502
    %1863 = vmatpush1.msra.mxu0 %v501
    %1864 = vmatprep.subr.mxu0 %v506
    %1865 = vmatpush1.msra.mxu0 %v505
    %1866 = vmatprep.subr.mxu0 %v510
    %1867 = vmatpush1.msra.mxu0 %v509
    %1868 = vmatprep.subr.mxu0 %v514
    %1869 = vmatpush1.msra.mxu0 %v513
    %1870 = vmatprep.subr.mxu0 %v518
    %1871 = vmatpush1.msra.mxu0 %v517
    %1872 = vmatprep.subr.mxu0 %v522
    %1873 = vmatpush1.msra.mxu0 %v521
    %1874 = vmatprep.subr.mxu0 %v526
    %1875 = vmatpush1.msra.mxu0 %v525
    %1876 = vmatprep.subr.mxu0 %v530
    %1877 = vmatpush1.msra.mxu0 %v529
    %1878 = vmatprep.subr.mxu0 %v534
    %1879 = vmatpush1.msra.mxu0 %v533
    %1880 = vmatprep.subr.mxu0 %v538
    %1881 = vmatpush1.msra.mxu0 %v537
    %1882 = vmatprep.subr.mxu0 %v542
    %1883 = vmatpush1.msra.mxu0 %v541
    %1884 = vmatprep.subr.mxu0 %v546
    %1885 = vmatpush1.msra.mxu0 %v545
    %1886 = vmatprep.subr.mxu0 %v550
    %1887 = vmatpush1.msra.mxu0 %v549
    %1888 = vmatprep.subr.mxu0 0.0
    %1889 = vmatpush1.msra.mxu0 0.0
    %1890 = vmatprep.subr.mxu0 0.0
    %1891 = vmatpush1.msra.mxu0 0.0
    %1892 = vmatprep.subr.mxu0 0.0
    %1893 = vmatpush1.msra.mxu0 0.0
    %1894 = vmatprep.subr.mxu0 0.0
    %1895 = vmatpush1.msra.mxu0 0.0
    %1896 = vmatprep.subr.mxu0 0.0
    %1897 = vmatpush1.msra.mxu0 0.0
    %1898 = vmatprep.subr.mxu0 0.0
    %1899 = vmatpush1.msra.mxu0 0.0
    %1900 = vmatprep.subr.mxu0 0.0
    %1901 = vmatpush1.msra.mxu0 0.0
    %1902 = vmatprep.subr.mxu0 0.0
    %1903 = vmatpush1.msra.mxu0 0.0
    %1904 = vmatprep.subr.mxu0 0.0
    %1905 = vmatpush1.msra.mxu0 0.0
    %1906 = vmatprep.subr.mxu0 0.0
    %1907 = vmatpush1.msra.mxu0 0.0
    %1908 = vmatprep.subr.mxu0 0.0
    %1909 = vmatpush1.msra.mxu0 0.0
    %1910 = vmatprep.subr.mxu0 0.0
    %1911 = vmatpush1.msra.mxu0 0.0
    %1912 = vmatprep.subr.mxu0 0.0
    %1913 = vmatpush1.msra.mxu0 0.0
    %1914 = vmatprep.subr.mxu0 0.0
    %1915 = vmatpush1.msra.mxu0 0.0
    %1916 = vmatprep.subr.mxu0 0.0
    %1917 = vmatpush1.msra.mxu0 0.0
    %1918 = vmatprep.subr.mxu0 0.0
    %1919 = vmatpush1.msra.mxu0 0.0
    %1920 = vmatprep.mubr.f32.mxu0 0.0
    %1921 = vmatmul.mubr.f32.gmra.mrb[0].mxu0 %v1633
    %v1922 = vpop.f32.mrb[0].mxu0
    %v1923 = vadd.f32 %v1781, %v1922
    %v1924 = vpop.f32.mrb[0].mxu0
    %v1925 = vadd.f32 %v1783, %v1924
    %1926 = vdwg.mxu0
    %v1927 = vadd.f32 %v1852, %v909
    %v1928 = vadd.f32 %v1854, %v913
    %v1929 = vadd.f32 %v1923, %v917
    %v1930 = vadd.f32 %v1925, %v921
    %v1931 = vmul.f32 %v1927, 0.5
    %v1932 = vtanh.pop %v1931
    %v1933 = vmul.f32 %v1932, 0.5
    %v1934 = vadd.f32 %v1933, 0.5
    %v1935 = vmul.f32 %v1928, 0.5
    %v1936 = vtanh.pop %v1935
    %v1937 = vmul.f32 %v1936, 0.5
    %v1938 = vadd.f32 %v1937, 0.5
    %v1939 = vtanh.pop %v1929
    %v1940 = vmul.f32 %v1930, 0.5
    %v1941 = vtanh.pop %v1940
    %v1942 = vmul.f32 %v1941, 0.5
    %v1943 = vadd.f32 %v1942, 0.5
    %v1944 = vmul.f32 %v1938, %v1641
    %v1945 = vmul.f32 %v1934, %v1939
    %v1946 = vadd.f32 %v1944, %v1945
    %v1947 = vtanh.pop %v1946
    %v1948 = vmul.f32 %v1943, %v1947
    %p1949 = scmp.ge.s32.totalorder %s1642, 1
    %s1950 = scalar_select %p1949, 1, 0
    %v1951 = vstv %s1950
    %vm1952 = vcmp.eq.s32.totalorder %v1951, 1
    %vm1953 = vmand %vm1952, %vm1627
    %s1954 = smul.u32 2, 4
    %s1955 = smul.addr %s1954, 8
    %s1956 = scalar_lea.vmem [#allocation2], %s1955
    %v1957 = vld [vmem:[%s1956] sm:$0xff]
    %v1958 = vld [vmem:[%s1956 + $0x8] sm:$0xff]
    %v1959 = vld [vmem:[%s1956 + $0x10] sm:$0xff]
    %v1960 = vld [vmem:[%s1956 + $0x18] sm:$0xff]
    %1961 = vmatprep.subr.mxu0 %v424
    %1962 = vmatpush1.msra.mxu0 %v423
    %1963 = vmatprep.subr.mxu0 %v428
    %1964 = vmatpush1.msra.mxu0 %v427
    %1965 = vmatprep.subr.mxu0 %v432
    %1966 = vmatpush1.msra.mxu0 %v431
    %1967 = vmatprep.subr.mxu0 %v436
    %1968 = vmatpush1.msra.mxu0 %v435
    %1969 = vmatprep.subr.mxu0 %v440
    %1970 = vmatpush1.msra.mxu0 %v439
    %1971 = vmatprep.subr.mxu0 %v444
    %1972 = vmatpush1.msra.mxu0 %v443
    %1973 = vmatprep.subr.mxu0 %v448
    %1974 = vmatpush1.msra.mxu0 %v447
    %1975 = vmatprep.subr.mxu0 %v452
    %1976 = vmatpush1.msra.mxu0 %v451
    %1977 = vmatprep.subr.mxu0 %v456
    %1978 = vmatpush1.msra.mxu0 %v455
    %1979 = vmatprep.subr.mxu0 %v460
    %1980 = vmatpush1.msra.mxu0 %v459
    %1981 = vmatprep.subr.mxu0 %v464
    %1982 = vmatpush1.msra.mxu0 %v463
    %1983 = vmatprep.subr.mxu0 %v468
    %1984 = vmatpush1.msra.mxu0 %v467
    %1985 = vmatprep.subr.mxu0 %v472
    %1986 = vmatpush1.msra.mxu0 %v471
    %1987 = vmatprep.subr.mxu0 %v476
    %1988 = vmatpush1.msra.mxu0 %v475
    %1989 = vmatprep.subr.mxu0 %v480
    %1990 = vmatpush1.msra.mxu0 %v479
    %1991 = vmatprep.subr.mxu0 %v484
    %1992 = vmatpush1.msra.mxu0 %v483
    %1993 = vmatprep.subr.mxu0 0.0
    %1994 = vmatpush1.msra.mxu0 0.0
    %1995 = vmatprep.subr.mxu0 0.0
    %1996 = vmatpush1.msra.mxu0 0.0
    %1997 = vmatprep.subr.mxu0 0.0
    %1998 = vmatpush1.msra.mxu0 0.0
    %1999 = vmatprep.subr.mxu0 0.0
    %2000 = vmatpush1.msra.mxu0 0.0
    %2001 = vmatprep.subr.mxu0 0.0
    %2002 = vmatpush1.msra.mxu0 0.0
    %2003 = vmatprep.subr.mxu0 0.0
    %2004 = vmatpush1.msra.mxu0 0.0
    %2005 = vmatprep.subr.mxu0 0.0
    %2006 = vmatpush1.msra.mxu0 0.0
    %2007 = vmatprep.subr.mxu0 0.0
    %2008 = vmatpush1.msra.mxu0 0.0
    %2009 = vmatprep.subr.mxu0 0.0
    %2010 = vmatpush1.msra.mxu0 0.0
    %2011 = vmatprep.subr.mxu0 0.0
    %2012 = vmatpush1.msra.mxu0 0.0
    %2013 = vmatprep.subr.mxu0 0.0
    %2014 = vmatpush1.msra.mxu0 0.0
    %2015 = vmatprep.subr.mxu0 0.0
    %2016 = vmatpush1.msra.mxu0 0.0
    %2017 = vmatprep.subr.mxu0 0.0
    %2018 = vmatpush1.msra.mxu0 0.0
    %2019 = vmatprep.subr.mxu0 0.0
    %2020 = vmatpush1.msra.mxu0 0.0
    %2021 = vmatprep.subr.mxu0 0.0
    %2022 = vmatpush1.msra.mxu0 0.0
    %2023 = vmatprep.subr.mxu0 0.0
    %2024 = vmatpush1.msra.mxu0 0.0
    %2025 = vmatprep.mubr.f32.mxu0 0.0
    %2026 = vmatmul.mubr.f32.gmra.mrb[0].mxu0 %v1633
    %v2027 = vpop.f32.mrb[0].mxu0
    %v2028 = vadd.f32 0.0, %v2027
    %v2029 = vpop.f32.mrb[0].mxu0
    %v2030 = vadd.f32 0.0, %v2029
    %2031 = vdwg.mxu0
    %2032 = vmatprep.subr.mxu0 %v426
    %2033 = vmatpush1.msra.mxu0 %v425
    %2034 = vmatprep.subr.mxu0 %v430
    %2035 = vmatpush1.msra.mxu0 %v429
    %2036 = vmatprep.subr.mxu0 %v434
    %2037 = vmatpush1.msra.mxu0 %v433
    %2038 = vmatprep.subr.mxu0 %v438
    %2039 = vmatpush1.msra.mxu0 %v437
    %2040 = vmatprep.subr.mxu0 %v442
    %2041 = vmatpush1.msra.mxu0 %v441
    %2042 = vmatprep.subr.mxu0 %v446
    %2043 = vmatpush1.msra.mxu0 %v445
    %2044 = vmatprep.subr.mxu0 %v450
    %2045 = vmatpush1.msra.mxu0 %v449
    %2046 = vmatprep.subr.mxu0 %v454
    %2047 = vmatpush1.msra.mxu0 %v453
    %2048 = vmatprep.subr.mxu0 %v458
    %2049 = vmatpush1.msra.mxu0 %v457
    %2050 = vmatprep.subr.mxu0 %v462
    %2051 = vmatpush1.msra.mxu0 %v461
    %2052 = vmatprep.subr.mxu0 %v466
    %2053 = vmatpush1.msra.mxu0 %v465
    %2054 = vmatprep.subr.mxu0 %v470
    %2055 = vmatpush1.msra.mxu0 %v469
    %2056 = vmatprep.subr.mxu0 %v474
    %2057 = vmatpush1.msra.mxu0 %v473
    %2058 = vmatprep.subr.mxu0 %v478
    %2059 = vmatpush1.msra.mxu0 %v477
    %2060 = vmatprep.subr.mxu0 %v482
    %2061 = vmatpush1.msra.mxu0 %v481
    %2062 = vmatprep.subr.mxu0 %v486
    %2063 = vmatpush1.msra.mxu0 %v485
    %2064 = vmatprep.subr.mxu0 0.0
    %2065 = vmatpush1.msra.mxu0 0.0
    %2066 = vmatprep.subr.mxu0 0.0
    %2067 = vmatpush1.msra.mxu0 0.0
    %2068 = vmatprep.subr.mxu0 0.0
    %2069 = vmatpush1.msra.mxu0 0.0
    %2070 = vmatprep.subr.mxu0 0.0
    %2071 = vmatpush1.msra.mxu0 0.0
    %2072 = vmatprep.subr.mxu0 0.0
    %2073 = vmatpush1.msra.mxu0 0.0
    %2074 = vmatprep.subr.mxu0 0.0
    %2075 = vmatpush1.msra.mxu0 0.0
    %2076 = vmatprep.subr.mxu0 0.0
    %2077 = vmatpush1.msra.mxu0 0.0
    %2078 = vmatprep.subr.mxu0 0.0
    %2079 = vmatpush1.msra.mxu0 0.0
    %2080 = vmatprep.subr.mxu0 0.0
    %2081 = vmatpush1.msra.mxu0 0.0
    %2082 = vmatprep.subr.mxu0 0.0
    %2083 = vmatpush1.msra.mxu0 0.0
    %2084 = vmatprep.subr.mxu0 0.0
    %2085 = vmatpush1.msra.mxu0 0.0
    %2086 = vmatprep.subr.mxu0 0.0
    %2087 = vmatpush1.msra.mxu0 0.0
    %2088 = vmatprep.subr.mxu0 0.0
    %2089 = vmatpush1.msra.mxu0 0.0
    %2090 = vmatprep.subr.mxu0 0.0
    %2091 = vmatpush1.msra.mxu0 0.0
    %2092 = vmatprep.subr.mxu0 0.0
    %2093 = vmatpush1.msra.mxu0 0.0
    %2094 = vmatprep.subr.mxu0 0.0
    %2095 = vmatpush1.msra.mxu0 0.0
    %2096 = vmatprep.mubr.f32.mxu0 0.0
    %2097 = vmatmul.mubr.f32.gmra.mrb[0].mxu0 %v1633
    %v2098 = vpop.f32.mrb[0].mxu0
    %v2099 = vadd.f32 0.0, %v2098
    %v2100 = vpop.f32.mrb[0].mxu0
    %v2101 = vadd.f32 0.0, %v2100
    %2102 = vdwg.mxu0
    %v2103 = vadd.f32 %v1957, %v2028
    %v2104 = vadd.f32 %v1958, %v2030
    %v2105 = vadd.f32 %v1959, %v2099
    %v2106 = vadd.f32 %v1960, %v2101
    %v2107 = vmul.f32 %v2103, 0.5
    %v2108 = vtanh.pop %v2107
    %v2109 = vmul.f32 %v2108, 0.5
    %v2110 = vadd.f32 %v2109, 0.5
    %v2111 = vmul.f32 %v2104, 0.5
    %v2112 = vtanh.pop %v2111
    %v2113 = vmul.f32 %v2112, 0.5
    %v2114 = vadd.f32 %v2113, 0.5
    %v2115 = vtanh.pop %v2105
    %v2116 = vmul.f32 %v2106, 0.5
    %v2117 = vtanh.pop %v2116
    %v2118 = vmul.f32 %v2117, 0.5
    %v2119 = vadd.f32 %v2118, 0.5
    %v2120 = vmul.f32 %v2114, %v1634
    %v2121 = vmul.f32 %v2110, %v2115
    %v2122 = vadd.f32 %v2120, %v2121
    %v2123 = vtanh.pop %v2122
    %v2124 = vmul.f32 %v2119, %v2123
    %v2125 = vstv %s1642
    %vm2126 = vcmp.lt.s32.totalorder %v2125, %v422
    %v2127 = vsel %vm2126, 1, 0
    %2128 = vset.pattern.permute.xlu0 0
    %2129 = vperm.xlu0 %2128, %v2127
    %v2130 = vpop.permute.xlu0 %2129
    %vm2131 = vcmp.eq.s32.totalorder %v2130, 1
    %v2132 = vsel %vm2131, %v2124, %v1633
    %v2133 = vsel %vm2131, %v2122, %v1634
    %v2134 = vsel %vm1953, 1, 0
    %2135 = vset.pattern.permute.xlu0 0
    %2136 = vperm.xlu0 %2135, %v2134
    %v2137 = vpop.permute.xlu0 %2136
    %vm2138 = vcmp.eq.s32.totalorder %v2137, 1
    %v2139 = vsel %vm2138, %v1948, %v1640
    %v2140 = vsel %vm2138, %v1946, %v1641
    %s2141 = sadd.s32 %s616, 3
    %2142 = vmatprep.subr.mxu0 %v552
    %2143 = vmatpush1.msra.mxu0 %v551
    %2144 = vmatprep.subr.mxu0 %v556
    %2145 = vmatpush1.msra.mxu0 %v555
    %2146 = vmatprep.subr.mxu0 %v560
    %2147 = vmatpush1.msra.mxu0 %v559
    %2148 = vmatprep.subr.mxu0 %v564
    %2149 = vmatpush1.msra.mxu0 %v563
    %2150 = vmatprep.subr.mxu0 %v568
    %2151 = vmatpush1.msra.mxu0 %v567
    %2152 = vmatprep.subr.mxu0 %v572
    %2153 = vmatpush1.msra.mxu0 %v571
    %2154 = vmatprep.subr.mxu0 %v576
    %2155 = vmatpush1.msra.mxu0 %v575
    %2156 = vmatprep.subr.mxu0 %v580
    %2157 = vmatpush1.msra.mxu0 %v579
    %2158 = vmatprep.subr.mxu0 %v584
    %2159 = vmatpush1.msra.mxu0 %v583
    %2160 = vmatprep.subr.mxu0 %v588
    %2161 = vmatpush1.msra.mxu0 %v587
    %2162 = vmatprep.subr.mxu0 %v592
    %2163 = vmatpush1.msra.mxu0 %v591
    %2164 = vmatprep.subr.mxu0 %v596
    %2165 = vmatpush1.msra.mxu0 %v595
    %2166 = vmatprep.subr.mxu0 %v600
    %2167 = vmatpush1.msra.mxu0 %v599
    %2168 = vmatprep.subr.mxu0 %v604
    %2169 = vmatpush1.msra.mxu0 %v603
    %2170 = vmatprep.subr.mxu0 %v608
    %2171 = vmatpush1.msra.mxu0 %v607
    %2172 = vmatprep.subr.mxu0 %v612
    %2173 = vmatpush1.msra.mxu0 %v611
    %2174 = vmatprep.subr.mxu0 0.0
    %2175 = vmatpush1.msra.mxu0 0.0
    %2176 = vmatprep.subr.mxu0 0.0
    %2177 = vmatpush1.msra.mxu0 0.0
    %2178 = vmatprep.subr.mxu0 0.0
    %2179 = vmatpush1.msra.mxu0 0.0
    %2180 = vmatprep.subr.mxu0 0.0
    %2181 = vmatpush1.msra.mxu0 0.0
    %2182 = vmatprep.subr.mxu0 0.0
    %2183 = vmatpush1.msra.mxu0 0.0
    %2184 = vmatprep.subr.mxu0 0.0
    %2185 = vmatpush1.msra.mxu0 0.0
    %2186 = vmatprep.subr.mxu0 0.0
    %2187 = vmatpush1.msra.mxu0 0.0
    %2188 = vmatprep.subr.mxu0 0.0
    %2189 = vmatpush1.msra.mxu0 0.0
    %2190 = vmatprep.subr.mxu0 0.0
    %2191 = vmatpush1.msra.mxu0 0.0
    %2192 = vmatprep.subr.mxu0 0.0
    %2193 = vmatpush1.msra.mxu0 0.0
    %2194 = vmatprep.subr.mxu0 0.0
    %2195 = vmatpush1.msra.mxu0 0.0
    %2196 = vmatprep.subr.mxu0 0.0
    %2197 = vmatpush1.msra.mxu0 0.0
    %2198 = vmatprep.subr.mxu0 0.0
    %2199 = vmatpush1.msra.mxu0 0.0
    %2200 = vmatprep.subr.mxu0 0.0
    %2201 = vmatpush1.msra.mxu0 0.0
    %2202 = vmatprep.subr.mxu0 0.0
    %2203 = vmatpush1.msra.mxu0 0.0
    %2204 = vmatprep.subr.mxu0 0.0
    %2205 = vmatpush1.msra.mxu0 0.0
    %2206 = vmatprep.mubr.f32.mxu0 0.0
    %2207 = vmatmul.mubr.f32.gmra.mrb[0].mxu0 %v2139
    %v2208 = vpop.f32.mrb[0].mxu0
    %v2209 = vadd.f32 0.0, %v2208
    %v2210 = vpop.f32.mrb[0].mxu0
    %v2211 = vadd.f32 0.0, %v2210
    %2212 = vdwg.mxu0
    %2213 = vmatprep.subr.mxu0 %v554
    %2214 = vmatpush1.msra.mxu0 %v553
    %2215 = vmatprep.subr.mxu0 %v558
    %2216 = vmatpush1.msra.mxu0 %v557
    %2217 = vmatprep.subr.mxu0 %v562
    %2218 = vmatpush1.msra.mxu0 %v561
    %2219 = vmatprep.subr.mxu0 %v566
    %2220 = vmatpush1.msra.mxu0 %v565
    %2221 = vmatprep.subr.mxu0 %v570
    %2222 = vmatpush1.msra.mxu0 %v569
    %2223 = vmatprep.subr.mxu0 %v574
    %2224 = vmatpush1.msra.mxu0 %v573
    %2225 = vmatprep.subr.mxu0 %v578
    %2226 = vmatpush1.msra.mxu0 %v577
    %2227 = vmatprep.subr.mxu0 %v582
    %2228 = vmatpush1.msra.mxu0 %v581
    %2229 = vmatprep.subr.mxu0 %v586
    %2230 = vmatpush1.msra.mxu0 %v585
    %2231 = vmatprep.subr.mxu0 %v590
    %2232 = vmatpush1.msra.mxu0 %v589
    %2233 = vmatprep.subr.mxu0 %v594
    %2234 = vmatpush1.msra.mxu0 %v593
    %2235 = vmatprep.subr.mxu0 %v598
    %2236 = vmatpush1.msra.mxu0 %v597
    %2237 = vmatprep.subr.mxu0 %v602
    %2238 = vmatpush1.msra.mxu0 %v601
    %2239 = vmatprep.subr.mxu0 %v606
    %2240 = vmatpush1.msra.mxu0 %v605
    %2241 = vmatprep.subr.mxu0 %v610
    %2242 = vmatpush1.msra.mxu0 %v609
    %2243 = vmatprep.subr.mxu0 %v614
    %2244 = vmatpush1.msra.mxu0 %v613
    %2245 = vmatprep.subr.mxu0 0.0
    %2246 = vmatpush1.msra.mxu0 0.0
    %2247 = vmatprep.subr.mxu0 0.0
    %2248 = vmatpush1.msra.mxu0 0.0
    %2249 = vmatprep.subr.mxu0 0.0
    %2250 = vmatpush1.msra.mxu0 0.0
    %2251 = vmatprep.subr.mxu0 0.0
    %2252 = vmatpush1.msra.mxu0 0.0
    %2253 = vmatprep.subr.mxu0 0.0
    %2254 = vmatpush1.msra.mxu0 0.0
    %2255 = vmatprep.subr.mxu0 0.0
    %2256 = vmatpush1.msra.mxu0 0.0
    %2257 = vmatprep.subr.mxu0 0.0
    %2258 = vmatpush1.msra.mxu0 0.0
    %2259 = vmatprep.subr.mxu0 0.0
    %2260 = vmatpush1.msra.mxu0 0.0
    %2261 = vmatprep.subr.mxu0 0.0
    %2262 = vmatpush1.msra.mxu0 0.0
    %2263 = vmatprep.subr.mxu0 0.0
    %2264 = vmatpush1.msra.mxu0 0.0
    %2265 = vmatprep.subr.mxu0 0.0
    %2266 = vmatpush1.msra.mxu0 0.0
    %2267 = vmatprep.subr.mxu0 0.0
    %2268 = vmatpush1.msra.mxu0 0.0
    %2269 = vmatprep.subr.mxu0 0.0
    %2270 = vmatpush1.msra.mxu0 0.0
    %2271 = vmatprep.subr.mxu0 0.0
    %2272 = vmatpush1.msra.mxu0 0.0
    %2273 = vmatprep.subr.mxu0 0.0
    %2274 = vmatpush1.msra.mxu0 0.0
    %2275 = vmatprep.subr.mxu0 0.0
    %2276 = vmatpush1.msra.mxu0 0.0
    %2277 = vmatprep.mubr.f32.mxu0 0.0
    %2278 = vmatmul.mubr.f32.gmra.mrb[0].mxu0 %v2139
    %v2279 = vpop.f32.mrb[0].mxu0
    %v2280 = vadd.f32 0.0, %v2279
    %v2281 = vpop.f32.mrb[0].mxu0
    %v2282 = vadd.f32 0.0, %v2281
    %2283 = vdwg.mxu0
    %2284 = vmatprep.subr.mxu0 %v488
    %2285 = vmatpush1.msra.mxu0 %v487
    %2286 = vmatprep.subr.mxu0 %v492
    %2287 = vmatpush1.msra.mxu0 %v491
    %2288 = vmatprep.subr.mxu0 %v496
    %2289 = vmatpush1.msra.mxu0 %v495
    %2290 = vmatprep.subr.mxu0 %v500
    %2291 = vmatpush1.msra.mxu0 %v499
    %2292 = vmatprep.subr.mxu0 %v504
    %2293 = vmatpush1.msra.mxu0 %v503
    %2294 = vmatprep.subr.mxu0 %v508
    %2295 = vmatpush1.msra.mxu0 %v507
    %2296 = vmatprep.subr.mxu0 %v512
    %2297 = vmatpush1.msra.mxu0 %v511
    %2298 = vmatprep.subr.mxu0 %v516
    %2299 = vmatpush1.msra.mxu0 %v515
    %2300 = vmatprep.subr.mxu0 %v520
    %2301 = vmatpush1.msra.mxu0 %v519
    %2302 = vmatprep.subr.mxu0 %v524
    %2303 = vmatpush1.msra.mxu0 %v523
    %2304 = vmatprep.subr.mxu0 %v528
    %2305 = vmatpush1.msra.mxu0 %v527
    %2306 = vmatprep.subr.mxu0 %v532
    %2307 = vmatpush1.msra.mxu0 %v531
    %2308 = vmatprep.subr.mxu0 %v536
    %2309 = vmatpush1.msra.mxu0 %v535
    %2310 = vmatprep.subr.mxu0 %v540
    %2311 = vmatpush1.msra.mxu0 %v539
    %2312 = vmatprep.subr.mxu0 %v544
    %2313 = vmatpush1.msra.mxu0 %v543
    %2314 = vmatprep.subr.mxu0 %v548
    %2315 = vmatpush1.msra.mxu0 %v547
    %2316 = vmatprep.subr.mxu0 0.0
    %2317 = vmatpush1.msra.mxu0 0.0
    %2318 = vmatprep.subr.mxu0 0.0
    %2319 = vmatpush1.msra.mxu0 0.0
    %2320 = vmatprep.subr.mxu0 0.0
    %2321 = vmatpush1.msra.mxu0 0.0
    %2322 = vmatprep.subr.mxu0 0.0
    %2323 = vmatpush1.msra.mxu0 0.0
    %2324 = vmatprep.subr.mxu0 0.0
    %2325 = vmatpush1.msra.mxu0 0.0
    %2326 = vmatprep.subr.mxu0 0.0
    %2327 = vmatpush1.msra.mxu0 0.0
    %2328 = vmatprep.subr.mxu0 0.0
    %2329 = vmatpush1.msra.mxu0 0.0
    %2330 = vmatprep.subr.mxu0 0.0
    %2331 = vmatpush1.msra.mxu0 0.0
    %2332 = vmatprep.subr.mxu0 0.0
    %2333 = vmatpush1.msra.mxu0 0.0
    %2334 = vmatprep.subr.mxu0 0.0
    %2335 = vmatpush1.msra.mxu0 0.0
    %2336 = vmatprep.subr.mxu0 0.0
    %2337 = vmatpush1.msra.mxu0 0.0
    %2338 = vmatprep.subr.mxu0 0.0
    %2339 = vmatpush1.msra.mxu0 0.0
    %2340 = vmatprep.subr.mxu0 0.0
    %2341 = vmatpush1.msra.mxu0 0.0
    %2342 = vmatprep.subr.mxu0 0.0
    %2343 = vmatpush1.msra.mxu0 0.0
    %2344 = vmatprep.subr.mxu0 0.0
    %2345 = vmatpush1.msra.mxu0 0.0
    %2346 = vmatprep.subr.mxu0 0.0
    %2347 = vmatpush1.msra.mxu0 0.0
    %2348 = vmatprep.mubr.f32.mxu0 0.0
    %2349 = vmatmul.mubr.f32.gmra.mrb[0].mxu0 %v2132
    %v2350 = vpop.f32.mrb[0].mxu0
    %v2351 = vadd.f32 %v2209, %v2350
    %v2352 = vpop.f32.mrb[0].mxu0
    %v2353 = vadd.f32 %v2211, %v2352
    %2354 = vdwg.mxu0
    %2355 = vmatprep.subr.mxu0 %v490
    %2356 = vmatpush1.msra.mxu0 %v489
    %2357 = vmatprep.subr.mxu0 %v494
    %2358 = vmatpush1.msra.mxu0 %v493
    %2359 = vmatprep.subr.mxu0 %v498
    %2360 = vmatpush1.msra.mxu0 %v497
    %2361 = vmatprep.subr.mxu0 %v502
    %2362 = vmatpush1.msra.mxu0 %v501
    %2363 = vmatprep.subr.mxu0 %v506
    %2364 = vmatpush1.msra.mxu0 %v505
    %2365 = vmatprep.subr.mxu0 %v510
    %2366 = vmatpush1.msra.mxu0 %v509
    %2367 = vmatprep.subr.mxu0 %v514
    %2368 = vmatpush1.msra.mxu0 %v513
    %2369 = vmatprep.subr.mxu0 %v518
    %2370 = vmatpush1.msra.mxu0 %v517
    %2371 = vmatprep.subr.mxu0 %v522
    %2372 = vmatpush1.msra.mxu0 %v521
    %2373 = vmatprep.subr.mxu0 %v526
    %2374 = vmatpush1.msra.mxu0 %v525
    %2375 = vmatprep.subr.mxu0 %v530
    %2376 = vmatpush1.msra.mxu0 %v529
    %2377 = vmatprep.subr.mxu0 %v534
    %2378 = vmatpush1.msra.mxu0 %v533
    %2379 = vmatprep.subr.mxu0 %v538
    %2380 = vmatpush1.msra.mxu0 %v537
    %2381 = vmatprep.subr.mxu0 %v542
    %2382 = vmatpush1.msra.mxu0 %v541
    %2383 = vmatprep.subr.mxu0 %v546
    %2384 = vmatpush1.msra.mxu0 %v545
    %2385 = vmatprep.subr.mxu0 %v550
    %2386 = vmatpush1.msra.mxu0 %v549
    %2387 = vmatprep.subr.mxu0 0.0
    %2388 = vmatpush1.msra.mxu0 0.0
    %2389 = vmatprep.subr.mxu0 0.0
    %2390 = vmatpush1.msra.mxu0 0.0
    %2391 = vmatprep.subr.mxu0 0.0
    %2392 = vmatpush1.msra.mxu0 0.0
    %2393 = vmatprep.subr.mxu0 0.0
    %2394 = vmatpush1.msra.mxu0 0.0
    %2395 = vmatprep.subr.mxu0 0.0
    %2396 = vmatpush1.msra.mxu0 0.0
    %2397 = vmatprep.subr.mxu0 0.0
    %2398 = vmatpush1.msra.mxu0 0.0
    %2399 = vmatprep.subr.mxu0 0.0
    %2400 = vmatpush1.msra.mxu0 0.0
    %2401 = vmatprep.subr.mxu0 0.0
    %2402 = vmatpush1.msra.mxu0 0.0
    %2403 = vmatprep.subr.mxu0 0.0
    %2404 = vmatpush1.msra.mxu0 0.0
    %2405 = vmatprep.subr.mxu0 0.0
    %2406 = vmatpush1.msra.mxu0 0.0
    %2407 = vmatprep.subr.mxu0 0.0
    %2408 = vmatpush1.msra.mxu0 0.0
    %2409 = vmatprep.subr.mxu0 0.0
    %2410 = vmatpush1.msra.mxu0 0.0
    %2411 = vmatprep.subr.mxu0 0.0
    %2412 = vmatpush1.msra.mxu0 0.0
    %2413 = vmatprep.subr.mxu0 0.0
    %2414 = vmatpush1.msra.mxu0 0.0
    %2415 = vmatprep.subr.mxu0 0.0
    %2416 = vmatpush1.msra.mxu0 0.0
    %2417 = vmatprep.subr.mxu0 0.0
    %2418 = vmatpush1.msra.mxu0 0.0
    %2419 = vmatprep.mubr.f32.mxu0 0.0
    %2420 = vmatmul.mubr.f32.gmra.mrb[0].mxu0 %v2132
    %v2421 = vpop.f32.mrb[0].mxu0
    %v2422 = vadd.f32 %v2280, %v2421
    %v2423 = vpop.f32.mrb[0].mxu0
    %v2424 = vadd.f32 %v2282, %v2423
    %2425 = vdwg.mxu0
    %v2426 = vadd.f32 %v2351, %v909
    %v2427 = vadd.f32 %v2353, %v913
    %v2428 = vadd.f32 %v2422, %v917
    %v2429 = vadd.f32 %v2424, %v921
    %v2430 = vmul.f32 %v2426, 0.5
    %v2431 = vtanh.pop %v2430
    %v2432 = vmul.f32 %v2431, 0.5
    %v2433 = vadd.f32 %v2432, 0.5
    %v2434 = vmul.f32 %v2427, 0.5
    %v2435 = vtanh.pop %v2434
    %v2436 = vmul.f32 %v2435, 0.5
    %v2437 = vadd.f32 %v2436, 0.5
    %v2438 = vtanh.pop %v2428
    %v2439 = vmul.f32 %v2429, 0.5
    %v2440 = vtanh.pop %v2439
    %v2441 = vmul.f32 %v2440, 0.5
    %v2442 = vadd.f32 %v2441, 0.5
    %v2443 = vmul.f32 %v2437, %v2140
    %v2444 = vmul.f32 %v2433, %v2438
    %v2445 = vadd.f32 %v2443, %v2444
    %v2446 = vtanh.pop %v2445
    %v2447 = vmul.f32 %v2442, %v2446
    %p2448 = scmp.ge.s32.totalorder %s2141, 1
    %s2449 = scalar_select %p2448, 1, 0
    %v2450 = vstv %s2449
    %vm2451 = vcmp.eq.s32.totalorder %v2450, 1
    %vm2452 = vmand %vm2451, %vm2126
    %s2453 = smul.u32 3, 4
    %s2454 = smul.addr %s2453, 8
    %s2455 = scalar_lea.vmem [#allocation2], %s2454
    %v2456 = vld [vmem:[%s2455] sm:$0xff]
    %v2457 = vld [vmem:[%s2455 + $0x8] sm:$0xff]
    %v2458 = vld [vmem:[%s2455 + $0x10] sm:$0xff]
    %v2459 = vld [vmem:[%s2455 + $0x18] sm:$0xff]
    %2460 = vmatprep.subr.mxu0 %v424
    %2461 = vmatpush1.msra.mxu0 %v423
    %2462 = vmatprep.subr.mxu0 %v428
    %2463 = vmatpush1.msra.mxu0 %v427
    %2464 = vmatprep.subr.mxu0 %v432
    %2465 = vmatpush1.msra.mxu0 %v431
    %2466 = vmatprep.subr.mxu0 %v436
    %2467 = vmatpush1.msra.mxu0 %v435
    %2468 = vmatprep.subr.mxu0 %v440
    %2469 = vmatpush1.msra.mxu0 %v439
    %2470 = vmatprep.subr.mxu0 %v444
    %2471 = vmatpush1.msra.mxu0 %v443
    %2472 = vmatprep.subr.mxu0 %v448
    %2473 = vmatpush1.msra.mxu0 %v447
    %2474 = vmatprep.subr.mxu0 %v452
    %2475 = vmatpush1.msra.mxu0 %v451
    %2476 = vmatprep.subr.mxu0 %v456
    %2477 = vmatpush1.msra.mxu0 %v455
    %2478 = vmatprep.subr.mxu0 %v460
    %2479 = vmatpush1.msra.mxu0 %v459
    %2480 = vmatprep.subr.mxu0 %v464
    %2481 = vmatpush1.msra.mxu0 %v463
    %2482 = vmatprep.subr.mxu0 %v468
    %2483 = vmatpush1.msra.mxu0 %v467
    %2484 = vmatprep.subr.mxu0 %v472
    %2485 = vmatpush1.msra.mxu0 %v471
    %2486 = vmatprep.subr.mxu0 %v476
    %2487 = vmatpush1.msra.mxu0 %v475
    %2488 = vmatprep.subr.mxu0 %v480
    %2489 = vmatpush1.msra.mxu0 %v479
    %2490 = vmatprep.subr.mxu0 %v484
    %2491 = vmatpush1.msra.mxu0 %v483
    %2492 = vmatprep.subr.mxu0 0.0
    %2493 = vmatpush1.msra.mxu0 0.0
    %2494 = vmatprep.subr.mxu0 0.0
    %2495 = vmatpush1.msra.mxu0 0.0
    %2496 = vmatprep.subr.mxu0 0.0
    %2497 = vmatpush1.msra.mxu0 0.0
    %2498 = vmatprep.subr.mxu0 0.0
    %2499 = vmatpush1.msra.mxu0 0.0
    %2500 = vmatprep.subr.mxu0 0.0
    %2501 = vmatpush1.msra.mxu0 0.0
    %2502 = vmatprep.subr.mxu0 0.0
    %2503 = vmatpush1.msra.mxu0 0.0
    %2504 = vmatprep.subr.mxu0 0.0
    %2505 = vmatpush1.msra.mxu0 0.0
    %2506 = vmatprep.subr.mxu0 0.0
    %2507 = vmatpush1.msra.mxu0 0.0
    %2508 = vmatprep.subr.mxu0 0.0
    %2509 = vmatpush1.msra.mxu0 0.0
    %2510 = vmatprep.subr.mxu0 0.0
    %2511 = vmatpush1.msra.mxu0 0.0
    %2512 = vmatprep.subr.mxu0 0.0
    %2513 = vmatpush1.msra.mxu0 0.0
    %2514 = vmatprep.subr.mxu0 0.0
    %2515 = vmatpush1.msra.mxu0 0.0
    %2516 = vmatprep.subr.mxu0 0.0
    %2517 = vmatpush1.msra.mxu0 0.0
    %2518 = vmatprep.subr.mxu0 0.0
    %2519 = vmatpush1.msra.mxu0 0.0
    %2520 = vmatprep.subr.mxu0 0.0
    %2521 = vmatpush1.msra.mxu0 0.0
    %2522 = vmatprep.subr.mxu0 0.0
    %2523 = vmatpush1.msra.mxu0 0.0
    %2524 = vmatprep.mubr.f32.mxu0 0.0
    %2525 = vmatmul.mubr.f32.gmra.mrb[0].mxu0 %v2132
    %v2526 = vpop.f32.mrb[0].mxu0
    %v2527 = vadd.f32 0.0, %v2526
    %v2528 = vpop.f32.mrb[0].mxu0
    %v2529 = vadd.f32 0.0, %v2528
    %2530 = vdwg.mxu0
    %2531 = vmatprep.subr.mxu0 %v426
    %2532 = vmatpush1.msra.mxu0 %v425
    %2533 = vmatprep.subr.mxu0 %v430
    %2534 = vmatpush1.msra.mxu0 %v429
    %2535 = vmatprep.subr.mxu0 %v434
    %2536 = vmatpush1.msra.mxu0 %v433
    %2537 = vmatprep.subr.mxu0 %v438
    %2538 = vmatpush1.msra.mxu0 %v437
    %2539 = vmatprep.subr.mxu0 %v442
    %2540 = vmatpush1.msra.mxu0 %v441
    %2541 = vmatprep.subr.mxu0 %v446
    %2542 = vmatpush1.msra.mxu0 %v445
    %2543 = vmatprep.subr.mxu0 %v450
    %2544 = vmatpush1.msra.mxu0 %v449
    %2545 = vmatprep.subr.mxu0 %v454
    %2546 = vmatpush1.msra.mxu0 %v453
    %2547 = vmatprep.subr.mxu0 %v458
    %2548 = vmatpush1.msra.mxu0 %v457
    %2549 = vmatprep.subr.mxu0 %v462
    %2550 = vmatpush1.msra.mxu0 %v461
    %2551 = vmatprep.subr.mxu0 %v466
    %2552 = vmatpush1.msra.mxu0 %v465
    %2553 = vmatprep.subr.mxu0 %v470
    %2554 = vmatpush1.msra.mxu0 %v469
    %2555 = vmatprep.subr.mxu0 %v474
    %2556 = vmatpush1.msra.mxu0 %v473
    %2557 = vmatprep.subr.mxu0 %v478
    %2558 = vmatpush1.msra.mxu0 %v477
    %2559 = vmatprep.subr.mxu0 %v482
    %2560 = vmatpush1.msra.mxu0 %v481
    %2561 = vmatprep.subr.mxu0 %v486
    %2562 = vmatpush1.msra.mxu0 %v485
    %2563 = vmatprep.subr.mxu0 0.0
    %2564 = vmatpush1.msra.mxu0 0.0
    %2565 = vmatprep.subr.mxu0 0.0
    %2566 = vmatpush1.msra.mxu0 0.0
    %2567 = vmatprep.subr.mxu0 0.0
    %2568 = vmatpush1.msra.mxu0 0.0
    %2569 = vmatprep.subr.mxu0 0.0
    %2570 = vmatpush1.msra.mxu0 0.0
    %2571 = vmatprep.subr.mxu0 0.0
    %2572 = vmatpush1.msra.mxu0 0.0
    %2573 = vmatprep.subr.mxu0 0.0
    %2574 = vmatpush1.msra.mxu0 0.0
    %2575 = vmatprep.subr.mxu0 0.0
    %2576 = vmatpush1.msra.mxu0 0.0
    %2577 = vmatprep.subr.mxu0 0.0
    %2578 = vmatpush1.msra.mxu0 0.0
    %2579 = vmatprep.subr.mxu0 0.0
    %2580 = vmatpush1.msra.mxu0 0.0
    %2581 = vmatprep.subr.mxu0 0.0
    %2582 = vmatpush1.msra.mxu0 0.0
    %2583 = vmatprep.subr.mxu0 0.0
    %2584 = vmatpush1.msra.mxu0 0.0
    %2585 = vmatprep.subr.mxu0 0.0
    %2586 = vmatpush1.msra.mxu0 0.0
    %2587 = vmatprep.subr.mxu0 0.0
    %2588 = vmatpush1.msra.mxu0 0.0
    %2589 = vmatprep.subr.mxu0 0.0
    %2590 = vmatpush1.msra.mxu0 0.0
    %2591 = vmatprep.subr.mxu0 0.0
    %2592 = vmatpush1.msra.mxu0 0.0
    %2593 = vmatprep.subr.mxu0 0.0
    %2594 = vmatpush1.msra.mxu0 0.0
    %2595 = vmatprep.mubr.f32.mxu0 0.0
    %2596 = vmatmul.mubr.f32.gmra.mrb[0].mxu0 %v2132
    %v2597 = vpop.f32.mrb[0].mxu0
    %v2598 = vadd.f32 0.0, %v2597
    %v2599 = vpop.f32.mrb[0].mxu0
    %v2600 = vadd.f32 0.0, %v2599
    %2601 = vdwg.mxu0
    %v2602 = vadd.f32 %v2456, %v2527
    %v2603 = vadd.f32 %v2457, %v2529
    %v2604 = vadd.f32 %v2458, %v2598
    %v2605 = vadd.f32 %v2459, %v2600
    %v2606 = vmul.f32 %v2602, 0.5
    %v2607 = vtanh.pop %v2606
    %v2608 = vmul.f32 %v2607, 0.5
    %v2609 = vadd.f32 %v2608, 0.5
    %v2610 = vmul.f32 %v2603, 0.5
    %v2611 = vtanh.pop %v2610
    %v2612 = vmul.f32 %v2611, 0.5
    %v2613 = vadd.f32 %v2612, 0.5
    %v2614 = vtanh.pop %v2604
    %v2615 = vmul.f32 %v2605, 0.5
    %v2616 = vtanh.pop %v2615
    %v2617 = vmul.f32 %v2616, 0.5
    %v2618 = vadd.f32 %v2617, 0.5
    %v2619 = vmul.f32 %v2613, %v2133
    %v2620 = vmul.f32 %v2609, %v2614
    %v2621 = vadd.f32 %v2619, %v2620
    %v2622 = vtanh.pop %v2621
    %v2623 = vmul.f32 %v2618, %v2622
    %v2624 = vstv %s2141
    %vm2625 = vcmp.lt.s32.totalorder %v2624, %v422
    %v2626 = vsel %vm2625, 1, 0
    %2627 = vset.pattern.permute.xlu0 0
    %2628 = vperm.xlu0 %2627, %v2626
    %v2629 = vpop.permute.xlu0 %2628
    %vm2630 = vcmp.eq.s32.totalorder %v2629, 1
    %v2631 = vsel %vm2630, %v2623, %v2132
    %v2632 = vsel %vm2630, %v2621, %v2133
    %v2633 = vsel %vm2452, 1, 0
    %2634 = vset.pattern.permute.xlu0 0
    %2635 = vperm.xlu0 %2634, %v2633
    %v2636 = vpop.permute.xlu0 %2635
    %vm2637 = vcmp.eq.s32.totalorder %v2636, 1
    %v2638 = vsel %vm2637, %v2447, %v2139
    %v2639 = vsel %vm2637, %v2445, %v2140
    %s2640 = sadd.s32 %s616, 4
    %2641 = vmatprep.subr.mxu0 %v552
    %2642 = vmatpush1.msra.mxu0 %v551
    %2643 = vmatprep.subr.mxu0 %v556
    %2644 = vmatpush1.msra.mxu0 %v555
    %2645 = vmatprep.subr.mxu0 %v560
    %2646 = vmatpush1.msra.mxu0 %v559
    %2647 = vmatprep.subr.mxu0 %v564
    %2648 = vmatpush1.msra.mxu0 %v563
    %2649 = vmatprep.subr.mxu0 %v568
    %2650 = vmatpush1.msra.mxu0 %v567
    %2651 = vmatprep.subr.mxu0 %v572
    %2652 = vmatpush1.msra.mxu0 %v571
    %2653 = vmatprep.subr.mxu0 %v576
    %2654 = vmatpush1.msra.mxu0 %v575
    %2655 = vmatprep.subr.mxu0 %v580
    %2656 = vmatpush1.msra.mxu0 %v579
    %2657 = vmatprep.subr.mxu0 %v584
    %2658 = vmatpush1.msra.mxu0 %v583
    %2659 = vmatprep.subr.mxu0 %v588
    %2660 = vmatpush1.msra.mxu0 %v587
    %2661 = vmatprep.subr.mxu0 %v592
    %2662 = vmatpush1.msra.mxu0 %v591
    %2663 = vmatprep.subr.mxu0 %v596
    %2664 = vmatpush1.msra.mxu0 %v595
    %2665 = vmatprep.subr.mxu0 %v600
    %2666 = vmatpush1.msra.mxu0 %v599
    %2667 = vmatprep.subr.mxu0 %v604
    %2668 = vmatpush1.msra.mxu0 %v603
    %2669 = vmatprep.subr.mxu0 %v608
    %2670 = vmatpush1.msra.mxu0 %v607
    %2671 = vmatprep.subr.mxu0 %v612
    %2672 = vmatpush1.msra.mxu0 %v611
    %2673 = vmatprep.subr.mxu0 0.0
    %2674 = vmatpush1.msra.mxu0 0.0
    %2675 = vmatprep.subr.mxu0 0.0
    %2676 = vmatpush1.msra.mxu0 0.0
    %2677 = vmatprep.subr.mxu0 0.0
    %2678 = vmatpush1.msra.mxu0 0.0
    %2679 = vmatprep.subr.mxu0 0.0
    %2680 = vmatpush1.msra.mxu0 0.0
    %2681 = vmatprep.subr.mxu0 0.0
    %2682 = vmatpush1.msra.mxu0 0.0
    %2683 = vmatprep.subr.mxu0 0.0
    %2684 = vmatpush1.msra.mxu0 0.0
    %2685 = vmatprep.subr.mxu0 0.0
    %2686 = vmatpush1.msra.mxu0 0.0
    %2687 = vmatprep.subr.mxu0 0.0
    %2688 = vmatpush1.msra.mxu0 0.0
    %2689 = vmatprep.subr.mxu0 0.0
    %2690 = vmatpush1.msra.mxu0 0.0
    %2691 = vmatprep.subr.mxu0 0.0
    %2692 = vmatpush1.msra.mxu0 0.0
    %2693 = vmatprep.subr.mxu0 0.0
    %2694 = vmatpush1.msra.mxu0 0.0
    %2695 = vmatprep.subr.mxu0 0.0
    %2696 = vmatpush1.msra.mxu0 0.0
    %2697 = vmatprep.subr.mxu0 0.0
    %2698 = vmatpush1.msra.mxu0 0.0
    %2699 = vmatprep.subr.mxu0 0.0
    %2700 = vmatpush1.msra.mxu0 0.0
    %2701 = vmatprep.subr.mxu0 0.0
    %2702 = vmatpush1.msra.mxu0 0.0
    %2703 = vmatprep.subr.mxu0 0.0
    %2704 = vmatpush1.msra.mxu0 0.0
    %2705 = vmatprep.mubr.f32.mxu0 0.0
    %2706 = vmatmul.mubr.f32.gmra.mrb[0].mxu0 %v2638
    %v2707 = vpop.f32.mrb[0].mxu0
    %v2708 = vadd.f32 0.0, %v2707
    %v2709 = vpop.f32.mrb[0].mxu0
    %v2710 = vadd.f32 0.0, %v2709
    %2711 = vdwg.mxu0
    %2712 = vmatprep.subr.mxu0 %v554
    %2713 = vmatpush1.msra.mxu0 %v553
    %2714 = vmatprep.subr.mxu0 %v558
    %2715 = vmatpush1.msra.mxu0 %v557
    %2716 = vmatprep.subr.mxu0 %v562
    %2717 = vmatpush1.msra.mxu0 %v561
    %2718 = vmatprep.subr.mxu0 %v566
    %2719 = vmatpush1.msra.mxu0 %v565
    %2720 = vmatprep.subr.mxu0 %v570
    %2721 = vmatpush1.msra.mxu0 %v569
    %2722 = vmatprep.subr.mxu0 %v574
    %2723 = vmatpush1.msra.mxu0 %v573
    %2724 = vmatprep.subr.mxu0 %v578
    %2725 = vmatpush1.msra.mxu0 %v577
    %2726 = vmatprep.subr.mxu0 %v582
    %2727 = vmatpush1.msra.mxu0 %v581
    %2728 = vmatprep.subr.mxu0 %v586
    %2729 = vmatpush1.msra.mxu0 %v585
    %2730 = vmatprep.subr.mxu0 %v590
    %2731 = vmatpush1.msra.mxu0 %v589
    %2732 = vmatprep.subr.mxu0 %v594
    %2733 = vmatpush1.msra.mxu0 %v593
    %2734 = vmatprep.subr.mxu0 %v598
    %2735 = vmatpush1.msra.mxu0 %v597
    %2736 = vmatprep.subr.mxu0 %v602
    %2737 = vmatpush1.msra.mxu0 %v601
    %2738 = vmatprep.subr.mxu0 %v606
    %2739 = vmatpush1.msra.mxu0 %v605
    %2740 = vmatprep.subr.mxu0 %v610
    %2741 = vmatpush1.msra.mxu0 %v609
    %2742 = vmatprep.subr.mxu0 %v614
    %2743 = vmatpush1.msra.mxu0 %v613
    %2744 = vmatprep.subr.mxu0 0.0
    %2745 = vmatpush1.msra.mxu0 0.0
    %2746 = vmatprep.subr.mxu0 0.0
    %2747 = vmatpush1.msra.mxu0 0.0
    %2748 = vmatprep.subr.mxu0 0.0
    %2749 = vmatpush1.msra.mxu0 0.0
    %2750 = vmatprep.subr.mxu0 0.0
    %2751 = vmatpush1.msra.mxu0 0.0
    %2752 = vmatprep.subr.mxu0 0.0
    %2753 = vmatpush1.msra.mxu0 0.0
    %2754 = vmatprep.subr.mxu0 0.0
    %2755 = vmatpush1.msra.mxu0 0.0
    %2756 = vmatprep.subr.mxu0 0.0
    %2757 = vmatpush1.msra.mxu0 0.0
    %2758 = vmatprep.subr.mxu0 0.0
    %2759 = vmatpush1.msra.mxu0 0.0
    %2760 = vmatprep.subr.mxu0 0.0
    %2761 = vmatpush1.msra.mxu0 0.0
    %2762 = vmatprep.subr.mxu0 0.0
    %2763 = vmatpush1.msra.mxu0 0.0
    %2764 = vmatprep.subr.mxu0 0.0
    %2765 = vmatpush1.msra.mxu0 0.0
    %2766 = vmatprep.subr.mxu0 0.0
    %2767 = vmatpush1.msra.mxu0 0.0
    %2768 = vmatprep.subr.mxu0 0.0
    %2769 = vmatpush1.msra.mxu0 0.0
    %2770 = vmatprep.subr.mxu0 0.0
    %2771 = vmatpush1.msra.mxu0 0.0
    %2772 = vmatprep.subr.mxu0 0.0
    %2773 = vmatpush1.msra.mxu0 0.0
    %2774 = vmatprep.subr.mxu0 0.0
    %2775 = vmatpush1.msra.mxu0 0.0
    %2776 = vmatprep.mubr.f32.mxu0 0.0
    %2777 = vmatmul.mubr.f32.gmra.mrb[0].mxu0 %v2638
    %v2778 = vpop.f32.mrb[0].mxu0
    %v2779 = vadd.f32 0.0, %v2778
    %v2780 = vpop.f32.mrb[0].mxu0
    %v2781 = vadd.f32 0.0, %v2780
    %2782 = vdwg.mxu0
    %2783 = vmatprep.subr.mxu0 %v488
    %2784 = vmatpush1.msra.mxu0 %v487
    %2785 = vmatprep.subr.mxu0 %v492
    %2786 = vmatpush1.msra.mxu0 %v491
    %2787 = vmatprep.subr.mxu0 %v496
    %2788 = vmatpush1.msra.mxu0 %v495
    %2789 = vmatprep.subr.mxu0 %v500
    %2790 = vmatpush1.msra.mxu0 %v499
    %2791 = vmatprep.subr.mxu0 %v504
    %2792 = vmatpush1.msra.mxu0 %v503
    %2793 = vmatprep.subr.mxu0 %v508
    %2794 = vmatpush1.msra.mxu0 %v507
    %2795 = vmatprep.subr.mxu0 %v512
    %2796 = vmatpush1.msra.mxu0 %v511
    %2797 = vmatprep.subr.mxu0 %v516
    %2798 = vmatpush1.msra.mxu0 %v515
    %2799 = vmatprep.subr.mxu0 %v520
    %2800 = vmatpush1.msra.mxu0 %v519
    %2801 = vmatprep.subr.mxu0 %v524
    %2802 = vmatpush1.msra.mxu0 %v523
    %2803 = vmatprep.subr.mxu0 %v528
    %2804 = vmatpush1.msra.mxu0 %v527
    %2805 = vmatprep.subr.mxu0 %v532
    %2806 = vmatpush1.msra.mxu0 %v531
    %2807 = vmatprep.subr.mxu0 %v536
    %2808 = vmatpush1.msra.mxu0 %v535
    %2809 = vmatprep.subr.mxu0 %v540
    %2810 = vmatpush1.msra.mxu0 %v539
    %2811 = vmatprep.subr.mxu0 %v544
    %2812 = vmatpush1.msra.mxu0 %v543
    %2813 = vmatprep.subr.mxu0 %v548
    %2814 = vmatpush1.msra.mxu0 %v547
    %2815 = vmatprep.subr.mxu0 0.0
    %2816 = vmatpush1.msra.mxu0 0.0
    %2817 = vmatprep.subr.mxu0 0.0
    %2818 = vmatpush1.msra.mxu0 0.0
    %2819 = vmatprep.subr.mxu0 0.0
    %2820 = vmatpush1.msra.mxu0 0.0
    %2821 = vmatprep.subr.mxu0 0.0
    %2822 = vmatpush1.msra.mxu0 0.0
    %2823 = vmatprep.subr.mxu0 0.0
    %2824 = vmatpush1.msra.mxu0 0.0
    %2825 = vmatprep.subr.mxu0 0.0
    %2826 = vmatpush1.msra.mxu0 0.0
    %2827 = vmatprep.subr.mxu0 0.0
    %2828 = vmatpush1.msra.mxu0 0.0
    %2829 = vmatprep.subr.mxu0 0.0
    %2830 = vmatpush1.msra.mxu0 0.0
    %2831 = vmatprep.subr.mxu0 0.0
    %2832 = vmatpush1.msra.mxu0 0.0
    %2833 = vmatprep.subr.mxu0 0.0
    %2834 = vmatpush1.msra.mxu0 0.0
    %2835 = vmatprep.subr.mxu0 0.0
    %2836 = vmatpush1.msra.mxu0 0.0
    %2837 = vmatprep.subr.mxu0 0.0
    %2838 = vmatpush1.msra.mxu0 0.0
    %2839 = vmatprep.subr.mxu0 0.0
    %2840 = vmatpush1.msra.mxu0 0.0
    %2841 = vmatprep.subr.mxu0 0.0
    %2842 = vmatpush1.msra.mxu0 0.0
    %2843 = vmatprep.subr.mxu0 0.0
    %2844 = vmatpush1.msra.mxu0 0.0
    %2845 = vmatprep.subr.mxu0 0.0
    %2846 = vmatpush1.msra.mxu0 0.0
    %2847 = vmatprep.mubr.f32.mxu0 0.0
    %2848 = vmatmul.mubr.f32.gmra.mrb[0].mxu0 %v2631
    %v2849 = vpop.f32.mrb[0].mxu0
    %v2850 = vadd.f32 %v2708, %v2849
    %v2851 = vpop.f32.mrb[0].mxu0
    %v2852 = vadd.f32 %v2710, %v2851
    %2853 = vdwg.mxu0
    %2854 = vmatprep.subr.mxu0 %v490
    %2855 = vmatpush1.msra.mxu0 %v489
    %2856 = vmatprep.subr.mxu0 %v494
    %2857 = vmatpush1.msra.mxu0 %v493
    %2858 = vmatprep.subr.mxu0 %v498
    %2859 = vmatpush1.msra.mxu0 %v497
    %2860 = vmatprep.subr.mxu0 %v502
    %2861 = vmatpush1.msra.mxu0 %v501
    %2862 = vmatprep.subr.mxu0 %v506
    %2863 = vmatpush1.msra.mxu0 %v505
    %2864 = vmatprep.subr.mxu0 %v510
    %2865 = vmatpush1.msra.mxu0 %v509
    %2866 = vmatprep.subr.mxu0 %v514
    %2867 = vmatpush1.msra.mxu0 %v513
    %2868 = vmatprep.subr.mxu0 %v518
    %2869 = vmatpush1.msra.mxu0 %v517
    %2870 = vmatprep.subr.mxu0 %v522
    %2871 = vmatpush1.msra.mxu0 %v521
    %2872 = vmatprep.subr.mxu0 %v526
    %2873 = vmatpush1.msra.mxu0 %v525
    %2874 = vmatprep.subr.mxu0 %v530
    %2875 = vmatpush1.msra.mxu0 %v529
    %2876 = vmatprep.subr.mxu0 %v534
    %2877 = vmatpush1.msra.mxu0 %v533
    %2878 = vmatprep.subr.mxu0 %v538
    %2879 = vmatpush1.msra.mxu0 %v537
    %2880 = vmatprep.subr.mxu0 %v542
    %2881 = vmatpush1.msra.mxu0 %v541
    %2882 = vmatprep.subr.mxu0 %v546
    %2883 = vmatpush1.msra.mxu0 %v545
    %2884 = vmatprep.subr.mxu0 %v550
    %2885 = vmatpush1.msra.mxu0 %v549
    %2886 = vmatprep.subr.mxu0 0.0
    %2887 = vmatpush1.msra.mxu0 0.0
    %2888 = vmatprep.subr.mxu0 0.0
    %2889 = vmatpush1.msra.mxu0 0.0
    %2890 = vmatprep.subr.mxu0 0.0
    %2891 = vmatpush1.msra.mxu0 0.0
    %2892 = vmatprep.subr.mxu0 0.0
    %2893 = vmatpush1.msra.mxu0 0.0
    %2894 = vmatprep.subr.mxu0 0.0
    %2895 = vmatpush1.msra.mxu0 0.0
    %2896 = vmatprep.subr.mxu0 0.0
    %2897 = vmatpush1.msra.mxu0 0.0
    %2898 = vmatprep.subr.mxu0 0.0
    %2899 = vmatpush1.msra.mxu0 0.0
    %2900 = vmatprep.subr.mxu0 0.0
    %2901 = vmatpush1.msra.mxu0 0.0
    %2902 = vmatprep.subr.mxu0 0.0
    %2903 = vmatpush1.msra.mxu0 0.0
    %2904 = vmatprep.subr.mxu0 0.0
    %2905 = vmatpush1.msra.mxu0 0.0
    %2906 = vmatprep.subr.mxu0 0.0
    %2907 = vmatpush1.msra.mxu0 0.0
    %2908 = vmatprep.subr.mxu0 0.0
    %2909 = vmatpush1.msra.mxu0 0.0
    %2910 = vmatprep.subr.mxu0 0.0
    %2911 = vmatpush1.msra.mxu0 0.0
    %2912 = vmatprep.subr.mxu0 0.0
    %2913 = vmatpush1.msra.mxu0 0.0
    %2914 = vmatprep.subr.mxu0 0.0
    %2915 = vmatpush1.msra.mxu0 0.0
    %2916 = vmatprep.subr.mxu0 0.0
    %2917 = vmatpush1.msra.mxu0 0.0
    %2918 = vmatprep.mubr.f32.mxu0 0.0
    %2919 = vmatmul.mubr.f32.gmra.mrb[0].mxu0 %v2631
    %v2920 = vpop.f32.mrb[0].mxu0
    %v2921 = vadd.f32 %v2779, %v2920
    %v2922 = vpop.f32.mrb[0].mxu0
    %v2923 = vadd.f32 %v2781, %v2922
    %2924 = vdwg.mxu0
    %v2925 = vadd.f32 %v2850, %v909
    %v2926 = vadd.f32 %v2852, %v913
    %v2927 = vadd.f32 %v2921, %v917
    %v2928 = vadd.f32 %v2923, %v921
    %v2929 = vmul.f32 %v2925, 0.5
    %v2930 = vtanh.pop %v2929
    %v2931 = vmul.f32 %v2930, 0.5
    %v2932 = vadd.f32 %v2931, 0.5
    %v2933 = vmul.f32 %v2926, 0.5
    %v2934 = vtanh.pop %v2933
    %v2935 = vmul.f32 %v2934, 0.5
    %v2936 = vadd.f32 %v2935, 0.5
    %v2937 = vtanh.pop %v2927
    %v2938 = vmul.f32 %v2928, 0.5
    %v2939 = vtanh.pop %v2938
    %v2940 = vmul.f32 %v2939, 0.5
    %v2941 = vadd.f32 %v2940, 0.5
    %v2942 = vmul.f32 %v2936, %v2639
    %v2943 = vmul.f32 %v2932, %v2937
    %v2944 = vadd.f32 %v2942, %v2943
    %v2945 = vtanh.pop %v2944
    %v2946 = vmul.f32 %v2941, %v2945
    %p2947 = scmp.ge.s32.totalorder %s2640, 1
    %s2948 = scalar_select %p2947, 1, 0
    %v2949 = vstv %s2948
    %vm2950 = vcmp.eq.s32.totalorder %v2949, 1
    %vm2951 = vmand %vm2950, %vm2625
    %s2952 = smul.u32 4, 4
    %s2953 = smul.addr %s2952, 8
    %s2954 = scalar_lea.vmem [#allocation2], %s2953
    %v2955 = vld [vmem:[%s2954] sm:$0xff]
    %v2956 = vld [vmem:[%s2954 + $0x8] sm:$0xff]
    %v2957 = vld [vmem:[%s2954 + $0x10] sm:$0xff]
    %v2958 = vld [vmem:[%s2954 + $0x18] sm:$0xff]
    %2959 = vmatprep.subr.mxu0 %v424
    %2960 = vmatpush1.msra.mxu0 %v423
    %2961 = vmatprep.subr.mxu0 %v428
    %2962 = vmatpush1.msra.mxu0 %v427
    %2963 = vmatprep.subr.mxu0 %v432
    %2964 = vmatpush1.msra.mxu0 %v431
    %2965 = vmatprep.subr.mxu0 %v436
    %2966 = vmatpush1.msra.mxu0 %v435
    %2967 = vmatprep.subr.mxu0 %v440
    %2968 = vmatpush1.msra.mxu0 %v439
    %2969 = vmatprep.subr.mxu0 %v444
    %2970 = vmatpush1.msra.mxu0 %v443
    %2971 = vmatprep.subr.mxu0 %v448
    %2972 = vmatpush1.msra.mxu0 %v447
    %2973 = vmatprep.subr.mxu0 %v452
    %2974 = vmatpush1.msra.mxu0 %v451
    %2975 = vmatprep.subr.mxu0 %v456
    %2976 = vmatpush1.msra.mxu0 %v455
    %2977 = vmatprep.subr.mxu0 %v460
    %2978 = vmatpush1.msra.mxu0 %v459
    %2979 = vmatprep.subr.mxu0 %v464
    %2980 = vmatpush1.msra.mxu0 %v463
    %2981 = vmatprep.subr.mxu0 %v468
    %2982 = vmatpush1.msra.mxu0 %v467
    %2983 = vmatprep.subr.mxu0 %v472
    %2984 = vmatpush1.msra.mxu0 %v471
    %2985 = vmatprep.subr.mxu0 %v476
    %2986 = vmatpush1.msra.mxu0 %v475
    %2987 = vmatprep.subr.mxu0 %v480
    %2988 = vmatpush1.msra.mxu0 %v479
    %2989 = vmatprep.subr.mxu0 %v484
    %2990 = vmatpush1.msra.mxu0 %v483
    %2991 = vmatprep.subr.mxu0 0.0
    %2992 = vmatpush1.msra.mxu0 0.0
    %2993 = vmatprep.subr.mxu0 0.0
    %2994 = vmatpush1.msra.mxu0 0.0
    %2995 = vmatprep.subr.mxu0 0.0
    %2996 = vmatpush1.msra.mxu0 0.0
    %2997 = vmatprep.subr.mxu0 0.0
    %2998 = vmatpush1.msra.mxu0 0.0
    %2999 = vmatprep.subr.mxu0 0.0
    %3000 = vmatpush1.msra.mxu0 0.0
    %3001 = vmatprep.subr.mxu0 0.0
    %3002 = vmatpush1.msra.mxu0 0.0
    %3003 = vmatprep.subr.mxu0 0.0
    %3004 = vmatpush1.msra.mxu0 0.0
    %3005 = vmatprep.subr.mxu0 0.0
    %3006 = vmatpush1.msra.mxu0 0.0
    %3007 = vmatprep.subr.mxu0 0.0
    %3008 = vmatpush1.msra.mxu0 0.0
    %3009 = vmatprep.subr.mxu0 0.0
    %3010 = vmatpush1.msra.mxu0 0.0
    %3011 = vmatprep.subr.mxu0 0.0
    %3012 = vmatpush1.msra.mxu0 0.0
    %3013 = vmatprep.subr.mxu0 0.0
    %3014 = vmatpush1.msra.mxu0 0.0
    %3015 = vmatprep.subr.mxu0 0.0
    %3016 = vmatpush1.msra.mxu0 0.0
    %3017 = vmatprep.subr.mxu0 0.0
    %3018 = vmatpush1.msra.mxu0 0.0
    %3019 = vmatprep.subr.mxu0 0.0
    %3020 = vmatpush1.msra.mxu0 0.0
    %3021 = vmatprep.subr.mxu0 0.0
    %3022 = vmatpush1.msra.mxu0 0.0
    %3023 = vmatprep.mubr.f32.mxu0 0.0
    %3024 = vmatmul.mubr.f32.gmra.mrb[0].mxu0 %v2631
    %v3025 = vpop.f32.mrb[0].mxu0
    %v3026 = vadd.f32 0.0, %v3025
    %v3027 = vpop.f32.mrb[0].mxu0
    %v3028 = vadd.f32 0.0, %v3027
    %3029 = vdwg.mxu0
    %3030 = vmatprep.subr.mxu0 %v426
    %3031 = vmatpush1.msra.mxu0 %v425
    %3032 = vmatprep.subr.mxu0 %v430
    %3033 = vmatpush1.msra.mxu0 %v429
    %3034 = vmatprep.subr.mxu0 %v434
    %3035 = vmatpush1.msra.mxu0 %v433
    %3036 = vmatprep.subr.mxu0 %v438
    %3037 = vmatpush1.msra.mxu0 %v437
    %3038 = vmatprep.subr.mxu0 %v442
    %3039 = vmatpush1.msra.mxu0 %v441
    %3040 = vmatprep.subr.mxu0 %v446
    %3041 = vmatpush1.msra.mxu0 %v445
    %3042 = vmatprep.subr.mxu0 %v450
    %3043 = vmatpush1.msra.mxu0 %v449
    %3044 = vmatprep.subr.mxu0 %v454
    %3045 = vmatpush1.msra.mxu0 %v453
    %3046 = vmatprep.subr.mxu0 %v458
    %3047 = vmatpush1.msra.mxu0 %v457
    %3048 = vmatprep.subr.mxu0 %v462
    %3049 = vmatpush1.msra.mxu0 %v461
    %3050 = vmatprep.subr.mxu0 %v466
    %3051 = vmatpush1.msra.mxu0 %v465
    %3052 = vmatprep.subr.mxu0 %v470
    %3053 = vmatpush1.msra.mxu0 %v469
    %3054 = vmatprep.subr.mxu0 %v474
    %3055 = vmatpush1.msra.mxu0 %v473
    %3056 = vmatprep.subr.mxu0 %v478
    %3057 = vmatpush1.msra.mxu0 %v477
    %3058 = vmatprep.subr.mxu0 %v482
    %3059 = vmatpush1.msra.mxu0 %v481
    %3060 = vmatprep.subr.mxu0 %v486
    %3061 = vmatpush1.msra.mxu0 %v485
    %3062 = vmatprep.subr.mxu0 0.0
    %3063 = vmatpush1.msra.mxu0 0.0
    %3064 = vmatprep.subr.mxu0 0.0
    %3065 = vmatpush1.msra.mxu0 0.0
    %3066 = vmatprep.subr.mxu0 0.0
    %3067 = vmatpush1.msra.mxu0 0.0
    %3068 = vmatprep.subr.mxu0 0.0
    %3069 = vmatpush1.msra.mxu0 0.0
    %3070 = vmatprep.subr.mxu0 0.0
    %3071 = vmatpush1.msra.mxu0 0.0
    %3072 = vmatprep.subr.mxu0 0.0
    %3073 = vmatpush1.msra.mxu0 0.0
    %3074 = vmatprep.subr.mxu0 0.0
    %3075 = vmatpush1.msra.mxu0 0.0
    %3076 = vmatprep.subr.mxu0 0.0
    %3077 = vmatpush1.msra.mxu0 0.0
    %3078 = vmatprep.subr.mxu0 0.0
    %3079 = vmatpush1.msra.mxu0 0.0
    %3080 = vmatprep.subr.mxu0 0.0
    %3081 = vmatpush1.msra.mxu0 0.0
    %3082 = vmatprep.subr.mxu0 0.0
    %3083 = vmatpush1.msra.mxu0 0.0
    %3084 = vmatprep.subr.mxu0 0.0
    %3085 = vmatpush1.msra.mxu0 0.0
    %3086 = vmatprep.subr.mxu0 0.0
    %3087 = vmatpush1.msra.mxu0 0.0
    %3088 = vmatprep.subr.mxu0 0.0
    %3089 = vmatpush1.msra.mxu0 0.0
    %3090 = vmatprep.subr.mxu0 0.0
    %3091 = vmatpush1.msra.mxu0 0.0
    %3092 = vmatprep.subr.mxu0 0.0
    %3093 = vmatpush1.msra.mxu0 0.0
    %3094 = vmatprep.mubr.f32.mxu0 0.0
    %3095 = vmatmul.mubr.f32.gmra.mrb[0].mxu0 %v2631
    %v3096 = vpop.f32.mrb[0].mxu0
    %v3097 = vadd.f32 0.0, %v3096
    %v3098 = vpop.f32.mrb[0].mxu0
    %v3099 = vadd.f32 0.0, %v3098
    %3100 = vdwg.mxu0
    %v3101 = vadd.f32 %v2955, %v3026
    %v3102 = vadd.f32 %v2956, %v3028
    %v3103 = vadd.f32 %v2957, %v3097
    %v3104 = vadd.f32 %v2958, %v3099
    %v3105 = vmul.f32 %v3101, 0.5
    %v3106 = vtanh.pop %v3105
    %v3107 = vmul.f32 %v3106, 0.5
    %v3108 = vadd.f32 %v3107, 0.5
    %v3109 = vmul.f32 %v3102, 0.5
    %v3110 = vtanh.pop %v3109
    %v3111 = vmul.f32 %v3110, 0.5
    %v3112 = vadd.f32 %v3111, 0.5
    %v3113 = vtanh.pop %v3103
    %v3114 = vmul.f32 %v3104, 0.5
    %v3115 = vtanh.pop %v3114
    %v3116 = vmul.f32 %v3115, 0.5
    %v3117 = vadd.f32 %v3116, 0.5
    %v3118 = vmul.f32 %v3112, %v2632
    %v3119 = vmul.f32 %v3108, %v3113
    %v3120 = vadd.f32 %v3118, %v3119
    %v3121 = vtanh.pop %v3120
    %v3122 = vmul.f32 %v3117, %v3121
    %v3123 = vstv %s2640
    %vm3124 = vcmp.lt.s32.totalorder %v3123, %v422
    %v3125 = vsel %vm3124, 1, 0
    %3126 = vset.pattern.permute.xlu0 0
    %3127 = vperm.xlu0 %3126, %v3125
    %v3128 = vpop.permute.xlu0 %3127
    %vm3129 = vcmp.eq.s32.totalorder %v3128, 1
    %v3130 = vsel %vm3129, %v3122, %v2631
    %v3131 = vsel %vm3129, %v3120, %v2632
    %v3132 = vsel %vm2951, 1, 0
    %3133 = vset.pattern.permute.xlu0 0
    %3134 = vperm.xlu0 %3133, %v3132
    %v3135 = vpop.permute.xlu0 %3134
    %vm3136 = vcmp.eq.s32.totalorder %v3135, 1
    %v3137 = vsel %vm3136, %v2946, %v2638
    %v3138 = vsel %vm3136, %v2944, %v2639
    %s3139 = sadd.s32 %s616, 5
    %3140 = vmatprep.subr.mxu0 %v552
    %3141 = vmatpush1.msra.mxu0 %v551
    %3142 = vmatprep.subr.mxu0 %v556
    %3143 = vmatpush1.msra.mxu0 %v555
    %3144 = vmatprep.subr.mxu0 %v560
    %3145 = vmatpush1.msra.mxu0 %v559
    %3146 = vmatprep.subr.mxu0 %v564
    %3147 = vmatpush1.msra.mxu0 %v563
    %3148 = vmatprep.subr.mxu0 %v568
    %3149 = vmatpush1.msra.mxu0 %v567
    %3150 = vmatprep.subr.mxu0 %v572
    %3151 = vmatpush1.msra.mxu0 %v571
    %3152 = vmatprep.subr.mxu0 %v576
    %3153 = vmatpush1.msra.mxu0 %v575
    %3154 = vmatprep.subr.mxu0 %v580
    %3155 = vmatpush1.msra.mxu0 %v579
    %3156 = vmatprep.subr.mxu0 %v584
    %3157 = vmatpush1.msra.mxu0 %v583
    %3158 = vmatprep.subr.mxu0 %v588
    %3159 = vmatpush1.msra.mxu0 %v587
    %3160 = vmatprep.subr.mxu0 %v592
    %3161 = vmatpush1.msra.mxu0 %v591
    %3162 = vmatprep.subr.mxu0 %v596
    %3163 = vmatpush1.msra.mxu0 %v595
    %3164 = vmatprep.subr.mxu0 %v600
    %3165 = vmatpush1.msra.mxu0 %v599
    %3166 = vmatprep.subr.mxu0 %v604
    %3167 = vmatpush1.msra.mxu0 %v603
    %3168 = vmatprep.subr.mxu0 %v608
    %3169 = vmatpush1.msra.mxu0 %v607
    %3170 = vmatprep.subr.mxu0 %v612
    %3171 = vmatpush1.msra.mxu0 %v611
    %3172 = vmatprep.subr.mxu0 0.0
    %3173 = vmatpush1.msra.mxu0 0.0
    %3174 = vmatprep.subr.mxu0 0.0
    %3175 = vmatpush1.msra.mxu0 0.0
    %3176 = vmatprep.subr.mxu0 0.0
    %3177 = vmatpush1.msra.mxu0 0.0
    %3178 = vmatprep.subr.mxu0 0.0
    %3179 = vmatpush1.msra.mxu0 0.0
    %3180 = vmatprep.subr.mxu0 0.0
    %3181 = vmatpush1.msra.mxu0 0.0
    %3182 = vmatprep.subr.mxu0 0.0
    %3183 = vmatpush1.msra.mxu0 0.0
    %3184 = vmatprep.subr.mxu0 0.0
    %3185 = vmatpush1.msra.mxu0 0.0
    %3186 = vmatprep.subr.mxu0 0.0
    %3187 = vmatpush1.msra.mxu0 0.0
    %3188 = vmatprep.subr.mxu0 0.0
    %3189 = vmatpush1.msra.mxu0 0.0
    %3190 = vmatprep.subr.mxu0 0.0
    %3191 = vmatpush1.msra.mxu0 0.0
    %3192 = vmatprep.subr.mxu0 0.0
    %3193 = vmatpush1.msra.mxu0 0.0
    %3194 = vmatprep.subr.mxu0 0.0
    %3195 = vmatpush1.msra.mxu0 0.0
    %3196 = vmatprep.subr.mxu0 0.0
    %3197 = vmatpush1.msra.mxu0 0.0
    %3198 = vmatprep.subr.mxu0 0.0
    %3199 = vmatpush1.msra.mxu0 0.0
    %3200 = vmatprep.subr.mxu0 0.0
    %3201 = vmatpush1.msra.mxu0 0.0
    %3202 = vmatprep.subr.mxu0 0.0
    %3203 = vmatpush1.msra.mxu0 0.0
    %3204 = vmatprep.mubr.f32.mxu0 0.0
    %3205 = vmatmul.mubr.f32.gmra.mrb[0].mxu0 %v3137
    %v3206 = vpop.f32.mrb[0].mxu0
    %v3207 = vadd.f32 0.0, %v3206
    %v3208 = vpop.f32.mrb[0].mxu0
    %v3209 = vadd.f32 0.0, %v3208
    %3210 = vdwg.mxu0
    %3211 = vmatprep.subr.mxu0 %v554
    %3212 = vmatpush1.msra.mxu0 %v553
    %3213 = vmatprep.subr.mxu0 %v558
    %3214 = vmatpush1.msra.mxu0 %v557
    %3215 = vmatprep.subr.mxu0 %v562
    %3216 = vmatpush1.msra.mxu0 %v561
    %3217 = vmatprep.subr.mxu0 %v566
    %3218 = vmatpush1.msra.mxu0 %v565
    %3219 = vmatprep.subr.mxu0 %v570
    %3220 = vmatpush1.msra.mxu0 %v569
    %3221 = vmatprep.subr.mxu0 %v574
    %3222 = vmatpush1.msra.mxu0 %v573
    %3223 = vmatprep.subr.mxu0 %v578
    %3224 = vmatpush1.msra.mxu0 %v577
    %3225 = vmatprep.subr.mxu0 %v582
    %3226 = vmatpush1.msra.mxu0 %v581
    %3227 = vmatprep.subr.mxu0 %v586
    %3228 = vmatpush1.msra.mxu0 %v585
    %3229 = vmatprep.subr.mxu0 %v590
    %3230 = vmatpush1.msra.mxu0 %v589
    %3231 = vmatprep.subr.mxu0 %v594
    %3232 = vmatpush1.msra.mxu0 %v593
    %3233 = vmatprep.subr.mxu0 %v598
    %3234 = vmatpush1.msra.mxu0 %v597
    %3235 = vmatprep.subr.mxu0 %v602
    %3236 = vmatpush1.msra.mxu0 %v601
    %3237 = vmatprep.subr.mxu0 %v606
    %3238 = vmatpush1.msra.mxu0 %v605
    %3239 = vmatprep.subr.mxu0 %v610
    %3240 = vmatpush1.msra.mxu0 %v609
    %3241 = vmatprep.subr.mxu0 %v614
    %3242 = vmatpush1.msra.mxu0 %v613
    %3243 = vmatprep.subr.mxu0 0.0
    %3244 = vmatpush1.msra.mxu0 0.0
    %3245 = vmatprep.subr.mxu0 0.0
    %3246 = vmatpush1.msra.mxu0 0.0
    %3247 = vmatprep.subr.mxu0 0.0
    %3248 = vmatpush1.msra.mxu0 0.0
    %3249 = vmatprep.subr.mxu0 0.0
    %3250 = vmatpush1.msra.mxu0 0.0
    %3251 = vmatprep.subr.mxu0 0.0
    %3252 = vmatpush1.msra.mxu0 0.0
    %3253 = vmatprep.subr.mxu0 0.0
    %3254 = vmatpush1.msra.mxu0 0.0
    %3255 = vmatprep.subr.mxu0 0.0
    %3256 = vmatpush1.msra.mxu0 0.0
    %3257 = vmatprep.subr.mxu0 0.0
    %3258 = vmatpush1.msra.mxu0 0.0
    %3259 = vmatprep.subr.mxu0 0.0
    %3260 = vmatpush1.msra.mxu0 0.0
    %3261 = vmatprep.subr.mxu0 0.0
    %3262 = vmatpush1.msra.mxu0 0.0
    %3263 = vmatprep.subr.mxu0 0.0
    %3264 = vmatpush1.msra.mxu0 0.0
    %3265 = vmatprep.subr.mxu0 0.0
    %3266 = vmatpush1.msra.mxu0 0.0
    %3267 = vmatprep.subr.mxu0 0.0
    %3268 = vmatpush1.msra.mxu0 0.0
    %3269 = vmatprep.subr.mxu0 0.0
    %3270 = vmatpush1.msra.mxu0 0.0
    %3271 = vmatprep.subr.mxu0 0.0
    %3272 = vmatpush1.msra.mxu0 0.0
    %3273 = vmatprep.subr.mxu0 0.0
    %3274 = vmatpush1.msra.mxu0 0.0
    %3275 = vmatprep.mubr.f32.mxu0 0.0
    %3276 = vmatmul.mubr.f32.gmra.mrb[0].mxu0 %v3137
    %v3277 = vpop.f32.mrb[0].mxu0
    %v3278 = vadd.f32 0.0, %v3277
    %v3279 = vpop.f32.mrb[0].mxu0
    %v3280 = vadd.f32 0.0, %v3279
    %3281 = vdwg.mxu0
    %3282 = vmatprep.subr.mxu0 %v488
    %3283 = vmatpush1.msra.mxu0 %v487
    %3284 = vmatprep.subr.mxu0 %v492
    %3285 = vmatpush1.msra.mxu0 %v491
    %3286 = vmatprep.subr.mxu0 %v496
    %3287 = vmatpush1.msra.mxu0 %v495
    %3288 = vmatprep.subr.mxu0 %v500
    %3289 = vmatpush1.msra.mxu0 %v499
    %3290 = vmatprep.subr.mxu0 %v504
    %3291 = vmatpush1.msra.mxu0 %v503
    %3292 = vmatprep.subr.mxu0 %v508
    %3293 = vmatpush1.msra.mxu0 %v507
    %3294 = vmatprep.subr.mxu0 %v512
    %3295 = vmatpush1.msra.mxu0 %v511
    %3296 = vmatprep.subr.mxu0 %v516
    %3297 = vmatpush1.msra.mxu0 %v515
    %3298 = vmatprep.subr.mxu0 %v520
    %3299 = vmatpush1.msra.mxu0 %v519
    %3300 = vmatprep.subr.mxu0 %v524
    %3301 = vmatpush1.msra.mxu0 %v523
    %3302 = vmatprep.subr.mxu0 %v528
    %3303 = vmatpush1.msra.mxu0 %v527
    %3304 = vmatprep.subr.mxu0 %v532
    %3305 = vmatpush1.msra.mxu0 %v531
    %3306 = vmatprep.subr.mxu0 %v536
    %3307 = vmatpush1.msra.mxu0 %v535
    %3308 = vmatprep.subr.mxu0 %v540
    %3309 = vmatpush1.msra.mxu0 %v539
    %3310 = vmatprep.subr.mxu0 %v544
    %3311 = vmatpush1.msra.mxu0 %v543
    %3312 = vmatprep.subr.mxu0 %v548
    %3313 = vmatpush1.msra.mxu0 %v547
    %3314 = vmatprep.subr.mxu0 0.0
    %3315 = vmatpush1.msra.mxu0 0.0
    %3316 = vmatprep.subr.mxu0 0.0
    %3317 = vmatpush1.msra.mxu0 0.0
    %3318 = vmatprep.subr.mxu0 0.0
    %3319 = vmatpush1.msra.mxu0 0.0
    %3320 = vmatprep.subr.mxu0 0.0
    %3321 = vmatpush1.msra.mxu0 0.0
    %3322 = vmatprep.subr.mxu0 0.0
    %3323 = vmatpush1.msra.mxu0 0.0
    %3324 = vmatprep.subr.mxu0 0.0
    %3325 = vmatpush1.msra.mxu0 0.0
    %3326 = vmatprep.subr.mxu0 0.0
    %3327 = vmatpush1.msra.mxu0 0.0
    %3328 = vmatprep.subr.mxu0 0.0
    %3329 = vmatpush1.msra.mxu0 0.0
    %3330 = vmatprep.subr.mxu0 0.0
    %3331 = vmatpush1.msra.mxu0 0.0
    %3332 = vmatprep.subr.mxu0 0.0
    %3333 = vmatpush1.msra.mxu0 0.0
    %3334 = vmatprep.subr.mxu0 0.0
    %3335 = vmatpush1.msra.mxu0 0.0
    %3336 = vmatprep.subr.mxu0 0.0
    %3337 = vmatpush1.msra.mxu0 0.0
    %3338 = vmatprep.subr.mxu0 0.0
    %3339 = vmatpush1.msra.mxu0 0.0
    %3340 = vmatprep.subr.mxu0 0.0
    %3341 = vmatpush1.msra.mxu0 0.0
    %3342 = vmatprep.subr.mxu0 0.0
    %3343 = vmatpush1.msra.mxu0 0.0
    %3344 = vmatprep.subr.mxu0 0.0
    %3345 = vmatpush1.msra.mxu0 0.0
    %3346 = vmatprep.mubr.f32.mxu0 0.0
    %3347 = vmatmul.mubr.f32.gmra.mrb[0].mxu0 %v3130
    %v3348 = vpop.f32.mrb[0].mxu0
    %v3349 = vadd.f32 %v3207, %v3348
    %v3350 = vpop.f32.mrb[0].mxu0
    %v3351 = vadd.f32 %v3209, %v3350
    %3352 = vdwg.mxu0
    %3353 = vmatprep.subr.mxu0 %v490
    %3354 = vmatpush1.msra.mxu0 %v489
    %3355 = vmatprep.subr.mxu0 %v494
    %3356 = vmatpush1.msra.mxu0 %v493
    %3357 = vmatprep.subr.mxu0 %v498
    %3358 = vmatpush1.msra.mxu0 %v497
    %3359 = vmatprep.subr.mxu0 %v502
    %3360 = vmatpush1.msra.mxu0 %v501
    %3361 = vmatprep.subr.mxu0 %v506
    %3362 = vmatpush1.msra.mxu0 %v505
    %3363 = vmatprep.subr.mxu0 %v510
    %3364 = vmatpush1.msra.mxu0 %v509
    %3365 = vmatprep.subr.mxu0 %v514
    %3366 = vmatpush1.msra.mxu0 %v513
    %3367 = vmatprep.subr.mxu0 %v518
    %3368 = vmatpush1.msra.mxu0 %v517
    %3369 = vmatprep.subr.mxu0 %v522
    %3370 = vmatpush1.msra.mxu0 %v521
    %3371 = vmatprep.subr.mxu0 %v526
    %3372 = vmatpush1.msra.mxu0 %v525
    %3373 = vmatprep.subr.mxu0 %v530
    %3374 = vmatpush1.msra.mxu0 %v529
    %3375 = vmatprep.subr.mxu0 %v534
    %3376 = vmatpush1.msra.mxu0 %v533
    %3377 = vmatprep.subr.mxu0 %v538
    %3378 = vmatpush1.msra.mxu0 %v537
    %3379 = vmatprep.subr.mxu0 %v542
    %3380 = vmatpush1.msra.mxu0 %v541
    %3381 = vmatprep.subr.mxu0 %v546
    %3382 = vmatpush1.msra.mxu0 %v545
    %3383 = vmatprep.subr.mxu0 %v550
    %3384 = vmatpush1.msra.mxu0 %v549
    %3385 = vmatprep.subr.mxu0 0.0
    %3386 = vmatpush1.msra.mxu0 0.0
    %3387 = vmatprep.subr.mxu0 0.0
    %3388 = vmatpush1.msra.mxu0 0.0
    %3389 = vmatprep.subr.mxu0 0.0
    %3390 = vmatpush1.msra.mxu0 0.0
    %3391 = vmatprep.subr.mxu0 0.0
    %3392 = vmatpush1.msra.mxu0 0.0
    %3393 = vmatprep.subr.mxu0 0.0
    %3394 = vmatpush1.msra.mxu0 0.0
    %3395 = vmatprep.subr.mxu0 0.0
    %3396 = vmatpush1.msra.mxu0 0.0
    %3397 = vmatprep.subr.mxu0 0.0
    %3398 = vmatpush1.msra.mxu0 0.0
    %3399 = vmatprep.subr.mxu0 0.0
    %3400 = vmatpush1.msra.mxu0 0.0
    %3401 = vmatprep.subr.mxu0 0.0
    %3402 = vmatpush1.msra.mxu0 0.0
    %3403 = vmatprep.subr.mxu0 0.0
    %3404 = vmatpush1.msra.mxu0 0.0
    %3405 = vmatprep.subr.mxu0 0.0
    %3406 = vmatpush1.msra.mxu0 0.0
    %3407 = vmatprep.subr.mxu0 0.0
    %3408 = vmatpush1.msra.mxu0 0.0
    %3409 = vmatprep.subr.mxu0 0.0
    %3410 = vmatpush1.msra.mxu0 0.0
    %3411 = vmatprep.subr.mxu0 0.0
    %3412 = vmatpush1.msra.mxu0 0.0
    %3413 = vmatprep.subr.mxu0 0.0
    %3414 = vmatpush1.msra.mxu0 0.0
    %3415 = vmatprep.subr.mxu0 0.0
    %3416 = vmatpush1.msra.mxu0 0.0
    %3417 = vmatprep.mubr.f32.mxu0 0.0
    %3418 = vmatmul.mubr.f32.gmra.mrb[0].mxu0 %v3130
    %v3419 = vpop.f32.mrb[0].mxu0
    %v3420 = vadd.f32 %v3278, %v3419
    %v3421 = vpop.f32.mrb[0].mxu0
    %v3422 = vadd.f32 %v3280, %v3421
    %3423 = vdwg.mxu0
    %v3424 = vadd.f32 %v3349, %v909
    %v3425 = vadd.f32 %v3351, %v913
    %v3426 = vadd.f32 %v3420, %v917
    %v3427 = vadd.f32 %v3422, %v921
    %v3428 = vmul.f32 %v3424, 0.5
    %v3429 = vtanh.pop %v3428
    %v3430 = vmul.f32 %v3429, 0.5
    %v3431 = vadd.f32 %v3430, 0.5
    %v3432 = vmul.f32 %v3425, 0.5
    %v3433 = vtanh.pop %v3432
    %v3434 = vmul.f32 %v3433, 0.5
    %v3435 = vadd.f32 %v3434, 0.5
    %v3436 = vtanh.pop %v3426
    %v3437 = vmul.f32 %v3427, 0.5
    %v3438 = vtanh.pop %v3437
    %v3439 = vmul.f32 %v3438, 0.5
    %v3440 = vadd.f32 %v3439, 0.5
    %v3441 = vmul.f32 %v3435, %v3138
    %v3442 = vmul.f32 %v3431, %v3436
    %v3443 = vadd.f32 %v3441, %v3442
    %v3444 = vtanh.pop %v3443
    %v3445 = vmul.f32 %v3440, %v3444
    %p3446 = scmp.ge.s32.totalorder %s3139, 1
    %s3447 = scalar_select %p3446, 1, 0
    %v3448 = vstv %s3447
    %vm3449 = vcmp.eq.s32.totalorder %v3448, 1
    %vm3450 = vmand %vm3449, %vm3124
    %s3451 = smul.u32 5, 4
    %s3452 = smul.addr %s3451, 8
    %s3453 = scalar_lea.vmem [#allocation2], %s3452
    %v3454 = vld [vmem:[%s3453] sm:$0xff]
    %v3455 = vld [vmem:[%s3453 + $0x8] sm:$0xff]
    %v3456 = vld [vmem:[%s3453 + $0x10] sm:$0xff]
    %v3457 = vld [vmem:[%s3453 + $0x18] sm:$0xff]
    %3458 = vmatprep.subr.mxu0 %v424
    %3459 = vmatpush1.msra.mxu0 %v423
    %3460 = vmatprep.subr.mxu0 %v428
    %3461 = vmatpush1.msra.mxu0 %v427
    %3462 = vmatprep.subr.mxu0 %v432
    %3463 = vmatpush1.msra.mxu0 %v431
    %3464 = vmatprep.subr.mxu0 %v436
    %3465 = vmatpush1.msra.mxu0 %v435
    %3466 = vmatprep.subr.mxu0 %v440
    %3467 = vmatpush1.msra.mxu0 %v439
    %3468 = vmatprep.subr.mxu0 %v444
    %3469 = vmatpush1.msra.mxu0 %v443
    %3470 = vmatprep.subr.mxu0 %v448
    %3471 = vmatpush1.msra.mxu0 %v447
    %3472 = vmatprep.subr.mxu0 %v452
    %3473 = vmatpush1.msra.mxu0 %v451
    %3474 = vmatprep.subr.mxu0 %v456
    %3475 = vmatpush1.msra.mxu0 %v455
    %3476 = vmatprep.subr.mxu0 %v460
    %3477 = vmatpush1.msra.mxu0 %v459
    %3478 = vmatprep.subr.mxu0 %v464
    %3479 = vmatpush1.msra.mxu0 %v463
    %3480 = vmatprep.subr.mxu0 %v468
    %3481 = vmatpush1.msra.mxu0 %v467
    %3482 = vmatprep.subr.mxu0 %v472
    %3483 = vmatpush1.msra.mxu0 %v471
    %3484 = vmatprep.subr.mxu0 %v476
    %3485 = vmatpush1.msra.mxu0 %v475
    %3486 = vmatprep.subr.mxu0 %v480
    %3487 = vmatpush1.msra.mxu0 %v479
    %3488 = vmatprep.subr.mxu0 %v484
    %3489 = vmatpush1.msra.mxu0 %v483
    %3490 = vmatprep.subr.mxu0 0.0
    %3491 = vmatpush1.msra.mxu0 0.0
    %3492 = vmatprep.subr.mxu0 0.0
    %3493 = vmatpush1.msra.mxu0 0.0
    %3494 = vmatprep.subr.mxu0 0.0
    %3495 = vmatpush1.msra.mxu0 0.0
    %3496 = vmatprep.subr.mxu0 0.0
    %3497 = vmatpush1.msra.mxu0 0.0
    %3498 = vmatprep.subr.mxu0 0.0
    %3499 = vmatpush1.msra.mxu0 0.0
    %3500 = vmatprep.subr.mxu0 0.0
    %3501 = vmatpush1.msra.mxu0 0.0
    %3502 = vmatprep.subr.mxu0 0.0
    %3503 = vmatpush1.msra.mxu0 0.0
    %3504 = vmatprep.subr.mxu0 0.0
    %3505 = vmatpush1.msra.mxu0 0.0
    %3506 = vmatprep.subr.mxu0 0.0
    %3507 = vmatpush1.msra.mxu0 0.0
    %3508 = vmatprep.subr.mxu0 0.0
    %3509 = vmatpush1.msra.mxu0 0.0
    %3510 = vmatprep.subr.mxu0 0.0
    %3511 = vmatpush1.msra.mxu0 0.0
    %3512 = vmatprep.subr.mxu0 0.0
    %3513 = vmatpush1.msra.mxu0 0.0
    %3514 = vmatprep.subr.mxu0 0.0
    %3515 = vmatpush1.msra.mxu0 0.0
    %3516 = vmatprep.subr.mxu0 0.0
    %3517 = vmatpush1.msra.mxu0 0.0
    %3518 = vmatprep.subr.mxu0 0.0
    %3519 = vmatpush1.msra.mxu0 0.0
    %3520 = vmatprep.subr.mxu0 0.0
    %3521 = vmatpush1.msra.mxu0 0.0
    %3522 = vmatprep.mubr.f32.mxu0 0.0
    %3523 = vmatmul.mubr.f32.gmra.mrb[0].mxu0 %v3130
    %v3524 = vpop.f32.mrb[0].mxu0
    %v3525 = vadd.f32 0.0, %v3524
    %v3526 = vpop.f32.mrb[0].mxu0
    %v3527 = vadd.f32 0.0, %v3526
    %3528 = vdwg.mxu0
    %3529 = vmatprep.subr.mxu0 %v426
    %3530 = vmatpush1.msra.mxu0 %v425
    %3531 = vmatprep.subr.mxu0 %v430
    %3532 = vmatpush1.msra.mxu0 %v429
    %3533 = vmatprep.subr.mxu0 %v434
    %3534 = vmatpush1.msra.mxu0 %v433
    %3535 = vmatprep.subr.mxu0 %v438
    %3536 = vmatpush1.msra.mxu0 %v437
    %3537 = vmatprep.subr.mxu0 %v442
    %3538 = vmatpush1.msra.mxu0 %v441
    %3539 = vmatprep.subr.mxu0 %v446
    %3540 = vmatpush1.msra.mxu0 %v445
    %3541 = vmatprep.subr.mxu0 %v450
    %3542 = vmatpush1.msra.mxu0 %v449
    %3543 = vmatprep.subr.mxu0 %v454
    %3544 = vmatpush1.msra.mxu0 %v453
    %3545 = vmatprep.subr.mxu0 %v458
    %3546 = vmatpush1.msra.mxu0 %v457
    %3547 = vmatprep.subr.mxu0 %v462
    %3548 = vmatpush1.msra.mxu0 %v461
    %3549 = vmatprep.subr.mxu0 %v466
    %3550 = vmatpush1.msra.mxu0 %v465
    %3551 = vmatprep.subr.mxu0 %v470
    %3552 = vmatpush1.msra.mxu0 %v469
    %3553 = vmatprep.subr.mxu0 %v474
    %3554 = vmatpush1.msra.mxu0 %v473
    %3555 = vmatprep.subr.mxu0 %v478
    %3556 = vmatpush1.msra.mxu0 %v477
    %3557 = vmatprep.subr.mxu0 %v482
    %3558 = vmatpush1.msra.mxu0 %v481
    %3559 = vmatprep.subr.mxu0 %v486
    %3560 = vmatpush1.msra.mxu0 %v485
    %3561 = vmatprep.subr.mxu0 0.0
    %3562 = vmatpush1.msra.mxu0 0.0
    %3563 = vmatprep.subr.mxu0 0.0
    %3564 = vmatpush1.msra.mxu0 0.0
    %3565 = vmatprep.subr.mxu0 0.0
    %3566 = vmatpush1.msra.mxu0 0.0
    %3567 = vmatprep.subr.mxu0 0.0
    %3568 = vmatpush1.msra.mxu0 0.0
    %3569 = vmatprep.subr.mxu0 0.0
    %3570 = vmatpush1.msra.mxu0 0.0
    %3571 = vmatprep.subr.mxu0 0.0
    %3572 = vmatpush1.msra.mxu0 0.0
    %3573 = vmatprep.subr.mxu0 0.0
    %3574 = vmatpush1.msra.mxu0 0.0
    %3575 = vmatprep.subr.mxu0 0.0
    %3576 = vmatpush1.msra.mxu0 0.0
    %3577 = vmatprep.subr.mxu0 0.0
    %3578 = vmatpush1.msra.mxu0 0.0
    %3579 = vmatprep.subr.mxu0 0.0
    %3580 = vmatpush1.msra.mxu0 0.0
    %3581 = vmatprep.subr.mxu0 0.0
    %3582 = vmatpush1.msra.mxu0 0.0
    %3583 = vmatprep.subr.mxu0 0.0
    %3584 = vmatpush1.msra.mxu0 0.0
    %3585 = vmatprep.subr.mxu0 0.0
    %3586 = vmatpush1.msra.mxu0 0.0
    %3587 = vmatprep.subr.mxu0 0.0
    %3588 = vmatpush1.msra.mxu0 0.0
    %3589 = vmatprep.subr.mxu0 0.0
    %3590 = vmatpush1.msra.mxu0 0.0
    %3591 = vmatprep.subr.mxu0 0.0
    %3592 = vmatpush1.msra.mxu0 0.0
    %3593 = vmatprep.mubr.f32.mxu0 0.0
    %3594 = vmatmul.mubr.f32.gmra.mrb[0].mxu0 %v3130
    %v3595 = vpop.f32.mrb[0].mxu0
    %v3596 = vadd.f32 0.0, %v3595
    %v3597 = vpop.f32.mrb[0].mxu0
    %v3598 = vadd.f32 0.0, %v3597
    %3599 = vdwg.mxu0
    %v3600 = vadd.f32 %v3454, %v3525
    %v3601 = vadd.f32 %v3455, %v3527
    %v3602 = vadd.f32 %v3456, %v3596
    %v3603 = vadd.f32 %v3457, %v3598
    %v3604 = vmul.f32 %v3600, 0.5
    %v3605 = vtanh.pop %v3604
    %v3606 = vmul.f32 %v3605, 0.5
    %v3607 = vadd.f32 %v3606, 0.5
    %v3608 = vmul.f32 %v3601, 0.5
    %v3609 = vtanh.pop %v3608
    %v3610 = vmul.f32 %v3609, 0.5
    %v3611 = vadd.f32 %v3610, 0.5
    %v3612 = vtanh.pop %v3602
    %v3613 = vmul.f32 %v3603, 0.5
    %v3614 = vtanh.pop %v3613
    %v3615 = vmul.f32 %v3614, 0.5
    %v3616 = vadd.f32 %v3615, 0.5
    %v3617 = vmul.f32 %v3611, %v3131
    %v3618 = vmul.f32 %v3607, %v3612
    %v3619 = vadd.f32 %v3617, %v3618
    %v3620 = vtanh.pop %v3619
    %v3621 = vmul.f32 %v3616, %v3620
    %v3622 = vstv %s3139
    %vm3623 = vcmp.lt.s32.totalorder %v3622, %v422
    %v3624 = vsel %vm3623, 1, 0
    %3625 = vset.pattern.permute.xlu0 0
    %3626 = vperm.xlu0 %3625, %v3624
    %v3627 = vpop.permute.xlu0 %3626
    %vm3628 = vcmp.eq.s32.totalorder %v3627, 1
    %v3629 = vsel %vm3628, %v3621, %v3130
    %v3630 = vsel %vm3628, %v3619, %v3131
    %v3631 = vsel %vm3450, 1, 0
    %3632 = vset.pattern.permute.xlu0 0
    %3633 = vperm.xlu0 %3632, %v3631
    %v3634 = vpop.permute.xlu0 %3633
    %vm3635 = vcmp.eq.s32.totalorder %v3634, 1
    %v3636 = vsel %vm3635, %v3445, %v3137
    %v3637 = vsel %vm3635, %v3443, %v3138
    %s3638 = sadd.s32 %s616, 6
    %3639 = vmatprep.subr.mxu0 %v552
    %3640 = vmatpush1.msra.mxu0 %v551
    %3641 = vmatprep.subr.mxu0 %v556
    %3642 = vmatpush1.msra.mxu0 %v555
    %3643 = vmatprep.subr.mxu0 %v560
    %3644 = vmatpush1.msra.mxu0 %v559
    %3645 = vmatprep.subr.mxu0 %v564
    %3646 = vmatpush1.msra.mxu0 %v563
    %3647 = vmatprep.subr.mxu0 %v568
    %3648 = vmatpush1.msra.mxu0 %v567
    %3649 = vmatprep.subr.mxu0 %v572
    %3650 = vmatpush1.msra.mxu0 %v571
    %3651 = vmatprep.subr.mxu0 %v576
    %3652 = vmatpush1.msra.mxu0 %v575
    %3653 = vmatprep.subr.mxu0 %v580
    %3654 = vmatpush1.msra.mxu0 %v579
    %3655 = vmatprep.subr.mxu0 %v584
    %3656 = vmatpush1.msra.mxu0 %v583
    %3657 = vmatprep.subr.mxu0 %v588
    %3658 = vmatpush1.msra.mxu0 %v587
    %3659 = vmatprep.subr.mxu0 %v592
    %3660 = vmatpush1.msra.mxu0 %v591
    %3661 = vmatprep.subr.mxu0 %v596
    %3662 = vmatpush1.msra.mxu0 %v595
    %3663 = vmatprep.subr.mxu0 %v600
    %3664 = vmatpush1.msra.mxu0 %v599
    %3665 = vmatprep.subr.mxu0 %v604
    %3666 = vmatpush1.msra.mxu0 %v603
    %3667 = vmatprep.subr.mxu0 %v608
    %3668 = vmatpush1.msra.mxu0 %v607
    %3669 = vmatprep.subr.mxu0 %v612
    %3670 = vmatpush1.msra.mxu0 %v611
    %3671 = vmatprep.subr.mxu0 0.0
    %3672 = vmatpush1.msra.mxu0 0.0
    %3673 = vmatprep.subr.mxu0 0.0
    %3674 = vmatpush1.msra.mxu0 0.0
    %3675 = vmatprep.subr.mxu0 0.0
    %3676 = vmatpush1.msra.mxu0 0.0
    %3677 = vmatprep.subr.mxu0 0.0
    %3678 = vmatpush1.msra.mxu0 0.0
    %3679 = vmatprep.subr.mxu0 0.0
    %3680 = vmatpush1.msra.mxu0 0.0
    %3681 = vmatprep.subr.mxu0 0.0
    %3682 = vmatpush1.msra.mxu0 0.0
    %3683 = vmatprep.subr.mxu0 0.0
    %3684 = vmatpush1.msra.mxu0 0.0
    %3685 = vmatprep.subr.mxu0 0.0
    %3686 = vmatpush1.msra.mxu0 0.0
    %3687 = vmatprep.subr.mxu0 0.0
    %3688 = vmatpush1.msra.mxu0 0.0
    %3689 = vmatprep.subr.mxu0 0.0
    %3690 = vmatpush1.msra.mxu0 0.0
    %3691 = vmatprep.subr.mxu0 0.0
    %3692 = vmatpush1.msra.mxu0 0.0
    %3693 = vmatprep.subr.mxu0 0.0
    %3694 = vmatpush1.msra.mxu0 0.0
    %3695 = vmatprep.subr.mxu0 0.0
    %3696 = vmatpush1.msra.mxu0 0.0
    %3697 = vmatprep.subr.mxu0 0.0
    %3698 = vmatpush1.msra.mxu0 0.0
    %3699 = vmatprep.subr.mxu0 0.0
    %3700 = vmatpush1.msra.mxu0 0.0
    %3701 = vmatprep.subr.mxu0 0.0
    %3702 = vmatpush1.msra.mxu0 0.0
    %3703 = vmatprep.mubr.f32.mxu0 0.0
    %3704 = vmatmul.mubr.f32.gmra.mrb[0].mxu0 %v3636
    %v3705 = vpop.f32.mrb[0].mxu0
    %v3706 = vadd.f32 0.0, %v3705
    %v3707 = vpop.f32.mrb[0].mxu0
    %v3708 = vadd.f32 0.0, %v3707
    %3709 = vdwg.mxu0
    %3710 = vmatprep.subr.mxu0 %v554
    %3711 = vmatpush1.msra.mxu0 %v553
    %3712 = vmatprep.subr.mxu0 %v558
    %3713 = vmatpush1.msra.mxu0 %v557
    %3714 = vmatprep.subr.mxu0 %v562
    %3715 = vmatpush1.msra.mxu0 %v561
    %3716 = vmatprep.subr.mxu0 %v566
    %3717 = vmatpush1.msra.mxu0 %v565
    %3718 = vmatprep.subr.mxu0 %v570
    %3719 = vmatpush1.msra.mxu0 %v569
    %3720 = vmatprep.subr.mxu0 %v574
    %3721 = vmatpush1.msra.mxu0 %v573
    %3722 = vmatprep.subr.mxu0 %v578
    %3723 = vmatpush1.msra.mxu0 %v577
    %3724 = vmatprep.subr.mxu0 %v582
    %3725 = vmatpush1.msra.mxu0 %v581
    %3726 = vmatprep.subr.mxu0 %v586
    %3727 = vmatpush1.msra.mxu0 %v585
    %3728 = vmatprep.subr.mxu0 %v590
    %3729 = vmatpush1.msra.mxu0 %v589
    %3730 = vmatprep.subr.mxu0 %v594
    %3731 = vmatpush1.msra.mxu0 %v593
    %3732 = vmatprep.subr.mxu0 %v598
    %3733 = vmatpush1.msra.mxu0 %v597
    %3734 = vmatprep.subr.mxu0 %v602
    %3735 = vmatpush1.msra.mxu0 %v601
    %3736 = vmatprep.subr.mxu0 %v606
    %3737 = vmatpush1.msra.mxu0 %v605
    %3738 = vmatprep.subr.mxu0 %v610
    %3739 = vmatpush1.msra.mxu0 %v609
    %3740 = vmatprep.subr.mxu0 %v614
    %3741 = vmatpush1.msra.mxu0 %v613
    %3742 = vmatprep.subr.mxu0 0.0
    %3743 = vmatpush1.msra.mxu0 0.0
    %3744 = vmatprep.subr.mxu0 0.0
    %3745 = vmatpush1.msra.mxu0 0.0
    %3746 = vmatprep.subr.mxu0 0.0
    %3747 = vmatpush1.msra.mxu0 0.0
    %3748 = vmatprep.subr.mxu0 0.0
    %3749 = vmatpush1.msra.mxu0 0.0
    %3750 = vmatprep.subr.mxu0 0.0
    %3751 = vmatpush1.msra.mxu0 0.0
    %3752 = vmatprep.subr.mxu0 0.0
    %3753 = vmatpush1.msra.mxu0 0.0
    %3754 = vmatprep.subr.mxu0 0.0
    %3755 = vmatpush1.msra.mxu0 0.0
    %3756 = vmatprep.subr.mxu0 0.0
    %3757 = vmatpush1.msra.mxu0 0.0
    %3758 = vmatprep.subr.mxu0 0.0
    %3759 = vmatpush1.msra.mxu0 0.0
    %3760 = vmatprep.subr.mxu0 0.0
    %3761 = vmatpush1.msra.mxu0 0.0
    %3762 = vmatprep.subr.mxu0 0.0
    %3763 = vmatpush1.msra.mxu0 0.0
    %3764 = vmatprep.subr.mxu0 0.0
    %3765 = vmatpush1.msra.mxu0 0.0
    %3766 = vmatprep.subr.mxu0 0.0
    %3767 = vmatpush1.msra.mxu0 0.0
    %3768 = vmatprep.subr.mxu0 0.0
    %3769 = vmatpush1.msra.mxu0 0.0
    %3770 = vmatprep.subr.mxu0 0.0
    %3771 = vmatpush1.msra.mxu0 0.0
    %3772 = vmatprep.subr.mxu0 0.0
    %3773 = vmatpush1.msra.mxu0 0.0
    %3774 = vmatprep.mubr.f32.mxu0 0.0
    %3775 = vmatmul.mubr.f32.gmra.mrb[0].mxu0 %v3636
    %v3776 = vpop.f32.mrb[0].mxu0
    %v3777 = vadd.f32 0.0, %v3776
    %v3778 = vpop.f32.mrb[0].mxu0
    %v3779 = vadd.f32 0.0, %v3778
    %3780 = vdwg.mxu0
    %3781 = vmatprep.subr.mxu0 %v488
    %3782 = vmatpush1.msra.mxu0 %v487
    %3783 = vmatprep.subr.mxu0 %v492
    %3784 = vmatpush1.msra.mxu0 %v491
    %3785 = vmatprep.subr.mxu0 %v496
    %3786 = vmatpush1.msra.mxu0 %v495
    %3787 = vmatprep.subr.mxu0 %v500
    %3788 = vmatpush1.msra.mxu0 %v499
    %3789 = vmatprep.subr.mxu0 %v504
    %3790 = vmatpush1.msra.mxu0 %v503
    %3791 = vmatprep.subr.mxu0 %v508
    %3792 = vmatpush1.msra.mxu0 %v507
    %3793 = vmatprep.subr.mxu0 %v512
    %3794 = vmatpush1.msra.mxu0 %v511
    %3795 = vmatprep.subr.mxu0 %v516
    %3796 = vmatpush1.msra.mxu0 %v515
    %3797 = vmatprep.subr.mxu0 %v520
    %3798 = vmatpush1.msra.mxu0 %v519
    %3799 = vmatprep.subr.mxu0 %v524
    %3800 = vmatpush1.msra.mxu0 %v523
    %3801 = vmatprep.subr.mxu0 %v528
    %3802 = vmatpush1.msra.mxu0 %v527
    %3803 = vmatprep.subr.mxu0 %v532
    %3804 = vmatpush1.msra.mxu0 %v531
    %3805 = vmatprep.subr.mxu0 %v536
    %3806 = vmatpush1.msra.mxu0 %v535
    %3807 = vmatprep.subr.mxu0 %v540
    %3808 = vmatpush1.msra.mxu0 %v539
    %3809 = vmatprep.subr.mxu0 %v544
    %3810 = vmatpush1.msra.mxu0 %v543
    %3811 = vmatprep.subr.mxu0 %v548
    %3812 = vmatpush1.msra.mxu0 %v547
    %3813 = vmatprep.subr.mxu0 0.0
    %3814 = vmatpush1.msra.mxu0 0.0
    %3815 = vmatprep.subr.mxu0 0.0
    %3816 = vmatpush1.msra.mxu0 0.0
    %3817 = vmatprep.subr.mxu0 0.0
    %3818 = vmatpush1.msra.mxu0 0.0
    %3819 = vmatprep.subr.mxu0 0.0
    %3820 = vmatpush1.msra.mxu0 0.0
    %3821 = vmatprep.subr.mxu0 0.0
    %3822 = vmatpush1.msra.mxu0 0.0
    %3823 = vmatprep.subr.mxu0 0.0
    %3824 = vmatpush1.msra.mxu0 0.0
    %3825 = vmatprep.subr.mxu0 0.0
    %3826 = vmatpush1.msra.mxu0 0.0
    %3827 = vmatprep.subr.mxu0 0.0
    %3828 = vmatpush1.msra.mxu0 0.0
    %3829 = vmatprep.subr.mxu0 0.0
    %3830 = vmatpush1.msra.mxu0 0.0
    %3831 = vmatprep.subr.mxu0 0.0
    %3832 = vmatpush1.msra.mxu0 0.0
    %3833 = vmatprep.subr.mxu0 0.0
    %3834 = vmatpush1.msra.mxu0 0.0
    %3835 = vmatprep.subr.mxu0 0.0
    %3836 = vmatpush1.msra.mxu0 0.0
    %3837 = vmatprep.subr.mxu0 0.0
    %3838 = vmatpush1.msra.mxu0 0.0
    %3839 = vmatprep.subr.mxu0 0.0
    %3840 = vmatpush1.msra.mxu0 0.0
    %3841 = vmatprep.subr.mxu0 0.0
    %3842 = vmatpush1.msra.mxu0 0.0
    %3843 = vmatprep.subr.mxu0 0.0
    %3844 = vmatpush1.msra.mxu0 0.0
    %3845 = vmatprep.mubr.f32.mxu0 0.0
    %3846 = vmatmul.mubr.f32.gmra.mrb[0].mxu0 %v3629
    %v3847 = vpop.f32.mrb[0].mxu0
    %v3848 = vadd.f32 %v3706, %v3847
    %v3849 = vpop.f32.mrb[0].mxu0
    %v3850 = vadd.f32 %v3708, %v3849
    %3851 = vdwg.mxu0
    %3852 = vmatprep.subr.mxu0 %v490
    %3853 = vmatpush1.msra.mxu0 %v489
    %3854 = vmatprep.subr.mxu0 %v494
    %3855 = vmatpush1.msra.mxu0 %v493
    %3856 = vmatprep.subr.mxu0 %v498
    %3857 = vmatpush1.msra.mxu0 %v497
    %3858 = vmatprep.subr.mxu0 %v502
    %3859 = vmatpush1.msra.mxu0 %v501
    %3860 = vmatprep.subr.mxu0 %v506
    %3861 = vmatpush1.msra.mxu0 %v505
    %3862 = vmatprep.subr.mxu0 %v510
    %3863 = vmatpush1.msra.mxu0 %v509
    %3864 = vmatprep.subr.mxu0 %v514
    %3865 = vmatpush1.msra.mxu0 %v513
    %3866 = vmatprep.subr.mxu0 %v518
    %3867 = vmatpush1.msra.mxu0 %v517
    %3868 = vmatprep.subr.mxu0 %v522
    %3869 = vmatpush1.msra.mxu0 %v521
    %3870 = vmatprep.subr.mxu0 %v526
    %3871 = vmatpush1.msra.mxu0 %v525
    %3872 = vmatprep.subr.mxu0 %v530
    %3873 = vmatpush1.msra.mxu0 %v529
    %3874 = vmatprep.subr.mxu0 %v534
    %3875 = vmatpush1.msra.mxu0 %v533
    %3876 = vmatprep.subr.mxu0 %v538
    %3877 = vmatpush1.msra.mxu0 %v537
    %3878 = vmatprep.subr.mxu0 %v542
    %3879 = vmatpush1.msra.mxu0 %v541
    %3880 = vmatprep.subr.mxu0 %v546
    %3881 = vmatpush1.msra.mxu0 %v545
    %3882 = vmatprep.subr.mxu0 %v550
    %3883 = vmatpush1.msra.mxu0 %v549
    %3884 = vmatprep.subr.mxu0 0.0
    %3885 = vmatpush1.msra.mxu0 0.0
    %3886 = vmatprep.subr.mxu0 0.0
    %3887 = vmatpush1.msra.mxu0 0.0
    %3888 = vmatprep.subr.mxu0 0.0
    %3889 = vmatpush1.msra.mxu0 0.0
    %3890 = vmatprep.subr.mxu0 0.0
    %3891 = vmatpush1.msra.mxu0 0.0
    %3892 = vmatprep.subr.mxu0 0.0
    %3893 = vmatpush1.msra.mxu0 0.0
    %3894 = vmatprep.subr.mxu0 0.0
    %3895 = vmatpush1.msra.mxu0 0.0
    %3896 = vmatprep.subr.mxu0 0.0
    %3897 = vmatpush1.msra.mxu0 0.0
    %3898 = vmatprep.subr.mxu0 0.0
    %3899 = vmatpush1.msra.mxu0 0.0
    %3900 = vmatprep.subr.mxu0 0.0
    %3901 = vmatpush1.msra.mxu0 0.0
    %3902 = vmatprep.subr.mxu0 0.0
    %3903 = vmatpush1.msra.mxu0 0.0
    %3904 = vmatprep.subr.mxu0 0.0
    %3905 = vmatpush1.msra.mxu0 0.0
    %3906 = vmatprep.subr.mxu0 0.0
    %3907 = vmatpush1.msra.mxu0 0.0
    %3908 = vmatprep.subr.mxu0 0.0
    %3909 = vmatpush1.msra.mxu0 0.0
    %3910 = vmatprep.subr.mxu0 0.0
    %3911 = vmatpush1.msra.mxu0 0.0
    %3912 = vmatprep.subr.mxu0 0.0
    %3913 = vmatpush1.msra.mxu0 0.0
    %3914 = vmatprep.subr.mxu0 0.0
    %3915 = vmatpush1.msra.mxu0 0.0
    %3916 = vmatprep.mubr.f32.mxu0 0.0
    %3917 = vmatmul.mubr.f32.gmra.mrb[0].mxu0 %v3629
    %v3918 = vpop.f32.mrb[0].mxu0
    %v3919 = vadd.f32 %v3777, %v3918
    %v3920 = vpop.f32.mrb[0].mxu0
    %v3921 = vadd.f32 %v3779, %v3920
    %3922 = vdwg.mxu0
    %v3923 = vadd.f32 %v3848, %v909
    %v3924 = vadd.f32 %v3850, %v913
    %v3925 = vadd.f32 %v3919, %v917
    %v3926 = vadd.f32 %v3921, %v921
    %v3927 = vmul.f32 %v3923, 0.5
    %v3928 = vtanh.pop %v3927
    %v3929 = vmul.f32 %v3928, 0.5
    %v3930 = vadd.f32 %v3929, 0.5
    %v3931 = vmul.f32 %v3924, 0.5
    %v3932 = vtanh.pop %v3931
    %v3933 = vmul.f32 %v3932, 0.5
    %v3934 = vadd.f32 %v3933, 0.5
    %v3935 = vtanh.pop %v3925
    %v3936 = vmul.f32 %v3926, 0.5
    %v3937 = vtanh.pop %v3936
    %v3938 = vmul.f32 %v3937, 0.5
    %v3939 = vadd.f32 %v3938, 0.5
    %v3940 = vmul.f32 %v3934, %v3637
    %v3941 = vmul.f32 %v3930, %v3935
    %v3942 = vadd.f32 %v3940, %v3941
    %v3943 = vtanh.pop %v3942
    %v3944 = vmul.f32 %v3939, %v3943
    %p3945 = scmp.ge.s32.totalorder %s3638, 1
    %s3946 = scalar_select %p3945, 1, 0
    %v3947 = vstv %s3946
    %vm3948 = vcmp.eq.s32.totalorder %v3947, 1
    %vm3949 = vmand %vm3948, %vm3623
    %s3950 = smul.u32 6, 4
    %s3951 = smul.addr %s3950, 8
    %s3952 = scalar_lea.vmem [#allocation2], %s3951
    %v3953 = vld [vmem:[%s3952] sm:$0xff]
    %v3954 = vld [vmem:[%s3952 + $0x8] sm:$0xff]
    %v3955 = vld [vmem:[%s3952 + $0x10] sm:$0xff]
    %v3956 = vld [vmem:[%s3952 + $0x18] sm:$0xff]
    %3957 = vmatprep.subr.mxu0 %v424
    %3958 = vmatpush1.msra.mxu0 %v423
    %3959 = vmatprep.subr.mxu0 %v428
    %3960 = vmatpush1.msra.mxu0 %v427
    %3961 = vmatprep.subr.mxu0 %v432
    %3962 = vmatpush1.msra.mxu0 %v431
    %3963 = vmatprep.subr.mxu0 %v436
    %3964 = vmatpush1.msra.mxu0 %v435
    %3965 = vmatprep.subr.mxu0 %v440
    %3966 = vmatpush1.msra.mxu0 %v439
    %3967 = vmatprep.subr.mxu0 %v444
    %3968 = vmatpush1.msra.mxu0 %v443
    %3969 = vmatprep.subr.mxu0 %v448
    %3970 = vmatpush1.msra.mxu0 %v447
    %3971 = vmatprep.subr.mxu0 %v452
    %3972 = vmatpush1.msra.mxu0 %v451
    %3973 = vmatprep.subr.mxu0 %v456
    %3974 = vmatpush1.msra.mxu0 %v455
    %3975 = vmatprep.subr.mxu0 %v460
    %3976 = vmatpush1.msra.mxu0 %v459
    %3977 = vmatprep.subr.mxu0 %v464
    %3978 = vmatpush1.msra.mxu0 %v463
    %3979 = vmatprep.subr.mxu0 %v468
    %3980 = vmatpush1.msra.mxu0 %v467
    %3981 = vmatprep.subr.mxu0 %v472
    %3982 = vmatpush1.msra.mxu0 %v471
    %3983 = vmatprep.subr.mxu0 %v476
    %3984 = vmatpush1.msra.mxu0 %v475
    %3985 = vmatprep.subr.mxu0 %v480
    %3986 = vmatpush1.msra.mxu0 %v479
    %3987 = vmatprep.subr.mxu0 %v484
    %3988 = vmatpush1.msra.mxu0 %v483
    %3989 = vmatprep.subr.mxu0 0.0
    %3990 = vmatpush1.msra.mxu0 0.0
    %3991 = vmatprep.subr.mxu0 0.0
    %3992 = vmatpush1.msra.mxu0 0.0
    %3993 = vmatprep.subr.mxu0 0.0
    %3994 = vmatpush1.msra.mxu0 0.0
    %3995 = vmatprep.subr.mxu0 0.0
    %3996 = vmatpush1.msra.mxu0 0.0
    %3997 = vmatprep.subr.mxu0 0.0
    %3998 = vmatpush1.msra.mxu0 0.0
    %3999 = vmatprep.subr.mxu0 0.0
    %4000 = vmatpush1.msra.mxu0 0.0
    %4001 = vmatprep.subr.mxu0 0.0
    %4002 = vmatpush1.msra.mxu0 0.0
    %4003 = vmatprep.subr.mxu0 0.0
    %4004 = vmatpush1.msra.mxu0 0.0
    %4005 = vmatprep.subr.mxu0 0.0
    %4006 = vmatpush1.msra.mxu0 0.0
    %4007 = vmatprep.subr.mxu0 0.0
    %4008 = vmatpush1.msra.mxu0 0.0
    %4009 = vmatprep.subr.mxu0 0.0
    %4010 = vmatpush1.msra.mxu0 0.0
    %4011 = vmatprep.subr.mxu0 0.0
    %4012 = vmatpush1.msra.mxu0 0.0
    %4013 = vmatprep.subr.mxu0 0.0
    %4014 = vmatpush1.msra.mxu0 0.0
    %4015 = vmatprep.subr.mxu0 0.0
    %4016 = vmatpush1.msra.mxu0 0.0
    %4017 = vmatprep.subr.mxu0 0.0
    %4018 = vmatpush1.msra.mxu0 0.0
    %4019 = vmatprep.subr.mxu0 0.0
    %4020 = vmatpush1.msra.mxu0 0.0
    %4021 = vmatprep.mubr.f32.mxu0 0.0
    %4022 = vmatmul.mubr.f32.gmra.mrb[0].mxu0 %v3629
    %v4023 = vpop.f32.mrb[0].mxu0
    %v4024 = vadd.f32 0.0, %v4023
    %v4025 = vpop.f32.mrb[0].mxu0
    %v4026 = vadd.f32 0.0, %v4025
    %4027 = vdwg.mxu0
    %4028 = vmatprep.subr.mxu0 %v426
    %4029 = vmatpush1.msra.mxu0 %v425
    %4030 = vmatprep.subr.mxu0 %v430
    %4031 = vmatpush1.msra.mxu0 %v429
    %4032 = vmatprep.subr.mxu0 %v434
    %4033 = vmatpush1.msra.mxu0 %v433
    %4034 = vmatprep.subr.mxu0 %v438
    %4035 = vmatpush1.msra.mxu0 %v437
    %4036 = vmatprep.subr.mxu0 %v442
    %4037 = vmatpush1.msra.mxu0 %v441
    %4038 = vmatprep.subr.mxu0 %v446
    %4039 = vmatpush1.msra.mxu0 %v445
    %4040 = vmatprep.subr.mxu0 %v450
    %4041 = vmatpush1.msra.mxu0 %v449
    %4042 = vmatprep.subr.mxu0 %v454
    %4043 = vmatpush1.msra.mxu0 %v453
    %4044 = vmatprep.subr.mxu0 %v458
    %4045 = vmatpush1.msra.mxu0 %v457
    %4046 = vmatprep.subr.mxu0 %v462
    %4047 = vmatpush1.msra.mxu0 %v461
    %4048 = vmatprep.subr.mxu0 %v466
    %4049 = vmatpush1.msra.mxu0 %v465
    %4050 = vmatprep.subr.mxu0 %v470
    %4051 = vmatpush1.msra.mxu0 %v469
    %4052 = vmatprep.subr.mxu0 %v474
    %4053 = vmatpush1.msra.mxu0 %v473
    %4054 = vmatprep.subr.mxu0 %v478
    %4055 = vmatpush1.msra.mxu0 %v477
    %4056 = vmatprep.subr.mxu0 %v482
    %4057 = vmatpush1.msra.mxu0 %v481
    %4058 = vmatprep.subr.mxu0 %v486
    %4059 = vmatpush1.msra.mxu0 %v485
    %4060 = vmatprep.subr.mxu0 0.0
    %4061 = vmatpush1.msra.mxu0 0.0
    %4062 = vmatprep.subr.mxu0 0.0
    %4063 = vmatpush1.msra.mxu0 0.0
    %4064 = vmatprep.subr.mxu0 0.0
    %4065 = vmatpush1.msra.mxu0 0.0
    %4066 = vmatprep.subr.mxu0 0.0
    %4067 = vmatpush1.msra.mxu0 0.0
    %4068 = vmatprep.subr.mxu0 0.0
    %4069 = vmatpush1.msra.mxu0 0.0
    %4070 = vmatprep.subr.mxu0 0.0
    %4071 = vmatpush1.msra.mxu0 0.0
    %4072 = vmatprep.subr.mxu0 0.0
    %4073 = vmatpush1.msra.mxu0 0.0
    %4074 = vmatprep.subr.mxu0 0.0
    %4075 = vmatpush1.msra.mxu0 0.0
    %4076 = vmatprep.subr.mxu0 0.0
    %4077 = vmatpush1.msra.mxu0 0.0
    %4078 = vmatprep.subr.mxu0 0.0
    %4079 = vmatpush1.msra.mxu0 0.0
    %4080 = vmatprep.subr.mxu0 0.0
    %4081 = vmatpush1.msra.mxu0 0.0
    %4082 = vmatprep.subr.mxu0 0.0
    %4083 = vmatpush1.msra.mxu0 0.0
    %4084 = vmatprep.subr.mxu0 0.0
    %4085 = vmatpush1.msra.mxu0 0.0
    %4086 = vmatprep.subr.mxu0 0.0
    %4087 = vmatpush1.msra.mxu0 0.0
    %4088 = vmatprep.subr.mxu0 0.0
    %4089 = vmatpush1.msra.mxu0 0.0
    %4090 = vmatprep.subr.mxu0 0.0
    %4091 = vmatpush1.msra.mxu0 0.0
    %4092 = vmatprep.mubr.f32.mxu0 0.0
    %4093 = vmatmul.mubr.f32.gmra.mrb[0].mxu0 %v3629
    %v4094 = vpop.f32.mrb[0].mxu0
    %v4095 = vadd.f32 0.0, %v4094
    %v4096 = vpop.f32.mrb[0].mxu0
    %v4097 = vadd.f32 0.0, %v4096
    %4098 = vdwg.mxu0
    %v4099 = vadd.f32 %v3953, %v4024
    %v4100 = vadd.f32 %v3954, %v4026
    %v4101 = vadd.f32 %v3955, %v4095
    %v4102 = vadd.f32 %v3956, %v4097
    %v4103 = vmul.f32 %v4099, 0.5
    %v4104 = vtanh.pop %v4103
    %v4105 = vmul.f32 %v4104, 0.5
    %v4106 = vadd.f32 %v4105, 0.5
    %v4107 = vmul.f32 %v4100, 0.5
    %v4108 = vtanh.pop %v4107
    %v4109 = vmul.f32 %v4108, 0.5
    %v4110 = vadd.f32 %v4109, 0.5
    %v4111 = vtanh.pop %v4101
    %v4112 = vmul.f32 %v4102, 0.5
    %v4113 = vtanh.pop %v4112
    %v4114 = vmul.f32 %v4113, 0.5
    %v4115 = vadd.f32 %v4114, 0.5
    %v4116 = vmul.f32 %v4110, %v3630
    %v4117 = vmul.f32 %v4106, %v4111
    %v4118 = vadd.f32 %v4116, %v4117
    %v4119 = vtanh.pop %v4118
    %v4120 = vmul.f32 %v4115, %v4119
    %v4121 = vstv %s3638
    %vm4122 = vcmp.lt.s32.totalorder %v4121, %v422
    %v4123 = vsel %vm4122, 1, 0
    %4124 = vset.pattern.permute.xlu0 0
    %4125 = vperm.xlu0 %4124, %v4123
    %v4126 = vpop.permute.xlu0 %4125
    %vm4127 = vcmp.eq.s32.totalorder %v4126, 1
    %v4128 = vsel %vm4127, %v4120, %v3629
    %v4129 = vsel %vm4127, %v4118, %v3630
    %v4130 = vsel %vm3949, 1, 0
    %4131 = vset.pattern.permute.xlu0 0
    %4132 = vperm.xlu0 %4131, %v4130
    %v4133 = vpop.permute.xlu0 %4132
    %vm4134 = vcmp.eq.s32.totalorder %v4133, 1
    %v4135 = vsel %vm4134, %v3944, %v3636
    %v4136 = vsel %vm4134, %v3942, %v3637
    %s4137 = sadd.s32 %s616, 7
    %4138 = vmatprep.subr.mxu0 %v552
    %4139 = vmatpush1.msra.mxu0 %v551
    %4140 = vmatprep.subr.mxu0 %v556
    %4141 = vmatpush1.msra.mxu0 %v555
    %4142 = vmatprep.subr.mxu0 %v560
    %4143 = vmatpush1.msra.mxu0 %v559
    %4144 = vmatprep.subr.mxu0 %v564
    %4145 = vmatpush1.msra.mxu0 %v563
    %4146 = vmatprep.subr.mxu0 %v568
    %4147 = vmatpush1.msra.mxu0 %v567
    %4148 = vmatprep.subr.mxu0 %v572
    %4149 = vmatpush1.msra.mxu0 %v571
    %4150 = vmatprep.subr.mxu0 %v576
    %4151 = vmatpush1.msra.mxu0 %v575
    %4152 = vmatprep.subr.mxu0 %v580
    %4153 = vmatpush1.msra.mxu0 %v579
    %4154 = vmatprep.subr.mxu0 %v584
    %4155 = vmatpush1.msra.mxu0 %v583
    %4156 = vmatprep.subr.mxu0 %v588
    %4157 = vmatpush1.msra.mxu0 %v587
    %4158 = vmatprep.subr.mxu0 %v592
    %4159 = vmatpush1.msra.mxu0 %v591
    %4160 = vmatprep.subr.mxu0 %v596
    %4161 = vmatpush1.msra.mxu0 %v595
    %4162 = vmatprep.subr.mxu0 %v600
    %4163 = vmatpush1.msra.mxu0 %v599
    %4164 = vmatprep.subr.mxu0 %v604
    %4165 = vmatpush1.msra.mxu0 %v603
    %4166 = vmatprep.subr.mxu0 %v608
    %4167 = vmatpush1.msra.mxu0 %v607
    %4168 = vmatprep.subr.mxu0 %v612
    %4169 = vmatpush1.msra.mxu0 %v611
    %4170 = vmatprep.subr.mxu0 0.0
    %4171 = vmatpush1.msra.mxu0 0.0
    %4172 = vmatprep.subr.mxu0 0.0
    %4173 = vmatpush1.msra.mxu0 0.0
    %4174 = vmatprep.subr.mxu0 0.0
    %4175 = vmatpush1.msra.mxu0 0.0
    %4176 = vmatprep.subr.mxu0 0.0
    %4177 = vmatpush1.msra.mxu0 0.0
    %4178 = vmatprep.subr.mxu0 0.0
    %4179 = vmatpush1.msra.mxu0 0.0
    %4180 = vmatprep.subr.mxu0 0.0
    %4181 = vmatpush1.msra.mxu0 0.0
    %4182 = vmatprep.subr.mxu0 0.0
    %4183 = vmatpush1.msra.mxu0 0.0
    %4184 = vmatprep.subr.mxu0 0.0
    %4185 = vmatpush1.msra.mxu0 0.0
    %4186 = vmatprep.subr.mxu0 0.0
    %4187 = vmatpush1.msra.mxu0 0.0
    %4188 = vmatprep.subr.mxu0 0.0
    %4189 = vmatpush1.msra.mxu0 0.0
    %4190 = vmatprep.subr.mxu0 0.0
    %4191 = vmatpush1.msra.mxu0 0.0
    %4192 = vmatprep.subr.mxu0 0.0
    %4193 = vmatpush1.msra.mxu0 0.0
    %4194 = vmatprep.subr.mxu0 0.0
    %4195 = vmatpush1.msra.mxu0 0.0
    %4196 = vmatprep.subr.mxu0 0.0
    %4197 = vmatpush1.msra.mxu0 0.0
    %4198 = vmatprep.subr.mxu0 0.0
    %4199 = vmatpush1.msra.mxu0 0.0
    %4200 = vmatprep.subr.mxu0 0.0
    %4201 = vmatpush1.msra.mxu0 0.0
    %4202 = vmatprep.mubr.f32.mxu0 0.0
    %4203 = vmatmul.mubr.f32.gmra.mrb[0].mxu0 %v4135
    %v4204 = vpop.f32.mrb[0].mxu0
    %v4205 = vadd.f32 0.0, %v4204
    %v4206 = vpop.f32.mrb[0].mxu0
    %v4207 = vadd.f32 0.0, %v4206
    %4208 = vdwg.mxu0
    %4209 = vmatprep.subr.mxu0 %v554
    %4210 = vmatpush1.msra.mxu0 %v553
    %4211 = vmatprep.subr.mxu0 %v558
    %4212 = vmatpush1.msra.mxu0 %v557
    %4213 = vmatprep.subr.mxu0 %v562
    %4214 = vmatpush1.msra.mxu0 %v561
    %4215 = vmatprep.subr.mxu0 %v566
    %4216 = vmatpush1.msra.mxu0 %v565
    %4217 = vmatprep.subr.mxu0 %v570
    %4218 = vmatpush1.msra.mxu0 %v569
    %4219 = vmatprep.subr.mxu0 %v574
    %4220 = vmatpush1.msra.mxu0 %v573
    %4221 = vmatprep.subr.mxu0 %v578
    %4222 = vmatpush1.msra.mxu0 %v577
    %4223 = vmatprep.subr.mxu0 %v582
    %4224 = vmatpush1.msra.mxu0 %v581
    %4225 = vmatprep.subr.mxu0 %v586
    %4226 = vmatpush1.msra.mxu0 %v585
    %4227 = vmatprep.subr.mxu0 %v590
    %4228 = vmatpush1.msra.mxu0 %v589
    %4229 = vmatprep.subr.mxu0 %v594
    %4230 = vmatpush1.msra.mxu0 %v593
    %4231 = vmatprep.subr.mxu0 %v598
    %4232 = vmatpush1.msra.mxu0 %v597
    %4233 = vmatprep.subr.mxu0 %v602
    %4234 = vmatpush1.msra.mxu0 %v601
    %4235 = vmatprep.subr.mxu0 %v606
    %4236 = vmatpush1.msra.mxu0 %v605
    %4237 = vmatprep.subr.mxu0 %v610
    %4238 = vmatpush1.msra.mxu0 %v609
    %4239 = vmatprep.subr.mxu0 %v614
    %4240 = vmatpush1.msra.mxu0 %v613
    %4241 = vmatprep.subr.mxu0 0.0
    %4242 = vmatpush1.msra.mxu0 0.0
    %4243 = vmatprep.subr.mxu0 0.0
    %4244 = vmatpush1.msra.mxu0 0.0
    %4245 = vmatprep.subr.mxu0 0.0
    %4246 = vmatpush1.msra.mxu0 0.0
    %4247 = vmatprep.subr.mxu0 0.0
    %4248 = vmatpush1.msra.mxu0 0.0
    %4249 = vmatprep.subr.mxu0 0.0
    %4250 = vmatpush1.msra.mxu0 0.0
    %4251 = vmatprep.subr.mxu0 0.0
    %4252 = vmatpush1.msra.mxu0 0.0
    %4253 = vmatprep.subr.mxu0 0.0
    %4254 = vmatpush1.msra.mxu0 0.0
    %4255 = vmatprep.subr.mxu0 0.0
    %4256 = vmatpush1.msra.mxu0 0.0
    %4257 = vmatprep.subr.mxu0 0.0
    %4258 = vmatpush1.msra.mxu0 0.0
    %4259 = vmatprep.subr.mxu0 0.0
    %4260 = vmatpush1.msra.mxu0 0.0
    %4261 = vmatprep.subr.mxu0 0.0
    %4262 = vmatpush1.msra.mxu0 0.0
    %4263 = vmatprep.subr.mxu0 0.0
    %4264 = vmatpush1.msra.mxu0 0.0
    %4265 = vmatprep.subr.mxu0 0.0
    %4266 = vmatpush1.msra.mxu0 0.0
    %4267 = vmatprep.subr.mxu0 0.0
    %4268 = vmatpush1.msra.mxu0 0.0
    %4269 = vmatprep.subr.mxu0 0.0
    %4270 = vmatpush1.msra.mxu0 0.0
    %4271 = vmatprep.subr.mxu0 0.0
    %4272 = vmatpush1.msra.mxu0 0.0
    %4273 = vmatprep.mubr.f32.mxu0 0.0
    %4274 = vmatmul.mubr.f32.gmra.mrb[0].mxu0 %v4135
    %v4275 = vpop.f32.mrb[0].mxu0
    %v4276 = vadd.f32 0.0, %v4275
    %v4277 = vpop.f32.mrb[0].mxu0
    %v4278 = vadd.f32 0.0, %v4277
    %4279 = vdwg.mxu0
    %4280 = vmatprep.subr.mxu0 %v488
    %4281 = vmatpush1.msra.mxu0 %v487
    %4282 = vmatprep.subr.mxu0 %v492
    %4283 = vmatpush1.msra.mxu0 %v491
    %4284 = vmatprep.subr.mxu0 %v496
    %4285 = vmatpush1.msra.mxu0 %v495
    %4286 = vmatprep.subr.mxu0 %v500
    %4287 = vmatpush1.msra.mxu0 %v499
    %4288 = vmatprep.subr.mxu0 %v504
    %4289 = vmatpush1.msra.mxu0 %v503
    %4290 = vmatprep.subr.mxu0 %v508
    %4291 = vmatpush1.msra.mxu0 %v507
    %4292 = vmatprep.subr.mxu0 %v512
    %4293 = vmatpush1.msra.mxu0 %v511
    %4294 = vmatprep.subr.mxu0 %v516
    %4295 = vmatpush1.msra.mxu0 %v515
    %4296 = vmatprep.subr.mxu0 %v520
    %4297 = vmatpush1.msra.mxu0 %v519
    %4298 = vmatprep.subr.mxu0 %v524
    %4299 = vmatpush1.msra.mxu0 %v523
    %4300 = vmatprep.subr.mxu0 %v528
    %4301 = vmatpush1.msra.mxu0 %v527
    %4302 = vmatprep.subr.mxu0 %v532
    %4303 = vmatpush1.msra.mxu0 %v531
    %4304 = vmatprep.subr.mxu0 %v536
    %4305 = vmatpush1.msra.mxu0 %v535
    %4306 = vmatprep.subr.mxu0 %v540
    %4307 = vmatpush1.msra.mxu0 %v539
    %4308 = vmatprep.subr.mxu0 %v544
    %4309 = vmatpush1.msra.mxu0 %v543
    %4310 = vmatprep.subr.mxu0 %v548
    %4311 = vmatpush1.msra.mxu0 %v547
    %4312 = vmatprep.subr.mxu0 0.0
    %4313 = vmatpush1.msra.mxu0 0.0
    %4314 = vmatprep.subr.mxu0 0.0
    %4315 = vmatpush1.msra.mxu0 0.0
    %4316 = vmatprep.subr.mxu0 0.0
    %4317 = vmatpush1.msra.mxu0 0.0
    %4318 = vmatprep.subr.mxu0 0.0
    %4319 = vmatpush1.msra.mxu0 0.0
    %4320 = vmatprep.subr.mxu0 0.0
    %4321 = vmatpush1.msra.mxu0 0.0
    %4322 = vmatprep.subr.mxu0 0.0
    %4323 = vmatpush1.msra.mxu0 0.0
    %4324 = vmatprep.subr.mxu0 0.0
    %4325 = vmatpush1.msra.mxu0 0.0
    %4326 = vmatprep.subr.mxu0 0.0
    %4327 = vmatpush1.msra.mxu0 0.0
    %4328 = vmatprep.subr.mxu0 0.0
    %4329 = vmatpush1.msra.mxu0 0.0
    %4330 = vmatprep.subr.mxu0 0.0
    %4331 = vmatpush1.msra.mxu0 0.0
    %4332 = vmatprep.subr.mxu0 0.0
    %4333 = vmatpush1.msra.mxu0 0.0
    %4334 = vmatprep.subr.mxu0 0.0
    %4335 = vmatpush1.msra.mxu0 0.0
    %4336 = vmatprep.subr.mxu0 0.0
    %4337 = vmatpush1.msra.mxu0 0.0
    %4338 = vmatprep.subr.mxu0 0.0
    %4339 = vmatpush1.msra.mxu0 0.0
    %4340 = vmatprep.subr.mxu0 0.0
    %4341 = vmatpush1.msra.mxu0 0.0
    %4342 = vmatprep.subr.mxu0 0.0
    %4343 = vmatpush1.msra.mxu0 0.0
    %4344 = vmatprep.mubr.f32.mxu0 0.0
    %4345 = vmatmul.mubr.f32.gmra.mrb[0].mxu0 %v4128
    %v4346 = vpop.f32.mrb[0].mxu0
    %v4347 = vadd.f32 %v4205, %v4346
    %v4348 = vpop.f32.mrb[0].mxu0
    %v4349 = vadd.f32 %v4207, %v4348
    %4350 = vdwg.mxu0
    %4351 = vmatprep.subr.mxu0 %v490
    %4352 = vmatpush1.msra.mxu0 %v489
    %4353 = vmatprep.subr.mxu0 %v494
    %4354 = vmatpush1.msra.mxu0 %v493
    %4355 = vmatprep.subr.mxu0 %v498
    %4356 = vmatpush1.msra.mxu0 %v497
    %4357 = vmatprep.subr.mxu0 %v502
    %4358 = vmatpush1.msra.mxu0 %v501
    %4359 = vmatprep.subr.mxu0 %v506
    %4360 = vmatpush1.msra.mxu0 %v505
    %4361 = vmatprep.subr.mxu0 %v510
    %4362 = vmatpush1.msra.mxu0 %v509
    %4363 = vmatprep.subr.mxu0 %v514
    %4364 = vmatpush1.msra.mxu0 %v513
    %4365 = vmatprep.subr.mxu0 %v518
    %4366 = vmatpush1.msra.mxu0 %v517
    %4367 = vmatprep.subr.mxu0 %v522
    %4368 = vmatpush1.msra.mxu0 %v521
    %4369 = vmatprep.subr.mxu0 %v526
    %4370 = vmatpush1.msra.mxu0 %v525
    %4371 = vmatprep.subr.mxu0 %v530
    %4372 = vmatpush1.msra.mxu0 %v529
    %4373 = vmatprep.subr.mxu0 %v534
    %4374 = vmatpush1.msra.mxu0 %v533
    %4375 = vmatprep.subr.mxu0 %v538
    %4376 = vmatpush1.msra.mxu0 %v537
    %4377 = vmatprep.subr.mxu0 %v542
    %4378 = vmatpush1.msra.mxu0 %v541
    %4379 = vmatprep.subr.mxu0 %v546
    %4380 = vmatpush1.msra.mxu0 %v545
    %4381 = vmatprep.subr.mxu0 %v550
    %4382 = vmatpush1.msra.mxu0 %v549
    %4383 = vmatprep.subr.mxu0 0.0
    %4384 = vmatpush1.msra.mxu0 0.0
    %4385 = vmatprep.subr.mxu0 0.0
    %4386 = vmatpush1.msra.mxu0 0.0
    %4387 = vmatprep.subr.mxu0 0.0
    %4388 = vmatpush1.msra.mxu0 0.0
    %4389 = vmatprep.subr.mxu0 0.0
    %4390 = vmatpush1.msra.mxu0 0.0
    %4391 = vmatprep.subr.mxu0 0.0
    %4392 = vmatpush1.msra.mxu0 0.0
    %4393 = vmatprep.subr.mxu0 0.0
    %4394 = vmatpush1.msra.mxu0 0.0
    %4395 = vmatprep.subr.mxu0 0.0
    %4396 = vmatpush1.msra.mxu0 0.0
    %4397 = vmatprep.subr.mxu0 0.0
    %4398 = vmatpush1.msra.mxu0 0.0
    %4399 = vmatprep.subr.mxu0 0.0
    %4400 = vmatpush1.msra.mxu0 0.0
    %4401 = vmatprep.subr.mxu0 0.0
    %4402 = vmatpush1.msra.mxu0 0.0
    %4403 = vmatprep.subr.mxu0 0.0
    %4404 = vmatpush1.msra.mxu0 0.0
    %4405 = vmatprep.subr.mxu0 0.0
    %4406 = vmatpush1.msra.mxu0 0.0
    %4407 = vmatprep.subr.mxu0 0.0
    %4408 = vmatpush1.msra.mxu0 0.0
    %4409 = vmatprep.subr.mxu0 0.0
    %4410 = vmatpush1.msra.mxu0 0.0
    %4411 = vmatprep.subr.mxu0 0.0
    %4412 = vmatpush1.msra.mxu0 0.0
    %4413 = vmatprep.subr.mxu0 0.0
    %4414 = vmatpush1.msra.mxu0 0.0
    %4415 = vmatprep.mubr.f32.mxu0 0.0
    %4416 = vmatmul.mubr.f32.gmra.mrb[0].mxu0 %v4128
    %v4417 = vpop.f32.mrb[0].mxu0
    %v4418 = vadd.f32 %v4276, %v4417
    %v4419 = vpop.f32.mrb[0].mxu0
    %v4420 = vadd.f32 %v4278, %v4419
    %4421 = vdwg.mxu0
    %v4422 = vadd.f32 %v4347, %v909
    %v4423 = vadd.f32 %v4349, %v913
    %v4424 = vadd.f32 %v4418, %v917
    %v4425 = vadd.f32 %v4420, %v921
    %v4426 = vmul.f32 %v4422, 0.5
    %v4427 = vtanh.pop %v4426
    %v4428 = vmul.f32 %v4427, 0.5
    %v4429 = vadd.f32 %v4428, 0.5
    %v4430 = vmul.f32 %v4423, 0.5
    %v4431 = vtanh.pop %v4430
    %v4432 = vmul.f32 %v4431, 0.5
    %v4433 = vadd.f32 %v4432, 0.5
    %v4434 = vtanh.pop %v4424
    %v4435 = vmul.f32 %v4425, 0.5
    %v4436 = vtanh.pop %v4435
    %v4437 = vmul.f32 %v4436, 0.5
    %v4438 = vadd.f32 %v4437, 0.5
    %v4439 = vmul.f32 %v4433, %v4136
    %v4440 = vmul.f32 %v4429, %v4434
    %v4441 = vadd.f32 %v4439, %v4440
    %v4442 = vtanh.pop %v4441
    %v4443 = vmul.f32 %v4438, %v4442
    %p4444 = scmp.ge.s32.totalorder %s4137, 1
    %s4445 = scalar_select %p4444, 1, 0
    %v4446 = vstv %s4445
    %vm4447 = vcmp.eq.s32.totalorder %v4446, 1
    %vm4448 = vmand %vm4447, %vm4122
    %s4449 = smul.u32 7, 4
    %s4450 = smul.addr %s4449, 8
    %s4451 = scalar_lea.vmem [#allocation2], %s4450
    %v4452 = vld [vmem:[%s4451] sm:$0xff]
    %v4453 = vld [vmem:[%s4451 + $0x8] sm:$0xff]
    %v4454 = vld [vmem:[%s4451 + $0x10] sm:$0xff]
    %v4455 = vld [vmem:[%s4451 + $0x18] sm:$0xff]
    %4456 = vmatprep.subr.mxu0 %v424
    %4457 = vmatpush1.msra.mxu0 %v423
    %4458 = vmatprep.subr.mxu0 %v428
    %4459 = vmatpush1.msra.mxu0 %v427
    %4460 = vmatprep.subr.mxu0 %v432
    %4461 = vmatpush1.msra.mxu0 %v431
    %4462 = vmatprep.subr.mxu0 %v436
    %4463 = vmatpush1.msra.mxu0 %v435
    %4464 = vmatprep.subr.mxu0 %v440
    %4465 = vmatpush1.msra.mxu0 %v439
    %4466 = vmatprep.subr.mxu0 %v444
    %4467 = vmatpush1.msra.mxu0 %v443
    %4468 = vmatprep.subr.mxu0 %v448
    %4469 = vmatpush1.msra.mxu0 %v447
    %4470 = vmatprep.subr.mxu0 %v452
    %4471 = vmatpush1.msra.mxu0 %v451
    %4472 = vmatprep.subr.mxu0 %v456
    %4473 = vmatpush1.msra.mxu0 %v455
    %4474 = vmatprep.subr.mxu0 %v460
    %4475 = vmatpush1.msra.mxu0 %v459
    %4476 = vmatprep.subr.mxu0 %v464
    %4477 = vmatpush1.msra.mxu0 %v463
    %4478 = vmatprep.subr.mxu0 %v468
    %4479 = vmatpush1.msra.mxu0 %v467
    %4480 = vmatprep.subr.mxu0 %v472
    %4481 = vmatpush1.msra.mxu0 %v471
    %4482 = vmatprep.subr.mxu0 %v476
    %4483 = vmatpush1.msra.mxu0 %v475
    %4484 = vmatprep.subr.mxu0 %v480
    %4485 = vmatpush1.msra.mxu0 %v479
    %4486 = vmatprep.subr.mxu0 %v484
    %4487 = vmatpush1.msra.mxu0 %v483
    %4488 = vmatprep.subr.mxu0 0.0
    %4489 = vmatpush1.msra.mxu0 0.0
    %4490 = vmatprep.subr.mxu0 0.0
    %4491 = vmatpush1.msra.mxu0 0.0
    %4492 = vmatprep.subr.mxu0 0.0
    %4493 = vmatpush1.msra.mxu0 0.0
    %4494 = vmatprep.subr.mxu0 0.0
    %4495 = vmatpush1.msra.mxu0 0.0
    %4496 = vmatprep.subr.mxu0 0.0
    %4497 = vmatpush1.msra.mxu0 0.0
    %4498 = vmatprep.subr.mxu0 0.0
    %4499 = vmatpush1.msra.mxu0 0.0
    %4500 = vmatprep.subr.mxu0 0.0
    %4501 = vmatpush1.msra.mxu0 0.0
    %4502 = vmatprep.subr.mxu0 0.0
    %4503 = vmatpush1.msra.mxu0 0.0
    %4504 = vmatprep.subr.mxu0 0.0
    %4505 = vmatpush1.msra.mxu0 0.0
    %4506 = vmatprep.subr.mxu0 0.0
    %4507 = vmatpush1.msra.mxu0 0.0
    %4508 = vmatprep.subr.mxu0 0.0
    %4509 = vmatpush1.msra.mxu0 0.0
    %4510 = vmatprep.subr.mxu0 0.0
    %4511 = vmatpush1.msra.mxu0 0.0
    %4512 = vmatprep.subr.mxu0 0.0
    %4513 = vmatpush1.msra.mxu0 0.0
    %4514 = vmatprep.subr.mxu0 0.0
    %4515 = vmatpush1.msra.mxu0 0.0
    %4516 = vmatprep.subr.mxu0 0.0
    %4517 = vmatpush1.msra.mxu0 0.0
    %4518 = vmatprep.subr.mxu0 0.0
    %4519 = vmatpush1.msra.mxu0 0.0
    %4520 = vmatprep.mubr.f32.mxu0 0.0
    %4521 = vmatmul.mubr.f32.gmra.mrb[0].mxu0 %v4128
    %v4522 = vpop.f32.mrb[0].mxu0
    %v4523 = vadd.f32 0.0, %v4522
    %v4524 = vpop.f32.mrb[0].mxu0
    %v4525 = vadd.f32 0.0, %v4524
    %4526 = vdwg.mxu0
    %4527 = vmatprep.subr.mxu0 %v426
    %4528 = vmatpush1.msra.mxu0 %v425
    %4529 = vmatprep.subr.mxu0 %v430
    %4530 = vmatpush1.msra.mxu0 %v429
    %4531 = vmatprep.subr.mxu0 %v434
    %4532 = vmatpush1.msra.mxu0 %v433
    %4533 = vmatprep.subr.mxu0 %v438
    %4534 = vmatpush1.msra.mxu0 %v437
    %4535 = vmatprep.subr.mxu0 %v442
    %4536 = vmatpush1.msra.mxu0 %v441
    %4537 = vmatprep.subr.mxu0 %v446
    %4538 = vmatpush1.msra.mxu0 %v445
    %4539 = vmatprep.subr.mxu0 %v450
    %4540 = vmatpush1.msra.mxu0 %v449
    %4541 = vmatprep.subr.mxu0 %v454
    %4542 = vmatpush1.msra.mxu0 %v453
    %4543 = vmatprep.subr.mxu0 %v458
    %4544 = vmatpush1.msra.mxu0 %v457
    %4545 = vmatprep.subr.mxu0 %v462
    %4546 = vmatpush1.msra.mxu0 %v461
    %4547 = vmatprep.subr.mxu0 %v466
    %4548 = vmatpush1.msra.mxu0 %v465
    %4549 = vmatprep.subr.mxu0 %v470
    %4550 = vmatpush1.msra.mxu0 %v469
    %4551 = vmatprep.subr.mxu0 %v474
    %4552 = vmatpush1.msra.mxu0 %v473
    %4553 = vmatprep.subr.mxu0 %v478
    %4554 = vmatpush1.msra.mxu0 %v477
    %4555 = vmatprep.subr.mxu0 %v482
    %4556 = vmatpush1.msra.mxu0 %v481
    %4557 = vmatprep.subr.mxu0 %v486
    %4558 = vmatpush1.msra.mxu0 %v485
    %4559 = vmatprep.subr.mxu0 0.0
    %4560 = vmatpush1.msra.mxu0 0.0
    %4561 = vmatprep.subr.mxu0 0.0
    %4562 = vmatpush1.msra.mxu0 0.0
    %4563 = vmatprep.subr.mxu0 0.0
    %4564 = vmatpush1.msra.mxu0 0.0
    %4565 = vmatprep.subr.mxu0 0.0
    %4566 = vmatpush1.msra.mxu0 0.0
    %4567 = vmatprep.subr.mxu0 0.0
    %4568 = vmatpush1.msra.mxu0 0.0
    %4569 = vmatprep.subr.mxu0 0.0
    %4570 = vmatpush1.msra.mxu0 0.0
    %4571 = vmatprep.subr.mxu0 0.0
    %4572 = vmatpush1.msra.mxu0 0.0
    %4573 = vmatprep.subr.mxu0 0.0
    %4574 = vmatpush1.msra.mxu0 0.0
    %4575 = vmatprep.subr.mxu0 0.0
    %4576 = vmatpush1.msra.mxu0 0.0
    %4577 = vmatprep.subr.mxu0 0.0
    %4578 = vmatpush1.msra.mxu0 0.0
    %4579 = vmatprep.subr.mxu0 0.0
    %4580 = vmatpush1.msra.mxu0 0.0
    %4581 = vmatprep.subr.mxu0 0.0
    %4582 = vmatpush1.msra.mxu0 0.0
    %4583 = vmatprep.subr.mxu0 0.0
    %4584 = vmatpush1.msra.mxu0 0.0
    %4585 = vmatprep.subr.mxu0 0.0
    %4586 = vmatpush1.msra.mxu0 0.0
    %4587 = vmatprep.subr.mxu0 0.0
    %4588 = vmatpush1.msra.mxu0 0.0
    %4589 = vmatprep.subr.mxu0 0.0
    %4590 = vmatpush1.msra.mxu0 0.0
    %4591 = vmatprep.mubr.f32.mxu0 0.0
    %4592 = vmatmul.mubr.f32.gmra.mrb[0].mxu0 %v4128
    %v4593 = vpop.f32.mrb[0].mxu0
    %v4594 = vadd.f32 0.0, %v4593
    %v4595 = vpop.f32.mrb[0].mxu0
    %v4596 = vadd.f32 0.0, %v4595
    %4597 = vdwg.mxu0
    %v4598 = vadd.f32 %v4452, %v4523
    %v4599 = vadd.f32 %v4453, %v4525
    %v4600 = vadd.f32 %v4454, %v4594
    %v4601 = vadd.f32 %v4455, %v4596
    %v4602 = vmul.f32 %v4598, 0.5
    %v4603 = vtanh.pop %v4602
    %v4604 = vmul.f32 %v4603, 0.5
    %v4605 = vadd.f32 %v4604, 0.5
    %v4606 = vmul.f32 %v4599, 0.5
    %v4607 = vtanh.pop %v4606
    %v4608 = vmul.f32 %v4607, 0.5
    %v4609 = vadd.f32 %v4608, 0.5
    %v4610 = vtanh.pop %v4600
    %v4611 = vmul.f32 %v4601, 0.5
    %v4612 = vtanh.pop %v4611
    %v4613 = vmul.f32 %v4612, 0.5
    %v4614 = vadd.f32 %v4613, 0.5
    %v4615 = vmul.f32 %v4609, %v4129
    %v4616 = vmul.f32 %v4605, %v4610
    %v4617 = vadd.f32 %v4615, %v4616
    %v4618 = vtanh.pop %v4617
    %v4619 = vmul.f32 %v4614, %v4618
    %v4620 = vstv %s4137
    %vm4621 = vcmp.lt.s32.totalorder %v4620, %v422
    %v4622 = vsel %vm4621, 1, 0
    %4623 = vset.pattern.permute.xlu0 0
    %4624 = vperm.xlu0 %4623, %v4622
    %v4625 = vpop.permute.xlu0 %4624
    %vm4626 = vcmp.eq.s32.totalorder %v4625, 1
    %v4627 = vsel %vm4626, %v4619, %v4128
    %v4628 = vsel %vm4626, %v4617, %v4129
    %v4629 = vsel %vm4448, 1, 0
    %4630 = vset.pattern.permute.xlu0 0
    %4631 = vperm.xlu0 %4630, %v4629
    %v4632 = vpop.permute.xlu0 %4631
    %vm4633 = vcmp.eq.s32.totalorder %v4632, 1
    %v4634 = vsel %vm4633, %v4443, %v4135
    %v4635 = vsel %vm4633, %v4441, %v4136
    %4636 = vst [vmem:[#allocation3] sm:$0xff] %v4627
    %4637 = vst [vmem:[#allocation4] sm:$0xff] %v4628
    %4638 = vst [vmem:[#allocation5] sm:$0xff] %v4634
    %4639 = vst [vmem:[#allocation6] sm:$0xff] %v4635
    %4640 = vst [vmem:[#allocation15] sm:$0xff] %v4628
    %4641 = vst [vmem:[#allocation15 + $0x8] sm:$0xff] %v4635
    // Predicated region
    $region54: #{tpu_custom_call.1} parent=1 // pred_check
      %p4642 = pneg %p414
    $region55: #{tpu_custom_call.1} parent=1 // pred_check_branch
      %4644 = sbr.rel (%p4642) target = $region57
    $region56: #{tpu_custom_call.1} parent=1 // pred_region
      %4645 = vmatprep.subr.mxu0 %v552
      %4646 = vmatpush1.msra.mxu0 %v551
      %4647 = vmatprep.subr.mxu0 %v556
      %4648 = vmatpush1.msra.mxu0 %v555
      %4649 = vmatprep.subr.mxu0 %v560
      %4650 = vmatpush1.msra.mxu0 %v559
      %4651 = vmatprep.subr.mxu0 %v564
      %4652 = vmatpush1.msra.mxu0 %v563
      %4653 = vmatprep.subr.mxu0 %v568
      %4654 = vmatpush1.msra.mxu0 %v567
      %4655 = vmatprep.subr.mxu0 %v572
      %4656 = vmatpush1.msra.mxu0 %v571
      %4657 = vmatprep.subr.mxu0 %v576
      %4658 = vmatpush1.msra.mxu0 %v575
      %4659 = vmatprep.subr.mxu0 %v580
      %4660 = vmatpush1.msra.mxu0 %v579
      %4661 = vmatprep.subr.mxu0 %v584
      %4662 = vmatpush1.msra.mxu0 %v583
      %4663 = vmatprep.subr.mxu0 %v588
      %4664 = vmatpush1.msra.mxu0 %v587
      %4665 = vmatprep.subr.mxu0 %v592
      %4666 = vmatpush1.msra.mxu0 %v591
      %4667 = vmatprep.subr.mxu0 %v596
      %4668 = vmatpush1.msra.mxu0 %v595
      %4669 = vmatprep.subr.mxu0 %v600
      %4670 = vmatpush1.msra.mxu0 %v599
      %4671 = vmatprep.subr.mxu0 %v604
      %4672 = vmatpush1.msra.mxu0 %v603
      %4673 = vmatprep.subr.mxu0 %v608
      %4674 = vmatpush1.msra.mxu0 %v607
      %4675 = vmatprep.subr.mxu0 %v612
      %4676 = vmatpush1.msra.mxu0 %v611
      %4677 = vmatprep.subr.mxu0 0.0
      %4678 = vmatpush1.msra.mxu0 0.0
      %4679 = vmatprep.subr.mxu0 0.0
      %4680 = vmatpush1.msra.mxu0 0.0
      %4681 = vmatprep.subr.mxu0 0.0
      %4682 = vmatpush1.msra.mxu0 0.0
      %4683 = vmatprep.subr.mxu0 0.0
      %4684 = vmatpush1.msra.mxu0 0.0
      %4685 = vmatprep.subr.mxu0 0.0
      %4686 = vmatpush1.msra.mxu0 0.0
      %4687 = vmatprep.subr.mxu0 0.0
      %4688 = vmatpush1.msra.mxu0 0.0
      %4689 = vmatprep.subr.mxu0 0.0
      %4690 = vmatpush1.msra.mxu0 0.0
      %4691 = vmatprep.subr.mxu0 0.0
      %4692 = vmatpush1.msra.mxu0 0.0
      %4693 = vmatprep.subr.mxu0 0.0
      %4694 = vmatpush1.msra.mxu0 0.0
      %4695 = vmatprep.subr.mxu0 0.0
      %4696 = vmatpush1.msra.mxu0 0.0
      %4697 = vmatprep.subr.mxu0 0.0
      %4698 = vmatpush1.msra.mxu0 0.0
      %4699 = vmatprep.subr.mxu0 0.0
      %4700 = vmatpush1.msra.mxu0 0.0
      %4701 = vmatprep.subr.mxu0 0.0
      %4702 = vmatpush1.msra.mxu0 0.0
      %4703 = vmatprep.subr.mxu0 0.0
      %4704 = vmatpush1.msra.mxu0 0.0
      %4705 = vmatprep.subr.mxu0 0.0
      %4706 = vmatpush1.msra.mxu0 0.0
      %4707 = vmatprep.subr.mxu0 0.0
      %4708 = vmatpush1.msra.mxu0 0.0
      %4709 = vmatprep.mubr.f32.mxu0 0.0
      %4710 = vmatmul.mubr.f32.gmra.mrb[0].mxu0 %v4634
      %v4711 = vpop.f32.mrb[0].mxu0
      %v4712 = vadd.f32 0.0, %v4711
      %v4713 = vpop.f32.mrb[0].mxu0
      %v4714 = vadd.f32 0.0, %v4713
      %4715 = vdwg.mxu0
      %4716 = vmatprep.subr.mxu0 %v554
      %4717 = vmatpush1.msra.mxu0 %v553
      %4718 = vmatprep.subr.mxu0 %v558
      %4719 = vmatpush1.msra.mxu0 %v557
      %4720 = vmatprep.subr.mxu0 %v562
      %4721 = vmatpush1.msra.mxu0 %v561
      %4722 = vmatprep.subr.mxu0 %v566
      %4723 = vmatpush1.msra.mxu0 %v565
      %4724 = vmatprep.subr.mxu0 %v570
      %4725 = vmatpush1.msra.mxu0 %v569
      %4726 = vmatprep.subr.mxu0 %v574
      %4727 = vmatpush1.msra.mxu0 %v573
      %4728 = vmatprep.subr.mxu0 %v578
      %4729 = vmatpush1.msra.mxu0 %v577
      %4730 = vmatprep.subr.mxu0 %v582
      %4731 = vmatpush1.msra.mxu0 %v581
      %4732 = vmatprep.subr.mxu0 %v586
      %4733 = vmatpush1.msra.mxu0 %v585
      %4734 = vmatprep.subr.mxu0 %v590
      %4735 = vmatpush1.msra.mxu0 %v589
      %4736 = vmatprep.subr.mxu0 %v594
      %4737 = vmatpush1.msra.mxu0 %v593
      %4738 = vmatprep.subr.mxu0 %v598
      %4739 = vmatpush1.msra.mxu0 %v597
      %4740 = vmatprep.subr.mxu0 %v602
      %4741 = vmatpush1.msra.mxu0 %v601
      %4742 = vmatprep.subr.mxu0 %v606
      %4743 = vmatpush1.msra.mxu0 %v605
      %4744 = vmatprep.subr.mxu0 %v610
      %4745 = vmatpush1.msra.mxu0 %v609
      %4746 = vmatprep.subr.mxu0 %v614
      %4747 = vmatpush1.msra.mxu0 %v613
      %4748 = vmatprep.subr.mxu0 0.0
      %4749 = vmatpush1.msra.mxu0 0.0
      %4750 = vmatprep.subr.mxu0 0.0
      %4751 = vmatpush1.msra.mxu0 0.0
      %4752 = vmatprep.subr.mxu0 0.0
      %4753 = vmatpush1.msra.mxu0 0.0
      %4754 = vmatprep.subr.mxu0 0.0
      %4755 = vmatpush1.msra.mxu0 0.0
      %4756 = vmatprep.subr.mxu0 0.0
      %4757 = vmatpush1.msra.mxu0 0.0
      %4758 = vmatprep.subr.mxu0 0.0
      %4759 = vmatpush1.msra.mxu0 0.0
      %4760 = vmatprep.subr.mxu0 0.0
      %4761 = vmatpush1.msra.mxu0 0.0
      %4762 = vmatprep.subr.mxu0 0.0
      %4763 = vmatpush1.msra.mxu0 0.0
      %4764 = vmatprep.subr.mxu0 0.0
      %4765 = vmatpush1.msra.mxu0 0.0
      %4766 = vmatprep.subr.mxu0 0.0
      %4767 = vmatpush1.msra.mxu0 0.0
      %4768 = vmatprep.subr.mxu0 0.0
      %4769 = vmatpush1.msra.mxu0 0.0
      %4770 = vmatprep.subr.mxu0 0.0
      %4771 = vmatpush1.msra.mxu0 0.0
      %4772 = vmatprep.subr.mxu0 0.0
      %4773 = vmatpush1.msra.mxu0 0.0
      %4774 = vmatprep.subr.mxu0 0.0
      %4775 = vmatpush1.msra.mxu0 0.0
      %4776 = vmatprep.subr.mxu0 0.0
      %4777 = vmatpush1.msra.mxu0 0.0
      %4778 = vmatprep.subr.mxu0 0.0
      %4779 = vmatpush1.msra.mxu0 0.0
      %4780 = vmatprep.mubr.f32.mxu0 0.0
      %4781 = vmatmul.mubr.f32.gmra.mrb[0].mxu0 %v4634
      %v4782 = vpop.f32.mrb[0].mxu0
      %v4783 = vadd.f32 0.0, %v4782
      %v4784 = vpop.f32.mrb[0].mxu0
      %4785 = vdwg.mxu0
      %4786 = vmatprep.subr.mxu0 %v488
      %4787 = vmatpush1.msra.mxu0 %v487
      %4788 = vmatprep.subr.mxu0 %v492
      %4789 = vmatpush1.msra.mxu0 %v491
      %4790 = vmatprep.subr.mxu0 %v496
      %4791 = vmatpush1.msra.mxu0 %v495
      %4792 = vmatprep.subr.mxu0 %v500
      %4793 = vmatpush1.msra.mxu0 %v499
      %4794 = vmatprep.subr.mxu0 %v504
      %4795 = vmatpush1.msra.mxu0 %v503
      %4796 = vmatprep.subr.mxu0 %v508
      %4797 = vmatpush1.msra.mxu0 %v507
      %4798 = vmatprep.subr.mxu0 %v512
      %4799 = vmatpush1.msra.mxu0 %v511
      %4800 = vmatprep.subr.mxu0 %v516
      %4801 = vmatpush1.msra.mxu0 %v515
      %4802 = vmatprep.subr.mxu0 %v520
      %4803 = vmatpush1.msra.mxu0 %v519
      %4804 = vmatprep.subr.mxu0 %v524
      %4805 = vmatpush1.msra.mxu0 %v523
      %4806 = vmatprep.subr.mxu0 %v528
      %4807 = vmatpush1.msra.mxu0 %v527
      %4808 = vmatprep.subr.mxu0 %v532
      %4809 = vmatpush1.msra.mxu0 %v531
      %4810 = vmatprep.subr.mxu0 %v536
      %4811 = vmatpush1.msra.mxu0 %v535
      %4812 = vmatprep.subr.mxu0 %v540
      %4813 = vmatpush1.msra.mxu0 %v539
      %4814 = vmatprep.subr.mxu0 %v544
      %4815 = vmatpush1.msra.mxu0 %v543
      %4816 = vmatprep.subr.mxu0 %v548
      %4817 = vmatpush1.msra.mxu0 %v547
      %4818 = vmatprep.subr.mxu0 0.0
      %4819 = vmatpush1.msra.mxu0 0.0
      %4820 = vmatprep.subr.mxu0 0.0
      %4821 = vmatpush1.msra.mxu0 0.0
      %4822 = vmatprep.subr.mxu0 0.0
      %4823 = vmatpush1.msra.mxu0 0.0
      %4824 = vmatprep.subr.mxu0 0.0
      %4825 = vmatpush1.msra.mxu0 0.0
      %4826 = vmatprep.subr.mxu0 0.0
      %4827 = vmatpush1.msra.mxu0 0.0
      %4828 = vmatprep.subr.mxu0 0.0
      %4829 = vmatpush1.msra.mxu0 0.0
      %4830 = vmatprep.subr.mxu0 0.0
      %4831 = vmatpush1.msra.mxu0 0.0
      %4832 = vmatprep.subr.mxu0 0.0
      %4833 = vmatpush1.msra.mxu0 0.0
      %4834 = vmatprep.subr.mxu0 0.0
      %4835 = vmatpush1.msra.mxu0 0.0
      %4836 = vmatprep.subr.mxu0 0.0
      %4837 = vmatpush1.msra.mxu0 0.0
      %4838 = vmatprep.subr.mxu0 0.0
      %4839 = vmatpush1.msra.mxu0 0.0
      %4840 = vmatprep.subr.mxu0 0.0
      %4841 = vmatpush1.msra.mxu0 0.0
      %4842 = vmatprep.subr.mxu0 0.0
      %4843 = vmatpush1.msra.mxu0 0.0
      %4844 = vmatprep.subr.mxu0 0.0
      %4845 = vmatpush1.msra.mxu0 0.0
      %4846 = vmatprep.subr.mxu0 0.0
      %4847 = vmatpush1.msra.mxu0 0.0
      %4848 = vmatprep.subr.mxu0 0.0
      %4849 = vmatpush1.msra.mxu0 0.0
      %4850 = vmatprep.mubr.f32.mxu0 0.0
      %4851 = vmatmul.mubr.f32.gmra.mrb[0].mxu0 %v4627
      %v4852 = vpop.f32.mrb[0].mxu0
      %v4853 = vadd.f32 %v4712, %v4852
      %v4854 = vpop.f32.mrb[0].mxu0
      %v4855 = vadd.f32 %v4714, %v4854
      %4856 = vdwg.mxu0
      %4857 = vmatprep.subr.mxu0 %v490
      %4858 = vmatpush1.msra.mxu0 %v489
      %4859 = vmatprep.subr.mxu0 %v494
      %4860 = vmatpush1.msra.mxu0 %v493
      %4861 = vmatprep.subr.mxu0 %v498
      %4862 = vmatpush1.msra.mxu0 %v497
      %4863 = vmatprep.subr.mxu0 %v502
      %4864 = vmatpush1.msra.mxu0 %v501
      %4865 = vmatprep.subr.mxu0 %v506
      %4866 = vmatpush1.msra.mxu0 %v505
      %4867 = vmatprep.subr.mxu0 %v510
      %4868 = vmatpush1.msra.mxu0 %v509
      %4869 = vmatprep.subr.mxu0 %v514
      %4870 = vmatpush1.msra.mxu0 %v513
      %4871 = vmatprep.subr.mxu0 %v518
      %4872 = vmatpush1.msra.mxu0 %v517
      %4873 = vmatprep.subr.mxu0 %v522
      %4874 = vmatpush1.msra.mxu0 %v521
      %4875 = vmatprep.subr.mxu0 %v526
      %4876 = vmatpush1.msra.mxu0 %v525
      %4877 = vmatprep.subr.mxu0 %v530
      %4878 = vmatpush1.msra.mxu0 %v529
      %4879 = vmatprep.subr.mxu0 %v534
      %4880 = vmatpush1.msra.mxu0 %v533
      %4881 = vmatprep.subr.mxu0 %v538
      %4882 = vmatpush1.msra.mxu0 %v537
      %4883 = vmatprep.subr.mxu0 %v542
      %4884 = vmatpush1.msra.mxu0 %v541
      %4885 = vmatprep.subr.mxu0 %v546
      %4886 = vmatpush1.msra.mxu0 %v545
      %4887 = vmatprep.subr.mxu0 %v550
      %4888 = vmatpush1.msra.mxu0 %v549
      %4889 = vmatprep.subr.mxu0 0.0
      %4890 = vmatpush1.msra.mxu0 0.0
      %4891 = vmatprep.subr.mxu0 0.0
      %4892 = vmatpush1.msra.mxu0 0.0
      %4893 = vmatprep.subr.mxu0 0.0
      %4894 = vmatpush1.msra.mxu0 0.0
      %4895 = vmatprep.subr.mxu0 0.0
      %4896 = vmatpush1.msra.mxu0 0.0
      %4897 = vmatprep.subr.mxu0 0.0
      %4898 = vmatpush1.msra.mxu0 0.0
      %4899 = vmatprep.subr.mxu0 0.0
      %4900 = vmatpush1.msra.mxu0 0.0
      %4901 = vmatprep.subr.mxu0 0.0
      %4902 = vmatpush1.msra.mxu0 0.0
      %4903 = vmatprep.subr.mxu0 0.0
      %4904 = vmatpush1.msra.mxu0 0.0
      %4905 = vmatprep.subr.mxu0 0.0
      %4906 = vmatpush1.msra.mxu0 0.0
      %4907 = vmatprep.subr.mxu0 0.0
      %4908 = vmatpush1.msra.mxu0 0.0
      %4909 = vmatprep.subr.mxu0 0.0
      %4910 = vmatpush1.msra.mxu0 0.0
      %4911 = vmatprep.subr.mxu0 0.0
      %4912 = vmatpush1.msra.mxu0 0.0
      %4913 = vmatprep.subr.mxu0 0.0
      %4914 = vmatpush1.msra.mxu0 0.0
      %4915 = vmatprep.subr.mxu0 0.0
      %4916 = vmatpush1.msra.mxu0 0.0
      %4917 = vmatprep.subr.mxu0 0.0
      %4918 = vmatpush1.msra.mxu0 0.0
      %4919 = vmatprep.subr.mxu0 0.0
      %4920 = vmatpush1.msra.mxu0 0.0
      %4921 = vmatprep.mubr.f32.mxu0 0.0
      %4922 = vmatmul.mubr.f32.gmra.mrb[0].mxu0 %v4627
      %v4923 = vpop.f32.mrb[0].mxu0
      %v4924 = vadd.f32 %v4783, %v4923
      %v4925 = vpop.f32.mrb[0].mxu0
      %4926 = vdwg.mxu0
      %v4927 = vadd.f32 %v4853, %v909
      %v4928 = vadd.f32 %v4855, %v913
      %v4929 = vadd.f32 %v4924, %v917
      %v4930 = vmul.f32 %v4927, 0.5
      %v4931 = vtanh.pop %v4930
      %v4932 = vmul.f32 %v4931, 0.5
      %v4933 = vadd.f32 %v4932, 0.5
      %v4934 = vmul.f32 %v4928, 0.5
      %v4935 = vtanh.pop %v4934
      %v4936 = vmul.f32 %v4935, 0.5
      %v4937 = vadd.f32 %v4936, 0.5
      %v4938 = vtanh.pop %v4929
      %v4939 = vmul.f32 %v4937, %v4635
      %v4940 = vmul.f32 %v4933, %v4938
      %v4941 = vadd.f32 %v4939, %v4940
      %vm4942 = vcmp.gt.s32.totalorder %v422, 7
      %v4943 = vsel %vm4942, 1, 0
      %4944 = vset.pattern.permute.xlu0 0
      %4945 = vperm.xlu0 %4944, %v4943
      %v4946 = vpop.permute.xlu0 %4945
      %vm4947 = vcmp.eq.s32.totalorder %v4946, 1
      %v4948 = vsel %vm4947, %v4941, %v4635
      %4949 = vst [vmem:[#allocation15 + $0x8] sm:$0xff] %v4948
    $region57: #{tpu_custom_call.1} parent=1 // pred_fallthru
      _
    // Predicated region
    $region58: #{tpu_custom_call.1} parent=1 // pred_check
      _
    $region59: #{tpu_custom_call.1} parent=1 // pred_check_branch
      %4951 = sbr.rel (0) target = $region61
    $region60: #{tpu_custom_call.1} parent=1 // pred_region
      %s4953 = ssub.s32 256, 256
      %4954 = vsyncadd [#allocation9], %s4953
      %s4956 = sshll.u32 [#allocation15], 4
      %s4957 = int_to_ptr.vmem [resolvable:$true] %s4956
      %4959 = dma.vmem_to_hbm [thread:$0]  %s4957, 256, %s8, [#allocation9]
    $region61: #{tpu_custom_call.1} parent=1 // pred_fallthru
      _
    // Predicated region
    $region62: #{tpu_custom_call.1} parent=1 // pred_check
      _
    $region63: #{tpu_custom_call.1} parent=1 // pred_check_branch
      %4961 = sbr.rel (0) target = $region65
    $region64: #{tpu_custom_call.1} parent=1 // pred_region
      %4962 = dma.done [#allocation9], 256
    $region65: #{tpu_custom_call.1} parent=1 // pred_fallthru
      _
    %4963 = vsyncpa [#allocation8], 1
    %4964 = vsyncpa [#allocation11], 1
    %4965 = vsyncpa [#allocation14], 1
    %4966 = vsyncpa [#allocation9], 1

</llo_original>
